<compile_context>
chip_gen: v5e
topology: v5e:2x2
jax: 0.10.0
libtpu: 0.0.40
codegen_flags: <defaults>
</compile_context>

<pallas_src>
import functools

import jax
import jax.numpy as jnp
from jax.experimental import pallas as pl
from jax.experimental.pallas import tpu as pltpu


def _round_up(x, m):
    return (x + m - 1) // m * m


def _pick_tile(dim, cap, aligns):
    """Largest tile <= cap dividing `dim`, preferring coarser alignment (MXU)."""
    if dim <= cap:
        return dim
    for align in aligns:
        t = (cap // align) * align
        while t >= align:
            if dim % t == 0:
                return t
            t -= align
    return dim  # full dim is always legal (M/N are padded upstream)


def _resident_spec(block_shape, index_map):
    """BlockSpec for an operand whose block index never changes.

    Single-buffering (pl.Buffered(1)) halves its resident VMEM and removes
    redundant DMA re-issue; fall back to default buffering on older jax.
    """
    try:
        return pl.BlockSpec(block_shape, index_map, pipeline_mode=pl.Buffered(1))
    except Exception:  # pragma: no cover - pipeline_mode unsupported
        return pl.BlockSpec(block_shape, index_map)


# ---------------------------------------------------------------------------
# Generic K-tiled matmul + bias kernel (P1 + P3), used for both the hoisted
# input-gate projection (Stage 1) and the hoisted fc_out projection (Stage 3).
# ---------------------------------------------------------------------------
def _matmul_bias_kernel(x_ref, w_ref, b_ref, o_ref, acc_ref):
    @pl.when(pl.program_id(2) == 0)
    def _():
        acc_ref[...] = jnp.zeros_like(acc_ref)

    acc_ref[...] += jnp.dot(x_ref[...], w_ref[...],
                            preferred_element_type=jnp.float32)

    @pl.when(pl.program_id(2) == pl.num_programs(2) - 1)
    def _():
        o_ref[...] = (acc_ref[...] + b_ref[...]).astype(o_ref.dtype)


def _matmul_bias(x, w, b, *, out_dtype=jnp.float32,
                 tm_cap=256, tn_cap=1024, tk_cap=512):
    """out = x @ w + b.  M padded to 8, N padded to 128 (sliced back); K is
    tiled (3rd 'arbitrary' axis + fp32 accumulator) when 128-aligned so the
    weight tile VMEM does not scale with K.  Caps chosen to fit the v7x
    scoped-VMEM default; raise them on v5e/v6e (128 MiB) if desired."""
    M, K = x.shape
    K2, N = w.shape
    assert K == K2 and b.shape == (1, N)

    Mp, Np = _round_up(M, 8), _round_up(N, 128)
    if Mp != M:
        x = jnp.pad(x, ((0, Mp - M), (0, 0)))
    if Np != N:
        w = jnp.pad(w, ((0, 0), (0, Np - N)))
        b = jnp.pad(b, ((0, 0), (0, Np - N)))

    tm = _pick_tile(Mp, tm_cap, (256, 8))
    tn = _pick_tile(Np, tn_cap, (256, 128))   # prefer 256-multiples (2x256 MXU)
    tk = _pick_tile(K, tk_cap, (256, 128)) if K % 128 == 0 else K

    out = pl.pallas_call(
        _matmul_bias_kernel,
        out_shape=jax.ShapeDtypeStruct((Mp, Np), out_dtype),
        grid_spec=pltpu.PrefetchScalarGridSpec(
            num_scalar_prefetch=0,
            grid=(Mp // tm, Np // tn, K // tk),
            in_specs=[
                pl.BlockSpec((tm, tk), lambda i, j, k: (i, k)),
                pl.BlockSpec((tk, tn), lambda i, j, k: (k, j)),
                pl.BlockSpec((1, tn), lambda i, j, k: (0, j)),
            ],
            out_specs=pl.BlockSpec((tm, tn), lambda i, j, k: (i, j)),
            scratch_shapes=[pltpu.VMEM((tm, tn), jnp.float32)],
        ),
        compiler_params=pltpu.CompilerParams(
            dimension_semantics=("parallel", "parallel", "arbitrary"),
        ),
    )(x, w, b)
    if (Mp, Np) != (M, N):
        out = out[:M, :N]
    return out


# ---------------------------------------------------------------------------
# Serial LSTM recurrence kernel.  grid = (batch_blocks, time_chunks):
#   * batch-block axis is "parallel" (v7x megacore), time axis is "arbitrary".
#   * h/c persist in fp32 VMEM scratch across time chunks (re-init per block).
#   * Tb timesteps are statically unrolled; all ref indices are static, and
#     hidden states are stored batch-major directly into the output block.
# ---------------------------------------------------------------------------
def _lstm_recurrence_kernel(gx_ref, whh_ref, h_seq_ref, h_ref, c_ref, *,
                            hidden_size, time_chunk):
    chunk = pl.program_id(1)

    @pl.when(chunk == 0)
    def _():
        h_ref[...] = jnp.zeros_like(h_ref)
        c_ref[...] = jnp.zeros_like(c_ref)

    H = hidden_size                      # lane-padded -> gate slices aligned
    whh = whh_ref[...]                   # (Hp, 4Hp), loaded once per chunk

    for tt in range(time_chunk):         # static unroll (LLO-visible)
        h = h_ref[...]                   # (Bb, Hp) fp32 state
        c = c_ref[...]                   # (Bb, Hp) fp32 state
        # x-path gates were precomputed in Stage 1; only the recurrent
        # h @ W_hh^T matmul remains on the serial critical path.
        gates = gx_ref[:, tt, :].astype(jnp.float32) + jnp.dot(
            h.astype(whh.dtype), whh, preferred_element_type=jnp.float32)
        i_g = jax.nn.sigmoid(gates[:, 0 * H:1 * H])
        f_g = jax.nn.sigmoid(gates[:, 1 * H:2 * H])
        g_g = jnp.tanh(gates[:, 2 * H:3 * H])
        o_g = jax.nn.sigmoid(gates[:, 3 * H:4 * H])
        c_new = f_g * c + i_g * g_g
        h_new = o_g * jnp.tanh(c_new)
        c_ref[...] = c_new
        h_ref[...] = h_new
        h_seq_ref[:, tt, :] = h_new.astype(h_seq_ref.dtype)   # batch-major


def _pick_time_chunk(T, cap):
    cap = max(1, min(T, cap))
    for tb in range(cap, 0, -1):
        if T % tb == 0 and (tb % 8 == 0 or tb == T):
            return tb
    return T


# ---------------------------------------------------------------------------
# Forward pass wrapper (matches DecoderRNN.forward semantics).
# ---------------------------------------------------------------------------
def decoder_rnn_forward(features, captions, params, *,
                        mxu_dtype=jnp.bfloat16, time_chunk=8, batch_blocks=1):
    """features: (B, E) f32;  captions: (B, T) i32  ->  logits (B, T, V) f32."""
    embed_w = params["embed"].astype(jnp.float32)   # (V, E)
    w_ih = params["w_ih"].astype(jnp.float32)       # (4H, E)
    w_hh = params["w_hh"].astype(jnp.float32)       # (4H, H)
    b_ih = params["b_ih"].astype(jnp.float32)       # (4H,)
    b_hh = params["b_hh"].astype(jnp.float32)       # (4H,)
    w_fc = params["w_fc"].astype(jnp.float32)       # (V, H)
    b_fc = params["b_fc"].astype(jnp.float32)       # (V,)

    B, E = features.shape
    T = captions.shape[1]
    H = w_hh.shape[1]
    V = w_fc.shape[0]

    # Pad H to a lane multiple so gate slices are free vreg selects.  Padded
    # lanes stay identically zero through the recurrence (zero weights/biases
    # give i=f=o=0.5, g=0 -> c_pad = 0, h_pad = 0), so results are exact.
    Hp = _round_up(H, 128)
    pad = Hp - H

    # Glue in plain JAX: embedding gather, batch-major (step 0 uses `features`,
    # exactly as the PyTorch loop does).  No large transposes anywhere.
    cap_emb = jnp.take(embed_w, captions, axis=0)                  # (B, T, E)
    x_seq = cap_emb.at[:, 0, :].set(features.astype(jnp.float32))  # (B, T, E)

    # Weight prep: pre-transposed, gate-blockwise padded, bf16 MXU operands.
    w_ih_g = jnp.pad(w_ih.reshape(4, H, E), ((0, 0), (0, pad), (0, 0)))
    w_ih_t = jnp.transpose(w_ih_g.reshape(4 * Hp, E)).astype(mxu_dtype)   # (E, 4Hp)
    gate_bias = jnp.pad((b_ih + b_hh).reshape(4, H), ((0, 0), (0, pad)))
    gate_bias = gate_bias.reshape(1, 4 * Hp).astype(jnp.float32)          # (1, 4Hp)
    w_hh_g = jnp.pad(w_hh.reshape(4, H, H), ((0, 0), (0, pad), (0, pad)))
    w_hh_t = jnp.transpose(w_hh_g.reshape(4 * Hp, Hp)).astype(mxu_dtype)  # (Hp, 4Hp)
    w_fc_t = jnp.pad(jnp.transpose(w_fc), ((0, pad), (0, 0))).astype(mxu_dtype)  # (Hp, V)
    b_fc2 = b_fc.reshape(1, V).astype(jnp.float32)                        # (1, V)

    # ---- Stage 1: x-path gate pre-activations for ALL timesteps (one GEMM).
    # Stored in mxu_dtype (bf16 default) to halve the HBM write + re-read.
    x_flat = x_seq.reshape(B * T, E).astype(mxu_dtype)
    gx = _matmul_bias(x_flat, w_ih_t, gate_bias,
                      out_dtype=mxu_dtype).reshape(B, T, 4 * Hp)

    # ---- Stage 2: serial recurrence (only h @ W_hh^T + gate math per step).
    assert B % batch_blocks == 0, "batch_blocks must divide the batch"
    Bb = B // batch_blocks
    Tb = _pick_time_chunk(T, time_chunk)
    n_chunks = T // Tb

    h_all = pl.pallas_call(
        functools.partial(_lstm_recurrence_kernel,
                          hidden_size=Hp, time_chunk=Tb),
        out_shape=jax.ShapeDtypeStruct((B, T, Hp), mxu_dtype),
        grid_spec=pltpu.PrefetchScalarGridSpec(
            num_scalar_prefetch=0,
            grid=(batch_blocks, n_chunks),
            in_specs=[
                pl.BlockSpec((Bb, Tb, 4 * Hp), lambda bb, s: (bb, s, 0)),
                _resident_spec((Hp, 4 * Hp), lambda bb, s: (0, 0)),  # W_hh^T
            ],
            out_specs=pl.BlockSpec((Bb, Tb, Hp), lambda bb, s: (bb, s, 0)),
            scratch_shapes=[
                pltpu.VMEM((Bb, Hp), jnp.float32),   # hidden state
                pltpu.VMEM((Bb, Hp), jnp.float32),   # cell state
            ],
        ),
        compiler_params=pltpu.CompilerParams(
            # batch blocks are independent (parallel -> v7x megacore);
            # time axis carries the true sequential dependence.
            dimension_semantics=("parallel", "arbitrary"),
        ),
    )(gx, w_hh_t)

    # ---- Stage 3: hoisted fc_out projection as one big GEMM.
    # h_all is already batch-major and contiguous; no transpose pass needed.
    h_flat = h_all.reshape(B * T, Hp)
    logits = _matmul_bias(h_flat, w_fc_t, b_fc2, out_dtype=jnp.float32)
    return logits.reshape(B, T, V)


# ---------------------------------------------------------------------------
# Pure-JAX reference mirroring the PyTorch module, for verification.
# ---------------------------------------------------------------------------
def _reference_forward(features, captions, params):
    embed_w = params["embed"]
    w_ih, w_hh = params["w_ih"], params["w_hh"]
    b_ih, b_hh = params["b_ih"], params["b_hh"]
    w_fc, b_fc = params["w_fc"], params["b_fc"]
    B = features.shape[0]
    T = captions.shape[1]
    H = w_hh.shape[1]

    cap_emb = embed_w[captions]                              # (B, T, E)
    h = jnp.zeros((B, H), jnp.float32)
    c = jnp.zeros((B, H), jnp.float32)
    outs = []
    for t in range(T):
        x = features if t == 0 else cap_emb[:, t, :]
        gates = x @ w_ih.T + b_ih + h @ w_hh.T + b_hh
        i_g = jax.nn.sigmoid(gates[:, 0 * H:1 * H])
        f_g = jax.nn.sigmoid(gates[:, 1 * H:2 * H])
        g_g = jnp.tanh(gates[:, 2 * H:3 * H])
        o_g = jax.nn.sigmoid(gates[:, 3 * H:4 * H])
        c = f_g * c + i_g * g_g
        h = o_g * jnp.tanh(c)
        outs.append(h @ w_fc.T + b_fc)
    return jnp.stack(outs, axis=1)                           # (B, T, V)


if __name__ == "__main__":
    # Small deterministic sizes consistent with the module:
    #   embed_size=32 (stand-in for 300), hidden_size=32, vocab_size=128.
    B, T, E, H, V = 8, 16, 32, 32, 128

    key = jax.random.PRNGKey(0)
    keys = jax.random.split(key, 9)

    params = {
        # TODO(synk): real module copies frozen weights from 'embeds300.txt';
        # synthetic init used here (no file I/O allowed).
        "embed": jax.random.normal(keys[0], (V, E), jnp.float32) * 0.1,
        "w_ih": jax.random.normal(keys[1], (4 * H, E), jnp.float32) * 0.1,
        "w_hh": jax.random.normal(keys[2], (4 * H, H), jnp.float32) * 0.1,
        "b_ih": jax.random.normal(keys[3], (4 * H,), jnp.float32) * 0.1,
        "b_hh": jax.random.normal(keys[4], (4 * H,), jnp.float32) * 0.1,
        "w_fc": jax.random.normal(keys[5], (V, H), jnp.float32) * 0.1,
        "b_fc": jax.random.normal(keys[6], (V,), jnp.float32) * 0.1,
    }

    features = jax.random.normal(keys[7], (B, E), jnp.float32)
    captions = jax.random.randint(keys[8], (B, T), 0, V, dtype=jnp.int32)

    ref = _reference_forward(features, captions, params)

    # fp32 MXU path, single batch block: tight correctness check.
    fwd_f32 = jax.jit(functools.partial(decoder_rnn_forward,
                                        mxu_dtype=jnp.float32, batch_blocks=1))
    out = jax.block_until_ready(fwd_f32(features, captions, params))
    assert out.shape == (B, T, V)
    assert jnp.allclose(out, ref, atol=1e-3, rtol=1e-3), "fp32 mismatch vs reference"

    # Default bf16 path (fp32 accumulation + fp32 state) with the batch-
    # parallel recurrence layout (v7x megacore); looser but tightened check.
    fwd_bf16 = jax.jit(functools.partial(decoder_rnn_forward, batch_blocks=2))
    out_bf16 = jax.block_until_ready(fwd_bf16(features, captions, params))
    assert out_bf16.shape == (B, T, V)
    assert float(jnp.max(jnp.abs(out_bf16 - ref))) < 0.05, "bf16 mismatch vs reference"

    print("KERNEL_OK")
</pallas_src>

<mosaic_0001>
module attributes {stable_mosaic.version = 11 : i64} {
  func.func @_matmul_bias_kernel(%arg0: i32, %arg1: i32, %arg2: i32, %arg3: memref<128x32xf32, #tpu.memory_space<vmem>>, %arg4: memref<32x512xf32, #tpu.memory_space<vmem>>, %arg5: memref<1x512xf32, #tpu.memory_space<vmem>>, %arg6: memref<128x512xf32, #tpu.memory_space<vmem>>, %arg7: memref<128x512xf32, #tpu.memory_space<vmem>>) attributes {dimension_semantics = [#tpu.dimension_semantics<parallel>, #tpu.dimension_semantics<parallel>, #tpu.dimension_semantics<arbitrary>], iteration_bounds = array<i64: 1, 1, 1>, scalar_prefetch = 0 : i64, scratch_operands = 1 : i64, tpu.core_type = #tpu.core_type<tc>, window_params = [{transform_indices = @transform_0, window_bounds = array<i64: 128, 32>}, {transform_indices = @transform_1, window_bounds = array<i64: 32, 512>}, {transform_indices = @transform_2, window_bounds = array<i64: 1, 512>}, {transform_indices = @transform_3, window_bounds = array<i64: 128, 512>}]} {
    %c0_i32 = arith.constant 0 : i32
    %0 = arith.cmpi eq, %arg2, %c0_i32 : i32
    %1 = arith.extui %0 : i1 to i32
    %c0_i32_0 = arith.constant 0 : i32
    %2 = arith.cmpi ne, %1, %c0_i32_0 : i32
    scf.if %2 {
      %cst_10 = arith.constant 0.000000e+00 : f32
      %12 = vector.broadcast %cst_10 : f32 to vector<128x512xf32>
      %c0_11 = arith.constant 0 : index
      %c0_12 = arith.constant 0 : index
      %13 = vector.load %arg7[%c0_11, %c0_12] : memref<128x512xf32, #tpu.memory_space<vmem>>, vector<128x512xf32>
      tpu.vector_store %arg7[%c0_11, %c0_12], %12 {strides = array<i32>} : memref<128x512xf32, #tpu.memory_space<vmem>>, vector<128x512xf32>,
    } else {
    }
    %c0 = arith.constant 0 : index
    %c0_1 = arith.constant 0 : index
    %3 = vector.load %arg7[%c0, %c0_1] : memref<128x512xf32, #tpu.memory_space<vmem>>, vector<128x512xf32>
    %c0_2 = arith.constant 0 : index
    %c0_3 = arith.constant 0 : index
    %4 = vector.load %arg3[%c0_2, %c0_3] : memref<128x32xf32, #tpu.memory_space<vmem>>, vector<128x32xf32>
    %c0_4 = arith.constant 0 : index
    %c0_5 = arith.constant 0 : index
    %5 = vector.load %arg4[%c0_4, %c0_5] : memref<32x512xf32, #tpu.memory_space<vmem>>, vector<32x512xf32>
    %cst = arith.constant dense<0.000000e+00> : vector<128x512xf32>
    %6 = tpu.matmul %4, %5, %cst {dimension_numbers = #tpu.dot_dimension_numbers<[1], [0], [0], [1], [0, 0, 1, 1], [], []>} : vector<128x32xf32>, vector<32x512xf32>, vector<128x512xf32> -> vector<128x512xf32>
    %7 = arith.addf %3, %6 : vector<128x512xf32>
    %c0_6 = arith.constant 0 : index
    %c0_7 = arith.constant 0 : index
    %8 = vector.load %arg7[%c0_6, %c0_7] : memref<128x512xf32, #tpu.memory_space<vmem>>, vector<128x512xf32>
    tpu.vector_store %arg7[%c0_6, %c0_7], %7 {strides = array<i32>} : memref<128x512xf32, #tpu.memory_space<vmem>>, vector<128x512xf32>,
    %c0_i32_8 = arith.constant 0 : i32
    %9 = arith.cmpi eq, %arg2, %c0_i32_8 : i32
    %10 = arith.extui %9 : i1 to i32
    %c0_i32_9 = arith.constant 0 : i32
    %11 = arith.cmpi ne, %10, %c0_i32_9 : i32
    scf.if %11 {
      %c0_10 = arith.constant 0 : index
      %c0_11 = arith.constant 0 : index
      %12 = vector.load %arg7[%c0_10, %c0_11] : memref<128x512xf32, #tpu.memory_space<vmem>>, vector<128x512xf32>
      %c0_12 = arith.constant 0 : index
      %c0_13 = arith.constant 0 : index
      %13 = vector.load %arg5[%c0_12, %c0_13] : memref<1x512xf32, #tpu.memory_space<vmem>>, vector<1x512xf32>
      %14 = vector.broadcast %13 : vector<1x512xf32> to vector<128x512xf32>
      %15 = arith.addf %12, %14 : vector<128x512xf32>
      %c0_14 = arith.constant 0 : index
      %c0_15 = arith.constant 0 : index
      %16 = vector.load %arg6[%c0_14, %c0_15] : memref<128x512xf32, #tpu.memory_space<vmem>>, vector<128x512xf32>
      tpu.vector_store %arg6[%c0_14, %c0_15], %15 {strides = array<i32>} : memref<128x512xf32, #tpu.memory_space<vmem>>, vector<128x512xf32>,
    } else {
    }
    return
  }
  func.func @transform_0(%arg0: i32, %arg1: i32, %arg2: i32) -> (i32, i32) {
    %c0_i32 = arith.constant 0 : i32
    return %arg0, %arg2 : i32, i32
  }
  func.func @transform_1(%arg0: i32, %arg1: i32, %arg2: i32) -> (i32, i32) {
    %c0_i32 = arith.constant 0 : i32
    return %arg2, %arg1 : i32, i32
  }
  func.func @transform_2(%arg0: i32, %arg1: i32, %arg2: i32) -> (i32, i32) {
    %c0_i32 = arith.constant 0 : i32
    %c0_i32_0 = arith.constant 0 : i32
    return %c0_i32, %arg1 : i32, i32
  }
  func.func @transform_3(%arg0: i32, %arg1: i32, %arg2: i32) -> (i32, i32) {
    %c0_i32 = arith.constant 0 : i32
    return %arg0, %arg1 : i32, i32
  }
}

module attributes {stable_mosaic.version = 11 : i64} {
  func.func @_lstm_recurrence_kernel(%arg0: i32, %arg1: i32, %arg2: memref<8x8x512xf32, #tpu.memory_space<vmem>>, %arg3: memref<128x512xf32, #tpu.memory_space<vmem>>, %arg4: memref<8x8x128xf32, #tpu.memory_space<vmem>>, %arg5: memref<8x128xf32, #tpu.memory_space<vmem>>, %arg6: memref<8x128xf32, #tpu.memory_space<vmem>>) attributes {dimension_semantics = [#tpu.dimension_semantics<parallel>, #tpu.dimension_semantics<arbitrary>], iteration_bounds = array<i64: 1, 2>, scalar_prefetch = 0 : i64, scratch_operands = 2 : i64, tpu.core_type = #tpu.core_type<tc>, window_params = [{transform_indices = @transform_0, window_bounds = array<i64: 8, 8, 512>}, {pipeline_mode = #tpu.pipeline_mode<synchronous>, transform_indices = @transform_1, window_bounds = array<i64: 128, 512>}, {transform_indices = @transform_2, window_bounds = array<i64: 8, 8, 128>}]} {
    %c0_i32 = arith.constant 0 : i32
    %0 = arith.cmpi eq, %arg1, %c0_i32 : i32
    %1 = arith.extui %0 : i1 to i32
    %c0_i32_0 = arith.constant 0 : i32
    %2 = arith.cmpi ne, %1, %c0_i32_0 : i32
    scf.if %2 {
      %cst_138 = arith.constant 0.000000e+00 : f32
      %292 = vector.broadcast %cst_138 : f32 to vector<8x128xf32>
      %c0_139 = arith.constant 0 : index
      %c0_140 = arith.constant 0 : index
      %293 = vector.load %arg5[%c0_139, %c0_140] : memref<8x128xf32, #tpu.memory_space<vmem>>, vector<8x128xf32>
      tpu.vector_store %arg5[%c0_139, %c0_140], %292 {strides = array<i32>} : memref<8x128xf32, #tpu.memory_space<vmem>>, vector<8x128xf32>,
      %cst_141 = arith.constant 0.000000e+00 : f32
      %294 = vector.broadcast %cst_141 : f32 to vector<8x128xf32>
      %c0_142 = arith.constant 0 : index
      %c0_143 = arith.constant 0 : index
      %295 = vector.load %arg6[%c0_142, %c0_143] : memref<8x128xf32, #tpu.memory_space<vmem>>, vector<8x128xf32>
      tpu.vector_store %arg6[%c0_142, %c0_143], %294 {strides = array<i32>} : memref<8x128xf32, #tpu.memory_space<vmem>>, vector<8x128xf32>,
    } else {
    }
    %c0 = arith.constant 0 : index
    %c0_1 = arith.constant 0 : index
    %3 = vector.load %arg3[%c0, %c0_1] : memref<128x512xf32, #tpu.memory_space<vmem>>, vector<128x512xf32>
    %c0_2 = arith.constant 0 : index
    %c0_3 = arith.constant 0 : index
    %4 = vector.load %arg5[%c0_2, %c0_3] : memref<8x128xf32, #tpu.memory_space<vmem>>, vector<8x128xf32>
    %c0_4 = arith.constant 0 : index
    %c0_5 = arith.constant 0 : index
    %5 = vector.load %arg6[%c0_4, %c0_5] : memref<8x128xf32, #tpu.memory_space<vmem>>, vector<8x128xf32>
    %c0_6 = arith.constant 0 : index
    %c0_7 = arith.constant 0 : index
    %c0_8 = arith.constant 0 : index
    %6 = vector.load %arg2[%c0_6, %c0_7, %c0_8] : memref<8x8x512xf32, #tpu.memory_space<vmem>>, vector<8x1x512xf32>
    %7 = vector.shape_cast %6 : vector<8x1x512xf32> to vector<8x512xf32>
    %cst = arith.constant dense<0.000000e+00> : vector<8x512xf32>
    %8 = tpu.matmul %4, %3, %cst {dimension_numbers = #tpu.dot_dimension_numbers<[1], [0], [0], [1], [0, 0, 1, 1], [], []>} : vector<8x128xf32>, vector<128x512xf32>, vector<8x512xf32> -> vector<8x512xf32>
    %9 = arith.addf %7, %8 : vector<8x512xf32>
    %10 = vector.extract_strided_slice %9 {offsets = [0, 0], sizes = [8, 128], strides = [1, 1]} : vector<8x512xf32> to vector<8x128xf32>
    %11 = arith.negf %10 : vector<8x128xf32>
    %12 = math.exp %11 : vector<8x128xf32>
    %cst_9 = arith.constant 1.000000e+00 : f32
    %13 = vector.broadcast %cst_9 : f32 to vector<8x128xf32>
    %14 = arith.addf %13, %12 : vector<8x128xf32>
    %15 = arith.divf %13, %14 : vector<8x128xf32>
    %16 = vector.extract_strided_slice %9 {offsets = [0, 128], sizes = [8, 128], strides = [1, 1]} : vector<8x512xf32> to vector<8x128xf32>
    %17 = arith.negf %16 : vector<8x128xf32>
    %18 = math.exp %17 : vector<8x128xf32>
    %cst_10 = arith.constant 1.000000e+00 : f32
    %19 = vector.broadcast %cst_10 : f32 to vector<8x128xf32>
    %20 = arith.addf %19, %18 : vector<8x128xf32>
    %21 = arith.divf %19, %20 : vector<8x128xf32>
    %22 = vector.extract_strided_slice %9 {offsets = [0, 256], sizes = [8, 128], strides = [1, 1]} : vector<8x512xf32> to vector<8x128xf32>
    %23 = math.tanh %22 : vector<8x128xf32>
    %24 = vector.extract_strided_slice %9 {offsets = [0, 384], sizes = [8, 128], strides = [1, 1]} : vector<8x512xf32> to vector<8x128xf32>
    %25 = arith.negf %24 : vector<8x128xf32>
    %26 = math.exp %25 : vector<8x128xf32>
    %cst_11 = arith.constant 1.000000e+00 : f32
    %27 = vector.broadcast %cst_11 : f32 to vector<8x128xf32>
    %28 = arith.addf %27, %26 : vector<8x128xf32>
    %29 = arith.divf %27, %28 : vector<8x128xf32>
    %30 = arith.mulf %21, %5 : vector<8x128xf32>
    %31 = arith.mulf %15, %23 : vector<8x128xf32>
    %32 = arith.addf %30, %31 : vector<8x128xf32>
    %33 = math.tanh %32 : vector<8x128xf32>
    %34 = arith.mulf %29, %33 : vector<8x128xf32>
    %c0_12 = arith.constant 0 : index
    %c0_13 = arith.constant 0 : index
    %35 = vector.load %arg6[%c0_12, %c0_13] : memref<8x128xf32, #tpu.memory_space<vmem>>, vector<8x128xf32>
    tpu.vector_store %arg6[%c0_12, %c0_13], %32 {strides = array<i32>} : memref<8x128xf32, #tpu.memory_space<vmem>>, vector<8x128xf32>,
    %c0_14 = arith.constant 0 : index
    %c0_15 = arith.constant 0 : index
    %36 = vector.load %arg5[%c0_14, %c0_15] : memref<8x128xf32, #tpu.memory_space<vmem>>, vector<8x128xf32>
    tpu.vector_store %arg5[%c0_14, %c0_15], %34 {strides = array<i32>} : memref<8x128xf32, #tpu.memory_space<vmem>>, vector<8x128xf32>,
    %c0_16 = arith.constant 0 : index
    %c0_17 = arith.constant 0 : index
    %c0_18 = arith.constant 0 : index
    %37 = vector.load %arg4[%c0_16, %c0_17, %c0_18] : memref<8x8x128xf32, #tpu.memory_space<vmem>>, vector<8x1x128xf32>
    %38 = vector.shape_cast %37 : vector<8x1x128xf32> to vector<8x128xf32>
    %39 = vector.shape_cast %34 : vector<8x128xf32> to vector<8x1x128xf32>
    tpu.vector_store %arg4[%c0_16, %c0_17, %c0_18], %39 {strides = array<i32>} : memref<8x8x128xf32, #tpu.memory_space<vmem>>, vector<8x1x128xf32>,
    %c0_19 = arith.constant 0 : index
    %c0_20 = arith.constant 0 : index
    %40 = vector.load %arg5[%c0_19, %c0_20] : memref<8x128xf32, #tpu.memory_space<vmem>>, vector<8x128xf32>
    %c0_21 = arith.constant 0 : index
    %c0_22 = arith.constant 0 : index
    %41 = vector.load %arg6[%c0_21, %c0_22] : memref<8x128xf32, #tpu.memory_space<vmem>>, vector<8x128xf32>
    %c0_23 = arith.constant 0 : index
    %c1 = arith.constant 1 : index
    %c0_24 = arith.constant 0 : index
    %42 = vector.load %arg2[%c0_23, %c1, %c0_24] : memref<8x8x512xf32, #tpu.memory_space<vmem>>, vector<8x1x512xf32>
    %43 = vector.shape_cast %42 : vector<8x1x512xf32> to vector<8x512xf32>
    %cst_25 = arith.constant dense<0.000000e+00> : vector<8x512xf32>
    %44 = tpu.matmul %40, %3, %cst_25 {dimension_numbers = #tpu.dot_dimension_numbers<[1], [0], [0], [1], [0, 0, 1, 1], [], []>} : vector<8x128xf32>, vector<128x512xf32>, vector<8x512xf32> -> vector<8x512xf32>
    %45 = arith.addf %43, %44 : vector<8x512xf32>
    %46 = vector.extract_strided_slice %45 {offsets = [0, 0], sizes = [8, 128], strides = [1, 1]} : vector<8x512xf32> to vector<8x128xf32>
    %47 = arith.negf %46 : vector<8x128xf32>
    %48 = math.exp %47 : vector<8x128xf32>
    %cst_26 = arith.constant 1.000000e+00 : f32
    %49 = vector.broadcast %cst_26 : f32 to vector<8x128xf32>
    %50 = arith.addf %49, %48 : vector<8x128xf32>
    %51 = arith.divf %49, %50 : vector<8x128xf32>
    %52 = vector.extract_strided_slice %45 {offsets = [0, 128], sizes = [8, 128], strides = [1, 1]} : vector<8x512xf32> to vector<8x128xf32>
    %53 = arith.negf %52 : vector<8x128xf32>
    %54 = math.exp %53 : vector<8x128xf32>
    %cst_27 = arith.constant 1.000000e+00 : f32
    %55 = vector.broadcast %cst_27 : f32 to vector<8x128xf32>
    %56 = arith.addf %55, %54 : vector<8x128xf32>
    %57 = arith.divf %55, %56 : vector<8x128xf32>
    %58 = vector.extract_strided_slice %45 {offsets = [0, 256], sizes = [8, 128], strides = [1, 1]} : vector<8x512xf32> to vector<8x128xf32>
    %59 = math.tanh %58 : vector<8x128xf32>
    %60 = vector.extract_strided_slice %45 {offsets = [0, 384], sizes = [8, 128], strides = [1, 1]} : vector<8x512xf32> to vector<8x128xf32>
    %61 = arith.negf %60 : vector<8x128xf32>
    %62 = math.exp %61 : vector<8x128xf32>
    %cst_28 = arith.constant 1.000000e+00 : f32
    %63 = vector.broadcast %cst_28 : f32 to vector<8x128xf32>
    %64 = arith.addf %63, %62 : vector<8x128xf32>
    %65 = arith.divf %63, %64 : vector<8x128xf32>
    %66 = arith.mulf %57, %41 : vector<8x128xf32>
    %67 = arith.mulf %51, %59 : vector<8x128xf32>
    %68 = arith.addf %66, %67 : vector<8x128xf32>
    %69 = math.tanh %68 : vector<8x128xf32>
    %70 = arith.mulf %65, %69 : vector<8x128xf32>
    %c0_29 = arith.constant 0 : index
    %c0_30 = arith.constant 0 : index
    %71 = vector.load %arg6[%c0_29, %c0_30] : memref<8x128xf32, #tpu.memory_space<vmem>>, vector<8x128xf32>
    tpu.vector_store %arg6[%c0_29, %c0_30], %68 {strides = array<i32>} : memref<8x128xf32, #tpu.memory_space<vmem>>, vector<8x128xf32>,
    %c0_31 = arith.constant 0 : index
    %c0_32 = arith.constant 0 : index
    %72 = vector.load %arg5[%c0_31, %c0_32] : memref<8x128xf32, #tpu.memory_space<vmem>>, vector<8x128xf32>
    tpu.vector_store %arg5[%c0_31, %c0_32], %70 {strides = array<i32>} : memref<8x128xf32, #tpu.memory_space<vmem>>, vector<8x128xf32>,
    %c0_33 = arith.constant 0 : index
    %c1_34 = arith.constant 1 : index
    %c0_35 = arith.constant 0 : index
    %73 = vector.load %arg4[%c0_33, %c1_34, %c0_35] : memref<8x8x128xf32, #tpu.memory_space<vmem>>, vector<8x1x128xf32>
    %74 = vector.shape_cast %73 : vector<8x1x128xf32> to vector<8x128xf32>
    %75 = vector.shape_cast %70 : vector<8x128xf32> to vector<8x1x128xf32>
    tpu.vector_store %arg4[%c0_33, %c1_34, %c0_35], %75 {strides = array<i32>} : memref<8x8x128xf32, #tpu.memory_space<vmem>>, vector<8x1x128xf32>,
    %c0_36 = arith.constant 0 : index
    %c0_37 = arith.constant 0 : index
    %76 = vector.load %arg5[%c0_36, %c0_37] : memref<8x128xf32, #tpu.memory_space<vmem>>, vector<8x128xf32>
    %c0_38 = arith.constant 0 : index
    %c0_39 = arith.constant 0 : index
    %77 = vector.load %arg6[%c0_38, %c0_39] : memref<8x128xf32, #tpu.memory_space<vmem>>, vector<8x128xf32>
    %c0_40 = arith.constant 0 : index
    %c2 = arith.constant 2 : index
    %c0_41 = arith.constant 0 : index
    %78 = vector.load %arg2[%c0_40, %c2, %c0_41] : memref<8x8x512xf32, #tpu.memory_space<vmem>>, vector<8x1x512xf32>
    %79 = vector.shape_cast %78 : vector<8x1x512xf32> to vector<8x512xf32>
    %cst_42 = arith.constant dense<0.000000e+00> : vector<8x512xf32>
    %80 = tpu.matmul %76, %3, %cst_42 {dimension_numbers = #tpu.dot_dimension_numbers<[1], [0], [0], [1], [0, 0, 1, 1], [], []>} : vector<8x128xf32>, vector<128x512xf32>, vector<8x512xf32> -> vector<8x512xf32>
    %81 = arith.addf %79, %80 : vector<8x512xf32>
    %82 = vector.extract_strided_slice %81 {offsets = [0, 0], sizes = [8, 128], strides = [1, 1]} : vector<8x512xf32> to vector<8x128xf32>
    %83 = arith.negf %82 : vector<8x128xf32>
    %84 = math.exp %83 : vector<8x128xf32>
    %cst_43 = arith.constant 1.000000e+00 : f32
    %85 = vector.broadcast %cst_43 : f32 to vector<8x128xf32>
    %86 = arith.addf %85, %84 : vector<8x128xf32>
    %87 = arith.divf %85, %86 : vector<8x128xf32>
    %88 = vector.extract_strided_slice %81 {offsets = [0, 128], sizes = [8, 128], strides = [1, 1]} : vector<8x512xf32> to vector<8x128xf32>
    %89 = arith.negf %88 : vector<8x128xf32>
    %90 = math.exp %89 : vector<8x128xf32>
    %cst_44 = arith.constant 1.000000e+00 : f32
    %91 = vector.broadcast %cst_44 : f32 to vector<8x128xf32>
    %92 = arith.addf %91, %90 : vector<8x128xf32>
    %93 = arith.divf %91, %92 : vector<8x128xf32>
    %94 = vector.extract_strided_slice %81 {offsets = [0, 256], sizes = [8, 128], strides = [1, 1]} : vector<8x512xf32> to vector<8x128xf32>
    %95 = math.tanh %94 : vector<8x128xf32>
    %96 = vector.extract_strided_slice %81 {offsets = [0, 384], sizes = [8, 128], strides = [1, 1]} : vector<8x512xf32> to vector<8x128xf32>
    %97 = arith.negf %96 : vector<8x128xf32>
    %98 = math.exp %97 : vector<8x128xf32>
    %cst_45 = arith.constant 1.000000e+00 : f32
    %99 = vector.broadcast %cst_45 : f32 to vector<8x128xf32>
    %100 = arith.addf %99, %98 : vector<8x128xf32>
    %101 = arith.divf %99, %100 : vector<8x128xf32>
    %102 = arith.mulf %93, %77 : vector<8x128xf32>
    %103 = arith.mulf %87, %95 : vector<8x128xf32>
    %104 = arith.addf %102, %103 : vector<8x128xf32>
    %105 = math.tanh %104 : vector<8x128xf32>
    %106 = arith.mulf %101, %105 : vector<8x128xf32>
    %c0_46 = arith.constant 0 : index
    %c0_47 = arith.constant 0 : index
    %107 = vector.load %arg6[%c0_46, %c0_47] : memref<8x128xf32, #tpu.memory_space<vmem>>, vector<8x128xf32>
    tpu.vector_store %arg6[%c0_46, %c0_47], %104 {strides = array<i32>} : memref<8x128xf32, #tpu.memory_space<vmem>>, vector<8x128xf32>,
    %c0_48 = arith.constant 0 : index
    %c0_49 = arith.constant 0 : index
    %108 = vector.load %arg5[%c0_48, %c0_49] : memref<8x128xf32, #tpu.memory_space<vmem>>, vector<8x128xf32>
    tpu.vector_store %arg5[%c0_48, %c0_49], %106 {strides = array<i32>} : memref<8x128xf32, #tpu.memory_space<vmem>>, vector<8x128xf32>,
    %c0_50 = arith.constant 0 : index
    %c2_51 = arith.constant 2 : index
    %c0_52 = arith.constant 0 : index
    %109 = vector.load %arg4[%c0_50, %c2_51, %c0_52] : memref<8x8x128xf32, #tpu.memory_space<vmem>>, vector<8x1x128xf32>
    %110 = vector.shape_cast %109 : vector<8x1x128xf32> to vector<8x128xf32>
    %111 = vector.shape_cast %106 : vector<8x128xf32> to vector<8x1x128xf32>
    tpu.vector_store %arg4[%c0_50, %c2_51, %c0_52], %111 {strides = array<i32>} : memref<8x8x128xf32, #tpu.memory_space<vmem>>, vector<8x1x128xf32>,
    %c0_53 = arith.constant 0 : index
    %c0_54 = arith.constant 0 : index
    %112 = vector.load %arg5[%c0_53, %c0_54] : memref<8x128xf32, #tpu.memory_space<vmem>>, vector<8x128xf32>
    %c0_55 = arith.constant 0 : index
    %c0_56 = arith.constant 0 : index
    %113 = vector.load %arg6[%c0_55, %c0_56] : memref<8x128xf32, #tpu.memory_space<vmem>>, vector<8x128xf32>
    %c0_57 = arith.constant 0 : index
    %c3 = arith.constant 3 : index
    %c0_58 = arith.constant 0 : index
    %114 = vector.load %arg2[%c0_57, %c3, %c0_58] : memref<8x8x512xf32, #tpu.memory_space<vmem>>, vector<8x1x512xf32>
    %115 = vector.shape_cast %114 : vector<8x1x512xf32> to vector<8x512xf32>
    %cst_59 = arith.constant dense<0.000000e+00> : vector<8x512xf32>
    %116 = tpu.matmul %112, %3, %cst_59 {dimension_numbers = #tpu.dot_dimension_numbers<[1], [0], [0], [1], [0, 0, 1, 1], [], []>} : vector<8x128xf32>, vector<128x512xf32>, vector<8x512xf32> -> vector<8x512xf32>
    %117 = arith.addf %115, %116 : vector<8x512xf32>
    %118 = vector.extract_strided_slice %117 {offsets = [0, 0], sizes = [8, 128], strides = [1, 1]} : vector<8x512xf32> to vector<8x128xf32>
    %119 = arith.negf %118 : vector<8x128xf32>
    %120 = math.exp %119 : vector<8x128xf32>
    %cst_60 = arith.constant 1.000000e+00 : f32
    %121 = vector.broadcast %cst_60 : f32 to vector<8x128xf32>
    %122 = arith.addf %121, %120 : vector<8x128xf32>
    %123 = arith.divf %121, %122 : vector<8x128xf32>
    %124 = vector.extract_strided_slice %117 {offsets = [0, 128], sizes = [8, 128], strides = [1, 1]} : vector<8x512xf32> to vector<8x128xf32>
    %125 = arith.negf %124 : vector<8x128xf32>
    %126 = math.exp %125 : vector<8x128xf32>
    %cst_61 = arith.constant 1.000000e+00 : f32
    %127 = vector.broadcast %cst_61 : f32 to vector<8x128xf32>
    %128 = arith.addf %127, %126 : vector<8x128xf32>
    %129 = arith.divf %127, %128 : vector<8x128xf32>
    %130 = vector.extract_strided_slice %117 {offsets = [0, 256], sizes = [8, 128], strides = [1, 1]} : vector<8x512xf32> to vector<8x128xf32>
    %131 = math.tanh %130 : vector<8x128xf32>
    %132 = vector.extract_strided_slice %117 {offsets = [0, 384], sizes = [8, 128], strides = [1, 1]} : vector<8x512xf32> to vector<8x128xf32>
    %133 = arith.negf %132 : vector<8x128xf32>
    %134 = math.exp %133 : vector<8x128xf32>
    %cst_62 = arith.constant 1.000000e+00 : f32
    %135 = vector.broadcast %cst_62 : f32 to vector<8x128xf32>
    %136 = arith.addf %135, %134 : vector<8x128xf32>
    %137 = arith.divf %135, %136 : vector<8x128xf32>
    %138 = arith.mulf %129, %113 : vector<8x128xf32>
    %139 = arith.mulf %123, %131 : vector<8x128xf32>
    %140 = arith.addf %138, %139 : vector<8x128xf32>
    %141 = math.tanh %140 : vector<8x128xf32>
    %142 = arith.mulf %137, %141 : vector<8x128xf32>
    %c0_63 = arith.constant 0 : index
    %c0_64 = arith.constant 0 : index
    %143 = vector.load %arg6[%c0_63, %c0_64] : memref<8x128xf32, #tpu.memory_space<vmem>>, vector<8x128xf32>
    tpu.vector_store %arg6[%c0_63, %c0_64], %140 {strides = array<i32>} : memref<8x128xf32, #tpu.memory_space<vmem>>, vector<8x128xf32>,
    %c0_65 = arith.constant 0 : index
    %c0_66 = arith.constant 0 : index
    %144 = vector.load %arg5[%c0_65, %c0_66] : memref<8x128xf32, #tpu.memory_space<vmem>>, vector<8x128xf32>
    tpu.vector_store %arg5[%c0_65, %c0_66], %142 {strides = array<i32>} : memref<8x128xf32, #tpu.memory_space<vmem>>, vector<8x128xf32>,
    %c0_67 = arith.constant 0 : index
    %c3_68 = arith.constant 3 : index
    %c0_69 = arith.constant 0 : index
    %145 = vector.load %arg4[%c0_67, %c3_68, %c0_69] : memref<8x8x128xf32, #tpu.memory_space<vmem>>, vector<8x1x128xf32>
    %146 = vector.shape_cast %145 : vector<8x1x128xf32> to vector<8x128xf32>
    %147 = vector.shape_cast %142 : vector<8x128xf32> to vector<8x1x128xf32>
    tpu.vector_store %arg4[%c0_67, %c3_68, %c0_69], %147 {strides = array<i32>} : memref<8x8x128xf32, #tpu.memory_space<vmem>>, vector<8x1x128xf32>,
    %c0_70 = arith.constant 0 : index
    %c0_71 = arith.constant 0 : index
    %148 = vector.load %arg5[%c0_70, %c0_71] : memref<8x128xf32, #tpu.memory_space<vmem>>, vector<8x128xf32>
    %c0_72 = arith.constant 0 : index
    %c0_73 = arith.constant 0 : index
    %149 = vector.load %arg6[%c0_72, %c0_73] : memref<8x128xf32, #tpu.memory_space<vmem>>, vector<8x128xf32>
    %c0_74 = arith.constant 0 : index
    %c4 = arith.constant 4 : index
    %c0_75 = arith.constant 0 : index
    %150 = vector.load %arg2[%c0_74, %c4, %c0_75] : memref<8x8x512xf32, #tpu.memory_space<vmem>>, vector<8x1x512xf32>
    %151 = vector.shape_cast %150 : vector<8x1x512xf32> to vector<8x512xf32>
    %cst_76 = arith.constant dense<0.000000e+00> : vector<8x512xf32>
    %152 = tpu.matmul %148, %3, %cst_76 {dimension_numbers = #tpu.dot_dimension_numbers<[1], [0], [0], [1], [0, 0, 1, 1], [], []>} : vector<8x128xf32>, vector<128x512xf32>, vector<8x512xf32> -> vector<8x512xf32>
    %153 = arith.addf %151, %152 : vector<8x512xf32>
    %154 = vector.extract_strided_slice %153 {offsets = [0, 0], sizes = [8, 128], strides = [1, 1]} : vector<8x512xf32> to vector<8x128xf32>
    %155 = arith.negf %154 : vector<8x128xf32>
    %156 = math.exp %155 : vector<8x128xf32>
    %cst_77 = arith.constant 1.000000e+00 : f32
    %157 = vector.broadcast %cst_77 : f32 to vector<8x128xf32>
    %158 = arith.addf %157, %156 : vector<8x128xf32>
    %159 = arith.divf %157, %158 : vector<8x128xf32>
    %160 = vector.extract_strided_slice %153 {offsets = [0, 128], sizes = [8, 128], strides = [1, 1]} : vector<8x512xf32> to vector<8x128xf32>
    %161 = arith.negf %160 : vector<8x128xf32>
    %162 = math.exp %161 : vector<8x128xf32>
    %cst_78 = arith.constant 1.000000e+00 : f32
    %163 = vector.broadcast %cst_78 : f32 to vector<8x128xf32>
    %164 = arith.addf %163, %162 : vector<8x128xf32>
    %165 = arith.divf %163, %164 : vector<8x128xf32>
    %166 = vector.extract_strided_slice %153 {offsets = [0, 256], sizes = [8, 128], strides = [1, 1]} : vector<8x512xf32> to vector<8x128xf32>
    %167 = math.tanh %166 : vector<8x128xf32>
    %168 = vector.extract_strided_slice %153 {offsets = [0, 384], sizes = [8, 128], strides = [1, 1]} : vector<8x512xf32> to vector<8x128xf32>
    %169 = arith.negf %168 : vector<8x128xf32>
    %170 = math.exp %169 : vector<8x128xf32>
    %cst_79 = arith.constant 1.000000e+00 : f32
    %171 = vector.broadcast %cst_79 : f32 to vector<8x128xf32>
    %172 = arith.addf %171, %170 : vector<8x128xf32>
    %173 = arith.divf %171, %172 : vector<8x128xf32>
    %174 = arith.mulf %165, %149 : vector<8x128xf32>
    %175 = arith.mulf %159, %167 : vector<8x128xf32>
    %176 = arith.addf %174, %175 : vector<8x128xf32>
    %177 = math.tanh %176 : vector<8x128xf32>
    %178 = arith.mulf %173, %177 : vector<8x128xf32>
    %c0_80 = arith.constant 0 : index
    %c0_81 = arith.constant 0 : index
    %179 = vector.load %arg6[%c0_80, %c0_81] : memref<8x128xf32, #tpu.memory_space<vmem>>, vector<8x128xf32>
    tpu.vector_store %arg6[%c0_80, %c0_81], %176 {strides = array<i32>} : memref<8x128xf32, #tpu.memory_space<vmem>>, vector<8x128xf32>,
    %c0_82 = arith.constant 0 : index
    %c0_83 = arith.constant 0 : index
    %180 = vector.load %arg5[%c0_82, %c0_83] : memref<8x128xf32, #tpu.memory_space<vmem>>, vector<8x128xf32>
    tpu.vector_store %arg5[%c0_82, %c0_83], %178 {strides = array<i32>} : memref<8x128xf32, #tpu.memory_space<vmem>>, vector<8x128xf32>,
    %c0_84 = arith.constant 0 : index
    %c4_85 = arith.constant 4 : index
    %c0_86 = arith.constant 0 : index
    %181 = vector.load %arg4[%c0_84, %c4_85, %c0_86] : memref<8x8x128xf32, #tpu.memory_space<vmem>>, vector<8x1x128xf32>
    %182 = vector.shape_cast %181 : vector<8x1x128xf32> to vector<8x128xf32>
    %183 = vector.shape_cast %178 : vector<8x128xf32> to vector<8x1x128xf32>
    tpu.vector_store %arg4[%c0_84, %c4_85, %c0_86], %183 {strides = array<i32>} : memref<8x8x128xf32, #tpu.memory_space<vmem>>, vector<8x1x128xf32>,
    %c0_87 = arith.constant 0 : index
    %c0_88 = arith.constant 0 : index
    %184 = vector.load %arg5[%c0_87, %c0_88] : memref<8x128xf32, #tpu.memory_space<vmem>>, vector<8x128xf32>
    %c0_89 = arith.constant 0 : index
    %c0_90 = arith.constant 0 : index
    %185 = vector.load %arg6[%c0_89, %c0_90] : memref<8x128xf32, #tpu.memory_space<vmem>>, vector<8x128xf32>
    %c0_91 = arith.constant 0 : index
    %c5 = arith.constant 5 : index
    %c0_92 = arith.constant 0 : index
    %186 = vector.load %arg2[%c0_91, %c5, %c0_92] : memref<8x8x512xf32, #tpu.memory_space<vmem>>, vector<8x1x512xf32>
    %187 = vector.shape_cast %186 : vector<8x1x512xf32> to vector<8x512xf32>
    %cst_93 = arith.constant dense<0.000000e+00> : vector<8x512xf32>
    %188 = tpu.matmul %184, %3, %cst_93 {dimension_numbers = #tpu.dot_dimension_numbers<[1], [0], [0], [1], [0, 0, 1, 1], [], []>} : vector<8x128xf32>, vector<128x512xf32>, vector<8x512xf32> -> vector<8x512xf32>
    %189 = arith.addf %187, %188 : vector<8x512xf32>
    %190 = vector.extract_strided_slice %189 {offsets = [0, 0], sizes = [8, 128], strides = [1, 1]} : vector<8x512xf32> to vector<8x128xf32>
    %191 = arith.negf %190 : vector<8x128xf32>
    %192 = math.exp %191 : vector<8x128xf32>
    %cst_94 = arith.constant 1.000000e+00 : f32
    %193 = vector.broadcast %cst_94 : f32 to vector<8x128xf32>
    %194 = arith.addf %193, %192 : vector<8x128xf32>
    %195 = arith.divf %193, %194 : vector<8x128xf32>
    %196 = vector.extract_strided_slice %189 {offsets = [0, 128], sizes = [8, 128], strides = [1, 1]} : vector<8x512xf32> to vector<8x128xf32>
    %197 = arith.negf %196 : vector<8x128xf32>
    %198 = math.exp %197 : vector<8x128xf32>
    %cst_95 = arith.constant 1.000000e+00 : f32
    %199 = vector.broadcast %cst_95 : f32 to vector<8x128xf32>
    %200 = arith.addf %199, %198 : vector<8x128xf32>
    %201 = arith.divf %199, %200 : vector<8x128xf32>
    %202 = vector.extract_strided_slice %189 {offsets = [0, 256], sizes = [8, 128], strides = [1, 1]} : vector<8x512xf32> to vector<8x128xf32>
    %203 = math.tanh %202 : vector<8x128xf32>
    %204 = vector.extract_strided_slice %189 {offsets = [0, 384], sizes = [8, 128], strides = [1, 1]} : vector<8x512xf32> to vector<8x128xf32>
    %205 = arith.negf %204 : vector<8x128xf32>
    %206 = math.exp %205 : vector<8x128xf32>
    %cst_96 = arith.constant 1.000000e+00 : f32
    %207 = vector.broadcast %cst_96 : f32 to vector<8x128xf32>
    %208 = arith.addf %207, %206 : vector<8x128xf32>
    %209 = arith.divf %207, %208 : vector<8x128xf32>
    %210 = arith.mulf %201, %185 : vector<8x128xf32>
    %211 = arith.mulf %195, %203 : vector<8x128xf32>
    %212 = arith.addf %210, %211 : vector<8x128xf32>
    %213 = math.tanh %212 : vector<8x128xf32>
    %214 = arith.mulf %209, %213 : vector<8x128xf32>
    %c0_97 = arith.constant 0 : index
    %c0_98 = arith.constant 0 : index
    %215 = vector.load %arg6[%c0_97, %c0_98] : memref<8x128xf32, #tpu.memory_space<vmem>>, vector<8x128xf32>
    tpu.vector_store %arg6[%c0_97, %c0_98], %212 {strides = array<i32>} : memref<8x128xf32, #tpu.memory_space<vmem>>, vector<8x128xf32>,
    %c0_99 = arith.constant 0 : index
    %c0_100 = arith.constant 0 : index
    %216 = vector.load %arg5[%c0_99, %c0_100] : memref<8x128xf32, #tpu.memory_space<vmem>>, vector<8x128xf32>
    tpu.vector_store %arg5[%c0_99, %c0_100], %214 {strides = array<i32>} : memref<8x128xf32, #tpu.memory_space<vmem>>, vector<8x128xf32>,
    %c0_101 = arith.constant 0 : index
    %c5_102 = arith.constant 5 : index
    %c0_103 = arith.constant 0 : index
    %217 = vector.load %arg4[%c0_101, %c5_102, %c0_103] : memref<8x8x128xf32, #tpu.memory_space<vmem>>, vector<8x1x128xf32>
    %218 = vector.shape_cast %217 : vector<8x1x128xf32> to vector<8x128xf32>
    %219 = vector.shape_cast %214 : vector<8x128xf32> to vector<8x1x128xf32>
    tpu.vector_store %arg4[%c0_101, %c5_102, %c0_103], %219 {strides = array<i32>} : memref<8x8x128xf32, #tpu.memory_space<vmem>>, vector<8x1x128xf32>,
    %c0_104 = arith.constant 0 : index
    %c0_105 = arith.constant 0 : index
    %220 = vector.load %arg5[%c0_104, %c0_105] : memref<8x128xf32, #tpu.memory_space<vmem>>, vector<8x128xf32>
    %c0_106 = arith.constant 0 : index
    %c0_107 = arith.constant 0 : index
    %221 = vector.load %arg6[%c0_106, %c0_107] : memref<8x128xf32, #tpu.memory_space<vmem>>, vector<8x128xf32>
    %c0_108 = arith.constant 0 : index
    %c6 = arith.constant 6 : index
    %c0_109 = arith.constant 0 : index
    %222 = vector.load %arg2[%c0_108, %c6, %c0_109] : memref<8x8x512xf32, #tpu.memory_space<vmem>>, vector<8x1x512xf32>
    %223 = vector.shape_cast %222 : vector<8x1x512xf32> to vector<8x512xf32>
    %cst_110 = arith.constant dense<0.000000e+00> : vector<8x512xf32>
    %224 = tpu.matmul %220, %3, %cst_110 {dimension_numbers = #tpu.dot_dimension_numbers<[1], [0], [0], [1], [0, 0, 1, 1], [], []>} : vector<8x128xf32>, vector<128x512xf32>, vector<8x512xf32> -> vector<8x512xf32>
    %225 = arith.addf %223, %224 : vector<8x512xf32>
    %226 = vector.extract_strided_slice %225 {offsets = [0, 0], sizes = [8, 128], strides = [1, 1]} : vector<8x512xf32> to vector<8x128xf32>
    %227 = arith.negf %226 : vector<8x128xf32>
    %228 = math.exp %227 : vector<8x128xf32>
    %cst_111 = arith.constant 1.000000e+00 : f32
    %229 = vector.broadcast %cst_111 : f32 to vector<8x128xf32>
    %230 = arith.addf %229, %228 : vector<8x128xf32>
    %231 = arith.divf %229, %230 : vector<8x128xf32>
    %232 = vector.extract_strided_slice %225 {offsets = [0, 128], sizes = [8, 128], strides = [1, 1]} : vector<8x512xf32> to vector<8x128xf32>
    %233 = arith.negf %232 : vector<8x128xf32>
    %234 = math.exp %233 : vector<8x128xf32>
    %cst_112 = arith.constant 1.000000e+00 : f32
    %235 = vector.broadcast %cst_112 : f32 to vector<8x128xf32>
    %236 = arith.addf %235, %234 : vector<8x128xf32>
    %237 = arith.divf %235, %236 : vector<8x128xf32>
    %238 = vector.extract_strided_slice %225 {offsets = [0, 256], sizes = [8, 128], strides = [1, 1]} : vector<8x512xf32> to vector<8x128xf32>
    %239 = math.tanh %238 : vector<8x128xf32>
    %240 = vector.extract_strided_slice %225 {offsets = [0, 384], sizes = [8, 128], strides = [1, 1]} : vector<8x512xf32> to vector<8x128xf32>
    %241 = arith.negf %240 : vector<8x128xf32>
    %242 = math.exp %241 : vector<8x128xf32>
    %cst_113 = arith.constant 1.000000e+00 : f32
    %243 = vector.broadcast %cst_113 : f32 to vector<8x128xf32>
    %244 = arith.addf %243, %242 : vector<8x128xf32>
    %245 = arith.divf %243, %244 : vector<8x128xf32>
    %246 = arith.mulf %237, %221 : vector<8x128xf32>
    %247 = arith.mulf %231, %239 : vector<8x128xf32>
    %248 = arith.addf %246, %247 : vector<8x128xf32>
    %249 = math.tanh %248 : vector<8x128xf32>
    %250 = arith.mulf %245, %249 : vector<8x128xf32>
    %c0_114 = arith.constant 0 : index
    %c0_115 = arith.constant 0 : index
    %251 = vector.load %arg6[%c0_114, %c0_115] : memref<8x128xf32, #tpu.memory_space<vmem>>, vector<8x128xf32>
    tpu.vector_store %arg6[%c0_114, %c0_115], %248 {strides = array<i32>} : memref<8x128xf32, #tpu.memory_space<vmem>>, vector<8x128xf32>,
    %c0_116 = arith.constant 0 : index
    %c0_117 = arith.constant 0 : index
    %252 = vector.load %arg5[%c0_116, %c0_117] : memref<8x128xf32, #tpu.memory_space<vmem>>, vector<8x128xf32>
    tpu.vector_store %arg5[%c0_116, %c0_117], %250 {strides = array<i32>} : memref<8x128xf32, #tpu.memory_space<vmem>>, vector<8x128xf32>,
    %c0_118 = arith.constant 0 : index
    %c6_119 = arith.constant 6 : index
    %c0_120 = arith.constant 0 : index
    %253 = vector.load %arg4[%c0_118, %c6_119, %c0_120] : memref<8x8x128xf32, #tpu.memory_space<vmem>>, vector<8x1x128xf32>
    %254 = vector.shape_cast %253 : vector<8x1x128xf32> to vector<8x128xf32>
    %255 = vector.shape_cast %250 : vector<8x128xf32> to vector<8x1x128xf32>
    tpu.vector_store %arg4[%c0_118, %c6_119, %c0_120], %255 {strides = array<i32>} : memref<8x8x128xf32, #tpu.memory_space<vmem>>, vector<8x1x128xf32>,
    %c0_121 = arith.constant 0 : index
    %c0_122 = arith.constant 0 : index
    %256 = vector.load %arg5[%c0_121, %c0_122] : memref<8x128xf32, #tpu.memory_space<vmem>>, vector<8x128xf32>
    %c0_123 = arith.constant 0 : index
    %c0_124 = arith.constant 0 : index
    %257 = vector.load %arg6[%c0_123, %c0_124] : memref<8x128xf32, #tpu.memory_space<vmem>>, vector<8x128xf32>
    %c0_125 = arith.constant 0 : index
    %c7 = arith.constant 7 : index
    %c0_126 = arith.constant 0 : index
    %258 = vector.load %arg2[%c0_125, %c7, %c0_126] : memref<8x8x512xf32, #tpu.memory_space<vmem>>, vector<8x1x512xf32>
    %259 = vector.shape_cast %258 : vector<8x1x512xf32> to vector<8x512xf32>
    %cst_127 = arith.constant dense<0.000000e+00> : vector<8x512xf32>
    %260 = tpu.matmul %256, %3, %cst_127 {dimension_numbers = #tpu.dot_dimension_numbers<[1], [0], [0], [1], [0, 0, 1, 1], [], []>} : vector<8x128xf32>, vector<128x512xf32>, vector<8x512xf32> -> vector<8x512xf32>
    %261 = arith.addf %259, %260 : vector<8x512xf32>
    %262 = vector.extract_strided_slice %261 {offsets = [0, 0], sizes = [8, 128], strides = [1, 1]} : vector<8x512xf32> to vector<8x128xf32>
    %263 = arith.negf %262 : vector<8x128xf32>
    %264 = math.exp %263 : vector<8x128xf32>
    %cst_128 = arith.constant 1.000000e+00 : f32
    %265 = vector.broadcast %cst_128 : f32 to vector<8x128xf32>
    %266 = arith.addf %265, %264 : vector<8x128xf32>
    %267 = arith.divf %265, %266 : vector<8x128xf32>
    %268 = vector.extract_strided_slice %261 {offsets = [0, 128], sizes = [8, 128], strides = [1, 1]} : vector<8x512xf32> to vector<8x128xf32>
    %269 = arith.negf %268 : vector<8x128xf32>
    %270 = math.exp %269 : vector<8x128xf32>
    %cst_129 = arith.constant 1.000000e+00 : f32
    %271 = vector.broadcast %cst_129 : f32 to vector<8x128xf32>
    %272 = arith.addf %271, %270 : vector<8x128xf32>
    %273 = arith.divf %271, %272 : vector<8x128xf32>
    %274 = vector.extract_strided_slice %261 {offsets = [0, 256], sizes = [8, 128], strides = [1, 1]} : vector<8x512xf32> to vector<8x128xf32>
    %275 = math.tanh %274 : vector<8x128xf32>
    %276 = vector.extract_strided_slice %261 {offsets = [0, 384], sizes = [8, 128], strides = [1, 1]} : vector<8x512xf32> to vector<8x128xf32>
    %277 = arith.negf %276 : vector<8x128xf32>
    %278 = math.exp %277 : vector<8x128xf32>
    %cst_130 = arith.constant 1.000000e+00 : f32
    %279 = vector.broadcast %cst_130 : f32 to vector<8x128xf32>
    %280 = arith.addf %279, %278 : vector<8x128xf32>
    %281 = arith.divf %279, %280 : vector<8x128xf32>
    %282 = arith.mulf %273, %257 : vector<8x128xf32>
    %283 = arith.mulf %267, %275 : vector<8x128xf32>
    %284 = arith.addf %282, %283 : vector<8x128xf32>
    %285 = math.tanh %284 : vector<8x128xf32>
    %286 = arith.mulf %281, %285 : vector<8x128xf32>
    %c0_131 = arith.constant 0 : index
    %c0_132 = arith.constant 0 : index
    %287 = vector.load %arg6[%c0_131, %c0_132] : memref<8x128xf32, #tpu.memory_space<vmem>>, vector<8x128xf32>
    tpu.vector_store %arg6[%c0_131, %c0_132], %284 {strides = array<i32>} : memref<8x128xf32, #tpu.memory_space<vmem>>, vector<8x128xf32>,
    %c0_133 = arith.constant 0 : index
    %c0_134 = arith.constant 0 : index
    %288 = vector.load %arg5[%c0_133, %c0_134] : memref<8x128xf32, #tpu.memory_space<vmem>>, vector<8x128xf32>
    tpu.vector_store %arg5[%c0_133, %c0_134], %286 {strides = array<i32>} : memref<8x128xf32, #tpu.memory_space<vmem>>, vector<8x128xf32>,
    %c0_135 = arith.constant 0 : index
    %c7_136 = arith.constant 7 : index
    %c0_137 = arith.constant 0 : index
    %289 = vector.load %arg4[%c0_135, %c7_136, %c0_137] : memref<8x8x128xf32, #tpu.memory_space<vmem>>, vector<8x1x128xf32>
    %290 = vector.shape_cast %289 : vector<8x1x128xf32> to vector<8x128xf32>
    %291 = vector.shape_cast %286 : vector<8x128xf32> to vector<8x1x128xf32>
    tpu.vector_store %arg4[%c0_135, %c7_136, %c0_137], %291 {strides = array<i32>} : memref<8x8x128xf32, #tpu.memory_space<vmem>>, vector<8x1x128xf32>,
    return
  }
  func.func @transform_0(%arg0: i32, %arg1: i32) -> (i32, i32, i32) {
    %c0_i32 = arith.constant 0 : i32
    %c0_i32_0 = arith.constant 0 : i32
    return %arg0, %arg1, %c0_i32 : i32, i32, i32
  }
  func.func @transform_1(%arg0: i32, %arg1: i32) -> (i32, i32) {
    %c0_i32 = arith.constant 0 : i32
    %c0_i32_0 = arith.constant 0 : i32
    %c0_i32_1 = arith.constant 0 : i32
    return %c0_i32, %c0_i32_0 : i32, i32
  }
  func.func @transform_2(%arg0: i32, %arg1: i32) -> (i32, i32, i32) {
    %c0_i32 = arith.constant 0 : i32
    %c0_i32_0 = arith.constant 0 : i32
    return %arg0, %arg1, %c0_i32 : i32, i32, i32
  }
}

module attributes {stable_mosaic.version = 11 : i64} {
  func.func @_matmul_bias_kernel(%arg0: i32, %arg1: i32, %arg2: i32, %arg3: memref<128x128xf32, #tpu.memory_space<vmem>>, %arg4: memref<128x128xf32, #tpu.memory_space<vmem>>, %arg5: memref<1x128xf32, #tpu.memory_space<vmem>>, %arg6: memref<128x128xf32, #tpu.memory_space<vmem>>, %arg7: memref<128x128xf32, #tpu.memory_space<vmem>>) attributes {dimension_semantics = [#tpu.dimension_semantics<parallel>, #tpu.dimension_semantics<parallel>, #tpu.dimension_semantics<arbitrary>], iteration_bounds = array<i64: 1, 1, 1>, scalar_prefetch = 0 : i64, scratch_operands = 1 : i64, tpu.core_type = #tpu.core_type<tc>, window_params = [{transform_indices = @transform_0, window_bounds = array<i64: 128, 128>}, {transform_indices = @transform_1, window_bounds = array<i64: 128, 128>}, {transform_indices = @transform_2, window_bounds = array<i64: 1, 128>}, {transform_indices = @transform_3, window_bounds = array<i64: 128, 128>}]} {
    %c0_i32 = arith.constant 0 : i32
    %0 = arith.cmpi eq, %arg2, %c0_i32 : i32
    %1 = arith.extui %0 : i1 to i32
    %c0_i32_0 = arith.constant 0 : i32
    %2 = arith.cmpi ne, %1, %c0_i32_0 : i32
    scf.if %2 {
      %cst_10 = arith.constant 0.000000e+00 : f32
      %12 = vector.broadcast %cst_10 : f32 to vector<128x128xf32>
      %c0_11 = arith.constant 0 : index
      %c0_12 = arith.constant 0 : index
      %13 = vector.load %arg7[%c0_11, %c0_12] : memref<128x128xf32, #tpu.memory_space<vmem>>, vector<128x128xf32>
      tpu.vector_store %arg7[%c0_11, %c0_12], %12 {strides = array<i32>} : memref<128x128xf32, #tpu.memory_space<vmem>>, vector<128x128xf32>,
    } else {
    }
    %c0 = arith.constant 0 : index
    %c0_1 = arith.constant 0 : index
    %3 = vector.load %arg7[%c0, %c0_1] : memref<128x128xf32, #tpu.memory_space<vmem>>, vector<128x128xf32>
    %c0_2 = arith.constant 0 : index
    %c0_3 = arith.constant 0 : index
    %4 = vector.load %arg3[%c0_2, %c0_3] : memref<128x128xf32, #tpu.memory_space<vmem>>, vector<128x128xf32>
    %c0_4 = arith.constant 0 : index
    %c0_5 = arith.constant 0 : index
    %5 = vector.load %arg4[%c0_4, %c0_5] : memref<128x128xf32, #tpu.memory_space<vmem>>, vector<128x128xf32>
    %cst = arith.constant dense<0.000000e+00> : vector<128x128xf32>
    %6 = tpu.matmul %4, %5, %cst {dimension_numbers = #tpu.dot_dimension_numbers<[1], [0], [0], [1], [0, 0, 1, 1], [], []>} : vector<128x128xf32>, vector<128x128xf32>, vector<128x128xf32> -> vector<128x128xf32>
    %7 = arith.addf %3, %6 : vector<128x128xf32>
    %c0_6 = arith.constant 0 : index
    %c0_7 = arith.constant 0 : index
    %8 = vector.load %arg7[%c0_6, %c0_7] : memref<128x128xf32, #tpu.memory_space<vmem>>, vector<128x128xf32>
    tpu.vector_store %arg7[%c0_6, %c0_7], %7 {strides = array<i32>} : memref<128x128xf32, #tpu.memory_space<vmem>>, vector<128x128xf32>,
    %c0_i32_8 = arith.constant 0 : i32
    %9 = arith.cmpi eq, %arg2, %c0_i32_8 : i32
    %10 = arith.extui %9 : i1 to i32
    %c0_i32_9 = arith.constant 0 : i32
    %11 = arith.cmpi ne, %10, %c0_i32_9 : i32
    scf.if %11 {
      %c0_10 = arith.constant 0 : index
      %c0_11 = arith.constant 0 : index
      %12 = vector.load %arg7[%c0_10, %c0_11] : memref<128x128xf32, #tpu.memory_space<vmem>>, vector<128x128xf32>
      %c0_12 = arith.constant 0 : index
      %c0_13 = arith.constant 0 : index
      %13 = vector.load %arg5[%c0_12, %c0_13] : memref<1x128xf32, #tpu.memory_space<vmem>>, vector<1x128xf32>
      %14 = vector.broadcast %13 : vector<1x128xf32> to vector<128x128xf32>
      %15 = arith.addf %12, %14 : vector<128x128xf32>
      %c0_14 = arith.constant 0 : index
      %c0_15 = arith.constant 0 : index
      %16 = vector.load %arg6[%c0_14, %c0_15] : memref<128x128xf32, #tpu.memory_space<vmem>>, vector<128x128xf32>
      tpu.vector_store %arg6[%c0_14, %c0_15], %15 {strides = array<i32>} : memref<128x128xf32, #tpu.memory_space<vmem>>, vector<128x128xf32>,
    } else {
    }
    return
  }
  func.func @transform_0(%arg0: i32, %arg1: i32, %arg2: i32) -> (i32, i32) {
    %c0_i32 = arith.constant 0 : i32
    return %arg0, %arg2 : i32, i32
  }
  func.func @transform_1(%arg0: i32, %arg1: i32, %arg2: i32) -> (i32, i32) {
    %c0_i32 = arith.constant 0 : i32
    return %arg2, %arg1 : i32, i32
  }
  func.func @transform_2(%arg0: i32, %arg1: i32, %arg2: i32) -> (i32, i32) {
    %c0_i32 = arith.constant 0 : i32
    %c0_i32_0 = arith.constant 0 : i32
    return %c0_i32, %arg1 : i32, i32
  }
  func.func @transform_3(%arg0: i32, %arg1: i32, %arg2: i32) -> (i32, i32) {
    %c0_i32 = arith.constant 0 : i32
    return %arg0, %arg1 : i32, i32
  }
}

</mosaic_0001>

<llo_original>
// kernel: decoder_rnn_forward.5
$region0: #{decoder_rnn_forward.5}
  #allocation0 [shape = 'u32[]', space=smem, size = 0x4, offset = 0x4, fixed_abs, tag = 'smem constant byte address 0x4 - core index']
  #allocation1 [shape = 'u32[72,128]{1,0:T(1,128)}', space=vmem, size = 0x9000, scoped, tag = 'internal scratch']
  #allocation2 [shape = 'f32[128,128]{1,0:T(8,128)}', space=vmem, size = 0x10000, scoped, tag = 'scratch operand']
  %s0 = inlined_call_operand.vmem [shape: f32[128,128], index: 0, kind: input, shape index: {}]
  %s1 = inlined_call_operand.vmem [shape: f32[128,128], index: 1, kind: input, shape index: {}]
  %s2 = inlined_call_operand.vmem [shape: f32[1,128], index: 2, kind: input, shape index: {}]
  %s3 = inlined_call_operand.hbm [shape: f32[128,128], index: 3, kind: output, shape index: {}]
  %s4 = sld [smem:[#allocation0]]
  $region30: #{decoder_rnn_forward.5} parent=0
    _
  %s6 = ssub.s32 1, %s4
  %s7 = scalar_select 0, %s6, %s4
  $region1: #{decoder_rnn_forward.5} parent=0
    #allocation3 [shape = 'u8[65536]{0}', space=vmem, size = 0x10000, scoped, tag = 'output window, operand 0, single buffered']
    #allocation4 [shape = 's32[1]{0}', space=sflag, size = 0x4, scoped, tag = 'scoped memory for decoder_rnn_forward.5']
    %8 = vsyncpa [#allocation4], 0
    // Predicated region
    $region2: #{decoder_rnn_forward.5} parent=1 // pred_check
      _
    $region3: #{decoder_rnn_forward.5} parent=1 // pred_check_branch
      %10 = sbr.rel (0) target = $region5
    $region4: #{decoder_rnn_forward.5} parent=1 // pred_region
      _
    $region5: #{decoder_rnn_forward.5} parent=1 // pred_fallthru
      _
    // Predicated region
    $region6: #{decoder_rnn_forward.5} parent=1 // pred_check
      _
    $region7: #{decoder_rnn_forward.5} parent=1 // pred_check_branch
      %12 = sbr.rel (0) target = $region9
    $region8: #{decoder_rnn_forward.5} parent=1 // pred_region
      _
    $region9: #{decoder_rnn_forward.5} parent=1 // pred_fallthru
      _
    // Predicated region
    $region10: #{decoder_rnn_forward.5} parent=1 // pred_check
      _
    $region11: #{decoder_rnn_forward.5} parent=1 // pred_check_branch
      %14 = sbr.rel (0) target = $region13
    $region12: #{decoder_rnn_forward.5} parent=1 // pred_region
      _
    $region13: #{decoder_rnn_forward.5} parent=1 // pred_fallthru
      _
    %p15 = scmp.eq.s32.totalorder 0, 0
    // Predicated region
    $region14: #{decoder_rnn_forward.5} parent=1 // pred_check
      %p16 = pneg %p15
    $region15: #{decoder_rnn_forward.5} parent=1 // pred_check_branch
      %18 = sbr.rel (%p16) target = $region17
    $region16: #{decoder_rnn_forward.5} parent=1 // pred_region
      %19 = vst [vmem:[#allocation2] sm:$0xff] 0.0
      %20 = vst [vmem:[#allocation2 + $0x8] sm:$0xff] 0.0
      %21 = vst [vmem:[#allocation2 + $0x10] sm:$0xff] 0.0
      %22 = vst [vmem:[#allocation2 + $0x18] sm:$0xff] 0.0
      %23 = vst [vmem:[#allocation2 + $0x20] sm:$0xff] 0.0
      %24 = vst [vmem:[#allocation2 + $0x28] sm:$0xff] 0.0
      %25 = vst [vmem:[#allocation2 + $0x30] sm:$0xff] 0.0
      %26 = vst [vmem:[#allocation2 + $0x38] sm:$0xff] 0.0
      %27 = vst [vmem:[#allocation2 + $0x40] sm:$0xff] 0.0
      %28 = vst [vmem:[#allocation2 + $0x48] sm:$0xff] 0.0
      %29 = vst [vmem:[#allocation2 + $0x50] sm:$0xff] 0.0
      %30 = vst [vmem:[#allocation2 + $0x58] sm:$0xff] 0.0
      %31 = vst [vmem:[#allocation2 + $0x60] sm:$0xff] 0.0
      %32 = vst [vmem:[#allocation2 + $0x68] sm:$0xff] 0.0
      %33 = vst [vmem:[#allocation2 + $0x70] sm:$0xff] 0.0
      %34 = vst [vmem:[#allocation2 + $0x78] sm:$0xff] 0.0
    $region17: #{decoder_rnn_forward.5} parent=1 // pred_fallthru
      _
    %v35 = vld [vmem:[#allocation2] sm:$0xff]
    %v36 = vld [vmem:[#allocation2 + $0x8] sm:$0xff]
    %v37 = vld [vmem:[#allocation2 + $0x10] sm:$0xff]
    %v38 = vld [vmem:[#allocation2 + $0x18] sm:$0xff]
    %v39 = vld [vmem:[#allocation2 + $0x20] sm:$0xff]
    %v40 = vld [vmem:[#allocation2 + $0x28] sm:$0xff]
    %v41 = vld [vmem:[#allocation2 + $0x30] sm:$0xff]
    %v42 = vld [vmem:[#allocation2 + $0x38] sm:$0xff]
    %v43 = vld [vmem:[#allocation2 + $0x40] sm:$0xff]
    %v44 = vld [vmem:[#allocation2 + $0x48] sm:$0xff]
    %v45 = vld [vmem:[#allocation2 + $0x50] sm:$0xff]
    %v46 = vld [vmem:[#allocation2 + $0x58] sm:$0xff]
    %v47 = vld [vmem:[#allocation2 + $0x60] sm:$0xff]
    %v48 = vld [vmem:[#allocation2 + $0x68] sm:$0xff]
    %v49 = vld [vmem:[#allocation2 + $0x70] sm:$0xff]
    %v50 = vld [vmem:[#allocation2 + $0x78] sm:$0xff]
    %v51 = vld [vmem:[%s0] sm:$0xff]
    %v52 = vld [vmem:[%s0 + $0x8] sm:$0xff]
    %v53 = vld [vmem:[%s0 + $0x10] sm:$0xff]
    %v54 = vld [vmem:[%s0 + $0x18] sm:$0xff]
    %v55 = vld [vmem:[%s0 + $0x20] sm:$0xff]
    %v56 = vld [vmem:[%s0 + $0x28] sm:$0xff]
    %v57 = vld [vmem:[%s0 + $0x30] sm:$0xff]
    %v58 = vld [vmem:[%s0 + $0x38] sm:$0xff]
    %v59 = vld [vmem:[%s0 + $0x40] sm:$0xff]
    %v60 = vld [vmem:[%s0 + $0x48] sm:$0xff]
    %v61 = vld [vmem:[%s0 + $0x50] sm:$0xff]
    %v62 = vld [vmem:[%s0 + $0x58] sm:$0xff]
    %v63 = vld [vmem:[%s0 + $0x60] sm:$0xff]
    %v64 = vld [vmem:[%s0 + $0x68] sm:$0xff]
    %v65 = vld [vmem:[%s0 + $0x70] sm:$0xff]
    %v66 = vld [vmem:[%s0 + $0x78] sm:$0xff]
    %v67 = vld [vmem:[%s1] sm:$0xff]
    %v68 = vld [vmem:[%s1 + $0x8] sm:$0xff]
    %v69 = vld [vmem:[%s1 + $0x10] sm:$0xff]
    %v70 = vld [vmem:[%s1 + $0x18] sm:$0xff]
    %v71 = vld [vmem:[%s1 + $0x20] sm:$0xff]
    %v72 = vld [vmem:[%s1 + $0x28] sm:$0xff]
    %v73 = vld [vmem:[%s1 + $0x30] sm:$0xff]
    %v74 = vld [vmem:[%s1 + $0x38] sm:$0xff]
    %v75 = vld [vmem:[%s1 + $0x40] sm:$0xff]
    %v76 = vld [vmem:[%s1 + $0x48] sm:$0xff]
    %v77 = vld [vmem:[%s1 + $0x50] sm:$0xff]
    %v78 = vld [vmem:[%s1 + $0x58] sm:$0xff]
    %v79 = vld [vmem:[%s1 + $0x60] sm:$0xff]
    %v80 = vld [vmem:[%s1 + $0x68] sm:$0xff]
    %v81 = vld [vmem:[%s1 + $0x70] sm:$0xff]
    %v82 = vld [vmem:[%s1 + $0x78] sm:$0xff]
    %83 = vmatpush.msra.mxu0 %v82
    %84 = vmatpush.msra.mxu0 %v81
    %85 = vmatpush.msra.mxu0 %v80
    %86 = vmatpush.msra.mxu0 %v79
    %87 = vmatpush.msra.mxu0 %v78
    %88 = vmatpush.msra.mxu0 %v77
    %89 = vmatpush.msra.mxu0 %v76
    %90 = vmatpush.msra.mxu0 %v75
    %91 = vmatpush.msra.mxu0 %v74
    %92 = vmatpush.msra.mxu0 %v73
    %93 = vmatpush.msra.mxu0 %v72
    %94 = vmatpush.msra.mxu0 %v71
    %95 = vmatpush.msra.mxu0 %v70
    %96 = vmatpush.msra.mxu0 %v69
    %97 = vmatpush.msra.mxu0 %v68
    %98 = vmatpush.msra.mxu0 %v67
    %99 = vmatmul.f32.gmra.mxu0 %v51
    %v100 = vpop.f32.mrf.mxu0
    %v101 = vadd.f32 0.0, %v100
    %102 = vmatmul.f32.gmra.mxu0 %v52
    %v103 = vpop.f32.mrf.mxu0
    %v104 = vadd.f32 0.0, %v103
    %105 = vmatmul.f32.gmra.mxu0 %v53
    %v106 = vpop.f32.mrf.mxu0
    %v107 = vadd.f32 0.0, %v106
    %108 = vmatmul.f32.gmra.mxu0 %v54
    %v109 = vpop.f32.mrf.mxu0
    %v110 = vadd.f32 0.0, %v109
    %111 = vmatmul.f32.gmra.mxu0 %v55
    %v112 = vpop.f32.mrf.mxu0
    %v113 = vadd.f32 0.0, %v112
    %114 = vmatmul.f32.gmra.mxu0 %v56
    %v115 = vpop.f32.mrf.mxu0
    %v116 = vadd.f32 0.0, %v115
    %117 = vmatmul.f32.gmra.mxu0 %v57
    %v118 = vpop.f32.mrf.mxu0
    %v119 = vadd.f32 0.0, %v118
    %120 = vmatmul.f32.gmra.mxu0 %v58
    %v121 = vpop.f32.mrf.mxu0
    %v122 = vadd.f32 0.0, %v121
    %123 = vmatmul.f32.gmra.mxu0 %v59
    %v124 = vpop.f32.mrf.mxu0
    %v125 = vadd.f32 0.0, %v124
    %126 = vmatmul.f32.gmra.mxu0 %v60
    %v127 = vpop.f32.mrf.mxu0
    %v128 = vadd.f32 0.0, %v127
    %129 = vmatmul.f32.gmra.mxu0 %v61
    %v130 = vpop.f32.mrf.mxu0
    %v131 = vadd.f32 0.0, %v130
    %132 = vmatmul.f32.gmra.mxu0 %v62
    %v133 = vpop.f32.mrf.mxu0
    %v134 = vadd.f32 0.0, %v133
    %135 = vmatmul.f32.gmra.mxu0 %v63
    %v136 = vpop.f32.mrf.mxu0
    %v137 = vadd.f32 0.0, %v136
    %138 = vmatmul.f32.gmra.mxu0 %v64
    %v139 = vpop.f32.mrf.mxu0
    %v140 = vadd.f32 0.0, %v139
    %141 = vmatmul.f32.gmra.mxu0 %v65
    %v142 = vpop.f32.mrf.mxu0
    %v143 = vadd.f32 0.0, %v142
    %144 = vmatmul.f32.gmra.mxu0 %v66
    %v145 = vpop.f32.mrf.mxu0
    %v146 = vadd.f32 0.0, %v145
    %147 = vdwg.mxu0
    %v148 = vadd.f32 %v35, %v101
    %v149 = vadd.f32 %v36, %v104
    %v150 = vadd.f32 %v37, %v107
    %v151 = vadd.f32 %v38, %v110
    %v152 = vadd.f32 %v39, %v113
    %v153 = vadd.f32 %v40, %v116
    %v154 = vadd.f32 %v41, %v119
    %v155 = vadd.f32 %v42, %v122
    %v156 = vadd.f32 %v43, %v125
    %v157 = vadd.f32 %v44, %v128
    %v158 = vadd.f32 %v45, %v131
    %v159 = vadd.f32 %v46, %v134
    %v160 = vadd.f32 %v47, %v137
    %v161 = vadd.f32 %v48, %v140
    %v162 = vadd.f32 %v49, %v143
    %v163 = vadd.f32 %v50, %v146
    %164 = vst [vmem:[#allocation2] sm:$0xff] %v148
    %165 = vst [vmem:[#allocation2 + $0x8] sm:$0xff] %v149
    %166 = vst [vmem:[#allocation2 + $0x10] sm:$0xff] %v150
    %167 = vst [vmem:[#allocation2 + $0x18] sm:$0xff] %v151
    %168 = vst [vmem:[#allocation2 + $0x20] sm:$0xff] %v152
    %169 = vst [vmem:[#allocation2 + $0x28] sm:$0xff] %v153
    %170 = vst [vmem:[#allocation2 + $0x30] sm:$0xff] %v154
    %171 = vst [vmem:[#allocation2 + $0x38] sm:$0xff] %v155
    %172 = vst [vmem:[#allocation2 + $0x40] sm:$0xff] %v156
    %173 = vst [vmem:[#allocation2 + $0x48] sm:$0xff] %v157
    %174 = vst [vmem:[#allocation2 + $0x50] sm:$0xff] %v158
    %175 = vst [vmem:[#allocation2 + $0x58] sm:$0xff] %v159
    %176 = vst [vmem:[#allocation2 + $0x60] sm:$0xff] %v160
    %177 = vst [vmem:[#allocation2 + $0x68] sm:$0xff] %v161
    %178 = vst [vmem:[#allocation2 + $0x70] sm:$0xff] %v162
    %179 = vst [vmem:[#allocation2 + $0x78] sm:$0xff] %v163
    // Predicated region
    $region18: #{decoder_rnn_forward.5} parent=1 // pred_check
      %p180 = pneg %p15
    $region19: #{decoder_rnn_forward.5} parent=1 // pred_check_branch
      %182 = sbr.rel (%p180) target = $region21
    $region20: #{decoder_rnn_forward.5} parent=1 // pred_region
      %v183 = vld [vmem:[#allocation2] sm:$0xff]
      %v184 = vld [vmem:[#allocation2 + $0x8] sm:$0xff]
      %v185 = vld [vmem:[#allocation2 + $0x10] sm:$0xff]
      %v186 = vld [vmem:[#allocation2 + $0x18] sm:$0xff]
      %v187 = vld [vmem:[#allocation2 + $0x20] sm:$0xff]
      %v188 = vld [vmem:[#allocation2 + $0x28] sm:$0xff]
      %v189 = vld [vmem:[#allocation2 + $0x30] sm:$0xff]
      %v190 = vld [vmem:[#allocation2 + $0x38] sm:$0xff]
      %v191 = vld [vmem:[#allocation2 + $0x40] sm:$0xff]
      %v192 = vld [vmem:[#allocation2 + $0x48] sm:$0xff]
      %v193 = vld [vmem:[#allocation2 + $0x50] sm:$0xff]
      %v194 = vld [vmem:[#allocation2 + $0x58] sm:$0xff]
      %v195 = vld [vmem:[#allocation2 + $0x60] sm:$0xff]
      %v196 = vld [vmem:[#allocation2 + $0x68] sm:$0xff]
      %v197 = vld [vmem:[#allocation2 + $0x70] sm:$0xff]
      %v198 = vld [vmem:[#allocation2 + $0x78] sm:$0xff]
      %v199 = vld [vmem:[%s2] sm:$0x1]
      %v201 = vperm.slane %v199, 0
      %v203 = vadd.f32 %v183, %v201
      %v204 = vadd.f32 %v184, %v201
      %v205 = vadd.f32 %v185, %v201
      %v206 = vadd.f32 %v186, %v201
      %v207 = vadd.f32 %v187, %v201
      %v208 = vadd.f32 %v188, %v201
      %v209 = vadd.f32 %v189, %v201
      %v210 = vadd.f32 %v190, %v201
      %v211 = vadd.f32 %v191, %v201
      %v212 = vadd.f32 %v192, %v201
      %v213 = vadd.f32 %v193, %v201
      %v214 = vadd.f32 %v194, %v201
      %v215 = vadd.f32 %v195, %v201
      %v216 = vadd.f32 %v196, %v201
      %v217 = vadd.f32 %v197, %v201
      %v218 = vadd.f32 %v198, %v201
      %219 = vst [vmem:[#allocation3] sm:$0xff] %v203
      %220 = vst [vmem:[#allocation3 + $0x8] sm:$0xff] %v204
      %221 = vst [vmem:[#allocation3 + $0x10] sm:$0xff] %v205
      %222 = vst [vmem:[#allocation3 + $0x18] sm:$0xff] %v206
      %223 = vst [vmem:[#allocation3 + $0x20] sm:$0xff] %v207
      %224 = vst [vmem:[#allocation3 + $0x28] sm:$0xff] %v208
      %225 = vst [vmem:[#allocation3 + $0x30] sm:$0xff] %v209
      %226 = vst [vmem:[#allocation3 + $0x38] sm:$0xff] %v210
      %227 = vst [vmem:[#allocation3 + $0x40] sm:$0xff] %v211
      %228 = vst [vmem:[#allocation3 + $0x48] sm:$0xff] %v212
      %229 = vst [vmem:[#allocation3 + $0x50] sm:$0xff] %v213
      %230 = vst [vmem:[#allocation3 + $0x58] sm:$0xff] %v214
      %231 = vst [vmem:[#allocation3 + $0x60] sm:$0xff] %v215
      %232 = vst [vmem:[#allocation3 + $0x68] sm:$0xff] %v216
      %233 = vst [vmem:[#allocation3 + $0x70] sm:$0xff] %v217
      %234 = vst [vmem:[#allocation3 + $0x78] sm:$0xff] %v218
    $region21: #{decoder_rnn_forward.5} parent=1 // pred_fallthru
      _
    // Predicated region
    $region22: #{decoder_rnn_forward.5} parent=1 // pred_check
      _
    $region23: #{decoder_rnn_forward.5} parent=1 // pred_check_branch
      %236 = sbr.rel (0) target = $region25
    $region24: #{decoder_rnn_forward.5} parent=1 // pred_region
      %238 = vsyncadd [#allocation4], 0
      %s239 = sshll.u32 [#allocation3], 4
      %s240 = int_to_ptr.vmem [resolvable:$true] %s239
      %s241 = sshll.u32 %s3, 4
      %s242 = int_to_ptr.hbm [resolvable:$true] %s241
      %247 = dma.vmem_to_hbm [thread:$0]  %s240, 2048, %s242, [#allocation4], 128, 128, 8
    $region25: #{decoder_rnn_forward.5} parent=1 // pred_fallthru
      _
    // Predicated region
    $region26: #{decoder_rnn_forward.5} parent=1 // pred_check
      _
    $region27: #{decoder_rnn_forward.5} parent=1 // pred_check_branch
      %249 = sbr.rel (0) target = $region29
    $region28: #{decoder_rnn_forward.5} parent=1 // pred_region
      %251 = dma.done [#allocation4], 2048
    $region29: #{decoder_rnn_forward.5} parent=1 // pred_fallthru
      _
    %252 = vsyncpa [#allocation4], 1

// kernel: decoder_rnn_forward.3
$region0: #{decoder_rnn_forward.3}
  #allocation0 [shape = 'u32[]', space=smem, size = 0x4, offset = 0x4, fixed_abs, tag = 'smem constant byte address 0x4 - core index']
  #allocation1 [shape = 'u32[72,128]{1,0:T(1,128)}', space=vmem, size = 0x9000, scoped, tag = 'internal scratch']
  #allocation2 [shape = 'f32[128,512]{1,0:T(8,128)}', space=vmem, size = 0x40000, scoped, tag = 'scratch operand']
  %s0 = inlined_call_operand.vmem [shape: f32[128,32], index: 0, kind: input, shape index: {}]
  %s1 = inlined_call_operand.vmem [shape: f32[32,512], index: 1, kind: input, shape index: {}]
  %s2 = inlined_call_operand.vmem [shape: f32[1,512], index: 2, kind: input, shape index: {}]
  %s3 = inlined_call_operand.vmem [shape: f32[128,512], index: 3, kind: output, shape index: {}]
  %s4 = sld [smem:[#allocation0]]
  $region30: #{decoder_rnn_forward.3} parent=0
    _
  %s6 = ssub.s32 1, %s4
  %s7 = scalar_select 0, %s6, %s4
  // Predicated region
  $region2: #{decoder_rnn_forward.3} parent=0 // pred_check
    _
  $region3: #{decoder_rnn_forward.3} parent=0 // pred_check_branch
    %9 = sbr.rel (0) target = $region5
  $region4: #{decoder_rnn_forward.3} parent=0 // pred_region
    _
  $region5: #{decoder_rnn_forward.3} parent=0 // pred_fallthru
    _
  // Predicated region
  $region6: #{decoder_rnn_forward.3} parent=0 // pred_check
    _
  $region7: #{decoder_rnn_forward.3} parent=0 // pred_check_branch
    %11 = sbr.rel (0) target = $region9
  $region8: #{decoder_rnn_forward.3} parent=0 // pred_region
    _
  $region9: #{decoder_rnn_forward.3} parent=0 // pred_fallthru
    _
  // Predicated region
  $region10: #{decoder_rnn_forward.3} parent=0 // pred_check
    _
  $region11: #{decoder_rnn_forward.3} parent=0 // pred_check_branch
    %13 = sbr.rel (0) target = $region13
  $region12: #{decoder_rnn_forward.3} parent=0 // pred_region
    _
  $region13: #{decoder_rnn_forward.3} parent=0 // pred_fallthru
    _
  %p14 = scmp.eq.s32.totalorder 0, 0
  // Predicated region
  $region14: #{decoder_rnn_forward.3} parent=0 // pred_check
    %p15 = pneg %p14
  $region15: #{decoder_rnn_forward.3} parent=0 // pred_check_branch
    %17 = sbr.rel (%p15) target = $region17
  $region16: #{decoder_rnn_forward.3} parent=0 // pred_region
    %18 = vst [vmem:[#allocation2] sm:$0xff] 0.0
    %19 = vst [vmem:[#allocation2 + $0x8] sm:$0xff] 0.0
    %20 = vst [vmem:[#allocation2 + $0x10] sm:$0xff] 0.0
    %21 = vst [vmem:[#allocation2 + $0x18] sm:$0xff] 0.0
    %22 = vst [vmem:[#allocation2 + $0x20] sm:$0xff] 0.0
    %23 = vst [vmem:[#allocation2 + $0x28] sm:$0xff] 0.0
    %24 = vst [vmem:[#allocation2 + $0x30] sm:$0xff] 0.0
    %25 = vst [vmem:[#allocation2 + $0x38] sm:$0xff] 0.0
    %26 = vst [vmem:[#allocation2 + $0x40] sm:$0xff] 0.0
    %27 = vst [vmem:[#allocation2 + $0x48] sm:$0xff] 0.0
    %28 = vst [vmem:[#allocation2 + $0x50] sm:$0xff] 0.0
    %29 = vst [vmem:[#allocation2 + $0x58] sm:$0xff] 0.0
    %30 = vst [vmem:[#allocation2 + $0x60] sm:$0xff] 0.0
    %31 = vst [vmem:[#allocation2 + $0x68] sm:$0xff] 0.0
    %32 = vst [vmem:[#allocation2 + $0x70] sm:$0xff] 0.0
    %33 = vst [vmem:[#allocation2 + $0x78] sm:$0xff] 0.0
    %34 = vst [vmem:[#allocation2 + $0x80] sm:$0xff] 0.0
    %35 = vst [vmem:[#allocation2 + $0x88] sm:$0xff] 0.0
    %36 = vst [vmem:[#allocation2 + $0x90] sm:$0xff] 0.0
    %37 = vst [vmem:[#allocation2 + $0x98] sm:$0xff] 0.0
    %38 = vst [vmem:[#allocation2 + $0xa0] sm:$0xff] 0.0
    %39 = vst [vmem:[#allocation2 + $0xa8] sm:$0xff] 0.0
    %40 = vst [vmem:[#allocation2 + $0xb0] sm:$0xff] 0.0
    %41 = vst [vmem:[#allocation2 + $0xb8] sm:$0xff] 0.0
    %42 = vst [vmem:[#allocation2 + $0xc0] sm:$0xff] 0.0
    %43 = vst [vmem:[#allocation2 + $0xc8] sm:$0xff] 0.0
    %44 = vst [vmem:[#allocation2 + $0xd0] sm:$0xff] 0.0
    %45 = vst [vmem:[#allocation2 + $0xd8] sm:$0xff] 0.0
    %46 = vst [vmem:[#allocation2 + $0xe0] sm:$0xff] 0.0
    %47 = vst [vmem:[#allocation2 + $0xe8] sm:$0xff] 0.0
    %48 = vst [vmem:[#allocation2 + $0xf0] sm:$0xff] 0.0
    %49 = vst [vmem:[#allocation2 + $0xf8] sm:$0xff] 0.0
    %50 = vst [vmem:[#allocation2 + $0x100] sm:$0xff] 0.0
    %51 = vst [vmem:[#allocation2 + $0x108] sm:$0xff] 0.0
    %52 = vst [vmem:[#allocation2 + $0x110] sm:$0xff] 0.0
    %53 = vst [vmem:[#allocation2 + $0x118] sm:$0xff] 0.0
    %54 = vst [vmem:[#allocation2 + $0x120] sm:$0xff] 0.0
    %55 = vst [vmem:[#allocation2 + $0x128] sm:$0xff] 0.0
    %56 = vst [vmem:[#allocation2 + $0x130] sm:$0xff] 0.0
    %57 = vst [vmem:[#allocation2 + $0x138] sm:$0xff] 0.0
    %58 = vst [vmem:[#allocation2 + $0x140] sm:$0xff] 0.0
    %59 = vst [vmem:[#allocation2 + $0x148] sm:$0xff] 0.0
    %60 = vst [vmem:[#allocation2 + $0x150] sm:$0xff] 0.0
    %61 = vst [vmem:[#allocation2 + $0x158] sm:$0xff] 0.0
    %62 = vst [vmem:[#allocation2 + $0x160] sm:$0xff] 0.0
    %63 = vst [vmem:[#allocation2 + $0x168] sm:$0xff] 0.0
    %64 = vst [vmem:[#allocation2 + $0x170] sm:$0xff] 0.0
    %65 = vst [vmem:[#allocation2 + $0x178] sm:$0xff] 0.0
    %66 = vst [vmem:[#allocation2 + $0x180] sm:$0xff] 0.0
    %67 = vst [vmem:[#allocation2 + $0x188] sm:$0xff] 0.0
    %68 = vst [vmem:[#allocation2 + $0x190] sm:$0xff] 0.0
    %69 = vst [vmem:[#allocation2 + $0x198] sm:$0xff] 0.0
    %70 = vst [vmem:[#allocation2 + $0x1a0] sm:$0xff] 0.0
    %71 = vst [vmem:[#allocation2 + $0x1a8] sm:$0xff] 0.0
    %72 = vst [vmem:[#allocation2 + $0x1b0] sm:$0xff] 0.0
    %73 = vst [vmem:[#allocation2 + $0x1b8] sm:$0xff] 0.0
    %74 = vst [vmem:[#allocation2 + $0x1c0] sm:$0xff] 0.0
    %75 = vst [vmem:[#allocation2 + $0x1c8] sm:$0xff] 0.0
    %76 = vst [vmem:[#allocation2 + $0x1d0] sm:$0xff] 0.0
    %77 = vst [vmem:[#allocation2 + $0x1d8] sm:$0xff] 0.0
    %78 = vst [vmem:[#allocation2 + $0x1e0] sm:$0xff] 0.0
    %79 = vst [vmem:[#allocation2 + $0x1e8] sm:$0xff] 0.0
    %80 = vst [vmem:[#allocation2 + $0x1f0] sm:$0xff] 0.0
    %81 = vst [vmem:[#allocation2 + $0x1f8] sm:$0xff] 0.0
  $region17: #{decoder_rnn_forward.3} parent=0 // pred_fallthru
    _
  %v82 = vld [vmem:[#allocation2] sm:$0xff]
  %v83 = vld [vmem:[#allocation2 + $0x8] sm:$0xff]
  %v84 = vld [vmem:[#allocation2 + $0x10] sm:$0xff]
  %v85 = vld [vmem:[#allocation2 + $0x18] sm:$0xff]
  %v86 = vld [vmem:[#allocation2 + $0x20] sm:$0xff]
  %v87 = vld [vmem:[#allocation2 + $0x28] sm:$0xff]
  %v88 = vld [vmem:[#allocation2 + $0x30] sm:$0xff]
  %v89 = vld [vmem:[#allocation2 + $0x38] sm:$0xff]
  %v90 = vld [vmem:[#allocation2 + $0x40] sm:$0xff]
  %v91 = vld [vmem:[#allocation2 + $0x48] sm:$0xff]
  %v92 = vld [vmem:[#allocation2 + $0x50] sm:$0xff]
  %v93 = vld [vmem:[#allocation2 + $0x58] sm:$0xff]
  %v94 = vld [vmem:[#allocation2 + $0x60] sm:$0xff]
  %v95 = vld [vmem:[#allocation2 + $0x68] sm:$0xff]
  %v96 = vld [vmem:[#allocation2 + $0x70] sm:$0xff]
  %v97 = vld [vmem:[#allocation2 + $0x78] sm:$0xff]
  %v98 = vld [vmem:[#allocation2 + $0x80] sm:$0xff]
  %v99 = vld [vmem:[#allocation2 + $0x88] sm:$0xff]
  %v100 = vld [vmem:[#allocation2 + $0x90] sm:$0xff]
  %v101 = vld [vmem:[#allocation2 + $0x98] sm:$0xff]
  %v102 = vld [vmem:[#allocation2 + $0xa0] sm:$0xff]
  %v103 = vld [vmem:[#allocation2 + $0xa8] sm:$0xff]
  %v104 = vld [vmem:[#allocation2 + $0xb0] sm:$0xff]
  %v105 = vld [vmem:[#allocation2 + $0xb8] sm:$0xff]
  %v106 = vld [vmem:[#allocation2 + $0xc0] sm:$0xff]
  %v107 = vld [vmem:[#allocation2 + $0xc8] sm:$0xff]
  %v108 = vld [vmem:[#allocation2 + $0xd0] sm:$0xff]
  %v109 = vld [vmem:[#allocation2 + $0xd8] sm:$0xff]
  %v110 = vld [vmem:[#allocation2 + $0xe0] sm:$0xff]
  %v111 = vld [vmem:[#allocation2 + $0xe8] sm:$0xff]
  %v112 = vld [vmem:[#allocation2 + $0xf0] sm:$0xff]
  %v113 = vld [vmem:[#allocation2 + $0xf8] sm:$0xff]
  %v114 = vld [vmem:[#allocation2 + $0x100] sm:$0xff]
  %v115 = vld [vmem:[#allocation2 + $0x108] sm:$0xff]
  %v116 = vld [vmem:[#allocation2 + $0x110] sm:$0xff]
  %v117 = vld [vmem:[#allocation2 + $0x118] sm:$0xff]
  %v118 = vld [vmem:[#allocation2 + $0x120] sm:$0xff]
  %v119 = vld [vmem:[#allocation2 + $0x128] sm:$0xff]
  %v120 = vld [vmem:[#allocation2 + $0x130] sm:$0xff]
  %v121 = vld [vmem:[#allocation2 + $0x138] sm:$0xff]
  %v122 = vld [vmem:[#allocation2 + $0x140] sm:$0xff]
  %v123 = vld [vmem:[#allocation2 + $0x148] sm:$0xff]
  %v124 = vld [vmem:[#allocation2 + $0x150] sm:$0xff]
  %v125 = vld [vmem:[#allocation2 + $0x158] sm:$0xff]
  %v126 = vld [vmem:[#allocation2 + $0x160] sm:$0xff]
  %v127 = vld [vmem:[#allocation2 + $0x168] sm:$0xff]
  %v128 = vld [vmem:[#allocation2 + $0x170] sm:$0xff]
  %v129 = vld [vmem:[#allocation2 + $0x178] sm:$0xff]
  %v130 = vld [vmem:[#allocation2 + $0x180] sm:$0xff]
  %v131 = vld [vmem:[#allocation2 + $0x188] sm:$0xff]
  %v132 = vld [vmem:[#allocation2 + $0x190] sm:$0xff]
  %v133 = vld [vmem:[#allocation2 + $0x198] sm:$0xff]
  %v134 = vld [vmem:[#allocation2 + $0x1a0] sm:$0xff]
  %v135 = vld [vmem:[#allocation2 + $0x1a8] sm:$0xff]
  %v136 = vld [vmem:[#allocation2 + $0x1b0] sm:$0xff]
  %v137 = vld [vmem:[#allocation2 + $0x1b8] sm:$0xff]
  %v138 = vld [vmem:[#allocation2 + $0x1c0] sm:$0xff]
  %v139 = vld [vmem:[#allocation2 + $0x1c8] sm:$0xff]
  %v140 = vld [vmem:[#allocation2 + $0x1d0] sm:$0xff]
  %v141 = vld [vmem:[#allocation2 + $0x1d8] sm:$0xff]
  %v142 = vld [vmem:[#allocation2 + $0x1e0] sm:$0xff]
  %v143 = vld [vmem:[#allocation2 + $0x1e8] sm:$0xff]
  %v144 = vld [vmem:[#allocation2 + $0x1f0] sm:$0xff]
  %v145 = vld [vmem:[#allocation2 + $0x1f8] sm:$0xff]
  %v146 = vld [vmem:[%s0] sm:$0xff]
  %v147 = vld [vmem:[%s0 + $0x8] sm:$0xff]
  %v148 = vld [vmem:[%s0 + $0x10] sm:$0xff]
  %v149 = vld [vmem:[%s0 + $0x18] sm:$0xff]
  %v150 = vld [vmem:[%s0 + $0x20] sm:$0xff]
  %v151 = vld [vmem:[%s0 + $0x28] sm:$0xff]
  %v152 = vld [vmem:[%s0 + $0x30] sm:$0xff]
  %v153 = vld [vmem:[%s0 + $0x38] sm:$0xff]
  %v154 = vld [vmem:[%s0 + $0x40] sm:$0xff]
  %v155 = vld [vmem:[%s0 + $0x48] sm:$0xff]
  %v156 = vld [vmem:[%s0 + $0x50] sm:$0xff]
  %v157 = vld [vmem:[%s0 + $0x58] sm:$0xff]
  %v158 = vld [vmem:[%s0 + $0x60] sm:$0xff]
  %v159 = vld [vmem:[%s0 + $0x68] sm:$0xff]
  %v160 = vld [vmem:[%s0 + $0x70] sm:$0xff]
  %v161 = vld [vmem:[%s0 + $0x78] sm:$0xff]
  %v162 = vld [vmem:[%s1] sm:$0xff]
  %v163 = vld [vmem:[%s1 + $0x8] sm:$0xff]
  %v164 = vld [vmem:[%s1 + $0x10] sm:$0xff]
  %v165 = vld [vmem:[%s1 + $0x18] sm:$0xff]
  %v166 = vld [vmem:[%s1 + $0x20] sm:$0xff]
  %v167 = vld [vmem:[%s1 + $0x28] sm:$0xff]
  %v168 = vld [vmem:[%s1 + $0x30] sm:$0xff]
  %v169 = vld [vmem:[%s1 + $0x38] sm:$0xff]
  %v170 = vld [vmem:[%s1 + $0x40] sm:$0xff]
  %v171 = vld [vmem:[%s1 + $0x48] sm:$0xff]
  %v172 = vld [vmem:[%s1 + $0x50] sm:$0xff]
  %v173 = vld [vmem:[%s1 + $0x58] sm:$0xff]
  %v174 = vld [vmem:[%s1 + $0x60] sm:$0xff]
  %v175 = vld [vmem:[%s1 + $0x68] sm:$0xff]
  %v176 = vld [vmem:[%s1 + $0x70] sm:$0xff]
  %v177 = vld [vmem:[%s1 + $0x78] sm:$0xff]
  %vm178 = vcmask 261120
  %v180 = vsel %vm178, %v146, 0
  %v183 = vsel %vm178, %v147, 0
  %v186 = vsel %vm178, %v148, 0
  %v189 = vsel %vm178, %v149, 0
  %v192 = vsel %vm178, %v150, 0
  %v195 = vsel %vm178, %v151, 0
  %v198 = vsel %vm178, %v152, 0
  %v201 = vsel %vm178, %v153, 0
  %v204 = vsel %vm178, %v154, 0
  %v207 = vsel %vm178, %v155, 0
  %v210 = vsel %vm178, %v156, 0
  %v213 = vsel %vm178, %v157, 0
  %v216 = vsel %vm178, %v158, 0
  %v219 = vsel %vm178, %v159, 0
  %v222 = vsel %vm178, %v160, 0
  %v225 = vsel %vm178, %v161, 0
  %227 = vmatpush.msra.mxu0 0.0
  %228 = vmatpush.msra.mxu0 0.0
  %229 = vmatpush.msra.mxu0 0.0
  %230 = vmatpush.msra.mxu0 0.0
  %231 = vmatpush.msra.mxu0 0.0
  %232 = vmatpush.msra.mxu0 0.0
  %233 = vmatpush.msra.mxu0 0.0
  %234 = vmatpush.msra.mxu0 0.0
  %235 = vmatpush.msra.mxu0 0.0
  %236 = vmatpush.msra.mxu0 0.0
  %237 = vmatpush.msra.mxu0 0.0
  %238 = vmatpush.msra.mxu0 0.0
  %239 = vmatpush.msra.mxu0 %v174
  %240 = vmatpush.msra.mxu0 %v170
  %241 = vmatpush.msra.mxu0 %v166
  %242 = vmatpush.msra.mxu0 %v162
  %243 = vmatmul.f32.gmra.mxu0 %v180
  %v244 = vpop.f32.mrf.mxu0
  %v245 = vadd.f32 0.0, %v244
  %246 = vmatmul.f32.gmra.mxu0 %v183
  %v247 = vpop.f32.mrf.mxu0
  %v248 = vadd.f32 0.0, %v247
  %249 = vmatmul.f32.gmra.mxu0 %v186
  %v250 = vpop.f32.mrf.mxu0
  %v251 = vadd.f32 0.0, %v250
  %252 = vmatmul.f32.gmra.mxu0 %v189
  %v253 = vpop.f32.mrf.mxu0
  %v254 = vadd.f32 0.0, %v253
  %255 = vmatmul.f32.gmra.mxu0 %v192
  %v256 = vpop.f32.mrf.mxu0
  %v257 = vadd.f32 0.0, %v256
  %258 = vmatmul.f32.gmra.mxu0 %v195
  %v259 = vpop.f32.mrf.mxu0
  %v260 = vadd.f32 0.0, %v259
  %261 = vmatmul.f32.gmra.mxu0 %v198
  %v262 = vpop.f32.mrf.mxu0
  %v263 = vadd.f32 0.0, %v262
  %264 = vmatmul.f32.gmra.mxu0 %v201
  %v265 = vpop.f32.mrf.mxu0
  %v266 = vadd.f32 0.0, %v265
  %267 = vmatmul.f32.gmra.mxu0 %v204
  %v268 = vpop.f32.mrf.mxu0
  %v269 = vadd.f32 0.0, %v268
  %270 = vmatmul.f32.gmra.mxu0 %v207
  %v271 = vpop.f32.mrf.mxu0
  %v272 = vadd.f32 0.0, %v271
  %273 = vmatmul.f32.gmra.mxu0 %v210
  %v274 = vpop.f32.mrf.mxu0
  %v275 = vadd.f32 0.0, %v274
  %276 = vmatmul.f32.gmra.mxu0 %v213
  %v277 = vpop.f32.mrf.mxu0
  %v278 = vadd.f32 0.0, %v277
  %279 = vmatmul.f32.gmra.mxu0 %v216
  %v280 = vpop.f32.mrf.mxu0
  %v281 = vadd.f32 0.0, %v280
  %282 = vmatmul.f32.gmra.mxu0 %v219
  %v283 = vpop.f32.mrf.mxu0
  %v284 = vadd.f32 0.0, %v283
  %285 = vmatmul.f32.gmra.mxu0 %v222
  %v286 = vpop.f32.mrf.mxu0
  %v287 = vadd.f32 0.0, %v286
  %288 = vmatmul.f32.gmra.mxu0 %v225
  %v289 = vpop.f32.mrf.mxu0
  %v290 = vadd.f32 0.0, %v289
  %291 = vdwg.mxu0
  %292 = vmatpush.msra.mxu0 0.0
  %293 = vmatpush.msra.mxu0 0.0
  %294 = vmatpush.msra.mxu0 0.0
  %295 = vmatpush.msra.mxu0 0.0
  %296 = vmatpush.msra.mxu0 0.0
  %297 = vmatpush.msra.mxu0 0.0
  %298 = vmatpush.msra.mxu0 0.0
  %299 = vmatpush.msra.mxu0 0.0
  %300 = vmatpush.msra.mxu0 0.0
  %301 = vmatpush.msra.mxu0 0.0
  %302 = vmatpush.msra.mxu0 0.0
  %303 = vmatpush.msra.mxu0 0.0
  %304 = vmatpush.msra.mxu0 %v175
  %305 = vmatpush.msra.mxu0 %v171
  %306 = vmatpush.msra.mxu0 %v167
  %307 = vmatpush.msra.mxu0 %v163
  %308 = vmatmul.f32.gmra.mxu0 %v180
  %v309 = vpop.f32.mrf.mxu0
  %v310 = vadd.f32 0.0, %v309
  %311 = vmatmul.f32.gmra.mxu0 %v183
  %v312 = vpop.f32.mrf.mxu0
  %v313 = vadd.f32 0.0, %v312
  %314 = vmatmul.f32.gmra.mxu0 %v186
  %v315 = vpop.f32.mrf.mxu0
  %v316 = vadd.f32 0.0, %v315
  %317 = vmatmul.f32.gmra.mxu0 %v189
  %v318 = vpop.f32.mrf.mxu0
  %v319 = vadd.f32 0.0, %v318
  %320 = vmatmul.f32.gmra.mxu0 %v192
  %v321 = vpop.f32.mrf.mxu0
  %v322 = vadd.f32 0.0, %v321
  %323 = vmatmul.f32.gmra.mxu0 %v195
  %v324 = vpop.f32.mrf.mxu0
  %v325 = vadd.f32 0.0, %v324
  %326 = vmatmul.f32.gmra.mxu0 %v198
  %v327 = vpop.f32.mrf.mxu0
  %v328 = vadd.f32 0.0, %v327
  %329 = vmatmul.f32.gmra.mxu0 %v201
  %v330 = vpop.f32.mrf.mxu0
  %v331 = vadd.f32 0.0, %v330
  %332 = vmatmul.f32.gmra.mxu0 %v204
  %v333 = vpop.f32.mrf.mxu0
  %v334 = vadd.f32 0.0, %v333
  %335 = vmatmul.f32.gmra.mxu0 %v207
  %v336 = vpop.f32.mrf.mxu0
  %v337 = vadd.f32 0.0, %v336
  %338 = vmatmul.f32.gmra.mxu0 %v210
  %v339 = vpop.f32.mrf.mxu0
  %v340 = vadd.f32 0.0, %v339
  %341 = vmatmul.f32.gmra.mxu0 %v213
  %v342 = vpop.f32.mrf.mxu0
  %v343 = vadd.f32 0.0, %v342
  %344 = vmatmul.f32.gmra.mxu0 %v216
  %v345 = vpop.f32.mrf.mxu0
  %v346 = vadd.f32 0.0, %v345
  %347 = vmatmul.f32.gmra.mxu0 %v219
  %v348 = vpop.f32.mrf.mxu0
  %v349 = vadd.f32 0.0, %v348
  %350 = vmatmul.f32.gmra.mxu0 %v222
  %v351 = vpop.f32.mrf.mxu0
  %v352 = vadd.f32 0.0, %v351
  %353 = vmatmul.f32.gmra.mxu0 %v225
  %v354 = vpop.f32.mrf.mxu0
  %v355 = vadd.f32 0.0, %v354
  %356 = vdwg.mxu0
  %357 = vmatpush.msra.mxu0 0.0
  %358 = vmatpush.msra.mxu0 0.0
  %359 = vmatpush.msra.mxu0 0.0
  %360 = vmatpush.msra.mxu0 0.0
  %361 = vmatpush.msra.mxu0 0.0
  %362 = vmatpush.msra.mxu0 0.0
  %363 = vmatpush.msra.mxu0 0.0
  %364 = vmatpush.msra.mxu0 0.0
  %365 = vmatpush.msra.mxu0 0.0
  %366 = vmatpush.msra.mxu0 0.0
  %367 = vmatpush.msra.mxu0 0.0
  %368 = vmatpush.msra.mxu0 0.0
  %369 = vmatpush.msra.mxu0 %v176
  %370 = vmatpush.msra.mxu0 %v172
  %371 = vmatpush.msra.mxu0 %v168
  %372 = vmatpush.msra.mxu0 %v164
  %373 = vmatmul.f32.gmra.mxu0 %v180
  %v374 = vpop.f32.mrf.mxu0
  %v375 = vadd.f32 0.0, %v374
  %376 = vmatmul.f32.gmra.mxu0 %v183
  %v377 = vpop.f32.mrf.mxu0
  %v378 = vadd.f32 0.0, %v377
  %379 = vmatmul.f32.gmra.mxu0 %v186
  %v380 = vpop.f32.mrf.mxu0
  %v381 = vadd.f32 0.0, %v380
  %382 = vmatmul.f32.gmra.mxu0 %v189
  %v383 = vpop.f32.mrf.mxu0
  %v384 = vadd.f32 0.0, %v383
  %385 = vmatmul.f32.gmra.mxu0 %v192
  %v386 = vpop.f32.mrf.mxu0
  %v387 = vadd.f32 0.0, %v386
  %388 = vmatmul.f32.gmra.mxu0 %v195
  %v389 = vpop.f32.mrf.mxu0
  %v390 = vadd.f32 0.0, %v389
  %391 = vmatmul.f32.gmra.mxu0 %v198
  %v392 = vpop.f32.mrf.mxu0
  %v393 = vadd.f32 0.0, %v392
  %394 = vmatmul.f32.gmra.mxu0 %v201
  %v395 = vpop.f32.mrf.mxu0
  %v396 = vadd.f32 0.0, %v395
  %397 = vmatmul.f32.gmra.mxu0 %v204
  %v398 = vpop.f32.mrf.mxu0
  %v399 = vadd.f32 0.0, %v398
  %400 = vmatmul.f32.gmra.mxu0 %v207
  %v401 = vpop.f32.mrf.mxu0
  %v402 = vadd.f32 0.0, %v401
  %403 = vmatmul.f32.gmra.mxu0 %v210
  %v404 = vpop.f32.mrf.mxu0
  %v405 = vadd.f32 0.0, %v404
  %406 = vmatmul.f32.gmra.mxu0 %v213
  %v407 = vpop.f32.mrf.mxu0
  %v408 = vadd.f32 0.0, %v407
  %409 = vmatmul.f32.gmra.mxu0 %v216
  %v410 = vpop.f32.mrf.mxu0
  %v411 = vadd.f32 0.0, %v410
  %412 = vmatmul.f32.gmra.mxu0 %v219
  %v413 = vpop.f32.mrf.mxu0
  %v414 = vadd.f32 0.0, %v413
  %415 = vmatmul.f32.gmra.mxu0 %v222
  %v416 = vpop.f32.mrf.mxu0
  %v417 = vadd.f32 0.0, %v416
  %418 = vmatmul.f32.gmra.mxu0 %v225
  %v419 = vpop.f32.mrf.mxu0
  %v420 = vadd.f32 0.0, %v419
  %421 = vdwg.mxu0
  %422 = vmatpush.msra.mxu0 0.0
  %423 = vmatpush.msra.mxu0 0.0
  %424 = vmatpush.msra.mxu0 0.0
  %425 = vmatpush.msra.mxu0 0.0
  %426 = vmatpush.msra.mxu0 0.0
  %427 = vmatpush.msra.mxu0 0.0
  %428 = vmatpush.msra.mxu0 0.0
  %429 = vmatpush.msra.mxu0 0.0
  %430 = vmatpush.msra.mxu0 0.0
  %431 = vmatpush.msra.mxu0 0.0
  %432 = vmatpush.msra.mxu0 0.0
  %433 = vmatpush.msra.mxu0 0.0
  %434 = vmatpush.msra.mxu0 %v177
  %435 = vmatpush.msra.mxu0 %v173
  %436 = vmatpush.msra.mxu0 %v169
  %437 = vmatpush.msra.mxu0 %v165
  %438 = vmatmul.f32.gmra.mxu0 %v180
  %v439 = vpop.f32.mrf.mxu0
  %v440 = vadd.f32 0.0, %v439
  %441 = vmatmul.f32.gmra.mxu0 %v183
  %v442 = vpop.f32.mrf.mxu0
  %v443 = vadd.f32 0.0, %v442
  %444 = vmatmul.f32.gmra.mxu0 %v186
  %v445 = vpop.f32.mrf.mxu0
  %v446 = vadd.f32 0.0, %v445
  %447 = vmatmul.f32.gmra.mxu0 %v189
  %v448 = vpop.f32.mrf.mxu0
  %v449 = vadd.f32 0.0, %v448
  %450 = vmatmul.f32.gmra.mxu0 %v192
  %v451 = vpop.f32.mrf.mxu0
  %v452 = vadd.f32 0.0, %v451
  %453 = vmatmul.f32.gmra.mxu0 %v195
  %v454 = vpop.f32.mrf.mxu0
  %v455 = vadd.f32 0.0, %v454
  %456 = vmatmul.f32.gmra.mxu0 %v198
  %v457 = vpop.f32.mrf.mxu0
  %v458 = vadd.f32 0.0, %v457
  %459 = vmatmul.f32.gmra.mxu0 %v201
  %v460 = vpop.f32.mrf.mxu0
  %v461 = vadd.f32 0.0, %v460
  %462 = vmatmul.f32.gmra.mxu0 %v204
  %v463 = vpop.f32.mrf.mxu0
  %v464 = vadd.f32 0.0, %v463
  %465 = vmatmul.f32.gmra.mxu0 %v207
  %v466 = vpop.f32.mrf.mxu0
  %v467 = vadd.f32 0.0, %v466
  %468 = vmatmul.f32.gmra.mxu0 %v210
  %v469 = vpop.f32.mrf.mxu0
  %v470 = vadd.f32 0.0, %v469
  %471 = vmatmul.f32.gmra.mxu0 %v213
  %v472 = vpop.f32.mrf.mxu0
  %v473 = vadd.f32 0.0, %v472
  %474 = vmatmul.f32.gmra.mxu0 %v216
  %v475 = vpop.f32.mrf.mxu0
  %v476 = vadd.f32 0.0, %v475
  %477 = vmatmul.f32.gmra.mxu0 %v219
  %v478 = vpop.f32.mrf.mxu0
  %v479 = vadd.f32 0.0, %v478
  %480 = vmatmul.f32.gmra.mxu0 %v222
  %v481 = vpop.f32.mrf.mxu0
  %v482 = vadd.f32 0.0, %v481
  %483 = vmatmul.f32.gmra.mxu0 %v225
  %v484 = vpop.f32.mrf.mxu0
  %v485 = vadd.f32 0.0, %v484
  %486 = vdwg.mxu0
  %v487 = vadd.f32 %v82, %v245
  %v488 = vadd.f32 %v83, %v310
  %v489 = vadd.f32 %v84, %v375
  %v490 = vadd.f32 %v85, %v440
  %v491 = vadd.f32 %v86, %v248
  %v492 = vadd.f32 %v87, %v313
  %v493 = vadd.f32 %v88, %v378
  %v494 = vadd.f32 %v89, %v443
  %v495 = vadd.f32 %v90, %v251
  %v496 = vadd.f32 %v91, %v316
  %v497 = vadd.f32 %v92, %v381
  %v498 = vadd.f32 %v93, %v446
  %v499 = vadd.f32 %v94, %v254
  %v500 = vadd.f32 %v95, %v319
  %v501 = vadd.f32 %v96, %v384
  %v502 = vadd.f32 %v97, %v449
  %v503 = vadd.f32 %v98, %v257
  %v504 = vadd.f32 %v99, %v322
  %v505 = vadd.f32 %v100, %v387
  %v506 = vadd.f32 %v101, %v452
  %v507 = vadd.f32 %v102, %v260
  %v508 = vadd.f32 %v103, %v325
  %v509 = vadd.f32 %v104, %v390
  %v510 = vadd.f32 %v105, %v455
  %v511 = vadd.f32 %v106, %v263
  %v512 = vadd.f32 %v107, %v328
  %v513 = vadd.f32 %v108, %v393
  %v514 = vadd.f32 %v109, %v458
  %v515 = vadd.f32 %v110, %v266
  %v516 = vadd.f32 %v111, %v331
  %v517 = vadd.f32 %v112, %v396
  %v518 = vadd.f32 %v113, %v461
  %v519 = vadd.f32 %v114, %v269
  %v520 = vadd.f32 %v115, %v334
  %v521 = vadd.f32 %v116, %v399
  %v522 = vadd.f32 %v117, %v464
  %v523 = vadd.f32 %v118, %v272
  %v524 = vadd.f32 %v119, %v337
  %v525 = vadd.f32 %v120, %v402
  %v526 = vadd.f32 %v121, %v467
  %v527 = vadd.f32 %v122, %v275
  %v528 = vadd.f32 %v123, %v340
  %v529 = vadd.f32 %v124, %v405
  %v530 = vadd.f32 %v125, %v470
  %v531 = vadd.f32 %v126, %v278
  %v532 = vadd.f32 %v127, %v343
  %v533 = vadd.f32 %v128, %v408
  %v534 = vadd.f32 %v129, %v473
  %v535 = vadd.f32 %v130, %v281
  %v536 = vadd.f32 %v131, %v346
  %v537 = vadd.f32 %v132, %v411
  %v538 = vadd.f32 %v133, %v476
  %v539 = vadd.f32 %v134, %v284
  %v540 = vadd.f32 %v135, %v349
  %v541 = vadd.f32 %v136, %v414
  %v542 = vadd.f32 %v137, %v479
  %v543 = vadd.f32 %v138, %v287
  %v544 = vadd.f32 %v139, %v352
  %v545 = vadd.f32 %v140, %v417
  %v546 = vadd.f32 %v141, %v482
  %v547 = vadd.f32 %v142, %v290
  %v548 = vadd.f32 %v143, %v355
  %v549 = vadd.f32 %v144, %v420
  %v550 = vadd.f32 %v145, %v485
  %551 = vst [vmem:[#allocation2] sm:$0xff] %v487
  %552 = vst [vmem:[#allocation2 + $0x8] sm:$0xff] %v488
  %553 = vst [vmem:[#allocation2 + $0x10] sm:$0xff] %v489
  %554 = vst [vmem:[#allocation2 + $0x18] sm:$0xff] %v490
  %555 = vst [vmem:[#allocation2 + $0x20] sm:$0xff] %v491
  %556 = vst [vmem:[#allocation2 + $0x28] sm:$0xff] %v492
  %557 = vst [vmem:[#allocation2 + $0x30] sm:$0xff] %v493
  %558 = vst [vmem:[#allocation2 + $0x38] sm:$0xff] %v494
  %559 = vst [vmem:[#allocation2 + $0x40] sm:$0xff] %v495
  %560 = vst [vmem:[#allocation2 + $0x48] sm:$0xff] %v496
  %561 = vst [vmem:[#allocation2 + $0x50] sm:$0xff] %v497
  %562 = vst [vmem:[#allocation2 + $0x58] sm:$0xff] %v498
  %563 = vst [vmem:[#allocation2 + $0x60] sm:$0xff] %v499
  %564 = vst [vmem:[#allocation2 + $0x68] sm:$0xff] %v500
  %565 = vst [vmem:[#allocation2 + $0x70] sm:$0xff] %v501
  %566 = vst [vmem:[#allocation2 + $0x78] sm:$0xff] %v502
  %567 = vst [vmem:[#allocation2 + $0x80] sm:$0xff] %v503
  %568 = vst [vmem:[#allocation2 + $0x88] sm:$0xff] %v504
  %569 = vst [vmem:[#allocation2 + $0x90] sm:$0xff] %v505
  %570 = vst [vmem:[#allocation2 + $0x98] sm:$0xff] %v506
  %571 = vst [vmem:[#allocation2 + $0xa0] sm:$0xff] %v507
  %572 = vst [vmem:[#allocation2 + $0xa8] sm:$0xff] %v508
  %573 = vst [vmem:[#allocation2 + $0xb0] sm:$0xff] %v509
  %574 = vst [vmem:[#allocation2 + $0xb8] sm:$0xff] %v510
  %575 = vst [vmem:[#allocation2 + $0xc0] sm:$0xff] %v511
  %576 = vst [vmem:[#allocation2 + $0xc8] sm:$0xff] %v512
  %577 = vst [vmem:[#allocation2 + $0xd0] sm:$0xff] %v513
  %578 = vst [vmem:[#allocation2 + $0xd8] sm:$0xff] %v514
  %579 = vst [vmem:[#allocation2 + $0xe0] sm:$0xff] %v515
  %580 = vst [vmem:[#allocation2 + $0xe8] sm:$0xff] %v516
  %581 = vst [vmem:[#allocation2 + $0xf0] sm:$0xff] %v517
  %582 = vst [vmem:[#allocation2 + $0xf8] sm:$0xff] %v518
  %583 = vst [vmem:[#allocation2 + $0x100] sm:$0xff] %v519
  %584 = vst [vmem:[#allocation2 + $0x108] sm:$0xff] %v520
  %585 = vst [vmem:[#allocation2 + $0x110] sm:$0xff] %v521
  %586 = vst [vmem:[#allocation2 + $0x118] sm:$0xff] %v522
  %587 = vst [vmem:[#allocation2 + $0x120] sm:$0xff] %v523
  %588 = vst [vmem:[#allocation2 + $0x128] sm:$0xff] %v524
  %589 = vst [vmem:[#allocation2 + $0x130] sm:$0xff] %v525
  %590 = vst [vmem:[#allocation2 + $0x138] sm:$0xff] %v526
  %591 = vst [vmem:[#allocation2 + $0x140] sm:$0xff] %v527
  %592 = vst [vmem:[#allocation2 + $0x148] sm:$0xff] %v528
  %593 = vst [vmem:[#allocation2 + $0x150] sm:$0xff] %v529
  %594 = vst [vmem:[#allocation2 + $0x158] sm:$0xff] %v530
  %595 = vst [vmem:[#allocation2 + $0x160] sm:$0xff] %v531
  %596 = vst [vmem:[#allocation2 + $0x168] sm:$0xff] %v532
  %597 = vst [vmem:[#allocation2 + $0x170] sm:$0xff] %v533
  %598 = vst [vmem:[#allocation2 + $0x178] sm:$0xff] %v534
  %599 = vst [vmem:[#allocation2 + $0x180] sm:$0xff] %v535
  %600 = vst [vmem:[#allocation2 + $0x188] sm:$0xff] %v536
  %601 = vst [vmem:[#allocation2 + $0x190] sm:$0xff] %v537
  %602 = vst [vmem:[#allocation2 + $0x198] sm:$0xff] %v538
  %603 = vst [vmem:[#allocation2 + $0x1a0] sm:$0xff] %v539
  %604 = vst [vmem:[#allocation2 + $0x1a8] sm:$0xff] %v540
  %605 = vst [vmem:[#allocation2 + $0x1b0] sm:$0xff] %v541
  %606 = vst [vmem:[#allocation2 + $0x1b8] sm:$0xff] %v542
  %607 = vst [vmem:[#allocation2 + $0x1c0] sm:$0xff] %v543
  %608 = vst [vmem:[#allocation2 + $0x1c8] sm:$0xff] %v544
  %609 = vst [vmem:[#allocation2 + $0x1d0] sm:$0xff] %v545
  %610 = vst [vmem:[#allocation2 + $0x1d8] sm:$0xff] %v546
  %611 = vst [vmem:[#allocation2 + $0x1e0] sm:$0xff] %v547
  %612 = vst [vmem:[#allocation2 + $0x1e8] sm:$0xff] %v548
  %613 = vst [vmem:[#allocation2 + $0x1f0] sm:$0xff] %v549
  %614 = vst [vmem:[#allocation2 + $0x1f8] sm:$0xff] %v550
  // Predicated region
  $region18: #{decoder_rnn_forward.3} parent=0 // pred_check
    %p615 = pneg %p14
  $region19: #{decoder_rnn_forward.3} parent=0 // pred_check_branch
    %617 = sbr.rel (%p615) target = $region21
  $region20: #{decoder_rnn_forward.3} parent=0 // pred_region
    %v618 = vld [vmem:[#allocation2] sm:$0xff]
    %v619 = vld [vmem:[#allocation2 + $0x8] sm:$0xff]
    %v620 = vld [vmem:[#allocation2 + $0x10] sm:$0xff]
    %v621 = vld [vmem:[#allocation2 + $0x18] sm:$0xff]
    %v622 = vld [vmem:[#allocation2 + $0x20] sm:$0xff]
    %v623 = vld [vmem:[#allocation2 + $0x28] sm:$0xff]
    %v624 = vld [vmem:[#allocation2 + $0x30] sm:$0xff]
    %v625 = vld [vmem:[#allocation2 + $0x38] sm:$0xff]
    %v626 = vld [vmem:[#allocation2 + $0x40] sm:$0xff]
    %v627 = vld [vmem:[#allocation2 + $0x48] sm:$0xff]
    %v628 = vld [vmem:[#allocation2 + $0x50] sm:$0xff]
    %v629 = vld [vmem:[#allocation2 + $0x58] sm:$0xff]
    %v630 = vld [vmem:[#allocation2 + $0x60] sm:$0xff]
    %v631 = vld [vmem:[#allocation2 + $0x68] sm:$0xff]
    %v632 = vld [vmem:[#allocation2 + $0x70] sm:$0xff]
    %v633 = vld [vmem:[#allocation2 + $0x78] sm:$0xff]
    %v634 = vld [vmem:[#allocation2 + $0x80] sm:$0xff]
    %v635 = vld [vmem:[#allocation2 + $0x88] sm:$0xff]
    %v636 = vld [vmem:[#allocation2 + $0x90] sm:$0xff]
    %v637 = vld [vmem:[#allocation2 + $0x98] sm:$0xff]
    %v638 = vld [vmem:[#allocation2 + $0xa0] sm:$0xff]
    %v639 = vld [vmem:[#allocation2 + $0xa8] sm:$0xff]
    %v640 = vld [vmem:[#allocation2 + $0xb0] sm:$0xff]
    %v641 = vld [vmem:[#allocation2 + $0xb8] sm:$0xff]
    %v642 = vld [vmem:[#allocation2 + $0xc0] sm:$0xff]
    %v643 = vld [vmem:[#allocation2 + $0xc8] sm:$0xff]
    %v644 = vld [vmem:[#allocation2 + $0xd0] sm:$0xff]
    %v645 = vld [vmem:[#allocation2 + $0xd8] sm:$0xff]
    %v646 = vld [vmem:[#allocation2 + $0xe0] sm:$0xff]
    %v647 = vld [vmem:[#allocation2 + $0xe8] sm:$0xff]
    %v648 = vld [vmem:[#allocation2 + $0xf0] sm:$0xff]
    %v649 = vld [vmem:[#allocation2 + $0xf8] sm:$0xff]
    %v650 = vld [vmem:[#allocation2 + $0x100] sm:$0xff]
    %v651 = vld [vmem:[#allocation2 + $0x108] sm:$0xff]
    %v652 = vld [vmem:[#allocation2 + $0x110] sm:$0xff]
    %v653 = vld [vmem:[#allocation2 + $0x118] sm:$0xff]
    %v654 = vld [vmem:[#allocation2 + $0x120] sm:$0xff]
    %v655 = vld [vmem:[#allocation2 + $0x128] sm:$0xff]
    %v656 = vld [vmem:[#allocation2 + $0x130] sm:$0xff]
    %v657 = vld [vmem:[#allocation2 + $0x138] sm:$0xff]
    %v658 = vld [vmem:[#allocation2 + $0x140] sm:$0xff]
    %v659 = vld [vmem:[#allocation2 + $0x148] sm:$0xff]
    %v660 = vld [vmem:[#allocation2 + $0x150] sm:$0xff]
    %v661 = vld [vmem:[#allocation2 + $0x158] sm:$0xff]
    %v662 = vld [vmem:[#allocation2 + $0x160] sm:$0xff]
    %v663 = vld [vmem:[#allocation2 + $0x168] sm:$0xff]
    %v664 = vld [vmem:[#allocation2 + $0x170] sm:$0xff]
    %v665 = vld [vmem:[#allocation2 + $0x178] sm:$0xff]
    %v666 = vld [vmem:[#allocation2 + $0x180] sm:$0xff]
    %v667 = vld [vmem:[#allocation2 + $0x188] sm:$0xff]
    %v668 = vld [vmem:[#allocation2 + $0x190] sm:$0xff]
    %v669 = vld [vmem:[#allocation2 + $0x198] sm:$0xff]
    %v670 = vld [vmem:[#allocation2 + $0x1a0] sm:$0xff]
    %v671 = vld [vmem:[#allocation2 + $0x1a8] sm:$0xff]
    %v672 = vld [vmem:[#allocation2 + $0x1b0] sm:$0xff]
    %v673 = vld [vmem:[#allocation2 + $0x1b8] sm:$0xff]
    %v674 = vld [vmem:[#allocation2 + $0x1c0] sm:$0xff]
    %v675 = vld [vmem:[#allocation2 + $0x1c8] sm:$0xff]
    %v676 = vld [vmem:[#allocation2 + $0x1d0] sm:$0xff]
    %v677 = vld [vmem:[#allocation2 + $0x1d8] sm:$0xff]
    %v678 = vld [vmem:[#allocation2 + $0x1e0] sm:$0xff]
    %v679 = vld [vmem:[#allocation2 + $0x1e8] sm:$0xff]
    %v680 = vld [vmem:[#allocation2 + $0x1f0] sm:$0xff]
    %v681 = vld [vmem:[#allocation2 + $0x1f8] sm:$0xff]
    %v682 = vld [vmem:[%s2] sm:$0xf]
    %v684 = vperm.slane %v682, 0
    %v685 = vperm.slane %v682, 1
    %v686 = vperm.slane %v682, 2
    %v687 = vperm.slane %v682, 3
    %v692 = vadd.f32 %v618, %v684
    %v693 = vadd.f32 %v619, %v685
    %v694 = vadd.f32 %v620, %v686
    %v695 = vadd.f32 %v621, %v687
    %v696 = vadd.f32 %v622, %v684
    %v697 = vadd.f32 %v623, %v685
    %v698 = vadd.f32 %v624, %v686
    %v699 = vadd.f32 %v625, %v687
    %v700 = vadd.f32 %v626, %v684
    %v701 = vadd.f32 %v627, %v685
    %v702 = vadd.f32 %v628, %v686
    %v703 = vadd.f32 %v629, %v687
    %v704 = vadd.f32 %v630, %v684
    %v705 = vadd.f32 %v631, %v685
    %v706 = vadd.f32 %v632, %v686
    %v707 = vadd.f32 %v633, %v687
    %v708 = vadd.f32 %v634, %v684
    %v709 = vadd.f32 %v635, %v685
    %v710 = vadd.f32 %v636, %v686
    %v711 = vadd.f32 %v637, %v687
    %v712 = vadd.f32 %v638, %v684
    %v713 = vadd.f32 %v639, %v685
    %v714 = vadd.f32 %v640, %v686
    %v715 = vadd.f32 %v641, %v687
    %v716 = vadd.f32 %v642, %v684
    %v717 = vadd.f32 %v643, %v685
    %v718 = vadd.f32 %v644, %v686
    %v719 = vadd.f32 %v645, %v687
    %v720 = vadd.f32 %v646, %v684
    %v721 = vadd.f32 %v647, %v685
    %v722 = vadd.f32 %v648, %v686
    %v723 = vadd.f32 %v649, %v687
    %v724 = vadd.f32 %v650, %v684
    %v725 = vadd.f32 %v651, %v685
    %v726 = vadd.f32 %v652, %v686
    %v727 = vadd.f32 %v653, %v687
    %v728 = vadd.f32 %v654, %v684
    %v729 = vadd.f32 %v655, %v685
    %v730 = vadd.f32 %v656, %v686
    %v731 = vadd.f32 %v657, %v687
    %v732 = vadd.f32 %v658, %v684
    %v733 = vadd.f32 %v659, %v685
    %v734 = vadd.f32 %v660, %v686
    %v735 = vadd.f32 %v661, %v687
    %v736 = vadd.f32 %v662, %v684
    %v737 = vadd.f32 %v663, %v685
    %v738 = vadd.f32 %v664, %v686
    %v739 = vadd.f32 %v665, %v687
    %v740 = vadd.f32 %v666, %v684
    %v741 = vadd.f32 %v667, %v685
    %v742 = vadd.f32 %v668, %v686
    %v743 = vadd.f32 %v669, %v687
    %v744 = vadd.f32 %v670, %v684
    %v745 = vadd.f32 %v671, %v685
    %v746 = vadd.f32 %v672, %v686
    %v747 = vadd.f32 %v673, %v687
    %v748 = vadd.f32 %v674, %v684
    %v749 = vadd.f32 %v675, %v685
    %v750 = vadd.f32 %v676, %v686
    %v751 = vadd.f32 %v677, %v687
    %v752 = vadd.f32 %v678, %v684
    %v753 = vadd.f32 %v679, %v685
    %v754 = vadd.f32 %v680, %v686
    %v755 = vadd.f32 %v681, %v687
    %756 = vst [vmem:[%s3] sm:$0xff] %v692
    %757 = vst [vmem:[%s3 + $0x8] sm:$0xff] %v693
    %758 = vst [vmem:[%s3 + $0x10] sm:$0xff] %v694
    %759 = vst [vmem:[%s3 + $0x18] sm:$0xff] %v695
    %760 = vst [vmem:[%s3 + $0x20] sm:$0xff] %v696
    %761 = vst [vmem:[%s3 + $0x28] sm:$0xff] %v697
    %762 = vst [vmem:[%s3 + $0x30] sm:$0xff] %v698
    %763 = vst [vmem:[%s3 + $0x38] sm:$0xff] %v699
    %764 = vst [vmem:[%s3 + $0x40] sm:$0xff] %v700
    %765 = vst [vmem:[%s3 + $0x48] sm:$0xff] %v701
    %766 = vst [vmem:[%s3 + $0x50] sm:$0xff] %v702
    %767 = vst [vmem:[%s3 + $0x58] sm:$0xff] %v703
    %768 = vst [vmem:[%s3 + $0x60] sm:$0xff] %v704
    %769 = vst [vmem:[%s3 + $0x68] sm:$0xff] %v705
    %770 = vst [vmem:[%s3 + $0x70] sm:$0xff] %v706
    %771 = vst [vmem:[%s3 + $0x78] sm:$0xff] %v707
    %772 = vst [vmem:[%s3 + $0x80] sm:$0xff] %v708
    %773 = vst [vmem:[%s3 + $0x88] sm:$0xff] %v709
    %774 = vst [vmem:[%s3 + $0x90] sm:$0xff] %v710
    %775 = vst [vmem:[%s3 + $0x98] sm:$0xff] %v711
    %776 = vst [vmem:[%s3 + $0xa0] sm:$0xff] %v712
    %777 = vst [vmem:[%s3 + $0xa8] sm:$0xff] %v713
    %778 = vst [vmem:[%s3 + $0xb0] sm:$0xff] %v714
    %779 = vst [vmem:[%s3 + $0xb8] sm:$0xff] %v715
    %780 = vst [vmem:[%s3 + $0xc0] sm:$0xff] %v716
    %781 = vst [vmem:[%s3 + $0xc8] sm:$0xff] %v717
    %782 = vst [vmem:[%s3 + $0xd0] sm:$0xff] %v718
    %783 = vst [vmem:[%s3 + $0xd8] sm:$0xff] %v719
    %784 = vst [vmem:[%s3 + $0xe0] sm:$0xff] %v720
    %785 = vst [vmem:[%s3 + $0xe8] sm:$0xff] %v721
    %786 = vst [vmem:[%s3 + $0xf0] sm:$0xff] %v722
    %787 = vst [vmem:[%s3 + $0xf8] sm:$0xff] %v723
    %788 = vst [vmem:[%s3 + $0x100] sm:$0xff] %v724
    %789 = vst [vmem:[%s3 + $0x108] sm:$0xff] %v725
    %790 = vst [vmem:[%s3 + $0x110] sm:$0xff] %v726
    %791 = vst [vmem:[%s3 + $0x118] sm:$0xff] %v727
    %792 = vst [vmem:[%s3 + $0x120] sm:$0xff] %v728
    %793 = vst [vmem:[%s3 + $0x128] sm:$0xff] %v729
    %794 = vst [vmem:[%s3 + $0x130] sm:$0xff] %v730
    %795 = vst [vmem:[%s3 + $0x138] sm:$0xff] %v731
    %796 = vst [vmem:[%s3 + $0x140] sm:$0xff] %v732
    %797 = vst [vmem:[%s3 + $0x148] sm:$0xff] %v733
    %798 = vst [vmem:[%s3 + $0x150] sm:$0xff] %v734
    %799 = vst [vmem:[%s3 + $0x158] sm:$0xff] %v735
    %800 = vst [vmem:[%s3 + $0x160] sm:$0xff] %v736
    %801 = vst [vmem:[%s3 + $0x168] sm:$0xff] %v737
    %802 = vst [vmem:[%s3 + $0x170] sm:$0xff] %v738
    %803 = vst [vmem:[%s3 + $0x178] sm:$0xff] %v739
    %804 = vst [vmem:[%s3 + $0x180] sm:$0xff] %v740
    %805 = vst [vmem:[%s3 + $0x188] sm:$0xff] %v741
    %806 = vst [vmem:[%s3 + $0x190] sm:$0xff] %v742
    %807 = vst [vmem:[%s3 + $0x198] sm:$0xff] %v743
    %808 = vst [vmem:[%s3 + $0x1a0] sm:$0xff] %v744
    %809 = vst [vmem:[%s3 + $0x1a8] sm:$0xff] %v745
    %810 = vst [vmem:[%s3 + $0x1b0] sm:$0xff] %v746
    %811 = vst [vmem:[%s3 + $0x1b8] sm:$0xff] %v747
    %812 = vst [vmem:[%s3 + $0x1c0] sm:$0xff] %v748
    %813 = vst [vmem:[%s3 + $0x1c8] sm:$0xff] %v749
    %814 = vst [vmem:[%s3 + $0x1d0] sm:$0xff] %v750
    %815 = vst [vmem:[%s3 + $0x1d8] sm:$0xff] %v751
    %816 = vst [vmem:[%s3 + $0x1e0] sm:$0xff] %v752
    %817 = vst [vmem:[%s3 + $0x1e8] sm:$0xff] %v753
    %818 = vst [vmem:[%s3 + $0x1f0] sm:$0xff] %v754
    %819 = vst [vmem:[%s3 + $0x1f8] sm:$0xff] %v755
  $region21: #{decoder_rnn_forward.3} parent=0 // pred_fallthru
    _
  // Predicated region
  $region22: #{decoder_rnn_forward.3} parent=0 // pred_check
    _
  $region23: #{decoder_rnn_forward.3} parent=0 // pred_check_branch
    %821 = sbr.rel (0) target = $region25
  $region24: #{decoder_rnn_forward.3} parent=0 // pred_region
    _
  $region25: #{decoder_rnn_forward.3} parent=0 // pred_fallthru
    _
  // Predicated region
  $region26: #{decoder_rnn_forward.3} parent=0 // pred_check
    _
  $region27: #{decoder_rnn_forward.3} parent=0 // pred_check_branch
    %823 = sbr.rel (0) target = $region29
  $region28: #{decoder_rnn_forward.3} parent=0 // pred_region
    _
  $region29: #{decoder_rnn_forward.3} parent=0 // pred_fallthru
    _

// kernel: decoder_rnn_forward.4
$region0: #{decoder_rnn_forward.4}
  #allocation0 [shape = 'u32[]', space=smem, size = 0x4, offset = 0x4, fixed_abs, tag = 'smem constant byte address 0x4 - core index']
  #allocation1 [shape = 'u32[72,128]{1,0:T(1,128)}', space=vmem, size = 0x9000, scoped, tag = 'internal scratch']
  #allocation2 [shape = 'f32[8,128]{1,0:T(8,128)}', space=vmem, size = 0x1000, scoped, tag = 'scratch operand']
  #allocation3 [shape = 'f32[8,128]{1,0:T(8,128)}', space=vmem, size = 0x1000, scoped, tag = 'scratch operand']
  %s0 = inlined_call_operand.vmem [shape: f32[8,16,512], index: 0, kind: input, shape index: {}]
  %s1 = inlined_call_operand.vmem [shape: f32[128,512], index: 1, kind: input, shape index: {}]
  %s2 = inlined_call_operand.vmem [shape: f32[8,16,128], index: 2, kind: output, shape index: {}]
  %s3 = sld [smem:[#allocation0]]
  $region102: #{decoder_rnn_forward.4} parent=0
    _
  %s5 = ssub.s32 1, %s3
  %s6 = scalar_select 0, %s5, %s3
  $region1: #{decoder_rnn_forward.4} parent=0
    #allocation4 [shape = 'u8[262144]{0}', space=vmem, size = 0x40000, scoped, tag = 'input window, operand 0']
    #allocation5 [shape = 'u8[65536]{0}', space=vmem, size = 0x10000, scoped, tag = 'output window, operand 0']
    loop: start=0, step=1, limit=4
    $region2: #{decoder_rnn_forward.4} parent=1 // loop_pre_header
      _
    $region3: #{decoder_rnn_forward.4} parent=1 // loop_header
      %s8 = sphi 0, %s12
      %p9 = scmp.ge.s32.totalorder %s8, 4
      %s15 = sphi 0, %s27
      %s16 = sphi 0, %s23
      %s17 = sphi 0, %s15
      %s18 = sphi 0, %s16
      %s19 = sphi 0, %s17
      %s20 = sphi 0, %s18
      %s32 = sphi 0, %s34
      %s35 = sphi 0, %s32
      %s36 = sphi 0, %s35
      %s52 = sphi 0, %s36
      %s56 = sphi 0, %s56
      %s58 = sphi 0, %s56
      %s59 = sphi 0, %s58
      %s73 = sphi 0, %s59
      %s81 = sphi 0, %s83
      %s84 = sphi 0, %s81
      %s85 = sphi 0, %s84
      %s101 = sphi 0, %s85
    $region4: #{decoder_rnn_forward.4} parent=1 // loop_header_branch
      %11 = sbr.rel (%p9) target = $region8
    $region5: #{decoder_rnn_forward.4} parent=1 // loop_body
      %s13 = ssub.s32 %s8, 1
      %s14 = ssub.s32 %s8, 2
      %s21 = sadd.s32 1, %s16
      %p22 = scmp.ge.s32.totalorder %s21, 2
      %s23 = scalar_select %p22, 0, %s21
      %s24 = sadd.s32 1, %s15
      %s25 = scalar_select %p22, %s24, %s15
      %p26 = scmp.ge.s32.totalorder %s25, 1
      %s27 = scalar_select %p26, 0, %s25
      %s28 = ssub.s32 %s15, %s27
      %s29 = ssub.s32 %s16, %s23
      %s30 = sor.u32 %s28, %s29
      %p31 = scmp.eq.s32.totalorder %s30, 0
      %s33 = sadd.s32 %s32, 1
      %s34 = scalar_select %p31, %s32, %s33
      %p37 = pneg %p31
      %p38 = scmp.eq.s32.totalorder %s8, 1
      %p39 = por %p37, %p38
      %p40 = scmp.ne.s32.totalorder %s32, %s35
      %p41 = scmp.eq.s32.totalorder %s8, 0
      %p42 = por %p40, %p41
      %p43 = scmp.ne.s32.totalorder %s32, %s35
      %p44 = scmp.eq.s32.totalorder %s13, 1
      %p45 = por %p43, %p44
      %p46 = scmp.ne.s32.totalorder %s35, %s36
      %p47 = scmp.eq.s32.totalorder %s13, 0
      %p48 = por %p46, %p47
      %p49 = scmp.ne.s32.totalorder %s35, %s36
      %p50 = scmp.eq.s32.totalorder %s14, 1
      %p51 = por %p49, %p50
      %p53 = scmp.ne.s32.totalorder %s36, %s52
      %p54 = scmp.eq.s32.totalorder %s14, 0
      %p55 = por %p53, %p54
      %s57 = sadd.s32 %s56, 1
      %p60 = scmp.eq.s32.totalorder %s8, 1
      %p61 = scmp.ne.s32.totalorder %s56, %s58
      %p62 = scmp.eq.s32.totalorder %s8, 0
      %p63 = por %p61, %p62
      %p64 = scmp.ne.s32.totalorder %s56, %s58
      %p65 = scmp.eq.s32.totalorder %s13, 1
      %p66 = por %p64, %p65
      %p67 = scmp.ne.s32.totalorder %s58, %s59
      %p68 = scmp.eq.s32.totalorder %s13, 0
      %p69 = por %p67, %p68
      %p70 = scmp.ne.s32.totalorder %s58, %s59
      %p71 = scmp.eq.s32.totalorder %s14, 1
      %p72 = por %p70, %p71
      %p74 = scmp.ne.s32.totalorder %s59, %s73
      %p75 = scmp.eq.s32.totalorder %s14, 0
      %p76 = por %p74, %p75
      %s77 = ssub.s32 %s15, %s27
      %s78 = ssub.s32 %s16, %s23
      %s79 = sor.u32 %s77, %s78
      %p80 = scmp.eq.s32.totalorder %s79, 0
      %s82 = sadd.s32 %s81, 1
      %s83 = scalar_select %p80, %s81, %s82
      %p86 = pneg %p80
      %p87 = scmp.eq.s32.totalorder %s8, 1
      %p88 = por %p86, %p87
      %p89 = scmp.ne.s32.totalorder %s81, %s84
      %p90 = scmp.eq.s32.totalorder %s8, 0
      %p91 = por %p89, %p90
      %p92 = scmp.ne.s32.totalorder %s81, %s84
      %p93 = scmp.eq.s32.totalorder %s13, 1
      %p94 = por %p92, %p93
      %p95 = scmp.ne.s32.totalorder %s84, %s85
      %p96 = scmp.eq.s32.totalorder %s13, 0
      %p97 = por %p95, %p96
      %p98 = scmp.ne.s32.totalorder %s84, %s85
      %p99 = scmp.eq.s32.totalorder %s14, 1
      %p100 = por %p98, %p99
      %p102 = scmp.ne.s32.totalorder %s85, %s101
      %p103 = scmp.eq.s32.totalorder %s14, 0
      %p104 = por %p102, %p103
      %p105 = scmp.le.s32.totalorder 1, %s8
      %p106 = scmp.lt.s32.totalorder %s8, 3
      %p107 = pnand %p105, %p106
      %p108 = pneg %p107
      // Predicated region
      $region9: #{decoder_rnn_forward.4} parent=5 // pred_check
        _
      $region10: #{decoder_rnn_forward.4} parent=5 // pred_check_branch
        %110 = sbr.rel (%p107) target = $region12
      $region11: #{decoder_rnn_forward.4} parent=5 // pred_region
        %s111 = ssub.s32 %s8, 1
        // Predicated region
        $region13: #{decoder_rnn_forward.4} parent=11 // pred_check
          %p112 = pneg %p69
        $region14: #{decoder_rnn_forward.4} parent=11 // pred_check_branch
          %114 = sbr.rel (%p112) target = $region16
        $region15: #{decoder_rnn_forward.4} parent=11 // pred_region
          _
        $region16: #{decoder_rnn_forward.4} parent=11 // pred_fallthru
          _
      $region12: #{decoder_rnn_forward.4} parent=5 // pred_fallthru
        _
      %p115 = scmp.lt.s32.totalorder %s8, 2
      // Predicated region
      $region17: #{decoder_rnn_forward.4} parent=5 // pred_check
        %p116 = pneg %p115
      $region18: #{decoder_rnn_forward.4} parent=5 // pred_check_branch
        %118 = sbr.rel (%p116) target = $region20
      $region19: #{decoder_rnn_forward.4} parent=5 // pred_region
        // Predicated region
        $region21: #{decoder_rnn_forward.4} parent=19 // pred_check
          %p119 = pneg %p42
        $region22: #{decoder_rnn_forward.4} parent=19 // pred_check_branch
          %121 = sbr.rel (%p119) target = $region24
        $region23: #{decoder_rnn_forward.4} parent=19 // pred_region
          %s122 = sand.u32 %s32, 1
          %s123 = sand.u32 %s32, 1
          %s124 = smul.addr %s123, 256
          %s125 = scalar_lea.vmem [#allocation4], %s124
          %s126 = smul.u32 8, %s15
          %s127 = smul.addr %s16, 4
          %s128 = smul.addr %s126, 8
          %s129 = sadd.s32 %s127, %s128
          %s130 = smul.addr %s129, 8
          %s131 = scalar_lea.vmem %s0, %s130
          // Predicated region
          $region25: #{decoder_rnn_forward.4} parent=23 // pred_check
            _
          $region26: #{decoder_rnn_forward.4} parent=23 // pred_check_branch
            %133 = sbr.rel (0) target = $region28
          $region27: #{decoder_rnn_forward.4} parent=23 // pred_region
            // Predicated region
            $region29: #{decoder_rnn_forward.4} parent=27 // pred_check
              _
            $region30: #{decoder_rnn_forward.4} parent=27 // pred_check_branch
              %135 = sbr.rel (0) target = $region32
            $region31: #{decoder_rnn_forward.4} parent=27 // pred_region
              loop: start=0, step=1, limit=1
              $region33: #{decoder_rnn_forward.4} parent=31 // loop_pre_header
                _
              $region34: #{decoder_rnn_forward.4} parent=31 // loop_header
                %s137 = sphi 0, %s141
                %p138 = scmp.ge.s32.totalorder %s137, 1
                %s142 = sphi %s131, %s131
                %s143 = sphi %s125, %s125
              $region35: #{decoder_rnn_forward.4} parent=31 // loop_header_branch
                %140 = sbr.rel (%p138) target = $region39
              $region36: #{decoder_rnn_forward.4} parent=31 // loop_body
                %v144 = vld [vmem:[%s142] sm:$0xff]
                %145 = vst [vmem:[%s143] sm:$0xff] %v144
                %v146 = vld [vmem:[%s142 + $0x8] sm:$0xff]
                %147 = vst [vmem:[%s143 + $0x8] sm:$0xff] %v146
                %v148 = vld [vmem:[%s142 + $0x10] sm:$0xff]
                %149 = vst [vmem:[%s143 + $0x10] sm:$0xff] %v148
                %v150 = vld [vmem:[%s142 + $0x18] sm:$0xff]
                %151 = vst [vmem:[%s143 + $0x18] sm:$0xff] %v150
                %v152 = vld [vmem:[%s142 + $0x40] sm:$0xff]
                %153 = vst [vmem:[%s143 + $0x20] sm:$0xff] %v152
                %v154 = vld [vmem:[%s142 + $0x48] sm:$0xff]
                %155 = vst [vmem:[%s143 + $0x28] sm:$0xff] %v154
                %v156 = vld [vmem:[%s142 + $0x50] sm:$0xff]
                %157 = vst [vmem:[%s143 + $0x30] sm:$0xff] %v156
                %v158 = vld [vmem:[%s142 + $0x58] sm:$0xff]
                %159 = vst [vmem:[%s143 + $0x38] sm:$0xff] %v158
                %v160 = vld [vmem:[%s142 + $0x80] sm:$0xff]
                %161 = vst [vmem:[%s143 + $0x40] sm:$0xff] %v160
                %v162 = vld [vmem:[%s142 + $0x88] sm:$0xff]
                %163 = vst [vmem:[%s143 + $0x48] sm:$0xff] %v162
                %v164 = vld [vmem:[%s142 + $0x90] sm:$0xff]
                %165 = vst [vmem:[%s143 + $0x50] sm:$0xff] %v164
                %v166 = vld [vmem:[%s142 + $0x98] sm:$0xff]
                %167 = vst [vmem:[%s143 + $0x58] sm:$0xff] %v166
                %v168 = vld [vmem:[%s142 + $0xc0] sm:$0xff]
                %169 = vst [vmem:[%s143 + $0x60] sm:$0xff] %v168
                %v170 = vld [vmem:[%s142 + $0xc8] sm:$0xff]
                %171 = vst [vmem:[%s143 + $0x68] sm:$0xff] %v170
                %v172 = vld [vmem:[%s142 + $0xd0] sm:$0xff]
                %173 = vst [vmem:[%s143 + $0x70] sm:$0xff] %v172
                %v174 = vld [vmem:[%s142 + $0xd8] sm:$0xff]
                %175 = vst [vmem:[%s143 + $0x78] sm:$0xff] %v174
                %v176 = vld [vmem:[%s142 + $0x100] sm:$0xff]
                %177 = vst [vmem:[%s143 + $0x80] sm:$0xff] %v176
                %v178 = vld [vmem:[%s142 + $0x108] sm:$0xff]
                %179 = vst [vmem:[%s143 + $0x88] sm:$0xff] %v178
                %v180 = vld [vmem:[%s142 + $0x110] sm:$0xff]
                %181 = vst [vmem:[%s143 + $0x90] sm:$0xff] %v180
                %v182 = vld [vmem:[%s142 + $0x118] sm:$0xff]
                %183 = vst [vmem:[%s143 + $0x98] sm:$0xff] %v182
                %v184 = vld [vmem:[%s142 + $0x140] sm:$0xff]
                %185 = vst [vmem:[%s143 + $0xa0] sm:$0xff] %v184
                %v186 = vld [vmem:[%s142 + $0x148] sm:$0xff]
                %187 = vst [vmem:[%s143 + $0xa8] sm:$0xff] %v186
                %v188 = vld [vmem:[%s142 + $0x150] sm:$0xff]
                %189 = vst [vmem:[%s143 + $0xb0] sm:$0xff] %v188
                %v190 = vld [vmem:[%s142 + $0x158] sm:$0xff]
                %191 = vst [vmem:[%s143 + $0xb8] sm:$0xff] %v190
                %v192 = vld [vmem:[%s142 + $0x180] sm:$0xff]
                %193 = vst [vmem:[%s143 + $0xc0] sm:$0xff] %v192
                %v194 = vld [vmem:[%s142 + $0x188] sm:$0xff]
                %195 = vst [vmem:[%s143 + $0xc8] sm:$0xff] %v194
                %v196 = vld [vmem:[%s142 + $0x190] sm:$0xff]
                %197 = vst [vmem:[%s143 + $0xd0] sm:$0xff] %v196
                %v198 = vld [vmem:[%s142 + $0x198] sm:$0xff]
                %199 = vst [vmem:[%s143 + $0xd8] sm:$0xff] %v198
                %v200 = vld [vmem:[%s142 + $0x1c0] sm:$0xff]
                %201 = vst [vmem:[%s143 + $0xe0] sm:$0xff] %v200
                %v202 = vld [vmem:[%s142 + $0x1c8] sm:$0xff]
                %203 = vst [vmem:[%s143 + $0xe8] sm:$0xff] %v202
                %v204 = vld [vmem:[%s142 + $0x1d0] sm:$0xff]
                %205 = vst [vmem:[%s143 + $0xf0] sm:$0xff] %v204
                %v206 = vld [vmem:[%s142 + $0x1d8] sm:$0xff]
                %207 = vst [vmem:[%s143 + $0xf8] sm:$0xff] %v206
              $region37: #{decoder_rnn_forward.4} parent=31 // loop_footer
                %s141 = sadd.s32 1, %s137
              $region38: #{decoder_rnn_forward.4} parent=31 // loop_footer_branch
                %136 = sbr.rel target = $region34
              $region39: #{decoder_rnn_forward.4} parent=31 // loop_exit
                _
            $region32: #{decoder_rnn_forward.4} parent=27 // pred_fallthru
              _
            // Predicated region
            $region40: #{decoder_rnn_forward.4} parent=27 // pred_check
              _
            $region41: #{decoder_rnn_forward.4} parent=27 // pred_check_branch
              %209 = sbr.rel target = $region43
            $region42: #{decoder_rnn_forward.4} parent=27 // pred_region
              _
            $region43: #{decoder_rnn_forward.4} parent=27 // pred_fallthru
              _
          $region28: #{decoder_rnn_forward.4} parent=23 // pred_fallthru
            _
          %210 = vnop
        $region24: #{decoder_rnn_forward.4} parent=19 // pred_fallthru
          _
      $region20: #{decoder_rnn_forward.4} parent=5 // pred_fallthru
        _
      %p211 = scmp.le.s32.totalorder 1, %s8
      %p212 = scmp.lt.s32.totalorder %s8, 3
      %p213 = pnand %p211, %p212
      %p214 = pneg %p213
      // Predicated region
      $region44: #{decoder_rnn_forward.4} parent=5 // pred_check
        _
      $region45: #{decoder_rnn_forward.4} parent=5 // pred_check_branch
        %216 = sbr.rel (%p213) target = $region47
      $region46: #{decoder_rnn_forward.4} parent=5 // pred_region
        %s217 = ssub.s32 %s8, 1
        %s218 = sand.u32 %s35, 1
        %s219 = sand.u32 %s35, 1
        %s220 = smul.addr %s219, 256
        %s221 = scalar_lea.vmem [#allocation4], %s220
        // Predicated region
        $region48: #{decoder_rnn_forward.4} parent=46 // pred_check
          %p222 = pneg %p48
        $region49: #{decoder_rnn_forward.4} parent=46 // pred_check_branch
          %224 = sbr.rel (%p222) target = $region51
        $region50: #{decoder_rnn_forward.4} parent=46 // pred_region
          _
        $region51: #{decoder_rnn_forward.4} parent=46 // pred_fallthru
          _
        %s225 = sand.u32 %s35, 1
        %s226 = sand.u32 %s35, 1
        %s227 = smul.addr %s226, 256
        %s228 = scalar_lea.vmem [#allocation4], %s227
        %p229 = pneg %p48
        %p230 = pneg %p45
        %p231 = pneg %p69
        %p232 = pneg %p66
        %p233 = pneg %p97
        %p234 = pneg %p94
        %s235 = sand.u32 %s84, 1
        %s236 = sand.u32 %s84, 1
        %s237 = smul.addr %s236, 64
        %s238 = scalar_lea.vmem [#allocation5], %s237
        %s239 = smul.u32 8, %s17
        %s240 = smul.u32 8, %s17
        %p241 = scmp.eq.s32.totalorder %s18, 0
        // Predicated region
        $region52: #{decoder_rnn_forward.4} parent=46 // pred_check
          %p242 = pneg %p241
        $region53: #{decoder_rnn_forward.4} parent=46 // pred_check_branch
          %244 = sbr.rel (%p242) target = $region55
        $region54: #{decoder_rnn_forward.4} parent=46 // pred_region
          %245 = vst [vmem:[#allocation2] sm:$0xff] 0.0
          %246 = vst [vmem:[#allocation3] sm:$0xff] 0.0
        $region55: #{decoder_rnn_forward.4} parent=46 // pred_fallthru
          _
        %v247 = vld [vmem:[%s1] sm:$0xff]
        %v248 = vld [vmem:[%s1 + $0x8] sm:$0xff]
        %v249 = vld [vmem:[%s1 + $0x10] sm:$0xff]
        %v250 = vld [vmem:[%s1 + $0x18] sm:$0xff]
        %v251 = vld [vmem:[%s1 + $0x20] sm:$0xff]
        %v252 = vld [vmem:[%s1 + $0x28] sm:$0xff]
        %v253 = vld [vmem:[%s1 + $0x30] sm:$0xff]
        %v254 = vld [vmem:[%s1 + $0x38] sm:$0xff]
        %v255 = vld [vmem:[%s1 + $0x40] sm:$0xff]
        %v256 = vld [vmem:[%s1 + $0x48] sm:$0xff]
        %v257 = vld [vmem:[%s1 + $0x50] sm:$0xff]
        %v258 = vld [vmem:[%s1 + $0x58] sm:$0xff]
        %v259 = vld [vmem:[%s1 + $0x60] sm:$0xff]
        %v260 = vld [vmem:[%s1 + $0x68] sm:$0xff]
        %v261 = vld [vmem:[%s1 + $0x70] sm:$0xff]
        %v262 = vld [vmem:[%s1 + $0x78] sm:$0xff]
        %v263 = vld [vmem:[%s1 + $0x80] sm:$0xff]
        %v264 = vld [vmem:[%s1 + $0x88] sm:$0xff]
        %v265 = vld [vmem:[%s1 + $0x90] sm:$0xff]
        %v266 = vld [vmem:[%s1 + $0x98] sm:$0xff]
        %v267 = vld [vmem:[%s1 + $0xa0] sm:$0xff]
        %v268 = vld [vmem:[%s1 + $0xa8] sm:$0xff]
        %v269 = vld [vmem:[%s1 + $0xb0] sm:$0xff]
        %v270 = vld [vmem:[%s1 + $0xb8] sm:$0xff]
        %v271 = vld [vmem:[%s1 + $0xc0] sm:$0xff]
        %v272 = vld [vmem:[%s1 + $0xc8] sm:$0xff]
        %v273 = vld [vmem:[%s1 + $0xd0] sm:$0xff]
        %v274 = vld [vmem:[%s1 + $0xd8] sm:$0xff]
        %v275 = vld [vmem:[%s1 + $0xe0] sm:$0xff]
        %v276 = vld [vmem:[%s1 + $0xe8] sm:$0xff]
        %v277 = vld [vmem:[%s1 + $0xf0] sm:$0xff]
        %v278 = vld [vmem:[%s1 + $0xf8] sm:$0xff]
        %v279 = vld [vmem:[%s1 + $0x100] sm:$0xff]
        %v280 = vld [vmem:[%s1 + $0x108] sm:$0xff]
        %v281 = vld [vmem:[%s1 + $0x110] sm:$0xff]
        %v282 = vld [vmem:[%s1 + $0x118] sm:$0xff]
        %v283 = vld [vmem:[%s1 + $0x120] sm:$0xff]
        %v284 = vld [vmem:[%s1 + $0x128] sm:$0xff]
        %v285 = vld [vmem:[%s1 + $0x130] sm:$0xff]
        %v286 = vld [vmem:[%s1 + $0x138] sm:$0xff]
        %v287 = vld [vmem:[%s1 + $0x140] sm:$0xff]
        %v288 = vld [vmem:[%s1 + $0x148] sm:$0xff]
        %v289 = vld [vmem:[%s1 + $0x150] sm:$0xff]
        %v290 = vld [vmem:[%s1 + $0x158] sm:$0xff]
        %v291 = vld [vmem:[%s1 + $0x160] sm:$0xff]
        %v292 = vld [vmem:[%s1 + $0x168] sm:$0xff]
        %v293 = vld [vmem:[%s1 + $0x170] sm:$0xff]
        %v294 = vld [vmem:[%s1 + $0x178] sm:$0xff]
        %v295 = vld [vmem:[%s1 + $0x180] sm:$0xff]
        %v296 = vld [vmem:[%s1 + $0x188] sm:$0xff]
        %v297 = vld [vmem:[%s1 + $0x190] sm:$0xff]
        %v298 = vld [vmem:[%s1 + $0x198] sm:$0xff]
        %v299 = vld [vmem:[%s1 + $0x1a0] sm:$0xff]
        %v300 = vld [vmem:[%s1 + $0x1a8] sm:$0xff]
        %v301 = vld [vmem:[%s1 + $0x1b0] sm:$0xff]
        %v302 = vld [vmem:[%s1 + $0x1b8] sm:$0xff]
        %v303 = vld [vmem:[%s1 + $0x1c0] sm:$0xff]
        %v304 = vld [vmem:[%s1 + $0x1c8] sm:$0xff]
        %v305 = vld [vmem:[%s1 + $0x1d0] sm:$0xff]
        %v306 = vld [vmem:[%s1 + $0x1d8] sm:$0xff]
        %v307 = vld [vmem:[%s1 + $0x1e0] sm:$0xff]
        %v308 = vld [vmem:[%s1 + $0x1e8] sm:$0xff]
        %v309 = vld [vmem:[%s1 + $0x1f0] sm:$0xff]
        %v310 = vld [vmem:[%s1 + $0x1f8] sm:$0xff]
        %v311 = vld [vmem:[#allocation2] sm:$0xff]
        %v312 = vld [vmem:[#allocation3] sm:$0xff]
        %v313 = vld [vmem:[%s221] ss:$8 sm:$0xf]
        %s314 = scalar_lea.vmem %s221, 32 [#allocation4]
        %v315 = vld [vmem:[%s314] ss:$8 sm:$0xf]
        %s316 = scalar_lea.vmem %s221, 64 [#allocation4]
        %v317 = vld [vmem:[%s316] ss:$8 sm:$0xf]
        %s318 = scalar_lea.vmem %s221, 96 [#allocation4]
        %v319 = vld [vmem:[%s318] ss:$8 sm:$0xf]
        %s320 = scalar_lea.vmem %s221, 128 [#allocation4]
        %v321 = vld [vmem:[%s320] ss:$8 sm:$0xf]
        %s322 = scalar_lea.vmem %s221, 160 [#allocation4]
        %v323 = vld [vmem:[%s322] ss:$8 sm:$0xf]
        %s324 = scalar_lea.vmem %s221, 192 [#allocation4]
        %v325 = vld [vmem:[%s324] ss:$8 sm:$0xf]
        %s326 = scalar_lea.vmem %s221, 224 [#allocation4]
        %v327 = vld [vmem:[%s326] ss:$8 sm:$0xf]
        %328 = vmatpush.msra.mxu0 %v307
        %329 = vmatpush.msra.mxu0 %v303
        %330 = vmatpush.msra.mxu0 %v299
        %331 = vmatpush.msra.mxu0 %v295
        %332 = vmatpush.msra.mxu0 %v291
        %333 = vmatpush.msra.mxu0 %v287
        %334 = vmatpush.msra.mxu0 %v283
        %335 = vmatpush.msra.mxu0 %v279
        %336 = vmatpush.msra.mxu0 %v275
        %337 = vmatpush.msra.mxu0 %v271
        %338 = vmatpush.msra.mxu0 %v267
        %339 = vmatpush.msra.mxu0 %v263
        %340 = vmatpush.msra.mxu0 %v259
        %341 = vmatpush.msra.mxu0 %v255
        %342 = vmatpush.msra.mxu0 %v251
        %343 = vmatpush.msra.mxu0 %v247
        %344 = vmatmul.f32.gmra.mxu0 %v311
        %v345 = vpop.f32.mrf.mxu0
        %v346 = vadd.f32 0.0, %v345
        %347 = vdwg.mxu0
        %348 = vmatpush.msra.mxu0 %v308
        %349 = vmatpush.msra.mxu0 %v304
        %350 = vmatpush.msra.mxu0 %v300
        %351 = vmatpush.msra.mxu0 %v296
        %352 = vmatpush.msra.mxu0 %v292
        %353 = vmatpush.msra.mxu0 %v288
        %354 = vmatpush.msra.mxu0 %v284
        %355 = vmatpush.msra.mxu0 %v280
        %356 = vmatpush.msra.mxu0 %v276
        %357 = vmatpush.msra.mxu0 %v272
        %358 = vmatpush.msra.mxu0 %v268
        %359 = vmatpush.msra.mxu0 %v264
        %360 = vmatpush.msra.mxu0 %v260
        %361 = vmatpush.msra.mxu0 %v256
        %362 = vmatpush.msra.mxu0 %v252
        %363 = vmatpush.msra.mxu0 %v248
        %364 = vmatmul.f32.gmra.mxu0 %v311
        %v365 = vpop.f32.mrf.mxu0
        %v366 = vadd.f32 0.0, %v365
        %367 = vdwg.mxu0
        %368 = vmatpush.msra.mxu0 %v309
        %369 = vmatpush.msra.mxu0 %v305
        %370 = vmatpush.msra.mxu0 %v301
        %371 = vmatpush.msra.mxu0 %v297
        %372 = vmatpush.msra.mxu0 %v293
        %373 = vmatpush.msra.mxu0 %v289
        %374 = vmatpush.msra.mxu0 %v285
        %375 = vmatpush.msra.mxu0 %v281
        %376 = vmatpush.msra.mxu0 %v277
        %377 = vmatpush.msra.mxu0 %v273
        %378 = vmatpush.msra.mxu0 %v269
        %379 = vmatpush.msra.mxu0 %v265
        %380 = vmatpush.msra.mxu0 %v261
        %381 = vmatpush.msra.mxu0 %v257
        %382 = vmatpush.msra.mxu0 %v253
        %383 = vmatpush.msra.mxu0 %v249
        %384 = vmatmul.f32.gmra.mxu0 %v311
        %v385 = vpop.f32.mrf.mxu0
        %v386 = vadd.f32 0.0, %v385
        %387 = vdwg.mxu0
        %388 = vmatpush.msra.mxu0 %v310
        %389 = vmatpush.msra.mxu0 %v306
        %390 = vmatpush.msra.mxu0 %v302
        %391 = vmatpush.msra.mxu0 %v298
        %392 = vmatpush.msra.mxu0 %v294
        %393 = vmatpush.msra.mxu0 %v290
        %394 = vmatpush.msra.mxu0 %v286
        %395 = vmatpush.msra.mxu0 %v282
        %396 = vmatpush.msra.mxu0 %v278
        %397 = vmatpush.msra.mxu0 %v274
        %398 = vmatpush.msra.mxu0 %v270
        %399 = vmatpush.msra.mxu0 %v266
        %400 = vmatpush.msra.mxu0 %v262
        %401 = vmatpush.msra.mxu0 %v258
        %402 = vmatpush.msra.mxu0 %v254
        %403 = vmatpush.msra.mxu0 %v250
        %404 = vmatmul.f32.gmra.mxu0 %v311
        %v405 = vpop.f32.mrf.mxu0
        %v406 = vadd.f32 0.0, %v405
        %407 = vdwg.mxu0
        %v412 = vrot.slane %v366, 7
        %v413 = vrot.slane %v386, 6
        %v414 = vrot.slane %v406, 5
        %vm415 = vcmask 1040384
        %v416 = vsel %vm415, %v346, %v412
        %vm417 = vcmask 1042434
        %v418 = vsel %vm417, %v413, %v414
        %vm419 = vcmask 1041408
        %v420 = vsel %vm419, %v416, %v418
        %vm421 = vcmask 1041409
        %v422 = vsel %vm421, %v346, %v412
        %vm423 = vcmask 1043459
        %v424 = vsel %vm423, %v413, %v414
        %vm425 = vcmask 1042433
        %v426 = vsel %vm425, %v422, %v424
        %v427 = vrot.slane %v426, 1
        %v428 = vsel %vm417, %v346, %v412
        %vm429 = vcmask 1044484
        %v430 = vsel %vm429, %v413, %v414
        %vm431 = vcmask 1043458
        %v432 = vsel %vm431, %v428, %v430
        %v433 = vrot.slane %v432, 2
        %v434 = vsel %vm423, %v346, %v412
        %vm435 = vcmask 1045509
        %v436 = vsel %vm435, %v413, %v414
        %vm437 = vcmask 1044483
        %v438 = vsel %vm437, %v434, %v436
        %v439 = vrot.slane %v438, 3
        %v440 = vsel %vm429, %v346, %v412
        %vm441 = vcmask 1046534
        %v442 = vsel %vm441, %v413, %v414
        %vm443 = vcmask 1045508
        %v444 = vsel %vm443, %v440, %v442
        %v445 = vrot.slane %v444, 4
        %v446 = vsel %vm435, %v346, %v412
        %vm447 = vcmask 1046528
        %v448 = vsel %vm447, %v414, %v413
        %vm449 = vcmask 1046533
        %v450 = vsel %vm449, %v446, %v448
        %v451 = vrot.slane %v450, 5
        %v452 = vsel %vm441, %v346, %v412
        %v453 = vsel %vm415, %v413, %v414
        %vm454 = vcmask 1045504
        %v455 = vsel %vm454, %v453, %v452
        %v456 = vrot.slane %v455, 6
        %v457 = vsel %vm447, %v412, %v346
        %v458 = vsel %vm421, %v413, %v414
        %vm459 = vcmask 1046529
        %v460 = vsel %vm459, %v458, %v457
        %v461 = vrot.slane %v460, 7
        %v470 = vadd.f32 %v313, %v420
        %v471 = vadd.f32 %v315, %v427
        %v472 = vadd.f32 %v317, %v433
        %v473 = vadd.f32 %v319, %v439
        %v474 = vadd.f32 %v321, %v445
        %v475 = vadd.f32 %v323, %v451
        %v476 = vadd.f32 %v325, %v456
        %v477 = vadd.f32 %v327, %v461
        %v478 = vxor.u32 %v470, 2147483648
        %v479 = vxor.u32 %v471, 2147483648
        %v480 = vxor.u32 %v472, 2147483648
        %v481 = vxor.u32 %v473, 2147483648
        %v482 = vxor.u32 %v474, 2147483648
        %v483 = vxor.u32 %v475, 2147483648
        %v484 = vxor.u32 %v476, 2147483648
        %v485 = vxor.u32 %v477, 2147483648
        %v486 = vmul.f32 %v478, 1.442695
        %v487 = vpow.pop %v486
        %v488 = vmul.f32 %v479, 1.442695
        %v489 = vpow.pop %v488
        %v490 = vmul.f32 %v480, 1.442695
        %v491 = vpow.pop %v490
        %v492 = vmul.f32 %v481, 1.442695
        %v493 = vpow.pop %v492
        %v494 = vmul.f32 %v482, 1.442695
        %v495 = vpow.pop %v494
        %v496 = vmul.f32 %v483, 1.442695
        %v497 = vpow.pop %v496
        %v498 = vmul.f32 %v484, 1.442695
        %v499 = vpow.pop %v498
        %v500 = vmul.f32 %v485, 1.442695
        %v501 = vpow.pop %v500
        %v502 = vadd.f32 %v487, 1.0
        %v503 = vadd.f32 %v489, 1.0
        %v504 = vadd.f32 %v491, 1.0
        %v505 = vadd.f32 %v493, 1.0
        %v506 = vadd.f32 %v495, 1.0
        %v507 = vadd.f32 %v497, 1.0
        %v508 = vadd.f32 %v499, 1.0
        %v509 = vadd.f32 %v501, 1.0
        %v510 = vrcp.pop %v502
        %v511 = vmul.f32 %v502, %v510
        %v512 = vsub.f32 1.0, %v511
        %v513 = vmul.f32 %v510, %v512
        %v514 = vadd.f32 %v510, %v513
        %vm515 = vweird.f32 %v502
        %vm516 = vweird.f32 %v510
        %vm517 = vmor %vm515, %vm516
        %v518 = vsel %vm517, %v510, %v514
        %v519 = vand.u32 2147483647, %v502
        %vm520 = vcmp.eq.f32.partialorder %v519, 8.507059e+37
        %v521 = vand.u32 %v502, 2147483648
        %v522 = vor.u32 1.1754944e-38, %v521
        %v523 = vsel %vm520, %v522, %v518
        %v524 = vmul.f32 1.0, %v523
        %v525 = vrcp.pop %v503
        %v526 = vmul.f32 %v503, %v525
        %v527 = vsub.f32 1.0, %v526
        %v528 = vmul.f32 %v525, %v527
        %v529 = vadd.f32 %v525, %v528
        %vm530 = vweird.f32 %v503
        %vm531 = vweird.f32 %v525
        %vm532 = vmor %vm530, %vm531
        %v533 = vsel %vm532, %v525, %v529
        %v534 = vand.u32 2147483647, %v503
        %vm535 = vcmp.eq.f32.partialorder %v534, 8.507059e+37
        %v536 = vand.u32 %v503, 2147483648
        %v537 = vor.u32 1.1754944e-38, %v536
        %v538 = vsel %vm535, %v537, %v533
        %v539 = vmul.f32 1.0, %v538
        %v540 = vrcp.pop %v504
        %v541 = vmul.f32 %v504, %v540
        %v542 = vsub.f32 1.0, %v541
        %v543 = vmul.f32 %v540, %v542
        %v544 = vadd.f32 %v540, %v543
        %vm545 = vweird.f32 %v504
        %vm546 = vweird.f32 %v540
        %vm547 = vmor %vm545, %vm546
        %v548 = vsel %vm547, %v540, %v544
        %v549 = vand.u32 2147483647, %v504
        %vm550 = vcmp.eq.f32.partialorder %v549, 8.507059e+37
        %v551 = vand.u32 %v504, 2147483648
        %v552 = vor.u32 1.1754944e-38, %v551
        %v553 = vsel %vm550, %v552, %v548
        %v554 = vmul.f32 1.0, %v553
        %v555 = vrcp.pop %v505
        %v556 = vmul.f32 %v505, %v555
        %v557 = vsub.f32 1.0, %v556
        %v558 = vmul.f32 %v555, %v557
        %v559 = vadd.f32 %v555, %v558
        %vm560 = vweird.f32 %v505
        %vm561 = vweird.f32 %v555
        %vm562 = vmor %vm560, %vm561
        %v563 = vsel %vm562, %v555, %v559
        %v564 = vand.u32 2147483647, %v505
        %vm565 = vcmp.eq.f32.partialorder %v564, 8.507059e+37
        %v566 = vand.u32 %v505, 2147483648
        %v567 = vor.u32 1.1754944e-38, %v566
        %v568 = vsel %vm565, %v567, %v563
        %v569 = vmul.f32 1.0, %v568
        %v570 = vrcp.pop %v506
        %v571 = vmul.f32 %v506, %v570
        %v572 = vsub.f32 1.0, %v571
        %v573 = vmul.f32 %v570, %v572
        %v574 = vadd.f32 %v570, %v573
        %vm575 = vweird.f32 %v506
        %vm576 = vweird.f32 %v570
        %vm577 = vmor %vm575, %vm576
        %v578 = vsel %vm577, %v570, %v574
        %v579 = vand.u32 2147483647, %v506
        %vm580 = vcmp.eq.f32.partialorder %v579, 8.507059e+37
        %v581 = vand.u32 %v506, 2147483648
        %v582 = vor.u32 1.1754944e-38, %v581
        %v583 = vsel %vm580, %v582, %v578
        %v584 = vmul.f32 1.0, %v583
        %v585 = vrcp.pop %v507
        %v586 = vmul.f32 %v507, %v585
        %v587 = vsub.f32 1.0, %v586
        %v588 = vmul.f32 %v585, %v587
        %v589 = vadd.f32 %v585, %v588
        %vm590 = vweird.f32 %v507
        %vm591 = vweird.f32 %v585
        %vm592 = vmor %vm590, %vm591
        %v593 = vsel %vm592, %v585, %v589
        %v594 = vand.u32 2147483647, %v507
        %vm595 = vcmp.eq.f32.partialorder %v594, 8.507059e+37
        %v596 = vand.u32 %v507, 2147483648
        %v597 = vor.u32 1.1754944e-38, %v596
        %v598 = vsel %vm595, %v597, %v593
        %v599 = vmul.f32 1.0, %v598
        %v600 = vrcp.pop %v508
        %v601 = vmul.f32 %v508, %v600
        %v602 = vsub.f32 1.0, %v601
        %v603 = vmul.f32 %v600, %v602
        %v604 = vadd.f32 %v600, %v603
        %vm605 = vweird.f32 %v508
        %vm606 = vweird.f32 %v600
        %vm607 = vmor %vm605, %vm606
        %v608 = vsel %vm607, %v600, %v604
        %v609 = vand.u32 2147483647, %v508
        %vm610 = vcmp.eq.f32.partialorder %v609, 8.507059e+37
        %v611 = vand.u32 %v508, 2147483648
        %v612 = vor.u32 1.1754944e-38, %v611
        %v613 = vsel %vm610, %v612, %v608
        %v614 = vmul.f32 1.0, %v613
        %v615 = vrcp.pop %v509
        %v616 = vmul.f32 %v509, %v615
        %v617 = vsub.f32 1.0, %v616
        %v618 = vmul.f32 %v615, %v617
        %v619 = vadd.f32 %v615, %v618
        %vm620 = vweird.f32 %v509
        %vm621 = vweird.f32 %v615
        %vm622 = vmor %vm620, %vm621
        %v623 = vsel %vm622, %v615, %v619
        %v624 = vand.u32 2147483647, %v509
        %vm625 = vcmp.eq.f32.partialorder %v624, 8.507059e+37
        %v626 = vand.u32 %v509, 2147483648
        %v627 = vor.u32 1.1754944e-38, %v626
        %v628 = vsel %vm625, %v627, %v623
        %v629 = vmul.f32 1.0, %v628
        %v638 = vrot.slane %v470, 1
        %v639 = vrot.slane %v471, 1
        %v640 = vrot.slane %v472, 1
        %v641 = vrot.slane %v473, 1
        %v642 = vrot.slane %v474, 1
        %v643 = vrot.slane %v475, 1
        %v644 = vrot.slane %v476, 1
        %v645 = vrot.slane %v477, 1
        %v654 = vxor.u32 %v638, 2147483648
        %v655 = vxor.u32 %v639, 2147483648
        %v656 = vxor.u32 %v640, 2147483648
        %v657 = vxor.u32 %v641, 2147483648
        %v658 = vxor.u32 %v642, 2147483648
        %v659 = vxor.u32 %v643, 2147483648
        %v660 = vxor.u32 %v644, 2147483648
        %v661 = vxor.u32 %v645, 2147483648
        %v662 = vmul.f32 %v654, 1.442695
        %v663 = vpow.pop %v662
        %v664 = vmul.f32 %v655, 1.442695
        %v665 = vpow.pop %v664
        %v666 = vmul.f32 %v656, 1.442695
        %v667 = vpow.pop %v666
        %v668 = vmul.f32 %v657, 1.442695
        %v669 = vpow.pop %v668
        %v670 = vmul.f32 %v658, 1.442695
        %v671 = vpow.pop %v670
        %v672 = vmul.f32 %v659, 1.442695
        %v673 = vpow.pop %v672
        %v674 = vmul.f32 %v660, 1.442695
        %v675 = vpow.pop %v674
        %v676 = vmul.f32 %v661, 1.442695
        %v677 = vpow.pop %v676
        %v678 = vadd.f32 %v663, 1.0
        %v679 = vadd.f32 %v665, 1.0
        %v680 = vadd.f32 %v667, 1.0
        %v681 = vadd.f32 %v669, 1.0
        %v682 = vadd.f32 %v671, 1.0
        %v683 = vadd.f32 %v673, 1.0
        %v684 = vadd.f32 %v675, 1.0
        %v685 = vadd.f32 %v677, 1.0
        %v686 = vrcp.pop %v678
        %v687 = vmul.f32 %v678, %v686
        %v688 = vsub.f32 1.0, %v687
        %v689 = vmul.f32 %v686, %v688
        %v690 = vadd.f32 %v686, %v689
        %vm691 = vweird.f32 %v678
        %vm692 = vweird.f32 %v686
        %vm693 = vmor %vm691, %vm692
        %v694 = vsel %vm693, %v686, %v690
        %v695 = vand.u32 2147483647, %v678
        %vm696 = vcmp.eq.f32.partialorder %v695, 8.507059e+37
        %v697 = vand.u32 %v678, 2147483648
        %v698 = vor.u32 1.1754944e-38, %v697
        %v699 = vsel %vm696, %v698, %v694
        %v700 = vmul.f32 1.0, %v699
        %v701 = vrcp.pop %v679
        %v702 = vmul.f32 %v679, %v701
        %v703 = vsub.f32 1.0, %v702
        %v704 = vmul.f32 %v701, %v703
        %v705 = vadd.f32 %v701, %v704
        %vm706 = vweird.f32 %v679
        %vm707 = vweird.f32 %v701
        %vm708 = vmor %vm706, %vm707
        %v709 = vsel %vm708, %v701, %v705
        %v710 = vand.u32 2147483647, %v679
        %vm711 = vcmp.eq.f32.partialorder %v710, 8.507059e+37
        %v712 = vand.u32 %v679, 2147483648
        %v713 = vor.u32 1.1754944e-38, %v712
        %v714 = vsel %vm711, %v713, %v709
        %v715 = vmul.f32 1.0, %v714
        %v716 = vrcp.pop %v680
        %v717 = vmul.f32 %v680, %v716
        %v718 = vsub.f32 1.0, %v717
        %v719 = vmul.f32 %v716, %v718
        %v720 = vadd.f32 %v716, %v719
        %vm721 = vweird.f32 %v680
        %vm722 = vweird.f32 %v716
        %vm723 = vmor %vm721, %vm722
        %v724 = vsel %vm723, %v716, %v720
        %v725 = vand.u32 2147483647, %v680
        %vm726 = vcmp.eq.f32.partialorder %v725, 8.507059e+37
        %v727 = vand.u32 %v680, 2147483648
        %v728 = vor.u32 1.1754944e-38, %v727
        %v729 = vsel %vm726, %v728, %v724
        %v730 = vmul.f32 1.0, %v729
        %v731 = vrcp.pop %v681
        %v732 = vmul.f32 %v681, %v731
        %v733 = vsub.f32 1.0, %v732
        %v734 = vmul.f32 %v731, %v733
        %v735 = vadd.f32 %v731, %v734
        %vm736 = vweird.f32 %v681
        %vm737 = vweird.f32 %v731
        %vm738 = vmor %vm736, %vm737
        %v739 = vsel %vm738, %v731, %v735
        %v740 = vand.u32 2147483647, %v681
        %vm741 = vcmp.eq.f32.partialorder %v740, 8.507059e+37
        %v742 = vand.u32 %v681, 2147483648
        %v743 = vor.u32 1.1754944e-38, %v742
        %v744 = vsel %vm741, %v743, %v739
        %v745 = vmul.f32 1.0, %v744
        %v746 = vrcp.pop %v682
        %v747 = vmul.f32 %v682, %v746
        %v748 = vsub.f32 1.0, %v747
        %v749 = vmul.f32 %v746, %v748
        %v750 = vadd.f32 %v746, %v749
        %vm751 = vweird.f32 %v682
        %vm752 = vweird.f32 %v746
        %vm753 = vmor %vm751, %vm752
        %v754 = vsel %vm753, %v746, %v750
        %v755 = vand.u32 2147483647, %v682
        %vm756 = vcmp.eq.f32.partialorder %v755, 8.507059e+37
        %v757 = vand.u32 %v682, 2147483648
        %v758 = vor.u32 1.1754944e-38, %v757
        %v759 = vsel %vm756, %v758, %v754
        %v760 = vmul.f32 1.0, %v759
        %v761 = vrcp.pop %v683
        %v762 = vmul.f32 %v683, %v761
        %v763 = vsub.f32 1.0, %v762
        %v764 = vmul.f32 %v761, %v763
        %v765 = vadd.f32 %v761, %v764
        %vm766 = vweird.f32 %v683
        %vm767 = vweird.f32 %v761
        %vm768 = vmor %vm766, %vm767
        %v769 = vsel %vm768, %v761, %v765
        %v770 = vand.u32 2147483647, %v683
        %vm771 = vcmp.eq.f32.partialorder %v770, 8.507059e+37
        %v772 = vand.u32 %v683, 2147483648
        %v773 = vor.u32 1.1754944e-38, %v772
        %v774 = vsel %vm771, %v773, %v769
        %v775 = vmul.f32 1.0, %v774
        %v776 = vrcp.pop %v684
        %v777 = vmul.f32 %v684, %v776
        %v778 = vsub.f32 1.0, %v777
        %v779 = vmul.f32 %v776, %v778
        %v780 = vadd.f32 %v776, %v779
        %vm781 = vweird.f32 %v684
        %vm782 = vweird.f32 %v776
        %vm783 = vmor %vm781, %vm782
        %v784 = vsel %vm783, %v776, %v780
        %v785 = vand.u32 2147483647, %v684
        %vm786 = vcmp.eq.f32.partialorder %v785, 8.507059e+37
        %v787 = vand.u32 %v684, 2147483648
        %v788 = vor.u32 1.1754944e-38, %v787
        %v789 = vsel %vm786, %v788, %v784
        %v790 = vmul.f32 1.0, %v789
        %v791 = vrcp.pop %v685
        %v792 = vmul.f32 %v685, %v791
        %v793 = vsub.f32 1.0, %v792
        %v794 = vmul.f32 %v791, %v793
        %v795 = vadd.f32 %v791, %v794
        %vm796 = vweird.f32 %v685
        %vm797 = vweird.f32 %v791
        %vm798 = vmor %vm796, %vm797
        %v799 = vsel %vm798, %v791, %v795
        %v800 = vand.u32 2147483647, %v685
        %vm801 = vcmp.eq.f32.partialorder %v800, 8.507059e+37
        %v802 = vand.u32 %v685, 2147483648
        %v803 = vor.u32 1.1754944e-38, %v802
        %v804 = vsel %vm801, %v803, %v799
        %v805 = vmul.f32 1.0, %v804
        %v806 = vrot.slane %v470, 2
        %v807 = vrot.slane %v471, 2
        %v808 = vrot.slane %v472, 2
        %v809 = vrot.slane %v473, 2
        %v810 = vrot.slane %v474, 2
        %v811 = vrot.slane %v475, 2
        %v812 = vrot.slane %v476, 2
        %v813 = vrot.slane %v477, 2
        %v822 = vtanh.pop %v806
        %v823 = vtanh.pop %v807
        %v824 = vtanh.pop %v808
        %v825 = vtanh.pop %v809
        %v826 = vtanh.pop %v810
        %v827 = vtanh.pop %v811
        %v828 = vtanh.pop %v812
        %v829 = vtanh.pop %v813
        %v830 = vrot.slane %v470, 3
        %v831 = vrot.slane %v471, 3
        %v832 = vrot.slane %v472, 3
        %v833 = vrot.slane %v473, 3
        %v834 = vrot.slane %v474, 3
        %v835 = vrot.slane %v475, 3
        %v836 = vrot.slane %v476, 3
        %v837 = vrot.slane %v477, 3
        %v846 = vxor.u32 %v830, 2147483648
        %v847 = vxor.u32 %v831, 2147483648
        %v848 = vxor.u32 %v832, 2147483648
        %v849 = vxor.u32 %v833, 2147483648
        %v850 = vxor.u32 %v834, 2147483648
        %v851 = vxor.u32 %v835, 2147483648
        %v852 = vxor.u32 %v836, 2147483648
        %v853 = vxor.u32 %v837, 2147483648
        %v854 = vmul.f32 %v846, 1.442695
        %v855 = vpow.pop %v854
        %v856 = vmul.f32 %v847, 1.442695
        %v857 = vpow.pop %v856
        %v858 = vmul.f32 %v848, 1.442695
        %v859 = vpow.pop %v858
        %v860 = vmul.f32 %v849, 1.442695
        %v861 = vpow.pop %v860
        %v862 = vmul.f32 %v850, 1.442695
        %v863 = vpow.pop %v862
        %v864 = vmul.f32 %v851, 1.442695
        %v865 = vpow.pop %v864
        %v866 = vmul.f32 %v852, 1.442695
        %v867 = vpow.pop %v866
        %v868 = vmul.f32 %v853, 1.442695
        %v869 = vpow.pop %v868
        %v870 = vadd.f32 %v855, 1.0
        %v871 = vadd.f32 %v857, 1.0
        %v872 = vadd.f32 %v859, 1.0
        %v873 = vadd.f32 %v861, 1.0
        %v874 = vadd.f32 %v863, 1.0
        %v875 = vadd.f32 %v865, 1.0
        %v876 = vadd.f32 %v867, 1.0
        %v877 = vadd.f32 %v869, 1.0
        %v878 = vrcp.pop %v870
        %v879 = vmul.f32 %v870, %v878
        %v880 = vsub.f32 1.0, %v879
        %v881 = vmul.f32 %v878, %v880
        %v882 = vadd.f32 %v878, %v881
        %vm883 = vweird.f32 %v870
        %vm884 = vweird.f32 %v878
        %vm885 = vmor %vm883, %vm884
        %v886 = vsel %vm885, %v878, %v882
        %v887 = vand.u32 2147483647, %v870
        %vm888 = vcmp.eq.f32.partialorder %v887, 8.507059e+37
        %v889 = vand.u32 %v870, 2147483648
        %v890 = vor.u32 1.1754944e-38, %v889
        %v891 = vsel %vm888, %v890, %v886
        %v892 = vmul.f32 1.0, %v891
        %v893 = vrcp.pop %v871
        %v894 = vmul.f32 %v871, %v893
        %v895 = vsub.f32 1.0, %v894
        %v896 = vmul.f32 %v893, %v895
        %v897 = vadd.f32 %v893, %v896
        %vm898 = vweird.f32 %v871
        %vm899 = vweird.f32 %v893
        %vm900 = vmor %vm898, %vm899
        %v901 = vsel %vm900, %v893, %v897
        %v902 = vand.u32 2147483647, %v871
        %vm903 = vcmp.eq.f32.partialorder %v902, 8.507059e+37
        %v904 = vand.u32 %v871, 2147483648
        %v905 = vor.u32 1.1754944e-38, %v904
        %v906 = vsel %vm903, %v905, %v901
        %v907 = vmul.f32 1.0, %v906
        %v908 = vrcp.pop %v872
        %v909 = vmul.f32 %v872, %v908
        %v910 = vsub.f32 1.0, %v909
        %v911 = vmul.f32 %v908, %v910
        %v912 = vadd.f32 %v908, %v911
        %vm913 = vweird.f32 %v872
        %vm914 = vweird.f32 %v908
        %vm915 = vmor %vm913, %vm914
        %v916 = vsel %vm915, %v908, %v912
        %v917 = vand.u32 2147483647, %v872
        %vm918 = vcmp.eq.f32.partialorder %v917, 8.507059e+37
        %v919 = vand.u32 %v872, 2147483648
        %v920 = vor.u32 1.1754944e-38, %v919
        %v921 = vsel %vm918, %v920, %v916
        %v922 = vmul.f32 1.0, %v921
        %v923 = vrcp.pop %v873
        %v924 = vmul.f32 %v873, %v923
        %v925 = vsub.f32 1.0, %v924
        %v926 = vmul.f32 %v923, %v925
        %v927 = vadd.f32 %v923, %v926
        %vm928 = vweird.f32 %v873
        %vm929 = vweird.f32 %v923
        %vm930 = vmor %vm928, %vm929
        %v931 = vsel %vm930, %v923, %v927
        %v932 = vand.u32 2147483647, %v873
        %vm933 = vcmp.eq.f32.partialorder %v932, 8.507059e+37
        %v934 = vand.u32 %v873, 2147483648
        %v935 = vor.u32 1.1754944e-38, %v934
        %v936 = vsel %vm933, %v935, %v931
        %v937 = vmul.f32 1.0, %v936
        %v938 = vrcp.pop %v874
        %v939 = vmul.f32 %v874, %v938
        %v940 = vsub.f32 1.0, %v939
        %v941 = vmul.f32 %v938, %v940
        %v942 = vadd.f32 %v938, %v941
        %vm943 = vweird.f32 %v874
        %vm944 = vweird.f32 %v938
        %vm945 = vmor %vm943, %vm944
        %v946 = vsel %vm945, %v938, %v942
        %v947 = vand.u32 2147483647, %v874
        %vm948 = vcmp.eq.f32.partialorder %v947, 8.507059e+37
        %v949 = vand.u32 %v874, 2147483648
        %v950 = vor.u32 1.1754944e-38, %v949
        %v951 = vsel %vm948, %v950, %v946
        %v952 = vmul.f32 1.0, %v951
        %v953 = vrcp.pop %v875
        %v954 = vmul.f32 %v875, %v953
        %v955 = vsub.f32 1.0, %v954
        %v956 = vmul.f32 %v953, %v955
        %v957 = vadd.f32 %v953, %v956
        %vm958 = vweird.f32 %v875
        %vm959 = vweird.f32 %v953
        %vm960 = vmor %vm958, %vm959
        %v961 = vsel %vm960, %v953, %v957
        %v962 = vand.u32 2147483647, %v875
        %vm963 = vcmp.eq.f32.partialorder %v962, 8.507059e+37
        %v964 = vand.u32 %v875, 2147483648
        %v965 = vor.u32 1.1754944e-38, %v964
        %v966 = vsel %vm963, %v965, %v961
        %v967 = vmul.f32 1.0, %v966
        %v968 = vrcp.pop %v876
        %v969 = vmul.f32 %v876, %v968
        %v970 = vsub.f32 1.0, %v969
        %v971 = vmul.f32 %v968, %v970
        %v972 = vadd.f32 %v968, %v971
        %vm973 = vweird.f32 %v876
        %vm974 = vweird.f32 %v968
        %vm975 = vmor %vm973, %vm974
        %v976 = vsel %vm975, %v968, %v972
        %v977 = vand.u32 2147483647, %v876
        %vm978 = vcmp.eq.f32.partialorder %v977, 8.507059e+37
        %v979 = vand.u32 %v876, 2147483648
        %v980 = vor.u32 1.1754944e-38, %v979
        %v981 = vsel %vm978, %v980, %v976
        %v982 = vmul.f32 1.0, %v981
        %v983 = vrcp.pop %v877
        %v984 = vmul.f32 %v877, %v983
        %v985 = vsub.f32 1.0, %v984
        %v986 = vmul.f32 %v983, %v985
        %v987 = vadd.f32 %v983, %v986
        %vm988 = vweird.f32 %v877
        %vm989 = vweird.f32 %v983
        %vm990 = vmor %vm988, %vm989
        %v991 = vsel %vm990, %v983, %v987
        %v992 = vand.u32 2147483647, %v877
        %vm993 = vcmp.eq.f32.partialorder %v992, 8.507059e+37
        %v994 = vand.u32 %v877, 2147483648
        %v995 = vor.u32 1.1754944e-38, %v994
        %v996 = vsel %vm993, %v995, %v991
        %v997 = vmul.f32 1.0, %v996
        %v999 = vrot.slane %v312, 1
        %v1000 = vrot.slane %v312, 2
        %v1001 = vrot.slane %v312, 3
        %v1002 = vrot.slane %v312, 4
        %v1003 = vrot.slane %v312, 5
        %v1004 = vrot.slane %v312, 6
        %v1005 = vrot.slane %v312, 7
        %v1013 = vmul.f32 %v700, %v312
        %v1014 = vmul.f32 %v715, %v999
        %v1015 = vmul.f32 %v730, %v1000
        %v1016 = vmul.f32 %v745, %v1001
        %v1017 = vmul.f32 %v760, %v1002
        %v1018 = vmul.f32 %v775, %v1003
        %v1019 = vmul.f32 %v790, %v1004
        %v1020 = vmul.f32 %v805, %v1005
        %v1021 = vmul.f32 %v524, %v822
        %v1022 = vmul.f32 %v539, %v823
        %v1023 = vmul.f32 %v554, %v824
        %v1024 = vmul.f32 %v569, %v825
        %v1025 = vmul.f32 %v584, %v826
        %v1026 = vmul.f32 %v599, %v827
        %v1027 = vmul.f32 %v614, %v828
        %v1028 = vmul.f32 %v629, %v829
        %v1029 = vadd.f32 %v1013, %v1021
        %v1030 = vadd.f32 %v1014, %v1022
        %v1031 = vadd.f32 %v1015, %v1023
        %v1032 = vadd.f32 %v1016, %v1024
        %v1033 = vadd.f32 %v1017, %v1025
        %v1034 = vadd.f32 %v1018, %v1026
        %v1035 = vadd.f32 %v1019, %v1027
        %v1036 = vadd.f32 %v1020, %v1028
        %v1037 = vtanh.pop %v1029
        %v1038 = vtanh.pop %v1030
        %v1039 = vtanh.pop %v1031
        %v1040 = vtanh.pop %v1032
        %v1041 = vtanh.pop %v1033
        %v1042 = vtanh.pop %v1034
        %v1043 = vtanh.pop %v1035
        %v1044 = vtanh.pop %v1036
        %v1045 = vmul.f32 %v892, %v1037
        %v1046 = vmul.f32 %v907, %v1038
        %v1047 = vmul.f32 %v922, %v1039
        %v1048 = vmul.f32 %v937, %v1040
        %v1049 = vmul.f32 %v952, %v1041
        %v1050 = vmul.f32 %v967, %v1042
        %v1051 = vmul.f32 %v982, %v1043
        %v1052 = vmul.f32 %v997, %v1044
        %1061 = vst [vmem:[#allocation1] ss:$9 sm:$0xff] %v1029
        %s1062 = scalar_lea.vmem [#allocation1], 1
        %1063 = vst [vmem:[%s1062] ss:$9 sm:$0xff] %v1030
        %s1064 = scalar_lea.vmem [#allocation1], 2
        %1065 = vst [vmem:[%s1064] ss:$9 sm:$0xff] %v1031
        %s1066 = scalar_lea.vmem [#allocation1], 3
        %1067 = vst [vmem:[%s1066] ss:$9 sm:$0xff] %v1032
        %s1068 = scalar_lea.vmem [#allocation1], 4
        %1069 = vst [vmem:[%s1068] ss:$9 sm:$0xff] %v1033
        %s1070 = scalar_lea.vmem [#allocation1], 5
        %1071 = vst [vmem:[%s1070] ss:$9 sm:$0xff] %v1034
        %s1072 = scalar_lea.vmem [#allocation1], 6
        %1073 = vst [vmem:[%s1072] ss:$9 sm:$0xff] %v1035
        %s1074 = scalar_lea.vmem [#allocation1], 7
        %1075 = vst [vmem:[%s1074] ss:$9 sm:$0xff] %v1036
        %v1076 = vld [vmem:[#allocation1] sm:$0xff]
        %1078 = vst [vmem:[#allocation3] sm:$0xff] %v1076
        %1087 = vst [vmem:[#allocation1] ss:$9 sm:$0xff] %v1045
        %s1088 = scalar_lea.vmem [#allocation1], 1
        %1089 = vst [vmem:[%s1088] ss:$9 sm:$0xff] %v1046
        %s1090 = scalar_lea.vmem [#allocation1], 2
        %1091 = vst [vmem:[%s1090] ss:$9 sm:$0xff] %v1047
        %s1092 = scalar_lea.vmem [#allocation1], 3
        %1093 = vst [vmem:[%s1092] ss:$9 sm:$0xff] %v1048
        %s1094 = scalar_lea.vmem [#allocation1], 4
        %1095 = vst [vmem:[%s1094] ss:$9 sm:$0xff] %v1049
        %s1096 = scalar_lea.vmem [#allocation1], 5
        %1097 = vst [vmem:[%s1096] ss:$9 sm:$0xff] %v1050
        %s1098 = scalar_lea.vmem [#allocation1], 6
        %1099 = vst [vmem:[%s1098] ss:$9 sm:$0xff] %v1051
        %s1100 = scalar_lea.vmem [#allocation1], 7
        %1101 = vst [vmem:[%s1100] ss:$9 sm:$0xff] %v1052
        %v1102 = vld [vmem:[#allocation1] sm:$0xff]
        %1104 = vst [vmem:[#allocation2] sm:$0xff] %v1102
        %1105 = vst [vmem:[%s238] sm:$0x1] %v1045
        %1106 = vst [vmem:[%s238 + $0x8] sm:$0x1] %v1046
        %1107 = vst [vmem:[%s238 + $0x10] sm:$0x1] %v1047
        %1108 = vst [vmem:[%s238 + $0x18] sm:$0x1] %v1048
        %1109 = vst [vmem:[%s238 + $0x20] sm:$0x1] %v1049
        %1110 = vst [vmem:[%s238 + $0x28] sm:$0x1] %v1050
        %1111 = vst [vmem:[%s238 + $0x30] sm:$0x1] %v1051
        %1112 = vst [vmem:[%s238 + $0x38] sm:$0x1] %v1052
        %v1113 = vld [vmem:[#allocation2] sm:$0xff]
        %v1114 = vld [vmem:[#allocation3] sm:$0xff]
        %s1115 = scalar_lea.vmem %s221, 1 [#allocation4]
        %v1116 = vld [vmem:[%s1115] ss:$8 sm:$0xf]
        %s1117 = scalar_lea.vmem %s221, 33 [#allocation4]
        %v1118 = vld [vmem:[%s1117] ss:$8 sm:$0xf]
        %s1119 = scalar_lea.vmem %s221, 65 [#allocation4]
        %v1120 = vld [vmem:[%s1119] ss:$8 sm:$0xf]
        %s1121 = scalar_lea.vmem %s221, 97 [#allocation4]
        %v1122 = vld [vmem:[%s1121] ss:$8 sm:$0xf]
        %s1123 = scalar_lea.vmem %s221, 129 [#allocation4]
        %v1124 = vld [vmem:[%s1123] ss:$8 sm:$0xf]
        %s1125 = scalar_lea.vmem %s221, 161 [#allocation4]
        %v1126 = vld [vmem:[%s1125] ss:$8 sm:$0xf]
        %s1127 = scalar_lea.vmem %s221, 193 [#allocation4]
        %v1128 = vld [vmem:[%s1127] ss:$8 sm:$0xf]
        %s1129 = scalar_lea.vmem %s221, 225 [#allocation4]
        %v1130 = vld [vmem:[%s1129] ss:$8 sm:$0xf]
        %1131 = vmatpush.msra.mxu0 %v307
        %1132 = vmatpush.msra.mxu0 %v303
        %1133 = vmatpush.msra.mxu0 %v299
        %1134 = vmatpush.msra.mxu0 %v295
        %1135 = vmatpush.msra.mxu0 %v291
        %1136 = vmatpush.msra.mxu0 %v287
        %1137 = vmatpush.msra.mxu0 %v283
        %1138 = vmatpush.msra.mxu0 %v279
        %1139 = vmatpush.msra.mxu0 %v275
        %1140 = vmatpush.msra.mxu0 %v271
        %1141 = vmatpush.msra.mxu0 %v267
        %1142 = vmatpush.msra.mxu0 %v263
        %1143 = vmatpush.msra.mxu0 %v259
        %1144 = vmatpush.msra.mxu0 %v255
        %1145 = vmatpush.msra.mxu0 %v251
        %1146 = vmatpush.msra.mxu0 %v247
        %1147 = vmatmul.f32.gmra.mxu0 %v1113
        %v1148 = vpop.f32.mrf.mxu0
        %v1149 = vadd.f32 0.0, %v1148
        %1150 = vdwg.mxu0
        %1151 = vmatpush.msra.mxu0 %v308
        %1152 = vmatpush.msra.mxu0 %v304
        %1153 = vmatpush.msra.mxu0 %v300
        %1154 = vmatpush.msra.mxu0 %v296
        %1155 = vmatpush.msra.mxu0 %v292
        %1156 = vmatpush.msra.mxu0 %v288
        %1157 = vmatpush.msra.mxu0 %v284
        %1158 = vmatpush.msra.mxu0 %v280
        %1159 = vmatpush.msra.mxu0 %v276
        %1160 = vmatpush.msra.mxu0 %v272
        %1161 = vmatpush.msra.mxu0 %v268
        %1162 = vmatpush.msra.mxu0 %v264
        %1163 = vmatpush.msra.mxu0 %v260
        %1164 = vmatpush.msra.mxu0 %v256
        %1165 = vmatpush.msra.mxu0 %v252
        %1166 = vmatpush.msra.mxu0 %v248
        %1167 = vmatmul.f32.gmra.mxu0 %v1113
        %v1168 = vpop.f32.mrf.mxu0
        %v1169 = vadd.f32 0.0, %v1168
        %1170 = vdwg.mxu0
        %1171 = vmatpush.msra.mxu0 %v309
        %1172 = vmatpush.msra.mxu0 %v305
        %1173 = vmatpush.msra.mxu0 %v301
        %1174 = vmatpush.msra.mxu0 %v297
        %1175 = vmatpush.msra.mxu0 %v293
        %1176 = vmatpush.msra.mxu0 %v289
        %1177 = vmatpush.msra.mxu0 %v285
        %1178 = vmatpush.msra.mxu0 %v281
        %1179 = vmatpush.msra.mxu0 %v277
        %1180 = vmatpush.msra.mxu0 %v273
        %1181 = vmatpush.msra.mxu0 %v269
        %1182 = vmatpush.msra.mxu0 %v265
        %1183 = vmatpush.msra.mxu0 %v261
        %1184 = vmatpush.msra.mxu0 %v257
        %1185 = vmatpush.msra.mxu0 %v253
        %1186 = vmatpush.msra.mxu0 %v249
        %1187 = vmatmul.f32.gmra.mxu0 %v1113
        %v1188 = vpop.f32.mrf.mxu0
        %v1189 = vadd.f32 0.0, %v1188
        %1190 = vdwg.mxu0
        %1191 = vmatpush.msra.mxu0 %v310
        %1192 = vmatpush.msra.mxu0 %v306
        %1193 = vmatpush.msra.mxu0 %v302
        %1194 = vmatpush.msra.mxu0 %v298
        %1195 = vmatpush.msra.mxu0 %v294
        %1196 = vmatpush.msra.mxu0 %v290
        %1197 = vmatpush.msra.mxu0 %v286
        %1198 = vmatpush.msra.mxu0 %v282
        %1199 = vmatpush.msra.mxu0 %v278
        %1200 = vmatpush.msra.mxu0 %v274
        %1201 = vmatpush.msra.mxu0 %v270
        %1202 = vmatpush.msra.mxu0 %v266
        %1203 = vmatpush.msra.mxu0 %v262
        %1204 = vmatpush.msra.mxu0 %v258
        %1205 = vmatpush.msra.mxu0 %v254
        %1206 = vmatpush.msra.mxu0 %v250
        %1207 = vmatmul.f32.gmra.mxu0 %v1113
        %v1208 = vpop.f32.mrf.mxu0
        %v1209 = vadd.f32 0.0, %v1208
        %1210 = vdwg.mxu0
        %v1215 = vrot.slane %v1169, 7
        %v1216 = vrot.slane %v1189, 6
        %v1217 = vrot.slane %v1209, 5
        %v1218 = vsel %vm415, %v1149, %v1215
        %v1219 = vsel %vm417, %v1216, %v1217
        %v1220 = vsel %vm419, %v1218, %v1219
        %v1221 = vsel %vm421, %v1149, %v1215
        %v1222 = vsel %vm423, %v1216, %v1217
        %v1223 = vsel %vm425, %v1221, %v1222
        %v1224 = vrot.slane %v1223, 1
        %v1225 = vsel %vm417, %v1149, %v1215
        %v1226 = vsel %vm429, %v1216, %v1217
        %v1227 = vsel %vm431, %v1225, %v1226
        %v1228 = vrot.slane %v1227, 2
        %v1229 = vsel %vm423, %v1149, %v1215
        %v1230 = vsel %vm435, %v1216, %v1217
        %v1231 = vsel %vm437, %v1229, %v1230
        %v1232 = vrot.slane %v1231, 3
        %v1233 = vsel %vm429, %v1149, %v1215
        %v1234 = vsel %vm441, %v1216, %v1217
        %v1235 = vsel %vm443, %v1233, %v1234
        %v1236 = vrot.slane %v1235, 4
        %v1237 = vsel %vm435, %v1149, %v1215
        %v1238 = vsel %vm447, %v1217, %v1216
        %v1239 = vsel %vm449, %v1237, %v1238
        %v1240 = vrot.slane %v1239, 5
        %v1241 = vsel %vm441, %v1149, %v1215
        %v1242 = vsel %vm415, %v1216, %v1217
        %v1243 = vsel %vm454, %v1242, %v1241
        %v1244 = vrot.slane %v1243, 6
        %v1245 = vsel %vm447, %v1215, %v1149
        %v1246 = vsel %vm421, %v1216, %v1217
        %v1247 = vsel %vm459, %v1246, %v1245
        %v1248 = vrot.slane %v1247, 7
        %v1257 = vadd.f32 %v1116, %v1220
        %v1258 = vadd.f32 %v1118, %v1224
        %v1259 = vadd.f32 %v1120, %v1228
        %v1260 = vadd.f32 %v1122, %v1232
        %v1261 = vadd.f32 %v1124, %v1236
        %v1262 = vadd.f32 %v1126, %v1240
        %v1263 = vadd.f32 %v1128, %v1244
        %v1264 = vadd.f32 %v1130, %v1248
        %v1265 = vxor.u32 %v1257, 2147483648
        %v1266 = vxor.u32 %v1258, 2147483648
        %v1267 = vxor.u32 %v1259, 2147483648
        %v1268 = vxor.u32 %v1260, 2147483648
        %v1269 = vxor.u32 %v1261, 2147483648
        %v1270 = vxor.u32 %v1262, 2147483648
        %v1271 = vxor.u32 %v1263, 2147483648
        %v1272 = vxor.u32 %v1264, 2147483648
        %v1273 = vmul.f32 %v1265, 1.442695
        %v1274 = vpow.pop %v1273
        %v1275 = vmul.f32 %v1266, 1.442695
        %v1276 = vpow.pop %v1275
        %v1277 = vmul.f32 %v1267, 1.442695
        %v1278 = vpow.pop %v1277
        %v1279 = vmul.f32 %v1268, 1.442695
        %v1280 = vpow.pop %v1279
        %v1281 = vmul.f32 %v1269, 1.442695
        %v1282 = vpow.pop %v1281
        %v1283 = vmul.f32 %v1270, 1.442695
        %v1284 = vpow.pop %v1283
        %v1285 = vmul.f32 %v1271, 1.442695
        %v1286 = vpow.pop %v1285
        %v1287 = vmul.f32 %v1272, 1.442695
        %v1288 = vpow.pop %v1287
        %v1289 = vadd.f32 %v1274, 1.0
        %v1290 = vadd.f32 %v1276, 1.0
        %v1291 = vadd.f32 %v1278, 1.0
        %v1292 = vadd.f32 %v1280, 1.0
        %v1293 = vadd.f32 %v1282, 1.0
        %v1294 = vadd.f32 %v1284, 1.0
        %v1295 = vadd.f32 %v1286, 1.0
        %v1296 = vadd.f32 %v1288, 1.0
        %v1297 = vrcp.pop %v1289
        %v1298 = vmul.f32 %v1289, %v1297
        %v1299 = vsub.f32 1.0, %v1298
        %v1300 = vmul.f32 %v1297, %v1299
        %v1301 = vadd.f32 %v1297, %v1300
        %vm1302 = vweird.f32 %v1289
        %vm1303 = vweird.f32 %v1297
        %vm1304 = vmor %vm1302, %vm1303
        %v1305 = vsel %vm1304, %v1297, %v1301
        %v1306 = vand.u32 2147483647, %v1289
        %vm1307 = vcmp.eq.f32.partialorder %v1306, 8.507059e+37
        %v1308 = vand.u32 %v1289, 2147483648
        %v1309 = vor.u32 1.1754944e-38, %v1308
        %v1310 = vsel %vm1307, %v1309, %v1305
        %v1311 = vmul.f32 1.0, %v1310
        %v1312 = vrcp.pop %v1290
        %v1313 = vmul.f32 %v1290, %v1312
        %v1314 = vsub.f32 1.0, %v1313
        %v1315 = vmul.f32 %v1312, %v1314
        %v1316 = vadd.f32 %v1312, %v1315
        %vm1317 = vweird.f32 %v1290
        %vm1318 = vweird.f32 %v1312
        %vm1319 = vmor %vm1317, %vm1318
        %v1320 = vsel %vm1319, %v1312, %v1316
        %v1321 = vand.u32 2147483647, %v1290
        %vm1322 = vcmp.eq.f32.partialorder %v1321, 8.507059e+37
        %v1323 = vand.u32 %v1290, 2147483648
        %v1324 = vor.u32 1.1754944e-38, %v1323
        %v1325 = vsel %vm1322, %v1324, %v1320
        %v1326 = vmul.f32 1.0, %v1325
        %v1327 = vrcp.pop %v1291
        %v1328 = vmul.f32 %v1291, %v1327
        %v1329 = vsub.f32 1.0, %v1328
        %v1330 = vmul.f32 %v1327, %v1329
        %v1331 = vadd.f32 %v1327, %v1330
        %vm1332 = vweird.f32 %v1291
        %vm1333 = vweird.f32 %v1327
        %vm1334 = vmor %vm1332, %vm1333
        %v1335 = vsel %vm1334, %v1327, %v1331
        %v1336 = vand.u32 2147483647, %v1291
        %vm1337 = vcmp.eq.f32.partialorder %v1336, 8.507059e+37
        %v1338 = vand.u32 %v1291, 2147483648
        %v1339 = vor.u32 1.1754944e-38, %v1338
        %v1340 = vsel %vm1337, %v1339, %v1335
        %v1341 = vmul.f32 1.0, %v1340
        %v1342 = vrcp.pop %v1292
        %v1343 = vmul.f32 %v1292, %v1342
        %v1344 = vsub.f32 1.0, %v1343
        %v1345 = vmul.f32 %v1342, %v1344
        %v1346 = vadd.f32 %v1342, %v1345
        %vm1347 = vweird.f32 %v1292
        %vm1348 = vweird.f32 %v1342
        %vm1349 = vmor %vm1347, %vm1348
        %v1350 = vsel %vm1349, %v1342, %v1346
        %v1351 = vand.u32 2147483647, %v1292
        %vm1352 = vcmp.eq.f32.partialorder %v1351, 8.507059e+37
        %v1353 = vand.u32 %v1292, 2147483648
        %v1354 = vor.u32 1.1754944e-38, %v1353
        %v1355 = vsel %vm1352, %v1354, %v1350
        %v1356 = vmul.f32 1.0, %v1355
        %v1357 = vrcp.pop %v1293
        %v1358 = vmul.f32 %v1293, %v1357
        %v1359 = vsub.f32 1.0, %v1358
        %v1360 = vmul.f32 %v1357, %v1359
        %v1361 = vadd.f32 %v1357, %v1360
        %vm1362 = vweird.f32 %v1293
        %vm1363 = vweird.f32 %v1357
        %vm1364 = vmor %vm1362, %vm1363
        %v1365 = vsel %vm1364, %v1357, %v1361
        %v1366 = vand.u32 2147483647, %v1293
        %vm1367 = vcmp.eq.f32.partialorder %v1366, 8.507059e+37
        %v1368 = vand.u32 %v1293, 2147483648
        %v1369 = vor.u32 1.1754944e-38, %v1368
        %v1370 = vsel %vm1367, %v1369, %v1365
        %v1371 = vmul.f32 1.0, %v1370
        %v1372 = vrcp.pop %v1294
        %v1373 = vmul.f32 %v1294, %v1372
        %v1374 = vsub.f32 1.0, %v1373
        %v1375 = vmul.f32 %v1372, %v1374
        %v1376 = vadd.f32 %v1372, %v1375
        %vm1377 = vweird.f32 %v1294
        %vm1378 = vweird.f32 %v1372
        %vm1379 = vmor %vm1377, %vm1378
        %v1380 = vsel %vm1379, %v1372, %v1376
        %v1381 = vand.u32 2147483647, %v1294
        %vm1382 = vcmp.eq.f32.partialorder %v1381, 8.507059e+37
        %v1383 = vand.u32 %v1294, 2147483648
        %v1384 = vor.u32 1.1754944e-38, %v1383
        %v1385 = vsel %vm1382, %v1384, %v1380
        %v1386 = vmul.f32 1.0, %v1385
        %v1387 = vrcp.pop %v1295
        %v1388 = vmul.f32 %v1295, %v1387
        %v1389 = vsub.f32 1.0, %v1388
        %v1390 = vmul.f32 %v1387, %v1389
        %v1391 = vadd.f32 %v1387, %v1390
        %vm1392 = vweird.f32 %v1295
        %vm1393 = vweird.f32 %v1387
        %vm1394 = vmor %vm1392, %vm1393
        %v1395 = vsel %vm1394, %v1387, %v1391
        %v1396 = vand.u32 2147483647, %v1295
        %vm1397 = vcmp.eq.f32.partialorder %v1396, 8.507059e+37
        %v1398 = vand.u32 %v1295, 2147483648
        %v1399 = vor.u32 1.1754944e-38, %v1398
        %v1400 = vsel %vm1397, %v1399, %v1395
        %v1401 = vmul.f32 1.0, %v1400
        %v1402 = vrcp.pop %v1296
        %v1403 = vmul.f32 %v1296, %v1402
        %v1404 = vsub.f32 1.0, %v1403
        %v1405 = vmul.f32 %v1402, %v1404
        %v1406 = vadd.f32 %v1402, %v1405
        %vm1407 = vweird.f32 %v1296
        %vm1408 = vweird.f32 %v1402
        %vm1409 = vmor %vm1407, %vm1408
        %v1410 = vsel %vm1409, %v1402, %v1406
        %v1411 = vand.u32 2147483647, %v1296
        %vm1412 = vcmp.eq.f32.partialorder %v1411, 8.507059e+37
        %v1413 = vand.u32 %v1296, 2147483648
        %v1414 = vor.u32 1.1754944e-38, %v1413
        %v1415 = vsel %vm1412, %v1414, %v1410
        %v1416 = vmul.f32 1.0, %v1415
        %v1425 = vrot.slane %v1257, 1
        %v1426 = vrot.slane %v1258, 1
        %v1427 = vrot.slane %v1259, 1
        %v1428 = vrot.slane %v1260, 1
        %v1429 = vrot.slane %v1261, 1
        %v1430 = vrot.slane %v1262, 1
        %v1431 = vrot.slane %v1263, 1
        %v1432 = vrot.slane %v1264, 1
        %v1441 = vxor.u32 %v1425, 2147483648
        %v1442 = vxor.u32 %v1426, 2147483648
        %v1443 = vxor.u32 %v1427, 2147483648
        %v1444 = vxor.u32 %v1428, 2147483648
        %v1445 = vxor.u32 %v1429, 2147483648
        %v1446 = vxor.u32 %v1430, 2147483648
        %v1447 = vxor.u32 %v1431, 2147483648
        %v1448 = vxor.u32 %v1432, 2147483648
        %v1449 = vmul.f32 %v1441, 1.442695
        %v1450 = vpow.pop %v1449
        %v1451 = vmul.f32 %v1442, 1.442695
        %v1452 = vpow.pop %v1451
        %v1453 = vmul.f32 %v1443, 1.442695
        %v1454 = vpow.pop %v1453
        %v1455 = vmul.f32 %v1444, 1.442695
        %v1456 = vpow.pop %v1455
        %v1457 = vmul.f32 %v1445, 1.442695
        %v1458 = vpow.pop %v1457
        %v1459 = vmul.f32 %v1446, 1.442695
        %v1460 = vpow.pop %v1459
        %v1461 = vmul.f32 %v1447, 1.442695
        %v1462 = vpow.pop %v1461
        %v1463 = vmul.f32 %v1448, 1.442695
        %v1464 = vpow.pop %v1463
        %v1465 = vadd.f32 %v1450, 1.0
        %v1466 = vadd.f32 %v1452, 1.0
        %v1467 = vadd.f32 %v1454, 1.0
        %v1468 = vadd.f32 %v1456, 1.0
        %v1469 = vadd.f32 %v1458, 1.0
        %v1470 = vadd.f32 %v1460, 1.0
        %v1471 = vadd.f32 %v1462, 1.0
        %v1472 = vadd.f32 %v1464, 1.0
        %v1473 = vrcp.pop %v1465
        %v1474 = vmul.f32 %v1465, %v1473
        %v1475 = vsub.f32 1.0, %v1474
        %v1476 = vmul.f32 %v1473, %v1475
        %v1477 = vadd.f32 %v1473, %v1476
        %vm1478 = vweird.f32 %v1465
        %vm1479 = vweird.f32 %v1473
        %vm1480 = vmor %vm1478, %vm1479
        %v1481 = vsel %vm1480, %v1473, %v1477
        %v1482 = vand.u32 2147483647, %v1465
        %vm1483 = vcmp.eq.f32.partialorder %v1482, 8.507059e+37
        %v1484 = vand.u32 %v1465, 2147483648
        %v1485 = vor.u32 1.1754944e-38, %v1484
        %v1486 = vsel %vm1483, %v1485, %v1481
        %v1487 = vmul.f32 1.0, %v1486
        %v1488 = vrcp.pop %v1466
        %v1489 = vmul.f32 %v1466, %v1488
        %v1490 = vsub.f32 1.0, %v1489
        %v1491 = vmul.f32 %v1488, %v1490
        %v1492 = vadd.f32 %v1488, %v1491
        %vm1493 = vweird.f32 %v1466
        %vm1494 = vweird.f32 %v1488
        %vm1495 = vmor %vm1493, %vm1494
        %v1496 = vsel %vm1495, %v1488, %v1492
        %v1497 = vand.u32 2147483647, %v1466
        %vm1498 = vcmp.eq.f32.partialorder %v1497, 8.507059e+37
        %v1499 = vand.u32 %v1466, 2147483648
        %v1500 = vor.u32 1.1754944e-38, %v1499
        %v1501 = vsel %vm1498, %v1500, %v1496
        %v1502 = vmul.f32 1.0, %v1501
        %v1503 = vrcp.pop %v1467
        %v1504 = vmul.f32 %v1467, %v1503
        %v1505 = vsub.f32 1.0, %v1504
        %v1506 = vmul.f32 %v1503, %v1505
        %v1507 = vadd.f32 %v1503, %v1506
        %vm1508 = vweird.f32 %v1467
        %vm1509 = vweird.f32 %v1503
        %vm1510 = vmor %vm1508, %vm1509
        %v1511 = vsel %vm1510, %v1503, %v1507
        %v1512 = vand.u32 2147483647, %v1467
        %vm1513 = vcmp.eq.f32.partialorder %v1512, 8.507059e+37
        %v1514 = vand.u32 %v1467, 2147483648
        %v1515 = vor.u32 1.1754944e-38, %v1514
        %v1516 = vsel %vm1513, %v1515, %v1511
        %v1517 = vmul.f32 1.0, %v1516
        %v1518 = vrcp.pop %v1468
        %v1519 = vmul.f32 %v1468, %v1518
        %v1520 = vsub.f32 1.0, %v1519
        %v1521 = vmul.f32 %v1518, %v1520
        %v1522 = vadd.f32 %v1518, %v1521
        %vm1523 = vweird.f32 %v1468
        %vm1524 = vweird.f32 %v1518
        %vm1525 = vmor %vm1523, %vm1524
        %v1526 = vsel %vm1525, %v1518, %v1522
        %v1527 = vand.u32 2147483647, %v1468
        %vm1528 = vcmp.eq.f32.partialorder %v1527, 8.507059e+37
        %v1529 = vand.u32 %v1468, 2147483648
        %v1530 = vor.u32 1.1754944e-38, %v1529
        %v1531 = vsel %vm1528, %v1530, %v1526
        %v1532 = vmul.f32 1.0, %v1531
        %v1533 = vrcp.pop %v1469
        %v1534 = vmul.f32 %v1469, %v1533
        %v1535 = vsub.f32 1.0, %v1534
        %v1536 = vmul.f32 %v1533, %v1535
        %v1537 = vadd.f32 %v1533, %v1536
        %vm1538 = vweird.f32 %v1469
        %vm1539 = vweird.f32 %v1533
        %vm1540 = vmor %vm1538, %vm1539
        %v1541 = vsel %vm1540, %v1533, %v1537
        %v1542 = vand.u32 2147483647, %v1469
        %vm1543 = vcmp.eq.f32.partialorder %v1542, 8.507059e+37
        %v1544 = vand.u32 %v1469, 2147483648
        %v1545 = vor.u32 1.1754944e-38, %v1544
        %v1546 = vsel %vm1543, %v1545, %v1541
        %v1547 = vmul.f32 1.0, %v1546
        %v1548 = vrcp.pop %v1470
        %v1549 = vmul.f32 %v1470, %v1548
        %v1550 = vsub.f32 1.0, %v1549
        %v1551 = vmul.f32 %v1548, %v1550
        %v1552 = vadd.f32 %v1548, %v1551
        %vm1553 = vweird.f32 %v1470
        %vm1554 = vweird.f32 %v1548
        %vm1555 = vmor %vm1553, %vm1554
        %v1556 = vsel %vm1555, %v1548, %v1552
        %v1557 = vand.u32 2147483647, %v1470
        %vm1558 = vcmp.eq.f32.partialorder %v1557, 8.507059e+37
        %v1559 = vand.u32 %v1470, 2147483648
        %v1560 = vor.u32 1.1754944e-38, %v1559
        %v1561 = vsel %vm1558, %v1560, %v1556
        %v1562 = vmul.f32 1.0, %v1561
        %v1563 = vrcp.pop %v1471
        %v1564 = vmul.f32 %v1471, %v1563
        %v1565 = vsub.f32 1.0, %v1564
        %v1566 = vmul.f32 %v1563, %v1565
        %v1567 = vadd.f32 %v1563, %v1566
        %vm1568 = vweird.f32 %v1471
        %vm1569 = vweird.f32 %v1563
        %vm1570 = vmor %vm1568, %vm1569
        %v1571 = vsel %vm1570, %v1563, %v1567
        %v1572 = vand.u32 2147483647, %v1471
        %vm1573 = vcmp.eq.f32.partialorder %v1572, 8.507059e+37
        %v1574 = vand.u32 %v1471, 2147483648
        %v1575 = vor.u32 1.1754944e-38, %v1574
        %v1576 = vsel %vm1573, %v1575, %v1571
        %v1577 = vmul.f32 1.0, %v1576
        %v1578 = vrcp.pop %v1472
        %v1579 = vmul.f32 %v1472, %v1578
        %v1580 = vsub.f32 1.0, %v1579
        %v1581 = vmul.f32 %v1578, %v1580
        %v1582 = vadd.f32 %v1578, %v1581
        %vm1583 = vweird.f32 %v1472
        %vm1584 = vweird.f32 %v1578
        %vm1585 = vmor %vm1583, %vm1584
        %v1586 = vsel %vm1585, %v1578, %v1582
        %v1587 = vand.u32 2147483647, %v1472
        %vm1588 = vcmp.eq.f32.partialorder %v1587, 8.507059e+37
        %v1589 = vand.u32 %v1472, 2147483648
        %v1590 = vor.u32 1.1754944e-38, %v1589
        %v1591 = vsel %vm1588, %v1590, %v1586
        %v1592 = vmul.f32 1.0, %v1591
        %v1593 = vrot.slane %v1257, 2
        %v1594 = vrot.slane %v1258, 2
        %v1595 = vrot.slane %v1259, 2
        %v1596 = vrot.slane %v1260, 2
        %v1597 = vrot.slane %v1261, 2
        %v1598 = vrot.slane %v1262, 2
        %v1599 = vrot.slane %v1263, 2
        %v1600 = vrot.slane %v1264, 2
        %v1609 = vtanh.pop %v1593
        %v1610 = vtanh.pop %v1594
        %v1611 = vtanh.pop %v1595
        %v1612 = vtanh.pop %v1596
        %v1613 = vtanh.pop %v1597
        %v1614 = vtanh.pop %v1598
        %v1615 = vtanh.pop %v1599
        %v1616 = vtanh.pop %v1600
        %v1617 = vrot.slane %v1257, 3
        %v1618 = vrot.slane %v1258, 3
        %v1619 = vrot.slane %v1259, 3
        %v1620 = vrot.slane %v1260, 3
        %v1621 = vrot.slane %v1261, 3
        %v1622 = vrot.slane %v1262, 3
        %v1623 = vrot.slane %v1263, 3
        %v1624 = vrot.slane %v1264, 3
        %v1633 = vxor.u32 %v1617, 2147483648
        %v1634 = vxor.u32 %v1618, 2147483648
        %v1635 = vxor.u32 %v1619, 2147483648
        %v1636 = vxor.u32 %v1620, 2147483648
        %v1637 = vxor.u32 %v1621, 2147483648
        %v1638 = vxor.u32 %v1622, 2147483648
        %v1639 = vxor.u32 %v1623, 2147483648
        %v1640 = vxor.u32 %v1624, 2147483648
        %v1641 = vmul.f32 %v1633, 1.442695
        %v1642 = vpow.pop %v1641
        %v1643 = vmul.f32 %v1634, 1.442695
        %v1644 = vpow.pop %v1643
        %v1645 = vmul.f32 %v1635, 1.442695
        %v1646 = vpow.pop %v1645
        %v1647 = vmul.f32 %v1636, 1.442695
        %v1648 = vpow.pop %v1647
        %v1649 = vmul.f32 %v1637, 1.442695
        %v1650 = vpow.pop %v1649
        %v1651 = vmul.f32 %v1638, 1.442695
        %v1652 = vpow.pop %v1651
        %v1653 = vmul.f32 %v1639, 1.442695
        %v1654 = vpow.pop %v1653
        %v1655 = vmul.f32 %v1640, 1.442695
        %v1656 = vpow.pop %v1655
        %v1657 = vadd.f32 %v1642, 1.0
        %v1658 = vadd.f32 %v1644, 1.0
        %v1659 = vadd.f32 %v1646, 1.0
        %v1660 = vadd.f32 %v1648, 1.0
        %v1661 = vadd.f32 %v1650, 1.0
        %v1662 = vadd.f32 %v1652, 1.0
        %v1663 = vadd.f32 %v1654, 1.0
        %v1664 = vadd.f32 %v1656, 1.0
        %v1665 = vrcp.pop %v1657
        %v1666 = vmul.f32 %v1657, %v1665
        %v1667 = vsub.f32 1.0, %v1666
        %v1668 = vmul.f32 %v1665, %v1667
        %v1669 = vadd.f32 %v1665, %v1668
        %vm1670 = vweird.f32 %v1657
        %vm1671 = vweird.f32 %v1665
        %vm1672 = vmor %vm1670, %vm1671
        %v1673 = vsel %vm1672, %v1665, %v1669
        %v1674 = vand.u32 2147483647, %v1657
        %vm1675 = vcmp.eq.f32.partialorder %v1674, 8.507059e+37
        %v1676 = vand.u32 %v1657, 2147483648
        %v1677 = vor.u32 1.1754944e-38, %v1676
        %v1678 = vsel %vm1675, %v1677, %v1673
        %v1679 = vmul.f32 1.0, %v1678
        %v1680 = vrcp.pop %v1658
        %v1681 = vmul.f32 %v1658, %v1680
        %v1682 = vsub.f32 1.0, %v1681
        %v1683 = vmul.f32 %v1680, %v1682
        %v1684 = vadd.f32 %v1680, %v1683
        %vm1685 = vweird.f32 %v1658
        %vm1686 = vweird.f32 %v1680
        %vm1687 = vmor %vm1685, %vm1686
        %v1688 = vsel %vm1687, %v1680, %v1684
        %v1689 = vand.u32 2147483647, %v1658
        %vm1690 = vcmp.eq.f32.partialorder %v1689, 8.507059e+37
        %v1691 = vand.u32 %v1658, 2147483648
        %v1692 = vor.u32 1.1754944e-38, %v1691
        %v1693 = vsel %vm1690, %v1692, %v1688
        %v1694 = vmul.f32 1.0, %v1693
        %v1695 = vrcp.pop %v1659
        %v1696 = vmul.f32 %v1659, %v1695
        %v1697 = vsub.f32 1.0, %v1696
        %v1698 = vmul.f32 %v1695, %v1697
        %v1699 = vadd.f32 %v1695, %v1698
        %vm1700 = vweird.f32 %v1659
        %vm1701 = vweird.f32 %v1695
        %vm1702 = vmor %vm1700, %vm1701
        %v1703 = vsel %vm1702, %v1695, %v1699
        %v1704 = vand.u32 2147483647, %v1659
        %vm1705 = vcmp.eq.f32.partialorder %v1704, 8.507059e+37
        %v1706 = vand.u32 %v1659, 2147483648
        %v1707 = vor.u32 1.1754944e-38, %v1706
        %v1708 = vsel %vm1705, %v1707, %v1703
        %v1709 = vmul.f32 1.0, %v1708
        %v1710 = vrcp.pop %v1660
        %v1711 = vmul.f32 %v1660, %v1710
        %v1712 = vsub.f32 1.0, %v1711
        %v1713 = vmul.f32 %v1710, %v1712
        %v1714 = vadd.f32 %v1710, %v1713
        %vm1715 = vweird.f32 %v1660
        %vm1716 = vweird.f32 %v1710
        %vm1717 = vmor %vm1715, %vm1716
        %v1718 = vsel %vm1717, %v1710, %v1714
        %v1719 = vand.u32 2147483647, %v1660
        %vm1720 = vcmp.eq.f32.partialorder %v1719, 8.507059e+37
        %v1721 = vand.u32 %v1660, 2147483648
        %v1722 = vor.u32 1.1754944e-38, %v1721
        %v1723 = vsel %vm1720, %v1722, %v1718
        %v1724 = vmul.f32 1.0, %v1723
        %v1725 = vrcp.pop %v1661
        %v1726 = vmul.f32 %v1661, %v1725
        %v1727 = vsub.f32 1.0, %v1726
        %v1728 = vmul.f32 %v1725, %v1727
        %v1729 = vadd.f32 %v1725, %v1728
        %vm1730 = vweird.f32 %v1661
        %vm1731 = vweird.f32 %v1725
        %vm1732 = vmor %vm1730, %vm1731
        %v1733 = vsel %vm1732, %v1725, %v1729
        %v1734 = vand.u32 2147483647, %v1661
        %vm1735 = vcmp.eq.f32.partialorder %v1734, 8.507059e+37
        %v1736 = vand.u32 %v1661, 2147483648
        %v1737 = vor.u32 1.1754944e-38, %v1736
        %v1738 = vsel %vm1735, %v1737, %v1733
        %v1739 = vmul.f32 1.0, %v1738
        %v1740 = vrcp.pop %v1662
        %v1741 = vmul.f32 %v1662, %v1740
        %v1742 = vsub.f32 1.0, %v1741
        %v1743 = vmul.f32 %v1740, %v1742
        %v1744 = vadd.f32 %v1740, %v1743
        %vm1745 = vweird.f32 %v1662
        %vm1746 = vweird.f32 %v1740
        %vm1747 = vmor %vm1745, %vm1746
        %v1748 = vsel %vm1747, %v1740, %v1744
        %v1749 = vand.u32 2147483647, %v1662
        %vm1750 = vcmp.eq.f32.partialorder %v1749, 8.507059e+37
        %v1751 = vand.u32 %v1662, 2147483648
        %v1752 = vor.u32 1.1754944e-38, %v1751
        %v1753 = vsel %vm1750, %v1752, %v1748
        %v1754 = vmul.f32 1.0, %v1753
        %v1755 = vrcp.pop %v1663
        %v1756 = vmul.f32 %v1663, %v1755
        %v1757 = vsub.f32 1.0, %v1756
        %v1758 = vmul.f32 %v1755, %v1757
        %v1759 = vadd.f32 %v1755, %v1758
        %vm1760 = vweird.f32 %v1663
        %vm1761 = vweird.f32 %v1755
        %vm1762 = vmor %vm1760, %vm1761
        %v1763 = vsel %vm1762, %v1755, %v1759
        %v1764 = vand.u32 2147483647, %v1663
        %vm1765 = vcmp.eq.f32.partialorder %v1764, 8.507059e+37
        %v1766 = vand.u32 %v1663, 2147483648
        %v1767 = vor.u32 1.1754944e-38, %v1766
        %v1768 = vsel %vm1765, %v1767, %v1763
        %v1769 = vmul.f32 1.0, %v1768
        %v1770 = vrcp.pop %v1664
        %v1771 = vmul.f32 %v1664, %v1770
        %v1772 = vsub.f32 1.0, %v1771
        %v1773 = vmul.f32 %v1770, %v1772
        %v1774 = vadd.f32 %v1770, %v1773
        %vm1775 = vweird.f32 %v1664
        %vm1776 = vweird.f32 %v1770
        %vm1777 = vmor %vm1775, %vm1776
        %v1778 = vsel %vm1777, %v1770, %v1774
        %v1779 = vand.u32 2147483647, %v1664
        %vm1780 = vcmp.eq.f32.partialorder %v1779, 8.507059e+37
        %v1781 = vand.u32 %v1664, 2147483648
        %v1782 = vor.u32 1.1754944e-38, %v1781
        %v1783 = vsel %vm1780, %v1782, %v1778
        %v1784 = vmul.f32 1.0, %v1783
        %v1786 = vrot.slane %v1114, 1
        %v1787 = vrot.slane %v1114, 2
        %v1788 = vrot.slane %v1114, 3
        %v1789 = vrot.slane %v1114, 4
        %v1790 = vrot.slane %v1114, 5
        %v1791 = vrot.slane %v1114, 6
        %v1792 = vrot.slane %v1114, 7
        %v1800 = vmul.f32 %v1487, %v1114
        %v1801 = vmul.f32 %v1502, %v1786
        %v1802 = vmul.f32 %v1517, %v1787
        %v1803 = vmul.f32 %v1532, %v1788
        %v1804 = vmul.f32 %v1547, %v1789
        %v1805 = vmul.f32 %v1562, %v1790
        %v1806 = vmul.f32 %v1577, %v1791
        %v1807 = vmul.f32 %v1592, %v1792
        %v1808 = vmul.f32 %v1311, %v1609
        %v1809 = vmul.f32 %v1326, %v1610
        %v1810 = vmul.f32 %v1341, %v1611
        %v1811 = vmul.f32 %v1356, %v1612
        %v1812 = vmul.f32 %v1371, %v1613
        %v1813 = vmul.f32 %v1386, %v1614
        %v1814 = vmul.f32 %v1401, %v1615
        %v1815 = vmul.f32 %v1416, %v1616
        %v1816 = vadd.f32 %v1800, %v1808
        %v1817 = vadd.f32 %v1801, %v1809
        %v1818 = vadd.f32 %v1802, %v1810
        %v1819 = vadd.f32 %v1803, %v1811
        %v1820 = vadd.f32 %v1804, %v1812
        %v1821 = vadd.f32 %v1805, %v1813
        %v1822 = vadd.f32 %v1806, %v1814
        %v1823 = vadd.f32 %v1807, %v1815
        %v1824 = vtanh.pop %v1816
        %v1825 = vtanh.pop %v1817
        %v1826 = vtanh.pop %v1818
        %v1827 = vtanh.pop %v1819
        %v1828 = vtanh.pop %v1820
        %v1829 = vtanh.pop %v1821
        %v1830 = vtanh.pop %v1822
        %v1831 = vtanh.pop %v1823
        %v1832 = vmul.f32 %v1679, %v1824
        %v1833 = vmul.f32 %v1694, %v1825
        %v1834 = vmul.f32 %v1709, %v1826
        %v1835 = vmul.f32 %v1724, %v1827
        %v1836 = vmul.f32 %v1739, %v1828
        %v1837 = vmul.f32 %v1754, %v1829
        %v1838 = vmul.f32 %v1769, %v1830
        %v1839 = vmul.f32 %v1784, %v1831
        %1848 = vst [vmem:[#allocation1] ss:$9 sm:$0xff] %v1816
        %s1849 = scalar_lea.vmem [#allocation1], 1
        %1850 = vst [vmem:[%s1849] ss:$9 sm:$0xff] %v1817
        %s1851 = scalar_lea.vmem [#allocation1], 2
        %1852 = vst [vmem:[%s1851] ss:$9 sm:$0xff] %v1818
        %s1853 = scalar_lea.vmem [#allocation1], 3
        %1854 = vst [vmem:[%s1853] ss:$9 sm:$0xff] %v1819
        %s1855 = scalar_lea.vmem [#allocation1], 4
        %1856 = vst [vmem:[%s1855] ss:$9 sm:$0xff] %v1820
        %s1857 = scalar_lea.vmem [#allocation1], 5
        %1858 = vst [vmem:[%s1857] ss:$9 sm:$0xff] %v1821
        %s1859 = scalar_lea.vmem [#allocation1], 6
        %1860 = vst [vmem:[%s1859] ss:$9 sm:$0xff] %v1822
        %s1861 = scalar_lea.vmem [#allocation1], 7
        %1862 = vst [vmem:[%s1861] ss:$9 sm:$0xff] %v1823
        %v1863 = vld [vmem:[#allocation1] sm:$0xff]
        %1865 = vst [vmem:[#allocation3] sm:$0xff] %v1863
        %1874 = vst [vmem:[#allocation1] ss:$9 sm:$0xff] %v1832
        %s1875 = scalar_lea.vmem [#allocation1], 1
        %1876 = vst [vmem:[%s1875] ss:$9 sm:$0xff] %v1833
        %s1877 = scalar_lea.vmem [#allocation1], 2
        %1878 = vst [vmem:[%s1877] ss:$9 sm:$0xff] %v1834
        %s1879 = scalar_lea.vmem [#allocation1], 3
        %1880 = vst [vmem:[%s1879] ss:$9 sm:$0xff] %v1835
        %s1881 = scalar_lea.vmem [#allocation1], 4
        %1882 = vst [vmem:[%s1881] ss:$9 sm:$0xff] %v1836
        %s1883 = scalar_lea.vmem [#allocation1], 5
        %1884 = vst [vmem:[%s1883] ss:$9 sm:$0xff] %v1837
        %s1885 = scalar_lea.vmem [#allocation1], 6
        %1886 = vst [vmem:[%s1885] ss:$9 sm:$0xff] %v1838
        %s1887 = scalar_lea.vmem [#allocation1], 7
        %1888 = vst [vmem:[%s1887] ss:$9 sm:$0xff] %v1839
        %v1889 = vld [vmem:[#allocation1] sm:$0xff]
        %1891 = vst [vmem:[#allocation2] sm:$0xff] %v1889
        %1892 = vst [vmem:[%s238 + $0x1] sm:$0x1] %v1832
        %1893 = vst [vmem:[%s238 + $0x9] sm:$0x1] %v1833
        %1894 = vst [vmem:[%s238 + $0x11] sm:$0x1] %v1834
        %1895 = vst [vmem:[%s238 + $0x19] sm:$0x1] %v1835
        %1896 = vst [vmem:[%s238 + $0x21] sm:$0x1] %v1836
        %1897 = vst [vmem:[%s238 + $0x29] sm:$0x1] %v1837
        %1898 = vst [vmem:[%s238 + $0x31] sm:$0x1] %v1838
        %1899 = vst [vmem:[%s238 + $0x39] sm:$0x1] %v1839
        %v1900 = vld [vmem:[#allocation2] sm:$0xff]
        %v1901 = vld [vmem:[#allocation3] sm:$0xff]
        %s1902 = scalar_lea.vmem %s221, 2 [#allocation4]
        %v1903 = vld [vmem:[%s1902] ss:$8 sm:$0xf]
        %s1904 = scalar_lea.vmem %s221, 34 [#allocation4]
        %v1905 = vld [vmem:[%s1904] ss:$8 sm:$0xf]
        %s1906 = scalar_lea.vmem %s221, 66 [#allocation4]
        %v1907 = vld [vmem:[%s1906] ss:$8 sm:$0xf]
        %s1908 = scalar_lea.vmem %s221, 98 [#allocation4]
        %v1909 = vld [vmem:[%s1908] ss:$8 sm:$0xf]
        %s1910 = scalar_lea.vmem %s221, 130 [#allocation4]
        %v1911 = vld [vmem:[%s1910] ss:$8 sm:$0xf]
        %s1912 = scalar_lea.vmem %s221, 162 [#allocation4]
        %v1913 = vld [vmem:[%s1912] ss:$8 sm:$0xf]
        %s1914 = scalar_lea.vmem %s221, 194 [#allocation4]
        %v1915 = vld [vmem:[%s1914] ss:$8 sm:$0xf]
        %s1916 = scalar_lea.vmem %s221, 226 [#allocation4]
        %v1917 = vld [vmem:[%s1916] ss:$8 sm:$0xf]
        %1918 = vmatpush.msra.mxu0 %v307
        %1919 = vmatpush.msra.mxu0 %v303
        %1920 = vmatpush.msra.mxu0 %v299
        %1921 = vmatpush.msra.mxu0 %v295
        %1922 = vmatpush.msra.mxu0 %v291
        %1923 = vmatpush.msra.mxu0 %v287
        %1924 = vmatpush.msra.mxu0 %v283
        %1925 = vmatpush.msra.mxu0 %v279
        %1926 = vmatpush.msra.mxu0 %v275
        %1927 = vmatpush.msra.mxu0 %v271
        %1928 = vmatpush.msra.mxu0 %v267
        %1929 = vmatpush.msra.mxu0 %v263
        %1930 = vmatpush.msra.mxu0 %v259
        %1931 = vmatpush.msra.mxu0 %v255
        %1932 = vmatpush.msra.mxu0 %v251
        %1933 = vmatpush.msra.mxu0 %v247
        %1934 = vmatmul.f32.gmra.mxu0 %v1900
        %v1935 = vpop.f32.mrf.mxu0
        %v1936 = vadd.f32 0.0, %v1935
        %1937 = vdwg.mxu0
        %1938 = vmatpush.msra.mxu0 %v308
        %1939 = vmatpush.msra.mxu0 %v304
        %1940 = vmatpush.msra.mxu0 %v300
        %1941 = vmatpush.msra.mxu0 %v296
        %1942 = vmatpush.msra.mxu0 %v292
        %1943 = vmatpush.msra.mxu0 %v288
        %1944 = vmatpush.msra.mxu0 %v284
        %1945 = vmatpush.msra.mxu0 %v280
        %1946 = vmatpush.msra.mxu0 %v276
        %1947 = vmatpush.msra.mxu0 %v272
        %1948 = vmatpush.msra.mxu0 %v268
        %1949 = vmatpush.msra.mxu0 %v264
        %1950 = vmatpush.msra.mxu0 %v260
        %1951 = vmatpush.msra.mxu0 %v256
        %1952 = vmatpush.msra.mxu0 %v252
        %1953 = vmatpush.msra.mxu0 %v248
        %1954 = vmatmul.f32.gmra.mxu0 %v1900
        %v1955 = vpop.f32.mrf.mxu0
        %v1956 = vadd.f32 0.0, %v1955
        %1957 = vdwg.mxu0
        %1958 = vmatpush.msra.mxu0 %v309
        %1959 = vmatpush.msra.mxu0 %v305
        %1960 = vmatpush.msra.mxu0 %v301
        %1961 = vmatpush.msra.mxu0 %v297
        %1962 = vmatpush.msra.mxu0 %v293
        %1963 = vmatpush.msra.mxu0 %v289
        %1964 = vmatpush.msra.mxu0 %v285
        %1965 = vmatpush.msra.mxu0 %v281
        %1966 = vmatpush.msra.mxu0 %v277
        %1967 = vmatpush.msra.mxu0 %v273
        %1968 = vmatpush.msra.mxu0 %v269
        %1969 = vmatpush.msra.mxu0 %v265
        %1970 = vmatpush.msra.mxu0 %v261
        %1971 = vmatpush.msra.mxu0 %v257
        %1972 = vmatpush.msra.mxu0 %v253
        %1973 = vmatpush.msra.mxu0 %v249
        %1974 = vmatmul.f32.gmra.mxu0 %v1900
        %v1975 = vpop.f32.mrf.mxu0
        %v1976 = vadd.f32 0.0, %v1975
        %1977 = vdwg.mxu0
        %1978 = vmatpush.msra.mxu0 %v310
        %1979 = vmatpush.msra.mxu0 %v306
        %1980 = vmatpush.msra.mxu0 %v302
        %1981 = vmatpush.msra.mxu0 %v298
        %1982 = vmatpush.msra.mxu0 %v294
        %1983 = vmatpush.msra.mxu0 %v290
        %1984 = vmatpush.msra.mxu0 %v286
        %1985 = vmatpush.msra.mxu0 %v282
        %1986 = vmatpush.msra.mxu0 %v278
        %1987 = vmatpush.msra.mxu0 %v274
        %1988 = vmatpush.msra.mxu0 %v270
        %1989 = vmatpush.msra.mxu0 %v266
        %1990 = vmatpush.msra.mxu0 %v262
        %1991 = vmatpush.msra.mxu0 %v258
        %1992 = vmatpush.msra.mxu0 %v254
        %1993 = vmatpush.msra.mxu0 %v250
        %1994 = vmatmul.f32.gmra.mxu0 %v1900
        %v1995 = vpop.f32.mrf.mxu0
        %v1996 = vadd.f32 0.0, %v1995
        %1997 = vdwg.mxu0
        %v2002 = vrot.slane %v1956, 7
        %v2003 = vrot.slane %v1976, 6
        %v2004 = vrot.slane %v1996, 5
        %v2005 = vsel %vm415, %v1936, %v2002
        %v2006 = vsel %vm417, %v2003, %v2004
        %v2007 = vsel %vm419, %v2005, %v2006
        %v2008 = vsel %vm421, %v1936, %v2002
        %v2009 = vsel %vm423, %v2003, %v2004
        %v2010 = vsel %vm425, %v2008, %v2009
        %v2011 = vrot.slane %v2010, 1
        %v2012 = vsel %vm417, %v1936, %v2002
        %v2013 = vsel %vm429, %v2003, %v2004
        %v2014 = vsel %vm431, %v2012, %v2013
        %v2015 = vrot.slane %v2014, 2
        %v2016 = vsel %vm423, %v1936, %v2002
        %v2017 = vsel %vm435, %v2003, %v2004
        %v2018 = vsel %vm437, %v2016, %v2017
        %v2019 = vrot.slane %v2018, 3
        %v2020 = vsel %vm429, %v1936, %v2002
        %v2021 = vsel %vm441, %v2003, %v2004
        %v2022 = vsel %vm443, %v2020, %v2021
        %v2023 = vrot.slane %v2022, 4
        %v2024 = vsel %vm435, %v1936, %v2002
        %v2025 = vsel %vm447, %v2004, %v2003
        %v2026 = vsel %vm449, %v2024, %v2025
        %v2027 = vrot.slane %v2026, 5
        %v2028 = vsel %vm441, %v1936, %v2002
        %v2029 = vsel %vm415, %v2003, %v2004
        %v2030 = vsel %vm454, %v2029, %v2028
        %v2031 = vrot.slane %v2030, 6
        %v2032 = vsel %vm447, %v2002, %v1936
        %v2033 = vsel %vm421, %v2003, %v2004
        %v2034 = vsel %vm459, %v2033, %v2032
        %v2035 = vrot.slane %v2034, 7
        %v2044 = vadd.f32 %v1903, %v2007
        %v2045 = vadd.f32 %v1905, %v2011
        %v2046 = vadd.f32 %v1907, %v2015
        %v2047 = vadd.f32 %v1909, %v2019
        %v2048 = vadd.f32 %v1911, %v2023
        %v2049 = vadd.f32 %v1913, %v2027
        %v2050 = vadd.f32 %v1915, %v2031
        %v2051 = vadd.f32 %v1917, %v2035
        %v2052 = vxor.u32 %v2044, 2147483648
        %v2053 = vxor.u32 %v2045, 2147483648
        %v2054 = vxor.u32 %v2046, 2147483648
        %v2055 = vxor.u32 %v2047, 2147483648
        %v2056 = vxor.u32 %v2048, 2147483648
        %v2057 = vxor.u32 %v2049, 2147483648
        %v2058 = vxor.u32 %v2050, 2147483648
        %v2059 = vxor.u32 %v2051, 2147483648
        %v2060 = vmul.f32 %v2052, 1.442695
        %v2061 = vpow.pop %v2060
        %v2062 = vmul.f32 %v2053, 1.442695
        %v2063 = vpow.pop %v2062
        %v2064 = vmul.f32 %v2054, 1.442695
        %v2065 = vpow.pop %v2064
        %v2066 = vmul.f32 %v2055, 1.442695
        %v2067 = vpow.pop %v2066
        %v2068 = vmul.f32 %v2056, 1.442695
        %v2069 = vpow.pop %v2068
        %v2070 = vmul.f32 %v2057, 1.442695
        %v2071 = vpow.pop %v2070
        %v2072 = vmul.f32 %v2058, 1.442695
        %v2073 = vpow.pop %v2072
        %v2074 = vmul.f32 %v2059, 1.442695
        %v2075 = vpow.pop %v2074
        %v2076 = vadd.f32 %v2061, 1.0
        %v2077 = vadd.f32 %v2063, 1.0
        %v2078 = vadd.f32 %v2065, 1.0
        %v2079 = vadd.f32 %v2067, 1.0
        %v2080 = vadd.f32 %v2069, 1.0
        %v2081 = vadd.f32 %v2071, 1.0
        %v2082 = vadd.f32 %v2073, 1.0
        %v2083 = vadd.f32 %v2075, 1.0
        %v2084 = vrcp.pop %v2076
        %v2085 = vmul.f32 %v2076, %v2084
        %v2086 = vsub.f32 1.0, %v2085
        %v2087 = vmul.f32 %v2084, %v2086
        %v2088 = vadd.f32 %v2084, %v2087
        %vm2089 = vweird.f32 %v2076
        %vm2090 = vweird.f32 %v2084
        %vm2091 = vmor %vm2089, %vm2090
        %v2092 = vsel %vm2091, %v2084, %v2088
        %v2093 = vand.u32 2147483647, %v2076
        %vm2094 = vcmp.eq.f32.partialorder %v2093, 8.507059e+37
        %v2095 = vand.u32 %v2076, 2147483648
        %v2096 = vor.u32 1.1754944e-38, %v2095
        %v2097 = vsel %vm2094, %v2096, %v2092
        %v2098 = vmul.f32 1.0, %v2097
        %v2099 = vrcp.pop %v2077
        %v2100 = vmul.f32 %v2077, %v2099
        %v2101 = vsub.f32 1.0, %v2100
        %v2102 = vmul.f32 %v2099, %v2101
        %v2103 = vadd.f32 %v2099, %v2102
        %vm2104 = vweird.f32 %v2077
        %vm2105 = vweird.f32 %v2099
        %vm2106 = vmor %vm2104, %vm2105
        %v2107 = vsel %vm2106, %v2099, %v2103
        %v2108 = vand.u32 2147483647, %v2077
        %vm2109 = vcmp.eq.f32.partialorder %v2108, 8.507059e+37
        %v2110 = vand.u32 %v2077, 2147483648
        %v2111 = vor.u32 1.1754944e-38, %v2110
        %v2112 = vsel %vm2109, %v2111, %v2107
        %v2113 = vmul.f32 1.0, %v2112
        %v2114 = vrcp.pop %v2078
        %v2115 = vmul.f32 %v2078, %v2114
        %v2116 = vsub.f32 1.0, %v2115
        %v2117 = vmul.f32 %v2114, %v2116
        %v2118 = vadd.f32 %v2114, %v2117
        %vm2119 = vweird.f32 %v2078
        %vm2120 = vweird.f32 %v2114
        %vm2121 = vmor %vm2119, %vm2120
        %v2122 = vsel %vm2121, %v2114, %v2118
        %v2123 = vand.u32 2147483647, %v2078
        %vm2124 = vcmp.eq.f32.partialorder %v2123, 8.507059e+37
        %v2125 = vand.u32 %v2078, 2147483648
        %v2126 = vor.u32 1.1754944e-38, %v2125
        %v2127 = vsel %vm2124, %v2126, %v2122
        %v2128 = vmul.f32 1.0, %v2127
        %v2129 = vrcp.pop %v2079
        %v2130 = vmul.f32 %v2079, %v2129
        %v2131 = vsub.f32 1.0, %v2130
        %v2132 = vmul.f32 %v2129, %v2131
        %v2133 = vadd.f32 %v2129, %v2132
        %vm2134 = vweird.f32 %v2079
        %vm2135 = vweird.f32 %v2129
        %vm2136 = vmor %vm2134, %vm2135
        %v2137 = vsel %vm2136, %v2129, %v2133
        %v2138 = vand.u32 2147483647, %v2079
        %vm2139 = vcmp.eq.f32.partialorder %v2138, 8.507059e+37
        %v2140 = vand.u32 %v2079, 2147483648
        %v2141 = vor.u32 1.1754944e-38, %v2140
        %v2142 = vsel %vm2139, %v2141, %v2137
        %v2143 = vmul.f32 1.0, %v2142
        %v2144 = vrcp.pop %v2080
        %v2145 = vmul.f32 %v2080, %v2144
        %v2146 = vsub.f32 1.0, %v2145
        %v2147 = vmul.f32 %v2144, %v2146
        %v2148 = vadd.f32 %v2144, %v2147
        %vm2149 = vweird.f32 %v2080
        %vm2150 = vweird.f32 %v2144
        %vm2151 = vmor %vm2149, %vm2150
        %v2152 = vsel %vm2151, %v2144, %v2148
        %v2153 = vand.u32 2147483647, %v2080
        %vm2154 = vcmp.eq.f32.partialorder %v2153, 8.507059e+37
        %v2155 = vand.u32 %v2080, 2147483648
        %v2156 = vor.u32 1.1754944e-38, %v2155
        %v2157 = vsel %vm2154, %v2156, %v2152
        %v2158 = vmul.f32 1.0, %v2157
        %v2159 = vrcp.pop %v2081
        %v2160 = vmul.f32 %v2081, %v2159
        %v2161 = vsub.f32 1.0, %v2160
        %v2162 = vmul.f32 %v2159, %v2161
        %v2163 = vadd.f32 %v2159, %v2162
        %vm2164 = vweird.f32 %v2081
        %vm2165 = vweird.f32 %v2159
        %vm2166 = vmor %vm2164, %vm2165
        %v2167 = vsel %vm2166, %v2159, %v2163
        %v2168 = vand.u32 2147483647, %v2081
        %vm2169 = vcmp.eq.f32.partialorder %v2168, 8.507059e+37
        %v2170 = vand.u32 %v2081, 2147483648
        %v2171 = vor.u32 1.1754944e-38, %v2170
        %v2172 = vsel %vm2169, %v2171, %v2167
        %v2173 = vmul.f32 1.0, %v2172
        %v2174 = vrcp.pop %v2082
        %v2175 = vmul.f32 %v2082, %v2174
        %v2176 = vsub.f32 1.0, %v2175
        %v2177 = vmul.f32 %v2174, %v2176
        %v2178 = vadd.f32 %v2174, %v2177
        %vm2179 = vweird.f32 %v2082
        %vm2180 = vweird.f32 %v2174
        %vm2181 = vmor %vm2179, %vm2180
        %v2182 = vsel %vm2181, %v2174, %v2178
        %v2183 = vand.u32 2147483647, %v2082
        %vm2184 = vcmp.eq.f32.partialorder %v2183, 8.507059e+37
        %v2185 = vand.u32 %v2082, 2147483648
        %v2186 = vor.u32 1.1754944e-38, %v2185
        %v2187 = vsel %vm2184, %v2186, %v2182
        %v2188 = vmul.f32 1.0, %v2187
        %v2189 = vrcp.pop %v2083
        %v2190 = vmul.f32 %v2083, %v2189
        %v2191 = vsub.f32 1.0, %v2190
        %v2192 = vmul.f32 %v2189, %v2191
        %v2193 = vadd.f32 %v2189, %v2192
        %vm2194 = vweird.f32 %v2083
        %vm2195 = vweird.f32 %v2189
        %vm2196 = vmor %vm2194, %vm2195
        %v2197 = vsel %vm2196, %v2189, %v2193
        %v2198 = vand.u32 2147483647, %v2083
        %vm2199 = vcmp.eq.f32.partialorder %v2198, 8.507059e+37
        %v2200 = vand.u32 %v2083, 2147483648
        %v2201 = vor.u32 1.1754944e-38, %v2200
        %v2202 = vsel %vm2199, %v2201, %v2197
        %v2203 = vmul.f32 1.0, %v2202
        %v2212 = vrot.slane %v2044, 1
        %v2213 = vrot.slane %v2045, 1
        %v2214 = vrot.slane %v2046, 1
        %v2215 = vrot.slane %v2047, 1
        %v2216 = vrot.slane %v2048, 1
        %v2217 = vrot.slane %v2049, 1
        %v2218 = vrot.slane %v2050, 1
        %v2219 = vrot.slane %v2051, 1
        %v2228 = vxor.u32 %v2212, 2147483648
        %v2229 = vxor.u32 %v2213, 2147483648
        %v2230 = vxor.u32 %v2214, 2147483648
        %v2231 = vxor.u32 %v2215, 2147483648
        %v2232 = vxor.u32 %v2216, 2147483648
        %v2233 = vxor.u32 %v2217, 2147483648
        %v2234 = vxor.u32 %v2218, 2147483648
        %v2235 = vxor.u32 %v2219, 2147483648
        %v2236 = vmul.f32 %v2228, 1.442695
        %v2237 = vpow.pop %v2236
        %v2238 = vmul.f32 %v2229, 1.442695
        %v2239 = vpow.pop %v2238
        %v2240 = vmul.f32 %v2230, 1.442695
        %v2241 = vpow.pop %v2240
        %v2242 = vmul.f32 %v2231, 1.442695
        %v2243 = vpow.pop %v2242
        %v2244 = vmul.f32 %v2232, 1.442695
        %v2245 = vpow.pop %v2244
        %v2246 = vmul.f32 %v2233, 1.442695
        %v2247 = vpow.pop %v2246
        %v2248 = vmul.f32 %v2234, 1.442695
        %v2249 = vpow.pop %v2248
        %v2250 = vmul.f32 %v2235, 1.442695
        %v2251 = vpow.pop %v2250
        %v2252 = vadd.f32 %v2237, 1.0
        %v2253 = vadd.f32 %v2239, 1.0
        %v2254 = vadd.f32 %v2241, 1.0
        %v2255 = vadd.f32 %v2243, 1.0
        %v2256 = vadd.f32 %v2245, 1.0
        %v2257 = vadd.f32 %v2247, 1.0
        %v2258 = vadd.f32 %v2249, 1.0
        %v2259 = vadd.f32 %v2251, 1.0
        %v2260 = vrcp.pop %v2252
        %v2261 = vmul.f32 %v2252, %v2260
        %v2262 = vsub.f32 1.0, %v2261
        %v2263 = vmul.f32 %v2260, %v2262
        %v2264 = vadd.f32 %v2260, %v2263
        %vm2265 = vweird.f32 %v2252
        %vm2266 = vweird.f32 %v2260
        %vm2267 = vmor %vm2265, %vm2266
        %v2268 = vsel %vm2267, %v2260, %v2264
        %v2269 = vand.u32 2147483647, %v2252
        %vm2270 = vcmp.eq.f32.partialorder %v2269, 8.507059e+37
        %v2271 = vand.u32 %v2252, 2147483648
        %v2272 = vor.u32 1.1754944e-38, %v2271
        %v2273 = vsel %vm2270, %v2272, %v2268
        %v2274 = vmul.f32 1.0, %v2273
        %v2275 = vrcp.pop %v2253
        %v2276 = vmul.f32 %v2253, %v2275
        %v2277 = vsub.f32 1.0, %v2276
        %v2278 = vmul.f32 %v2275, %v2277
        %v2279 = vadd.f32 %v2275, %v2278
        %vm2280 = vweird.f32 %v2253
        %vm2281 = vweird.f32 %v2275
        %vm2282 = vmor %vm2280, %vm2281
        %v2283 = vsel %vm2282, %v2275, %v2279
        %v2284 = vand.u32 2147483647, %v2253
        %vm2285 = vcmp.eq.f32.partialorder %v2284, 8.507059e+37
        %v2286 = vand.u32 %v2253, 2147483648
        %v2287 = vor.u32 1.1754944e-38, %v2286
        %v2288 = vsel %vm2285, %v2287, %v2283
        %v2289 = vmul.f32 1.0, %v2288
        %v2290 = vrcp.pop %v2254
        %v2291 = vmul.f32 %v2254, %v2290
        %v2292 = vsub.f32 1.0, %v2291
        %v2293 = vmul.f32 %v2290, %v2292
        %v2294 = vadd.f32 %v2290, %v2293
        %vm2295 = vweird.f32 %v2254
        %vm2296 = vweird.f32 %v2290
        %vm2297 = vmor %vm2295, %vm2296
        %v2298 = vsel %vm2297, %v2290, %v2294
        %v2299 = vand.u32 2147483647, %v2254
        %vm2300 = vcmp.eq.f32.partialorder %v2299, 8.507059e+37
        %v2301 = vand.u32 %v2254, 2147483648
        %v2302 = vor.u32 1.1754944e-38, %v2301
        %v2303 = vsel %vm2300, %v2302, %v2298
        %v2304 = vmul.f32 1.0, %v2303
        %v2305 = vrcp.pop %v2255
        %v2306 = vmul.f32 %v2255, %v2305
        %v2307 = vsub.f32 1.0, %v2306
        %v2308 = vmul.f32 %v2305, %v2307
        %v2309 = vadd.f32 %v2305, %v2308
        %vm2310 = vweird.f32 %v2255
        %vm2311 = vweird.f32 %v2305
        %vm2312 = vmor %vm2310, %vm2311
        %v2313 = vsel %vm2312, %v2305, %v2309
        %v2314 = vand.u32 2147483647, %v2255
        %vm2315 = vcmp.eq.f32.partialorder %v2314, 8.507059e+37
        %v2316 = vand.u32 %v2255, 2147483648
        %v2317 = vor.u32 1.1754944e-38, %v2316
        %v2318 = vsel %vm2315, %v2317, %v2313
        %v2319 = vmul.f32 1.0, %v2318
        %v2320 = vrcp.pop %v2256
        %v2321 = vmul.f32 %v2256, %v2320
        %v2322 = vsub.f32 1.0, %v2321
        %v2323 = vmul.f32 %v2320, %v2322
        %v2324 = vadd.f32 %v2320, %v2323
        %vm2325 = vweird.f32 %v2256
        %vm2326 = vweird.f32 %v2320
        %vm2327 = vmor %vm2325, %vm2326
        %v2328 = vsel %vm2327, %v2320, %v2324
        %v2329 = vand.u32 2147483647, %v2256
        %vm2330 = vcmp.eq.f32.partialorder %v2329, 8.507059e+37
        %v2331 = vand.u32 %v2256, 2147483648
        %v2332 = vor.u32 1.1754944e-38, %v2331
        %v2333 = vsel %vm2330, %v2332, %v2328
        %v2334 = vmul.f32 1.0, %v2333
        %v2335 = vrcp.pop %v2257
        %v2336 = vmul.f32 %v2257, %v2335
        %v2337 = vsub.f32 1.0, %v2336
        %v2338 = vmul.f32 %v2335, %v2337
        %v2339 = vadd.f32 %v2335, %v2338
        %vm2340 = vweird.f32 %v2257
        %vm2341 = vweird.f32 %v2335
        %vm2342 = vmor %vm2340, %vm2341
        %v2343 = vsel %vm2342, %v2335, %v2339
        %v2344 = vand.u32 2147483647, %v2257
        %vm2345 = vcmp.eq.f32.partialorder %v2344, 8.507059e+37
        %v2346 = vand.u32 %v2257, 2147483648
        %v2347 = vor.u32 1.1754944e-38, %v2346
        %v2348 = vsel %vm2345, %v2347, %v2343
        %v2349 = vmul.f32 1.0, %v2348
        %v2350 = vrcp.pop %v2258
        %v2351 = vmul.f32 %v2258, %v2350
        %v2352 = vsub.f32 1.0, %v2351
        %v2353 = vmul.f32 %v2350, %v2352
        %v2354 = vadd.f32 %v2350, %v2353
        %vm2355 = vweird.f32 %v2258
        %vm2356 = vweird.f32 %v2350
        %vm2357 = vmor %vm2355, %vm2356
        %v2358 = vsel %vm2357, %v2350, %v2354
        %v2359 = vand.u32 2147483647, %v2258
        %vm2360 = vcmp.eq.f32.partialorder %v2359, 8.507059e+37
        %v2361 = vand.u32 %v2258, 2147483648
        %v2362 = vor.u32 1.1754944e-38, %v2361
        %v2363 = vsel %vm2360, %v2362, %v2358
        %v2364 = vmul.f32 1.0, %v2363
        %v2365 = vrcp.pop %v2259
        %v2366 = vmul.f32 %v2259, %v2365
        %v2367 = vsub.f32 1.0, %v2366
        %v2368 = vmul.f32 %v2365, %v2367
        %v2369 = vadd.f32 %v2365, %v2368
        %vm2370 = vweird.f32 %v2259
        %vm2371 = vweird.f32 %v2365
        %vm2372 = vmor %vm2370, %vm2371
        %v2373 = vsel %vm2372, %v2365, %v2369
        %v2374 = vand.u32 2147483647, %v2259
        %vm2375 = vcmp.eq.f32.partialorder %v2374, 8.507059e+37
        %v2376 = vand.u32 %v2259, 2147483648
        %v2377 = vor.u32 1.1754944e-38, %v2376
        %v2378 = vsel %vm2375, %v2377, %v2373
        %v2379 = vmul.f32 1.0, %v2378
        %v2380 = vrot.slane %v2044, 2
        %v2381 = vrot.slane %v2045, 2
        %v2382 = vrot.slane %v2046, 2
        %v2383 = vrot.slane %v2047, 2
        %v2384 = vrot.slane %v2048, 2
        %v2385 = vrot.slane %v2049, 2
        %v2386 = vrot.slane %v2050, 2
        %v2387 = vrot.slane %v2051, 2
        %v2396 = vtanh.pop %v2380
        %v2397 = vtanh.pop %v2381
        %v2398 = vtanh.pop %v2382
        %v2399 = vtanh.pop %v2383
        %v2400 = vtanh.pop %v2384
        %v2401 = vtanh.pop %v2385
        %v2402 = vtanh.pop %v2386
        %v2403 = vtanh.pop %v2387
        %v2404 = vrot.slane %v2044, 3
        %v2405 = vrot.slane %v2045, 3
        %v2406 = vrot.slane %v2046, 3
        %v2407 = vrot.slane %v2047, 3
        %v2408 = vrot.slane %v2048, 3
        %v2409 = vrot.slane %v2049, 3
        %v2410 = vrot.slane %v2050, 3
        %v2411 = vrot.slane %v2051, 3
        %v2420 = vxor.u32 %v2404, 2147483648
        %v2421 = vxor.u32 %v2405, 2147483648
        %v2422 = vxor.u32 %v2406, 2147483648
        %v2423 = vxor.u32 %v2407, 2147483648
        %v2424 = vxor.u32 %v2408, 2147483648
        %v2425 = vxor.u32 %v2409, 2147483648
        %v2426 = vxor.u32 %v2410, 2147483648
        %v2427 = vxor.u32 %v2411, 2147483648
        %v2428 = vmul.f32 %v2420, 1.442695
        %v2429 = vpow.pop %v2428
        %v2430 = vmul.f32 %v2421, 1.442695
        %v2431 = vpow.pop %v2430
        %v2432 = vmul.f32 %v2422, 1.442695
        %v2433 = vpow.pop %v2432
        %v2434 = vmul.f32 %v2423, 1.442695
        %v2435 = vpow.pop %v2434
        %v2436 = vmul.f32 %v2424, 1.442695
        %v2437 = vpow.pop %v2436
        %v2438 = vmul.f32 %v2425, 1.442695
        %v2439 = vpow.pop %v2438
        %v2440 = vmul.f32 %v2426, 1.442695
        %v2441 = vpow.pop %v2440
        %v2442 = vmul.f32 %v2427, 1.442695
        %v2443 = vpow.pop %v2442
        %v2444 = vadd.f32 %v2429, 1.0
        %v2445 = vadd.f32 %v2431, 1.0
        %v2446 = vadd.f32 %v2433, 1.0
        %v2447 = vadd.f32 %v2435, 1.0
        %v2448 = vadd.f32 %v2437, 1.0
        %v2449 = vadd.f32 %v2439, 1.0
        %v2450 = vadd.f32 %v2441, 1.0
        %v2451 = vadd.f32 %v2443, 1.0
        %v2452 = vrcp.pop %v2444
        %v2453 = vmul.f32 %v2444, %v2452
        %v2454 = vsub.f32 1.0, %v2453
        %v2455 = vmul.f32 %v2452, %v2454
        %v2456 = vadd.f32 %v2452, %v2455
        %vm2457 = vweird.f32 %v2444
        %vm2458 = vweird.f32 %v2452
        %vm2459 = vmor %vm2457, %vm2458
        %v2460 = vsel %vm2459, %v2452, %v2456
        %v2461 = vand.u32 2147483647, %v2444
        %vm2462 = vcmp.eq.f32.partialorder %v2461, 8.507059e+37
        %v2463 = vand.u32 %v2444, 2147483648
        %v2464 = vor.u32 1.1754944e-38, %v2463
        %v2465 = vsel %vm2462, %v2464, %v2460
        %v2466 = vmul.f32 1.0, %v2465
        %v2467 = vrcp.pop %v2445
        %v2468 = vmul.f32 %v2445, %v2467
        %v2469 = vsub.f32 1.0, %v2468
        %v2470 = vmul.f32 %v2467, %v2469
        %v2471 = vadd.f32 %v2467, %v2470
        %vm2472 = vweird.f32 %v2445
        %vm2473 = vweird.f32 %v2467
        %vm2474 = vmor %vm2472, %vm2473
        %v2475 = vsel %vm2474, %v2467, %v2471
        %v2476 = vand.u32 2147483647, %v2445
        %vm2477 = vcmp.eq.f32.partialorder %v2476, 8.507059e+37
        %v2478 = vand.u32 %v2445, 2147483648
        %v2479 = vor.u32 1.1754944e-38, %v2478
        %v2480 = vsel %vm2477, %v2479, %v2475
        %v2481 = vmul.f32 1.0, %v2480
        %v2482 = vrcp.pop %v2446
        %v2483 = vmul.f32 %v2446, %v2482
        %v2484 = vsub.f32 1.0, %v2483
        %v2485 = vmul.f32 %v2482, %v2484
        %v2486 = vadd.f32 %v2482, %v2485
        %vm2487 = vweird.f32 %v2446
        %vm2488 = vweird.f32 %v2482
        %vm2489 = vmor %vm2487, %vm2488
        %v2490 = vsel %vm2489, %v2482, %v2486
        %v2491 = vand.u32 2147483647, %v2446
        %vm2492 = vcmp.eq.f32.partialorder %v2491, 8.507059e+37
        %v2493 = vand.u32 %v2446, 2147483648
        %v2494 = vor.u32 1.1754944e-38, %v2493
        %v2495 = vsel %vm2492, %v2494, %v2490
        %v2496 = vmul.f32 1.0, %v2495
        %v2497 = vrcp.pop %v2447
        %v2498 = vmul.f32 %v2447, %v2497
        %v2499 = vsub.f32 1.0, %v2498
        %v2500 = vmul.f32 %v2497, %v2499
        %v2501 = vadd.f32 %v2497, %v2500
        %vm2502 = vweird.f32 %v2447
        %vm2503 = vweird.f32 %v2497
        %vm2504 = vmor %vm2502, %vm2503
        %v2505 = vsel %vm2504, %v2497, %v2501
        %v2506 = vand.u32 2147483647, %v2447
        %vm2507 = vcmp.eq.f32.partialorder %v2506, 8.507059e+37
        %v2508 = vand.u32 %v2447, 2147483648
        %v2509 = vor.u32 1.1754944e-38, %v2508
        %v2510 = vsel %vm2507, %v2509, %v2505
        %v2511 = vmul.f32 1.0, %v2510
        %v2512 = vrcp.pop %v2448
        %v2513 = vmul.f32 %v2448, %v2512
        %v2514 = vsub.f32 1.0, %v2513
        %v2515 = vmul.f32 %v2512, %v2514
        %v2516 = vadd.f32 %v2512, %v2515
        %vm2517 = vweird.f32 %v2448
        %vm2518 = vweird.f32 %v2512
        %vm2519 = vmor %vm2517, %vm2518
        %v2520 = vsel %vm2519, %v2512, %v2516
        %v2521 = vand.u32 2147483647, %v2448
        %vm2522 = vcmp.eq.f32.partialorder %v2521, 8.507059e+37
        %v2523 = vand.u32 %v2448, 2147483648
        %v2524 = vor.u32 1.1754944e-38, %v2523
        %v2525 = vsel %vm2522, %v2524, %v2520
        %v2526 = vmul.f32 1.0, %v2525
        %v2527 = vrcp.pop %v2449
        %v2528 = vmul.f32 %v2449, %v2527
        %v2529 = vsub.f32 1.0, %v2528
        %v2530 = vmul.f32 %v2527, %v2529
        %v2531 = vadd.f32 %v2527, %v2530
        %vm2532 = vweird.f32 %v2449
        %vm2533 = vweird.f32 %v2527
        %vm2534 = vmor %vm2532, %vm2533
        %v2535 = vsel %vm2534, %v2527, %v2531
        %v2536 = vand.u32 2147483647, %v2449
        %vm2537 = vcmp.eq.f32.partialorder %v2536, 8.507059e+37
        %v2538 = vand.u32 %v2449, 2147483648
        %v2539 = vor.u32 1.1754944e-38, %v2538
        %v2540 = vsel %vm2537, %v2539, %v2535
        %v2541 = vmul.f32 1.0, %v2540
        %v2542 = vrcp.pop %v2450
        %v2543 = vmul.f32 %v2450, %v2542
        %v2544 = vsub.f32 1.0, %v2543
        %v2545 = vmul.f32 %v2542, %v2544
        %v2546 = vadd.f32 %v2542, %v2545
        %vm2547 = vweird.f32 %v2450
        %vm2548 = vweird.f32 %v2542
        %vm2549 = vmor %vm2547, %vm2548
        %v2550 = vsel %vm2549, %v2542, %v2546
        %v2551 = vand.u32 2147483647, %v2450
        %vm2552 = vcmp.eq.f32.partialorder %v2551, 8.507059e+37
        %v2553 = vand.u32 %v2450, 2147483648
        %v2554 = vor.u32 1.1754944e-38, %v2553
        %v2555 = vsel %vm2552, %v2554, %v2550
        %v2556 = vmul.f32 1.0, %v2555
        %v2557 = vrcp.pop %v2451
        %v2558 = vmul.f32 %v2451, %v2557
        %v2559 = vsub.f32 1.0, %v2558
        %v2560 = vmul.f32 %v2557, %v2559
        %v2561 = vadd.f32 %v2557, %v2560
        %vm2562 = vweird.f32 %v2451
        %vm2563 = vweird.f32 %v2557
        %vm2564 = vmor %vm2562, %vm2563
        %v2565 = vsel %vm2564, %v2557, %v2561
        %v2566 = vand.u32 2147483647, %v2451
        %vm2567 = vcmp.eq.f32.partialorder %v2566, 8.507059e+37
        %v2568 = vand.u32 %v2451, 2147483648
        %v2569 = vor.u32 1.1754944e-38, %v2568
        %v2570 = vsel %vm2567, %v2569, %v2565
        %v2571 = vmul.f32 1.0, %v2570
        %v2573 = vrot.slane %v1901, 1
        %v2574 = vrot.slane %v1901, 2
        %v2575 = vrot.slane %v1901, 3
        %v2576 = vrot.slane %v1901, 4
        %v2577 = vrot.slane %v1901, 5
        %v2578 = vrot.slane %v1901, 6
        %v2579 = vrot.slane %v1901, 7
        %v2587 = vmul.f32 %v2274, %v1901
        %v2588 = vmul.f32 %v2289, %v2573
        %v2589 = vmul.f32 %v2304, %v2574
        %v2590 = vmul.f32 %v2319, %v2575
        %v2591 = vmul.f32 %v2334, %v2576
        %v2592 = vmul.f32 %v2349, %v2577
        %v2593 = vmul.f32 %v2364, %v2578
        %v2594 = vmul.f32 %v2379, %v2579
        %v2595 = vmul.f32 %v2098, %v2396
        %v2596 = vmul.f32 %v2113, %v2397
        %v2597 = vmul.f32 %v2128, %v2398
        %v2598 = vmul.f32 %v2143, %v2399
        %v2599 = vmul.f32 %v2158, %v2400
        %v2600 = vmul.f32 %v2173, %v2401
        %v2601 = vmul.f32 %v2188, %v2402
        %v2602 = vmul.f32 %v2203, %v2403
        %v2603 = vadd.f32 %v2587, %v2595
        %v2604 = vadd.f32 %v2588, %v2596
        %v2605 = vadd.f32 %v2589, %v2597
        %v2606 = vadd.f32 %v2590, %v2598
        %v2607 = vadd.f32 %v2591, %v2599
        %v2608 = vadd.f32 %v2592, %v2600
        %v2609 = vadd.f32 %v2593, %v2601
        %v2610 = vadd.f32 %v2594, %v2602
        %v2611 = vtanh.pop %v2603
        %v2612 = vtanh.pop %v2604
        %v2613 = vtanh.pop %v2605
        %v2614 = vtanh.pop %v2606
        %v2615 = vtanh.pop %v2607
        %v2616 = vtanh.pop %v2608
        %v2617 = vtanh.pop %v2609
        %v2618 = vtanh.pop %v2610
        %v2619 = vmul.f32 %v2466, %v2611
        %v2620 = vmul.f32 %v2481, %v2612
        %v2621 = vmul.f32 %v2496, %v2613
        %v2622 = vmul.f32 %v2511, %v2614
        %v2623 = vmul.f32 %v2526, %v2615
        %v2624 = vmul.f32 %v2541, %v2616
        %v2625 = vmul.f32 %v2556, %v2617
        %v2626 = vmul.f32 %v2571, %v2618
        %2635 = vst [vmem:[#allocation1] ss:$9 sm:$0xff] %v2603
        %s2636 = scalar_lea.vmem [#allocation1], 1
        %2637 = vst [vmem:[%s2636] ss:$9 sm:$0xff] %v2604
        %s2638 = scalar_lea.vmem [#allocation1], 2
        %2639 = vst [vmem:[%s2638] ss:$9 sm:$0xff] %v2605
        %s2640 = scalar_lea.vmem [#allocation1], 3
        %2641 = vst [vmem:[%s2640] ss:$9 sm:$0xff] %v2606
        %s2642 = scalar_lea.vmem [#allocation1], 4
        %2643 = vst [vmem:[%s2642] ss:$9 sm:$0xff] %v2607
        %s2644 = scalar_lea.vmem [#allocation1], 5
        %2645 = vst [vmem:[%s2644] ss:$9 sm:$0xff] %v2608
        %s2646 = scalar_lea.vmem [#allocation1], 6
        %2647 = vst [vmem:[%s2646] ss:$9 sm:$0xff] %v2609
        %s2648 = scalar_lea.vmem [#allocation1], 7
        %2649 = vst [vmem:[%s2648] ss:$9 sm:$0xff] %v2610
        %v2650 = vld [vmem:[#allocation1] sm:$0xff]
        %2652 = vst [vmem:[#allocation3] sm:$0xff] %v2650
        %2661 = vst [vmem:[#allocation1] ss:$9 sm:$0xff] %v2619
        %s2662 = scalar_lea.vmem [#allocation1], 1
        %2663 = vst [vmem:[%s2662] ss:$9 sm:$0xff] %v2620
        %s2664 = scalar_lea.vmem [#allocation1], 2
        %2665 = vst [vmem:[%s2664] ss:$9 sm:$0xff] %v2621
        %s2666 = scalar_lea.vmem [#allocation1], 3
        %2667 = vst [vmem:[%s2666] ss:$9 sm:$0xff] %v2622
        %s2668 = scalar_lea.vmem [#allocation1], 4
        %2669 = vst [vmem:[%s2668] ss:$9 sm:$0xff] %v2623
        %s2670 = scalar_lea.vmem [#allocation1], 5
        %2671 = vst [vmem:[%s2670] ss:$9 sm:$0xff] %v2624
        %s2672 = scalar_lea.vmem [#allocation1], 6
        %2673 = vst [vmem:[%s2672] ss:$9 sm:$0xff] %v2625
        %s2674 = scalar_lea.vmem [#allocation1], 7
        %2675 = vst [vmem:[%s2674] ss:$9 sm:$0xff] %v2626
        %v2676 = vld [vmem:[#allocation1] sm:$0xff]
        %2678 = vst [vmem:[#allocation2] sm:$0xff] %v2676
        %2679 = vst [vmem:[%s238 + $0x2] sm:$0x1] %v2619
        %2680 = vst [vmem:[%s238 + $0xa] sm:$0x1] %v2620
        %2681 = vst [vmem:[%s238 + $0x12] sm:$0x1] %v2621
        %2682 = vst [vmem:[%s238 + $0x1a] sm:$0x1] %v2622
        %2683 = vst [vmem:[%s238 + $0x22] sm:$0x1] %v2623
        %2684 = vst [vmem:[%s238 + $0x2a] sm:$0x1] %v2624
        %2685 = vst [vmem:[%s238 + $0x32] sm:$0x1] %v2625
        %2686 = vst [vmem:[%s238 + $0x3a] sm:$0x1] %v2626
        %v2687 = vld [vmem:[#allocation2] sm:$0xff]
        %v2688 = vld [vmem:[#allocation3] sm:$0xff]
        %s2689 = scalar_lea.vmem %s221, 3 [#allocation4]
        %v2690 = vld [vmem:[%s2689] ss:$8 sm:$0xf]
        %s2691 = scalar_lea.vmem %s221, 35 [#allocation4]
        %v2692 = vld [vmem:[%s2691] ss:$8 sm:$0xf]
        %s2693 = scalar_lea.vmem %s221, 67 [#allocation4]
        %v2694 = vld [vmem:[%s2693] ss:$8 sm:$0xf]
        %s2695 = scalar_lea.vmem %s221, 99 [#allocation4]
        %v2696 = vld [vmem:[%s2695] ss:$8 sm:$0xf]
        %s2697 = scalar_lea.vmem %s221, 131 [#allocation4]
        %v2698 = vld [vmem:[%s2697] ss:$8 sm:$0xf]
        %s2699 = scalar_lea.vmem %s221, 163 [#allocation4]
        %v2700 = vld [vmem:[%s2699] ss:$8 sm:$0xf]
        %s2701 = scalar_lea.vmem %s221, 195 [#allocation4]
        %v2702 = vld [vmem:[%s2701] ss:$8 sm:$0xf]
        %s2703 = scalar_lea.vmem %s221, 227 [#allocation4]
        %v2704 = vld [vmem:[%s2703] ss:$8 sm:$0xf]
        %2705 = vmatpush.msra.mxu0 %v307
        %2706 = vmatpush.msra.mxu0 %v303
        %2707 = vmatpush.msra.mxu0 %v299
        %2708 = vmatpush.msra.mxu0 %v295
        %2709 = vmatpush.msra.mxu0 %v291
        %2710 = vmatpush.msra.mxu0 %v287
        %2711 = vmatpush.msra.mxu0 %v283
        %2712 = vmatpush.msra.mxu0 %v279
        %2713 = vmatpush.msra.mxu0 %v275
        %2714 = vmatpush.msra.mxu0 %v271
        %2715 = vmatpush.msra.mxu0 %v267
        %2716 = vmatpush.msra.mxu0 %v263
        %2717 = vmatpush.msra.mxu0 %v259
        %2718 = vmatpush.msra.mxu0 %v255
        %2719 = vmatpush.msra.mxu0 %v251
        %2720 = vmatpush.msra.mxu0 %v247
        %2721 = vmatmul.f32.gmra.mxu0 %v2687
        %v2722 = vpop.f32.mrf.mxu0
        %v2723 = vadd.f32 0.0, %v2722
        %2724 = vdwg.mxu0
        %2725 = vmatpush.msra.mxu0 %v308
        %2726 = vmatpush.msra.mxu0 %v304
        %2727 = vmatpush.msra.mxu0 %v300
        %2728 = vmatpush.msra.mxu0 %v296
        %2729 = vmatpush.msra.mxu0 %v292
        %2730 = vmatpush.msra.mxu0 %v288
        %2731 = vmatpush.msra.mxu0 %v284
        %2732 = vmatpush.msra.mxu0 %v280
        %2733 = vmatpush.msra.mxu0 %v276
        %2734 = vmatpush.msra.mxu0 %v272
        %2735 = vmatpush.msra.mxu0 %v268
        %2736 = vmatpush.msra.mxu0 %v264
        %2737 = vmatpush.msra.mxu0 %v260
        %2738 = vmatpush.msra.mxu0 %v256
        %2739 = vmatpush.msra.mxu0 %v252
        %2740 = vmatpush.msra.mxu0 %v248
        %2741 = vmatmul.f32.gmra.mxu0 %v2687
        %v2742 = vpop.f32.mrf.mxu0
        %v2743 = vadd.f32 0.0, %v2742
        %2744 = vdwg.mxu0
        %2745 = vmatpush.msra.mxu0 %v309
        %2746 = vmatpush.msra.mxu0 %v305
        %2747 = vmatpush.msra.mxu0 %v301
        %2748 = vmatpush.msra.mxu0 %v297
        %2749 = vmatpush.msra.mxu0 %v293
        %2750 = vmatpush.msra.mxu0 %v289
        %2751 = vmatpush.msra.mxu0 %v285
        %2752 = vmatpush.msra.mxu0 %v281
        %2753 = vmatpush.msra.mxu0 %v277
        %2754 = vmatpush.msra.mxu0 %v273
        %2755 = vmatpush.msra.mxu0 %v269
        %2756 = vmatpush.msra.mxu0 %v265
        %2757 = vmatpush.msra.mxu0 %v261
        %2758 = vmatpush.msra.mxu0 %v257
        %2759 = vmatpush.msra.mxu0 %v253
        %2760 = vmatpush.msra.mxu0 %v249
        %2761 = vmatmul.f32.gmra.mxu0 %v2687
        %v2762 = vpop.f32.mrf.mxu0
        %v2763 = vadd.f32 0.0, %v2762
        %2764 = vdwg.mxu0
        %2765 = vmatpush.msra.mxu0 %v310
        %2766 = vmatpush.msra.mxu0 %v306
        %2767 = vmatpush.msra.mxu0 %v302
        %2768 = vmatpush.msra.mxu0 %v298
        %2769 = vmatpush.msra.mxu0 %v294
        %2770 = vmatpush.msra.mxu0 %v290
        %2771 = vmatpush.msra.mxu0 %v286
        %2772 = vmatpush.msra.mxu0 %v282
        %2773 = vmatpush.msra.mxu0 %v278
        %2774 = vmatpush.msra.mxu0 %v274
        %2775 = vmatpush.msra.mxu0 %v270
        %2776 = vmatpush.msra.mxu0 %v266
        %2777 = vmatpush.msra.mxu0 %v262
        %2778 = vmatpush.msra.mxu0 %v258
        %2779 = vmatpush.msra.mxu0 %v254
        %2780 = vmatpush.msra.mxu0 %v250
        %2781 = vmatmul.f32.gmra.mxu0 %v2687
        %v2782 = vpop.f32.mrf.mxu0
        %v2783 = vadd.f32 0.0, %v2782
        %2784 = vdwg.mxu0
        %v2789 = vrot.slane %v2743, 7
        %v2790 = vrot.slane %v2763, 6
        %v2791 = vrot.slane %v2783, 5
        %v2792 = vsel %vm415, %v2723, %v2789
        %v2793 = vsel %vm417, %v2790, %v2791
        %v2794 = vsel %vm419, %v2792, %v2793
        %v2795 = vsel %vm421, %v2723, %v2789
        %v2796 = vsel %vm423, %v2790, %v2791
        %v2797 = vsel %vm425, %v2795, %v2796
        %v2798 = vrot.slane %v2797, 1
        %v2799 = vsel %vm417, %v2723, %v2789
        %v2800 = vsel %vm429, %v2790, %v2791
        %v2801 = vsel %vm431, %v2799, %v2800
        %v2802 = vrot.slane %v2801, 2
        %v2803 = vsel %vm423, %v2723, %v2789
        %v2804 = vsel %vm435, %v2790, %v2791
        %v2805 = vsel %vm437, %v2803, %v2804
        %v2806 = vrot.slane %v2805, 3
        %v2807 = vsel %vm429, %v2723, %v2789
        %v2808 = vsel %vm441, %v2790, %v2791
        %v2809 = vsel %vm443, %v2807, %v2808
        %v2810 = vrot.slane %v2809, 4
        %v2811 = vsel %vm435, %v2723, %v2789
        %v2812 = vsel %vm447, %v2791, %v2790
        %v2813 = vsel %vm449, %v2811, %v2812
        %v2814 = vrot.slane %v2813, 5
        %v2815 = vsel %vm441, %v2723, %v2789
        %v2816 = vsel %vm415, %v2790, %v2791
        %v2817 = vsel %vm454, %v2816, %v2815
        %v2818 = vrot.slane %v2817, 6
        %v2819 = vsel %vm447, %v2789, %v2723
        %v2820 = vsel %vm421, %v2790, %v2791
        %v2821 = vsel %vm459, %v2820, %v2819
        %v2822 = vrot.slane %v2821, 7
        %v2831 = vadd.f32 %v2690, %v2794
        %v2832 = vadd.f32 %v2692, %v2798
        %v2833 = vadd.f32 %v2694, %v2802
        %v2834 = vadd.f32 %v2696, %v2806
        %v2835 = vadd.f32 %v2698, %v2810
        %v2836 = vadd.f32 %v2700, %v2814
        %v2837 = vadd.f32 %v2702, %v2818
        %v2838 = vadd.f32 %v2704, %v2822
        %v2839 = vxor.u32 %v2831, 2147483648
        %v2840 = vxor.u32 %v2832, 2147483648
        %v2841 = vxor.u32 %v2833, 2147483648
        %v2842 = vxor.u32 %v2834, 2147483648
        %v2843 = vxor.u32 %v2835, 2147483648
        %v2844 = vxor.u32 %v2836, 2147483648
        %v2845 = vxor.u32 %v2837, 2147483648
        %v2846 = vxor.u32 %v2838, 2147483648
        %v2847 = vmul.f32 %v2839, 1.442695
        %v2848 = vpow.pop %v2847
        %v2849 = vmul.f32 %v2840, 1.442695
        %v2850 = vpow.pop %v2849
        %v2851 = vmul.f32 %v2841, 1.442695
        %v2852 = vpow.pop %v2851
        %v2853 = vmul.f32 %v2842, 1.442695
        %v2854 = vpow.pop %v2853
        %v2855 = vmul.f32 %v2843, 1.442695
        %v2856 = vpow.pop %v2855
        %v2857 = vmul.f32 %v2844, 1.442695
        %v2858 = vpow.pop %v2857
        %v2859 = vmul.f32 %v2845, 1.442695
        %v2860 = vpow.pop %v2859
        %v2861 = vmul.f32 %v2846, 1.442695
        %v2862 = vpow.pop %v2861
        %v2863 = vadd.f32 %v2848, 1.0
        %v2864 = vadd.f32 %v2850, 1.0
        %v2865 = vadd.f32 %v2852, 1.0
        %v2866 = vadd.f32 %v2854, 1.0
        %v2867 = vadd.f32 %v2856, 1.0
        %v2868 = vadd.f32 %v2858, 1.0
        %v2869 = vadd.f32 %v2860, 1.0
        %v2870 = vadd.f32 %v2862, 1.0
        %v2871 = vrcp.pop %v2863
        %v2872 = vmul.f32 %v2863, %v2871
        %v2873 = vsub.f32 1.0, %v2872
        %v2874 = vmul.f32 %v2871, %v2873
        %v2875 = vadd.f32 %v2871, %v2874
        %vm2876 = vweird.f32 %v2863
        %vm2877 = vweird.f32 %v2871
        %vm2878 = vmor %vm2876, %vm2877
        %v2879 = vsel %vm2878, %v2871, %v2875
        %v2880 = vand.u32 2147483647, %v2863
        %vm2881 = vcmp.eq.f32.partialorder %v2880, 8.507059e+37
        %v2882 = vand.u32 %v2863, 2147483648
        %v2883 = vor.u32 1.1754944e-38, %v2882
        %v2884 = vsel %vm2881, %v2883, %v2879
        %v2885 = vmul.f32 1.0, %v2884
        %v2886 = vrcp.pop %v2864
        %v2887 = vmul.f32 %v2864, %v2886
        %v2888 = vsub.f32 1.0, %v2887
        %v2889 = vmul.f32 %v2886, %v2888
        %v2890 = vadd.f32 %v2886, %v2889
        %vm2891 = vweird.f32 %v2864
        %vm2892 = vweird.f32 %v2886
        %vm2893 = vmor %vm2891, %vm2892
        %v2894 = vsel %vm2893, %v2886, %v2890
        %v2895 = vand.u32 2147483647, %v2864
        %vm2896 = vcmp.eq.f32.partialorder %v2895, 8.507059e+37
        %v2897 = vand.u32 %v2864, 2147483648
        %v2898 = vor.u32 1.1754944e-38, %v2897
        %v2899 = vsel %vm2896, %v2898, %v2894
        %v2900 = vmul.f32 1.0, %v2899
        %v2901 = vrcp.pop %v2865
        %v2902 = vmul.f32 %v2865, %v2901
        %v2903 = vsub.f32 1.0, %v2902
        %v2904 = vmul.f32 %v2901, %v2903
        %v2905 = vadd.f32 %v2901, %v2904
        %vm2906 = vweird.f32 %v2865
        %vm2907 = vweird.f32 %v2901
        %vm2908 = vmor %vm2906, %vm2907
        %v2909 = vsel %vm2908, %v2901, %v2905
        %v2910 = vand.u32 2147483647, %v2865
        %vm2911 = vcmp.eq.f32.partialorder %v2910, 8.507059e+37
        %v2912 = vand.u32 %v2865, 2147483648
        %v2913 = vor.u32 1.1754944e-38, %v2912
        %v2914 = vsel %vm2911, %v2913, %v2909
        %v2915 = vmul.f32 1.0, %v2914
        %v2916 = vrcp.pop %v2866
        %v2917 = vmul.f32 %v2866, %v2916
        %v2918 = vsub.f32 1.0, %v2917
        %v2919 = vmul.f32 %v2916, %v2918
        %v2920 = vadd.f32 %v2916, %v2919
        %vm2921 = vweird.f32 %v2866
        %vm2922 = vweird.f32 %v2916
        %vm2923 = vmor %vm2921, %vm2922
        %v2924 = vsel %vm2923, %v2916, %v2920
        %v2925 = vand.u32 2147483647, %v2866
        %vm2926 = vcmp.eq.f32.partialorder %v2925, 8.507059e+37
        %v2927 = vand.u32 %v2866, 2147483648
        %v2928 = vor.u32 1.1754944e-38, %v2927
        %v2929 = vsel %vm2926, %v2928, %v2924
        %v2930 = vmul.f32 1.0, %v2929
        %v2931 = vrcp.pop %v2867
        %v2932 = vmul.f32 %v2867, %v2931
        %v2933 = vsub.f32 1.0, %v2932
        %v2934 = vmul.f32 %v2931, %v2933
        %v2935 = vadd.f32 %v2931, %v2934
        %vm2936 = vweird.f32 %v2867
        %vm2937 = vweird.f32 %v2931
        %vm2938 = vmor %vm2936, %vm2937
        %v2939 = vsel %vm2938, %v2931, %v2935
        %v2940 = vand.u32 2147483647, %v2867
        %vm2941 = vcmp.eq.f32.partialorder %v2940, 8.507059e+37
        %v2942 = vand.u32 %v2867, 2147483648
        %v2943 = vor.u32 1.1754944e-38, %v2942
        %v2944 = vsel %vm2941, %v2943, %v2939
        %v2945 = vmul.f32 1.0, %v2944
        %v2946 = vrcp.pop %v2868
        %v2947 = vmul.f32 %v2868, %v2946
        %v2948 = vsub.f32 1.0, %v2947
        %v2949 = vmul.f32 %v2946, %v2948
        %v2950 = vadd.f32 %v2946, %v2949
        %vm2951 = vweird.f32 %v2868
        %vm2952 = vweird.f32 %v2946
        %vm2953 = vmor %vm2951, %vm2952
        %v2954 = vsel %vm2953, %v2946, %v2950
        %v2955 = vand.u32 2147483647, %v2868
        %vm2956 = vcmp.eq.f32.partialorder %v2955, 8.507059e+37
        %v2957 = vand.u32 %v2868, 2147483648
        %v2958 = vor.u32 1.1754944e-38, %v2957
        %v2959 = vsel %vm2956, %v2958, %v2954
        %v2960 = vmul.f32 1.0, %v2959
        %v2961 = vrcp.pop %v2869
        %v2962 = vmul.f32 %v2869, %v2961
        %v2963 = vsub.f32 1.0, %v2962
        %v2964 = vmul.f32 %v2961, %v2963
        %v2965 = vadd.f32 %v2961, %v2964
        %vm2966 = vweird.f32 %v2869
        %vm2967 = vweird.f32 %v2961
        %vm2968 = vmor %vm2966, %vm2967
        %v2969 = vsel %vm2968, %v2961, %v2965
        %v2970 = vand.u32 2147483647, %v2869
        %vm2971 = vcmp.eq.f32.partialorder %v2970, 8.507059e+37
        %v2972 = vand.u32 %v2869, 2147483648
        %v2973 = vor.u32 1.1754944e-38, %v2972
        %v2974 = vsel %vm2971, %v2973, %v2969
        %v2975 = vmul.f32 1.0, %v2974
        %v2976 = vrcp.pop %v2870
        %v2977 = vmul.f32 %v2870, %v2976
        %v2978 = vsub.f32 1.0, %v2977
        %v2979 = vmul.f32 %v2976, %v2978
        %v2980 = vadd.f32 %v2976, %v2979
        %vm2981 = vweird.f32 %v2870
        %vm2982 = vweird.f32 %v2976
        %vm2983 = vmor %vm2981, %vm2982
        %v2984 = vsel %vm2983, %v2976, %v2980
        %v2985 = vand.u32 2147483647, %v2870
        %vm2986 = vcmp.eq.f32.partialorder %v2985, 8.507059e+37
        %v2987 = vand.u32 %v2870, 2147483648
        %v2988 = vor.u32 1.1754944e-38, %v2987
        %v2989 = vsel %vm2986, %v2988, %v2984
        %v2990 = vmul.f32 1.0, %v2989
        %v2999 = vrot.slane %v2831, 1
        %v3000 = vrot.slane %v2832, 1
        %v3001 = vrot.slane %v2833, 1
        %v3002 = vrot.slane %v2834, 1
        %v3003 = vrot.slane %v2835, 1
        %v3004 = vrot.slane %v2836, 1
        %v3005 = vrot.slane %v2837, 1
        %v3006 = vrot.slane %v2838, 1
        %v3015 = vxor.u32 %v2999, 2147483648
        %v3016 = vxor.u32 %v3000, 2147483648
        %v3017 = vxor.u32 %v3001, 2147483648
        %v3018 = vxor.u32 %v3002, 2147483648
        %v3019 = vxor.u32 %v3003, 2147483648
        %v3020 = vxor.u32 %v3004, 2147483648
        %v3021 = vxor.u32 %v3005, 2147483648
        %v3022 = vxor.u32 %v3006, 2147483648
        %v3023 = vmul.f32 %v3015, 1.442695
        %v3024 = vpow.pop %v3023
        %v3025 = vmul.f32 %v3016, 1.442695
        %v3026 = vpow.pop %v3025
        %v3027 = vmul.f32 %v3017, 1.442695
        %v3028 = vpow.pop %v3027
        %v3029 = vmul.f32 %v3018, 1.442695
        %v3030 = vpow.pop %v3029
        %v3031 = vmul.f32 %v3019, 1.442695
        %v3032 = vpow.pop %v3031
        %v3033 = vmul.f32 %v3020, 1.442695
        %v3034 = vpow.pop %v3033
        %v3035 = vmul.f32 %v3021, 1.442695
        %v3036 = vpow.pop %v3035
        %v3037 = vmul.f32 %v3022, 1.442695
        %v3038 = vpow.pop %v3037
        %v3039 = vadd.f32 %v3024, 1.0
        %v3040 = vadd.f32 %v3026, 1.0
        %v3041 = vadd.f32 %v3028, 1.0
        %v3042 = vadd.f32 %v3030, 1.0
        %v3043 = vadd.f32 %v3032, 1.0
        %v3044 = vadd.f32 %v3034, 1.0
        %v3045 = vadd.f32 %v3036, 1.0
        %v3046 = vadd.f32 %v3038, 1.0
        %v3047 = vrcp.pop %v3039
        %v3048 = vmul.f32 %v3039, %v3047
        %v3049 = vsub.f32 1.0, %v3048
        %v3050 = vmul.f32 %v3047, %v3049
        %v3051 = vadd.f32 %v3047, %v3050
        %vm3052 = vweird.f32 %v3039
        %vm3053 = vweird.f32 %v3047
        %vm3054 = vmor %vm3052, %vm3053
        %v3055 = vsel %vm3054, %v3047, %v3051
        %v3056 = vand.u32 2147483647, %v3039
        %vm3057 = vcmp.eq.f32.partialorder %v3056, 8.507059e+37
        %v3058 = vand.u32 %v3039, 2147483648
        %v3059 = vor.u32 1.1754944e-38, %v3058
        %v3060 = vsel %vm3057, %v3059, %v3055
        %v3061 = vmul.f32 1.0, %v3060
        %v3062 = vrcp.pop %v3040
        %v3063 = vmul.f32 %v3040, %v3062
        %v3064 = vsub.f32 1.0, %v3063
        %v3065 = vmul.f32 %v3062, %v3064
        %v3066 = vadd.f32 %v3062, %v3065
        %vm3067 = vweird.f32 %v3040
        %vm3068 = vweird.f32 %v3062
        %vm3069 = vmor %vm3067, %vm3068
        %v3070 = vsel %vm3069, %v3062, %v3066
        %v3071 = vand.u32 2147483647, %v3040
        %vm3072 = vcmp.eq.f32.partialorder %v3071, 8.507059e+37
        %v3073 = vand.u32 %v3040, 2147483648
        %v3074 = vor.u32 1.1754944e-38, %v3073
        %v3075 = vsel %vm3072, %v3074, %v3070
        %v3076 = vmul.f32 1.0, %v3075
        %v3077 = vrcp.pop %v3041
        %v3078 = vmul.f32 %v3041, %v3077
        %v3079 = vsub.f32 1.0, %v3078
        %v3080 = vmul.f32 %v3077, %v3079
        %v3081 = vadd.f32 %v3077, %v3080
        %vm3082 = vweird.f32 %v3041
        %vm3083 = vweird.f32 %v3077
        %vm3084 = vmor %vm3082, %vm3083
        %v3085 = vsel %vm3084, %v3077, %v3081
        %v3086 = vand.u32 2147483647, %v3041
        %vm3087 = vcmp.eq.f32.partialorder %v3086, 8.507059e+37
        %v3088 = vand.u32 %v3041, 2147483648
        %v3089 = vor.u32 1.1754944e-38, %v3088
        %v3090 = vsel %vm3087, %v3089, %v3085
        %v3091 = vmul.f32 1.0, %v3090
        %v3092 = vrcp.pop %v3042
        %v3093 = vmul.f32 %v3042, %v3092
        %v3094 = vsub.f32 1.0, %v3093
        %v3095 = vmul.f32 %v3092, %v3094
        %v3096 = vadd.f32 %v3092, %v3095
        %vm3097 = vweird.f32 %v3042
        %vm3098 = vweird.f32 %v3092
        %vm3099 = vmor %vm3097, %vm3098
        %v3100 = vsel %vm3099, %v3092, %v3096
        %v3101 = vand.u32 2147483647, %v3042
        %vm3102 = vcmp.eq.f32.partialorder %v3101, 8.507059e+37
        %v3103 = vand.u32 %v3042, 2147483648
        %v3104 = vor.u32 1.1754944e-38, %v3103
        %v3105 = vsel %vm3102, %v3104, %v3100
        %v3106 = vmul.f32 1.0, %v3105
        %v3107 = vrcp.pop %v3043
        %v3108 = vmul.f32 %v3043, %v3107
        %v3109 = vsub.f32 1.0, %v3108
        %v3110 = vmul.f32 %v3107, %v3109
        %v3111 = vadd.f32 %v3107, %v3110
        %vm3112 = vweird.f32 %v3043
        %vm3113 = vweird.f32 %v3107
        %vm3114 = vmor %vm3112, %vm3113
        %v3115 = vsel %vm3114, %v3107, %v3111
        %v3116 = vand.u32 2147483647, %v3043
        %vm3117 = vcmp.eq.f32.partialorder %v3116, 8.507059e+37
        %v3118 = vand.u32 %v3043, 2147483648
        %v3119 = vor.u32 1.1754944e-38, %v3118
        %v3120 = vsel %vm3117, %v3119, %v3115
        %v3121 = vmul.f32 1.0, %v3120
        %v3122 = vrcp.pop %v3044
        %v3123 = vmul.f32 %v3044, %v3122
        %v3124 = vsub.f32 1.0, %v3123
        %v3125 = vmul.f32 %v3122, %v3124
        %v3126 = vadd.f32 %v3122, %v3125
        %vm3127 = vweird.f32 %v3044
        %vm3128 = vweird.f32 %v3122
        %vm3129 = vmor %vm3127, %vm3128
        %v3130 = vsel %vm3129, %v3122, %v3126
        %v3131 = vand.u32 2147483647, %v3044
        %vm3132 = vcmp.eq.f32.partialorder %v3131, 8.507059e+37
        %v3133 = vand.u32 %v3044, 2147483648
        %v3134 = vor.u32 1.1754944e-38, %v3133
        %v3135 = vsel %vm3132, %v3134, %v3130
        %v3136 = vmul.f32 1.0, %v3135
        %v3137 = vrcp.pop %v3045
        %v3138 = vmul.f32 %v3045, %v3137
        %v3139 = vsub.f32 1.0, %v3138
        %v3140 = vmul.f32 %v3137, %v3139
        %v3141 = vadd.f32 %v3137, %v3140
        %vm3142 = vweird.f32 %v3045
        %vm3143 = vweird.f32 %v3137
        %vm3144 = vmor %vm3142, %vm3143
        %v3145 = vsel %vm3144, %v3137, %v3141
        %v3146 = vand.u32 2147483647, %v3045
        %vm3147 = vcmp.eq.f32.partialorder %v3146, 8.507059e+37
        %v3148 = vand.u32 %v3045, 2147483648
        %v3149 = vor.u32 1.1754944e-38, %v3148
        %v3150 = vsel %vm3147, %v3149, %v3145
        %v3151 = vmul.f32 1.0, %v3150
        %v3152 = vrcp.pop %v3046
        %v3153 = vmul.f32 %v3046, %v3152
        %v3154 = vsub.f32 1.0, %v3153
        %v3155 = vmul.f32 %v3152, %v3154
        %v3156 = vadd.f32 %v3152, %v3155
        %vm3157 = vweird.f32 %v3046
        %vm3158 = vweird.f32 %v3152
        %vm3159 = vmor %vm3157, %vm3158
        %v3160 = vsel %vm3159, %v3152, %v3156
        %v3161 = vand.u32 2147483647, %v3046
        %vm3162 = vcmp.eq.f32.partialorder %v3161, 8.507059e+37
        %v3163 = vand.u32 %v3046, 2147483648
        %v3164 = vor.u32 1.1754944e-38, %v3163
        %v3165 = vsel %vm3162, %v3164, %v3160
        %v3166 = vmul.f32 1.0, %v3165
        %v3167 = vrot.slane %v2831, 2
        %v3168 = vrot.slane %v2832, 2
        %v3169 = vrot.slane %v2833, 2
        %v3170 = vrot.slane %v2834, 2
        %v3171 = vrot.slane %v2835, 2
        %v3172 = vrot.slane %v2836, 2
        %v3173 = vrot.slane %v2837, 2
        %v3174 = vrot.slane %v2838, 2
        %v3183 = vtanh.pop %v3167
        %v3184 = vtanh.pop %v3168
        %v3185 = vtanh.pop %v3169
        %v3186 = vtanh.pop %v3170
        %v3187 = vtanh.pop %v3171
        %v3188 = vtanh.pop %v3172
        %v3189 = vtanh.pop %v3173
        %v3190 = vtanh.pop %v3174
        %v3191 = vrot.slane %v2831, 3
        %v3192 = vrot.slane %v2832, 3
        %v3193 = vrot.slane %v2833, 3
        %v3194 = vrot.slane %v2834, 3
        %v3195 = vrot.slane %v2835, 3
        %v3196 = vrot.slane %v2836, 3
        %v3197 = vrot.slane %v2837, 3
        %v3198 = vrot.slane %v2838, 3
        %v3207 = vxor.u32 %v3191, 2147483648
        %v3208 = vxor.u32 %v3192, 2147483648
        %v3209 = vxor.u32 %v3193, 2147483648
        %v3210 = vxor.u32 %v3194, 2147483648
        %v3211 = vxor.u32 %v3195, 2147483648
        %v3212 = vxor.u32 %v3196, 2147483648
        %v3213 = vxor.u32 %v3197, 2147483648
        %v3214 = vxor.u32 %v3198, 2147483648
        %v3215 = vmul.f32 %v3207, 1.442695
        %v3216 = vpow.pop %v3215
        %v3217 = vmul.f32 %v3208, 1.442695
        %v3218 = vpow.pop %v3217
        %v3219 = vmul.f32 %v3209, 1.442695
        %v3220 = vpow.pop %v3219
        %v3221 = vmul.f32 %v3210, 1.442695
        %v3222 = vpow.pop %v3221
        %v3223 = vmul.f32 %v3211, 1.442695
        %v3224 = vpow.pop %v3223
        %v3225 = vmul.f32 %v3212, 1.442695
        %v3226 = vpow.pop %v3225
        %v3227 = vmul.f32 %v3213, 1.442695
        %v3228 = vpow.pop %v3227
        %v3229 = vmul.f32 %v3214, 1.442695
        %v3230 = vpow.pop %v3229
        %v3231 = vadd.f32 %v3216, 1.0
        %v3232 = vadd.f32 %v3218, 1.0
        %v3233 = vadd.f32 %v3220, 1.0
        %v3234 = vadd.f32 %v3222, 1.0
        %v3235 = vadd.f32 %v3224, 1.0
        %v3236 = vadd.f32 %v3226, 1.0
        %v3237 = vadd.f32 %v3228, 1.0
        %v3238 = vadd.f32 %v3230, 1.0
        %v3239 = vrcp.pop %v3231
        %v3240 = vmul.f32 %v3231, %v3239
        %v3241 = vsub.f32 1.0, %v3240
        %v3242 = vmul.f32 %v3239, %v3241
        %v3243 = vadd.f32 %v3239, %v3242
        %vm3244 = vweird.f32 %v3231
        %vm3245 = vweird.f32 %v3239
        %vm3246 = vmor %vm3244, %vm3245
        %v3247 = vsel %vm3246, %v3239, %v3243
        %v3248 = vand.u32 2147483647, %v3231
        %vm3249 = vcmp.eq.f32.partialorder %v3248, 8.507059e+37
        %v3250 = vand.u32 %v3231, 2147483648
        %v3251 = vor.u32 1.1754944e-38, %v3250
        %v3252 = vsel %vm3249, %v3251, %v3247
        %v3253 = vmul.f32 1.0, %v3252
        %v3254 = vrcp.pop %v3232
        %v3255 = vmul.f32 %v3232, %v3254
        %v3256 = vsub.f32 1.0, %v3255
        %v3257 = vmul.f32 %v3254, %v3256
        %v3258 = vadd.f32 %v3254, %v3257
        %vm3259 = vweird.f32 %v3232
        %vm3260 = vweird.f32 %v3254
        %vm3261 = vmor %vm3259, %vm3260
        %v3262 = vsel %vm3261, %v3254, %v3258
        %v3263 = vand.u32 2147483647, %v3232
        %vm3264 = vcmp.eq.f32.partialorder %v3263, 8.507059e+37
        %v3265 = vand.u32 %v3232, 2147483648
        %v3266 = vor.u32 1.1754944e-38, %v3265
        %v3267 = vsel %vm3264, %v3266, %v3262
        %v3268 = vmul.f32 1.0, %v3267
        %v3269 = vrcp.pop %v3233
        %v3270 = vmul.f32 %v3233, %v3269
        %v3271 = vsub.f32 1.0, %v3270
        %v3272 = vmul.f32 %v3269, %v3271
        %v3273 = vadd.f32 %v3269, %v3272
        %vm3274 = vweird.f32 %v3233
        %vm3275 = vweird.f32 %v3269
        %vm3276 = vmor %vm3274, %vm3275
        %v3277 = vsel %vm3276, %v3269, %v3273
        %v3278 = vand.u32 2147483647, %v3233
        %vm3279 = vcmp.eq.f32.partialorder %v3278, 8.507059e+37
        %v3280 = vand.u32 %v3233, 2147483648
        %v3281 = vor.u32 1.1754944e-38, %v3280
        %v3282 = vsel %vm3279, %v3281, %v3277
        %v3283 = vmul.f32 1.0, %v3282
        %v3284 = vrcp.pop %v3234
        %v3285 = vmul.f32 %v3234, %v3284
        %v3286 = vsub.f32 1.0, %v3285
        %v3287 = vmul.f32 %v3284, %v3286
        %v3288 = vadd.f32 %v3284, %v3287
        %vm3289 = vweird.f32 %v3234
        %vm3290 = vweird.f32 %v3284
        %vm3291 = vmor %vm3289, %vm3290
        %v3292 = vsel %vm3291, %v3284, %v3288
        %v3293 = vand.u32 2147483647, %v3234
        %vm3294 = vcmp.eq.f32.partialorder %v3293, 8.507059e+37
        %v3295 = vand.u32 %v3234, 2147483648
        %v3296 = vor.u32 1.1754944e-38, %v3295
        %v3297 = vsel %vm3294, %v3296, %v3292
        %v3298 = vmul.f32 1.0, %v3297
        %v3299 = vrcp.pop %v3235
        %v3300 = vmul.f32 %v3235, %v3299
        %v3301 = vsub.f32 1.0, %v3300
        %v3302 = vmul.f32 %v3299, %v3301
        %v3303 = vadd.f32 %v3299, %v3302
        %vm3304 = vweird.f32 %v3235
        %vm3305 = vweird.f32 %v3299
        %vm3306 = vmor %vm3304, %vm3305
        %v3307 = vsel %vm3306, %v3299, %v3303
        %v3308 = vand.u32 2147483647, %v3235
        %vm3309 = vcmp.eq.f32.partialorder %v3308, 8.507059e+37
        %v3310 = vand.u32 %v3235, 2147483648
        %v3311 = vor.u32 1.1754944e-38, %v3310
        %v3312 = vsel %vm3309, %v3311, %v3307
        %v3313 = vmul.f32 1.0, %v3312
        %v3314 = vrcp.pop %v3236
        %v3315 = vmul.f32 %v3236, %v3314
        %v3316 = vsub.f32 1.0, %v3315
        %v3317 = vmul.f32 %v3314, %v3316
        %v3318 = vadd.f32 %v3314, %v3317
        %vm3319 = vweird.f32 %v3236
        %vm3320 = vweird.f32 %v3314
        %vm3321 = vmor %vm3319, %vm3320
        %v3322 = vsel %vm3321, %v3314, %v3318
        %v3323 = vand.u32 2147483647, %v3236
        %vm3324 = vcmp.eq.f32.partialorder %v3323, 8.507059e+37
        %v3325 = vand.u32 %v3236, 2147483648
        %v3326 = vor.u32 1.1754944e-38, %v3325
        %v3327 = vsel %vm3324, %v3326, %v3322
        %v3328 = vmul.f32 1.0, %v3327
        %v3329 = vrcp.pop %v3237
        %v3330 = vmul.f32 %v3237, %v3329
        %v3331 = vsub.f32 1.0, %v3330
        %v3332 = vmul.f32 %v3329, %v3331
        %v3333 = vadd.f32 %v3329, %v3332
        %vm3334 = vweird.f32 %v3237
        %vm3335 = vweird.f32 %v3329
        %vm3336 = vmor %vm3334, %vm3335
        %v3337 = vsel %vm3336, %v3329, %v3333
        %v3338 = vand.u32 2147483647, %v3237
        %vm3339 = vcmp.eq.f32.partialorder %v3338, 8.507059e+37
        %v3340 = vand.u32 %v3237, 2147483648
        %v3341 = vor.u32 1.1754944e-38, %v3340
        %v3342 = vsel %vm3339, %v3341, %v3337
        %v3343 = vmul.f32 1.0, %v3342
        %v3344 = vrcp.pop %v3238
        %v3345 = vmul.f32 %v3238, %v3344
        %v3346 = vsub.f32 1.0, %v3345
        %v3347 = vmul.f32 %v3344, %v3346
        %v3348 = vadd.f32 %v3344, %v3347
        %vm3349 = vweird.f32 %v3238
        %vm3350 = vweird.f32 %v3344
        %vm3351 = vmor %vm3349, %vm3350
        %v3352 = vsel %vm3351, %v3344, %v3348
        %v3353 = vand.u32 2147483647, %v3238
        %vm3354 = vcmp.eq.f32.partialorder %v3353, 8.507059e+37
        %v3355 = vand.u32 %v3238, 2147483648
        %v3356 = vor.u32 1.1754944e-38, %v3355
        %v3357 = vsel %vm3354, %v3356, %v3352
        %v3358 = vmul.f32 1.0, %v3357
        %v3360 = vrot.slane %v2688, 1
        %v3361 = vrot.slane %v2688, 2
        %v3362 = vrot.slane %v2688, 3
        %v3363 = vrot.slane %v2688, 4
        %v3364 = vrot.slane %v2688, 5
        %v3365 = vrot.slane %v2688, 6
        %v3366 = vrot.slane %v2688, 7
        %v3374 = vmul.f32 %v3061, %v2688
        %v3375 = vmul.f32 %v3076, %v3360
        %v3376 = vmul.f32 %v3091, %v3361
        %v3377 = vmul.f32 %v3106, %v3362
        %v3378 = vmul.f32 %v3121, %v3363
        %v3379 = vmul.f32 %v3136, %v3364
        %v3380 = vmul.f32 %v3151, %v3365
        %v3381 = vmul.f32 %v3166, %v3366
        %v3382 = vmul.f32 %v2885, %v3183
        %v3383 = vmul.f32 %v2900, %v3184
        %v3384 = vmul.f32 %v2915, %v3185
        %v3385 = vmul.f32 %v2930, %v3186
        %v3386 = vmul.f32 %v2945, %v3187
        %v3387 = vmul.f32 %v2960, %v3188
        %v3388 = vmul.f32 %v2975, %v3189
        %v3389 = vmul.f32 %v2990, %v3190
        %v3390 = vadd.f32 %v3374, %v3382
        %v3391 = vadd.f32 %v3375, %v3383
        %v3392 = vadd.f32 %v3376, %v3384
        %v3393 = vadd.f32 %v3377, %v3385
        %v3394 = vadd.f32 %v3378, %v3386
        %v3395 = vadd.f32 %v3379, %v3387
        %v3396 = vadd.f32 %v3380, %v3388
        %v3397 = vadd.f32 %v3381, %v3389
        %v3398 = vtanh.pop %v3390
        %v3399 = vtanh.pop %v3391
        %v3400 = vtanh.pop %v3392
        %v3401 = vtanh.pop %v3393
        %v3402 = vtanh.pop %v3394
        %v3403 = vtanh.pop %v3395
        %v3404 = vtanh.pop %v3396
        %v3405 = vtanh.pop %v3397
        %v3406 = vmul.f32 %v3253, %v3398
        %v3407 = vmul.f32 %v3268, %v3399
        %v3408 = vmul.f32 %v3283, %v3400
        %v3409 = vmul.f32 %v3298, %v3401
        %v3410 = vmul.f32 %v3313, %v3402
        %v3411 = vmul.f32 %v3328, %v3403
        %v3412 = vmul.f32 %v3343, %v3404
        %v3413 = vmul.f32 %v3358, %v3405
        %3422 = vst [vmem:[#allocation1] ss:$9 sm:$0xff] %v3390
        %s3423 = scalar_lea.vmem [#allocation1], 1
        %3424 = vst [vmem:[%s3423] ss:$9 sm:$0xff] %v3391
        %s3425 = scalar_lea.vmem [#allocation1], 2
        %3426 = vst [vmem:[%s3425] ss:$9 sm:$0xff] %v3392
        %s3427 = scalar_lea.vmem [#allocation1], 3
        %3428 = vst [vmem:[%s3427] ss:$9 sm:$0xff] %v3393
        %s3429 = scalar_lea.vmem [#allocation1], 4
        %3430 = vst [vmem:[%s3429] ss:$9 sm:$0xff] %v3394
        %s3431 = scalar_lea.vmem [#allocation1], 5
        %3432 = vst [vmem:[%s3431] ss:$9 sm:$0xff] %v3395
        %s3433 = scalar_lea.vmem [#allocation1], 6
        %3434 = vst [vmem:[%s3433] ss:$9 sm:$0xff] %v3396
        %s3435 = scalar_lea.vmem [#allocation1], 7
        %3436 = vst [vmem:[%s3435] ss:$9 sm:$0xff] %v3397
        %v3437 = vld [vmem:[#allocation1] sm:$0xff]
        %3439 = vst [vmem:[#allocation3] sm:$0xff] %v3437
        %3448 = vst [vmem:[#allocation1] ss:$9 sm:$0xff] %v3406
        %s3449 = scalar_lea.vmem [#allocation1], 1
        %3450 = vst [vmem:[%s3449] ss:$9 sm:$0xff] %v3407
        %s3451 = scalar_lea.vmem [#allocation1], 2
        %3452 = vst [vmem:[%s3451] ss:$9 sm:$0xff] %v3408
        %s3453 = scalar_lea.vmem [#allocation1], 3
        %3454 = vst [vmem:[%s3453] ss:$9 sm:$0xff] %v3409
        %s3455 = scalar_lea.vmem [#allocation1], 4
        %3456 = vst [vmem:[%s3455] ss:$9 sm:$0xff] %v3410
        %s3457 = scalar_lea.vmem [#allocation1], 5
        %3458 = vst [vmem:[%s3457] ss:$9 sm:$0xff] %v3411
        %s3459 = scalar_lea.vmem [#allocation1], 6
        %3460 = vst [vmem:[%s3459] ss:$9 sm:$0xff] %v3412
        %s3461 = scalar_lea.vmem [#allocation1], 7
        %3462 = vst [vmem:[%s3461] ss:$9 sm:$0xff] %v3413
        %v3463 = vld [vmem:[#allocation1] sm:$0xff]
        %3465 = vst [vmem:[#allocation2] sm:$0xff] %v3463
        %3466 = vst [vmem:[%s238 + $0x3] sm:$0x1] %v3406
        %3467 = vst [vmem:[%s238 + $0xb] sm:$0x1] %v3407
        %3468 = vst [vmem:[%s238 + $0x13] sm:$0x1] %v3408
        %3469 = vst [vmem:[%s238 + $0x1b] sm:$0x1] %v3409
        %3470 = vst [vmem:[%s238 + $0x23] sm:$0x1] %v3410
        %3471 = vst [vmem:[%s238 + $0x2b] sm:$0x1] %v3411
        %3472 = vst [vmem:[%s238 + $0x33] sm:$0x1] %v3412
        %3473 = vst [vmem:[%s238 + $0x3b] sm:$0x1] %v3413
        %v3474 = vld [vmem:[#allocation2] sm:$0xff]
        %v3475 = vld [vmem:[#allocation3] sm:$0xff]
        %s3476 = scalar_lea.vmem %s221, 4 [#allocation4]
        %v3477 = vld [vmem:[%s3476] ss:$8 sm:$0xf]
        %s3478 = scalar_lea.vmem %s221, 36 [#allocation4]
        %v3479 = vld [vmem:[%s3478] ss:$8 sm:$0xf]
        %s3480 = scalar_lea.vmem %s221, 68 [#allocation4]
        %v3481 = vld [vmem:[%s3480] ss:$8 sm:$0xf]
        %s3482 = scalar_lea.vmem %s221, 100 [#allocation4]
        %v3483 = vld [vmem:[%s3482] ss:$8 sm:$0xf]
        %s3484 = scalar_lea.vmem %s221, 132 [#allocation4]
        %v3485 = vld [vmem:[%s3484] ss:$8 sm:$0xf]
        %s3486 = scalar_lea.vmem %s221, 164 [#allocation4]
        %v3487 = vld [vmem:[%s3486] ss:$8 sm:$0xf]
        %s3488 = scalar_lea.vmem %s221, 196 [#allocation4]
        %v3489 = vld [vmem:[%s3488] ss:$8 sm:$0xf]
        %s3490 = scalar_lea.vmem %s221, 228 [#allocation4]
        %v3491 = vld [vmem:[%s3490] ss:$8 sm:$0xf]
        %3492 = vmatpush.msra.mxu0 %v307
        %3493 = vmatpush.msra.mxu0 %v303
        %3494 = vmatpush.msra.mxu0 %v299
        %3495 = vmatpush.msra.mxu0 %v295
        %3496 = vmatpush.msra.mxu0 %v291
        %3497 = vmatpush.msra.mxu0 %v287
        %3498 = vmatpush.msra.mxu0 %v283
        %3499 = vmatpush.msra.mxu0 %v279
        %3500 = vmatpush.msra.mxu0 %v275
        %3501 = vmatpush.msra.mxu0 %v271
        %3502 = vmatpush.msra.mxu0 %v267
        %3503 = vmatpush.msra.mxu0 %v263
        %3504 = vmatpush.msra.mxu0 %v259
        %3505 = vmatpush.msra.mxu0 %v255
        %3506 = vmatpush.msra.mxu0 %v251
        %3507 = vmatpush.msra.mxu0 %v247
        %3508 = vmatmul.f32.gmra.mxu0 %v3474
        %v3509 = vpop.f32.mrf.mxu0
        %v3510 = vadd.f32 0.0, %v3509
        %3511 = vdwg.mxu0
        %3512 = vmatpush.msra.mxu0 %v308
        %3513 = vmatpush.msra.mxu0 %v304
        %3514 = vmatpush.msra.mxu0 %v300
        %3515 = vmatpush.msra.mxu0 %v296
        %3516 = vmatpush.msra.mxu0 %v292
        %3517 = vmatpush.msra.mxu0 %v288
        %3518 = vmatpush.msra.mxu0 %v284
        %3519 = vmatpush.msra.mxu0 %v280
        %3520 = vmatpush.msra.mxu0 %v276
        %3521 = vmatpush.msra.mxu0 %v272
        %3522 = vmatpush.msra.mxu0 %v268
        %3523 = vmatpush.msra.mxu0 %v264
        %3524 = vmatpush.msra.mxu0 %v260
        %3525 = vmatpush.msra.mxu0 %v256
        %3526 = vmatpush.msra.mxu0 %v252
        %3527 = vmatpush.msra.mxu0 %v248
        %3528 = vmatmul.f32.gmra.mxu0 %v3474
        %v3529 = vpop.f32.mrf.mxu0
        %v3530 = vadd.f32 0.0, %v3529
        %3531 = vdwg.mxu0
        %3532 = vmatpush.msra.mxu0 %v309
        %3533 = vmatpush.msra.mxu0 %v305
        %3534 = vmatpush.msra.mxu0 %v301
        %3535 = vmatpush.msra.mxu0 %v297
        %3536 = vmatpush.msra.mxu0 %v293
        %3537 = vmatpush.msra.mxu0 %v289
        %3538 = vmatpush.msra.mxu0 %v285
        %3539 = vmatpush.msra.mxu0 %v281
        %3540 = vmatpush.msra.mxu0 %v277
        %3541 = vmatpush.msra.mxu0 %v273
        %3542 = vmatpush.msra.mxu0 %v269
        %3543 = vmatpush.msra.mxu0 %v265
        %3544 = vmatpush.msra.mxu0 %v261
        %3545 = vmatpush.msra.mxu0 %v257
        %3546 = vmatpush.msra.mxu0 %v253
        %3547 = vmatpush.msra.mxu0 %v249
        %3548 = vmatmul.f32.gmra.mxu0 %v3474
        %v3549 = vpop.f32.mrf.mxu0
        %v3550 = vadd.f32 0.0, %v3549
        %3551 = vdwg.mxu0
        %3552 = vmatpush.msra.mxu0 %v310
        %3553 = vmatpush.msra.mxu0 %v306
        %3554 = vmatpush.msra.mxu0 %v302
        %3555 = vmatpush.msra.mxu0 %v298
        %3556 = vmatpush.msra.mxu0 %v294
        %3557 = vmatpush.msra.mxu0 %v290
        %3558 = vmatpush.msra.mxu0 %v286
        %3559 = vmatpush.msra.mxu0 %v282
        %3560 = vmatpush.msra.mxu0 %v278
        %3561 = vmatpush.msra.mxu0 %v274
        %3562 = vmatpush.msra.mxu0 %v270
        %3563 = vmatpush.msra.mxu0 %v266
        %3564 = vmatpush.msra.mxu0 %v262
        %3565 = vmatpush.msra.mxu0 %v258
        %3566 = vmatpush.msra.mxu0 %v254
        %3567 = vmatpush.msra.mxu0 %v250
        %3568 = vmatmul.f32.gmra.mxu0 %v3474
        %v3569 = vpop.f32.mrf.mxu0
        %v3570 = vadd.f32 0.0, %v3569
        %3571 = vdwg.mxu0
        %v3576 = vrot.slane %v3530, 7
        %v3577 = vrot.slane %v3550, 6
        %v3578 = vrot.slane %v3570, 5
        %v3579 = vsel %vm415, %v3510, %v3576
        %v3580 = vsel %vm417, %v3577, %v3578
        %v3581 = vsel %vm419, %v3579, %v3580
        %v3582 = vsel %vm421, %v3510, %v3576
        %v3583 = vsel %vm423, %v3577, %v3578
        %v3584 = vsel %vm425, %v3582, %v3583
        %v3585 = vrot.slane %v3584, 1
        %v3586 = vsel %vm417, %v3510, %v3576
        %v3587 = vsel %vm429, %v3577, %v3578
        %v3588 = vsel %vm431, %v3586, %v3587
        %v3589 = vrot.slane %v3588, 2
        %v3590 = vsel %vm423, %v3510, %v3576
        %v3591 = vsel %vm435, %v3577, %v3578
        %v3592 = vsel %vm437, %v3590, %v3591
        %v3593 = vrot.slane %v3592, 3
        %v3594 = vsel %vm429, %v3510, %v3576
        %v3595 = vsel %vm441, %v3577, %v3578
        %v3596 = vsel %vm443, %v3594, %v3595
        %v3597 = vrot.slane %v3596, 4
        %v3598 = vsel %vm435, %v3510, %v3576
        %v3599 = vsel %vm447, %v3578, %v3577
        %v3600 = vsel %vm449, %v3598, %v3599
        %v3601 = vrot.slane %v3600, 5
        %v3602 = vsel %vm441, %v3510, %v3576
        %v3603 = vsel %vm415, %v3577, %v3578
        %v3604 = vsel %vm454, %v3603, %v3602
        %v3605 = vrot.slane %v3604, 6
        %v3606 = vsel %vm447, %v3576, %v3510
        %v3607 = vsel %vm421, %v3577, %v3578
        %v3608 = vsel %vm459, %v3607, %v3606
        %v3609 = vrot.slane %v3608, 7
        %v3618 = vadd.f32 %v3477, %v3581
        %v3619 = vadd.f32 %v3479, %v3585
        %v3620 = vadd.f32 %v3481, %v3589
        %v3621 = vadd.f32 %v3483, %v3593
        %v3622 = vadd.f32 %v3485, %v3597
        %v3623 = vadd.f32 %v3487, %v3601
        %v3624 = vadd.f32 %v3489, %v3605
        %v3625 = vadd.f32 %v3491, %v3609
        %v3626 = vxor.u32 %v3618, 2147483648
        %v3627 = vxor.u32 %v3619, 2147483648
        %v3628 = vxor.u32 %v3620, 2147483648
        %v3629 = vxor.u32 %v3621, 2147483648
        %v3630 = vxor.u32 %v3622, 2147483648
        %v3631 = vxor.u32 %v3623, 2147483648
        %v3632 = vxor.u32 %v3624, 2147483648
        %v3633 = vxor.u32 %v3625, 2147483648
        %v3634 = vmul.f32 %v3626, 1.442695
        %v3635 = vpow.pop %v3634
        %v3636 = vmul.f32 %v3627, 1.442695
        %v3637 = vpow.pop %v3636
        %v3638 = vmul.f32 %v3628, 1.442695
        %v3639 = vpow.pop %v3638
        %v3640 = vmul.f32 %v3629, 1.442695
        %v3641 = vpow.pop %v3640
        %v3642 = vmul.f32 %v3630, 1.442695
        %v3643 = vpow.pop %v3642
        %v3644 = vmul.f32 %v3631, 1.442695
        %v3645 = vpow.pop %v3644
        %v3646 = vmul.f32 %v3632, 1.442695
        %v3647 = vpow.pop %v3646
        %v3648 = vmul.f32 %v3633, 1.442695
        %v3649 = vpow.pop %v3648
        %v3650 = vadd.f32 %v3635, 1.0
        %v3651 = vadd.f32 %v3637, 1.0
        %v3652 = vadd.f32 %v3639, 1.0
        %v3653 = vadd.f32 %v3641, 1.0
        %v3654 = vadd.f32 %v3643, 1.0
        %v3655 = vadd.f32 %v3645, 1.0
        %v3656 = vadd.f32 %v3647, 1.0
        %v3657 = vadd.f32 %v3649, 1.0
        %v3658 = vrcp.pop %v3650
        %v3659 = vmul.f32 %v3650, %v3658
        %v3660 = vsub.f32 1.0, %v3659
        %v3661 = vmul.f32 %v3658, %v3660
        %v3662 = vadd.f32 %v3658, %v3661
        %vm3663 = vweird.f32 %v3650
        %vm3664 = vweird.f32 %v3658
        %vm3665 = vmor %vm3663, %vm3664
        %v3666 = vsel %vm3665, %v3658, %v3662
        %v3667 = vand.u32 2147483647, %v3650
        %vm3668 = vcmp.eq.f32.partialorder %v3667, 8.507059e+37
        %v3669 = vand.u32 %v3650, 2147483648
        %v3670 = vor.u32 1.1754944e-38, %v3669
        %v3671 = vsel %vm3668, %v3670, %v3666
        %v3672 = vmul.f32 1.0, %v3671
        %v3673 = vrcp.pop %v3651
        %v3674 = vmul.f32 %v3651, %v3673
        %v3675 = vsub.f32 1.0, %v3674
        %v3676 = vmul.f32 %v3673, %v3675
        %v3677 = vadd.f32 %v3673, %v3676
        %vm3678 = vweird.f32 %v3651
        %vm3679 = vweird.f32 %v3673
        %vm3680 = vmor %vm3678, %vm3679
        %v3681 = vsel %vm3680, %v3673, %v3677
        %v3682 = vand.u32 2147483647, %v3651
        %vm3683 = vcmp.eq.f32.partialorder %v3682, 8.507059e+37
        %v3684 = vand.u32 %v3651, 2147483648
        %v3685 = vor.u32 1.1754944e-38, %v3684
        %v3686 = vsel %vm3683, %v3685, %v3681
        %v3687 = vmul.f32 1.0, %v3686
        %v3688 = vrcp.pop %v3652
        %v3689 = vmul.f32 %v3652, %v3688
        %v3690 = vsub.f32 1.0, %v3689
        %v3691 = vmul.f32 %v3688, %v3690
        %v3692 = vadd.f32 %v3688, %v3691
        %vm3693 = vweird.f32 %v3652
        %vm3694 = vweird.f32 %v3688
        %vm3695 = vmor %vm3693, %vm3694
        %v3696 = vsel %vm3695, %v3688, %v3692
        %v3697 = vand.u32 2147483647, %v3652
        %vm3698 = vcmp.eq.f32.partialorder %v3697, 8.507059e+37
        %v3699 = vand.u32 %v3652, 2147483648
        %v3700 = vor.u32 1.1754944e-38, %v3699
        %v3701 = vsel %vm3698, %v3700, %v3696
        %v3702 = vmul.f32 1.0, %v3701
        %v3703 = vrcp.pop %v3653
        %v3704 = vmul.f32 %v3653, %v3703
        %v3705 = vsub.f32 1.0, %v3704
        %v3706 = vmul.f32 %v3703, %v3705
        %v3707 = vadd.f32 %v3703, %v3706
        %vm3708 = vweird.f32 %v3653
        %vm3709 = vweird.f32 %v3703
        %vm3710 = vmor %vm3708, %vm3709
        %v3711 = vsel %vm3710, %v3703, %v3707
        %v3712 = vand.u32 2147483647, %v3653
        %vm3713 = vcmp.eq.f32.partialorder %v3712, 8.507059e+37
        %v3714 = vand.u32 %v3653, 2147483648
        %v3715 = vor.u32 1.1754944e-38, %v3714
        %v3716 = vsel %vm3713, %v3715, %v3711
        %v3717 = vmul.f32 1.0, %v3716
        %v3718 = vrcp.pop %v3654
        %v3719 = vmul.f32 %v3654, %v3718
        %v3720 = vsub.f32 1.0, %v3719
        %v3721 = vmul.f32 %v3718, %v3720
        %v3722 = vadd.f32 %v3718, %v3721
        %vm3723 = vweird.f32 %v3654
        %vm3724 = vweird.f32 %v3718
        %vm3725 = vmor %vm3723, %vm3724
        %v3726 = vsel %vm3725, %v3718, %v3722
        %v3727 = vand.u32 2147483647, %v3654
        %vm3728 = vcmp.eq.f32.partialorder %v3727, 8.507059e+37
        %v3729 = vand.u32 %v3654, 2147483648
        %v3730 = vor.u32 1.1754944e-38, %v3729
        %v3731 = vsel %vm3728, %v3730, %v3726
        %v3732 = vmul.f32 1.0, %v3731
        %v3733 = vrcp.pop %v3655
        %v3734 = vmul.f32 %v3655, %v3733
        %v3735 = vsub.f32 1.0, %v3734
        %v3736 = vmul.f32 %v3733, %v3735
        %v3737 = vadd.f32 %v3733, %v3736
        %vm3738 = vweird.f32 %v3655
        %vm3739 = vweird.f32 %v3733
        %vm3740 = vmor %vm3738, %vm3739
        %v3741 = vsel %vm3740, %v3733, %v3737
        %v3742 = vand.u32 2147483647, %v3655
        %vm3743 = vcmp.eq.f32.partialorder %v3742, 8.507059e+37
        %v3744 = vand.u32 %v3655, 2147483648
        %v3745 = vor.u32 1.1754944e-38, %v3744
        %v3746 = vsel %vm3743, %v3745, %v3741
        %v3747 = vmul.f32 1.0, %v3746
        %v3748 = vrcp.pop %v3656
        %v3749 = vmul.f32 %v3656, %v3748
        %v3750 = vsub.f32 1.0, %v3749
        %v3751 = vmul.f32 %v3748, %v3750
        %v3752 = vadd.f32 %v3748, %v3751
        %vm3753 = vweird.f32 %v3656
        %vm3754 = vweird.f32 %v3748
        %vm3755 = vmor %vm3753, %vm3754
        %v3756 = vsel %vm3755, %v3748, %v3752
        %v3757 = vand.u32 2147483647, %v3656
        %vm3758 = vcmp.eq.f32.partialorder %v3757, 8.507059e+37
        %v3759 = vand.u32 %v3656, 2147483648
        %v3760 = vor.u32 1.1754944e-38, %v3759
        %v3761 = vsel %vm3758, %v3760, %v3756
        %v3762 = vmul.f32 1.0, %v3761
        %v3763 = vrcp.pop %v3657
        %v3764 = vmul.f32 %v3657, %v3763
        %v3765 = vsub.f32 1.0, %v3764
        %v3766 = vmul.f32 %v3763, %v3765
        %v3767 = vadd.f32 %v3763, %v3766
        %vm3768 = vweird.f32 %v3657
        %vm3769 = vweird.f32 %v3763
        %vm3770 = vmor %vm3768, %vm3769
        %v3771 = vsel %vm3770, %v3763, %v3767
        %v3772 = vand.u32 2147483647, %v3657
        %vm3773 = vcmp.eq.f32.partialorder %v3772, 8.507059e+37
        %v3774 = vand.u32 %v3657, 2147483648
        %v3775 = vor.u32 1.1754944e-38, %v3774
        %v3776 = vsel %vm3773, %v3775, %v3771
        %v3777 = vmul.f32 1.0, %v3776
        %v3786 = vrot.slane %v3618, 1
        %v3787 = vrot.slane %v3619, 1
        %v3788 = vrot.slane %v3620, 1
        %v3789 = vrot.slane %v3621, 1
        %v3790 = vrot.slane %v3622, 1
        %v3791 = vrot.slane %v3623, 1
        %v3792 = vrot.slane %v3624, 1
        %v3793 = vrot.slane %v3625, 1
        %v3802 = vxor.u32 %v3786, 2147483648
        %v3803 = vxor.u32 %v3787, 2147483648
        %v3804 = vxor.u32 %v3788, 2147483648
        %v3805 = vxor.u32 %v3789, 2147483648
        %v3806 = vxor.u32 %v3790, 2147483648
        %v3807 = vxor.u32 %v3791, 2147483648
        %v3808 = vxor.u32 %v3792, 2147483648
        %v3809 = vxor.u32 %v3793, 2147483648
        %v3810 = vmul.f32 %v3802, 1.442695
        %v3811 = vpow.pop %v3810
        %v3812 = vmul.f32 %v3803, 1.442695
        %v3813 = vpow.pop %v3812
        %v3814 = vmul.f32 %v3804, 1.442695
        %v3815 = vpow.pop %v3814
        %v3816 = vmul.f32 %v3805, 1.442695
        %v3817 = vpow.pop %v3816
        %v3818 = vmul.f32 %v3806, 1.442695
        %v3819 = vpow.pop %v3818
        %v3820 = vmul.f32 %v3807, 1.442695
        %v3821 = vpow.pop %v3820
        %v3822 = vmul.f32 %v3808, 1.442695
        %v3823 = vpow.pop %v3822
        %v3824 = vmul.f32 %v3809, 1.442695
        %v3825 = vpow.pop %v3824
        %v3826 = vadd.f32 %v3811, 1.0
        %v3827 = vadd.f32 %v3813, 1.0
        %v3828 = vadd.f32 %v3815, 1.0
        %v3829 = vadd.f32 %v3817, 1.0
        %v3830 = vadd.f32 %v3819, 1.0
        %v3831 = vadd.f32 %v3821, 1.0
        %v3832 = vadd.f32 %v3823, 1.0
        %v3833 = vadd.f32 %v3825, 1.0
        %v3834 = vrcp.pop %v3826
        %v3835 = vmul.f32 %v3826, %v3834
        %v3836 = vsub.f32 1.0, %v3835
        %v3837 = vmul.f32 %v3834, %v3836
        %v3838 = vadd.f32 %v3834, %v3837
        %vm3839 = vweird.f32 %v3826
        %vm3840 = vweird.f32 %v3834
        %vm3841 = vmor %vm3839, %vm3840
        %v3842 = vsel %vm3841, %v3834, %v3838
        %v3843 = vand.u32 2147483647, %v3826
        %vm3844 = vcmp.eq.f32.partialorder %v3843, 8.507059e+37
        %v3845 = vand.u32 %v3826, 2147483648
        %v3846 = vor.u32 1.1754944e-38, %v3845
        %v3847 = vsel %vm3844, %v3846, %v3842
        %v3848 = vmul.f32 1.0, %v3847
        %v3849 = vrcp.pop %v3827
        %v3850 = vmul.f32 %v3827, %v3849
        %v3851 = vsub.f32 1.0, %v3850
        %v3852 = vmul.f32 %v3849, %v3851
        %v3853 = vadd.f32 %v3849, %v3852
        %vm3854 = vweird.f32 %v3827
        %vm3855 = vweird.f32 %v3849
        %vm3856 = vmor %vm3854, %vm3855
        %v3857 = vsel %vm3856, %v3849, %v3853
        %v3858 = vand.u32 2147483647, %v3827
        %vm3859 = vcmp.eq.f32.partialorder %v3858, 8.507059e+37
        %v3860 = vand.u32 %v3827, 2147483648
        %v3861 = vor.u32 1.1754944e-38, %v3860
        %v3862 = vsel %vm3859, %v3861, %v3857
        %v3863 = vmul.f32 1.0, %v3862
        %v3864 = vrcp.pop %v3828
        %v3865 = vmul.f32 %v3828, %v3864
        %v3866 = vsub.f32 1.0, %v3865
        %v3867 = vmul.f32 %v3864, %v3866
        %v3868 = vadd.f32 %v3864, %v3867
        %vm3869 = vweird.f32 %v3828
        %vm3870 = vweird.f32 %v3864
        %vm3871 = vmor %vm3869, %vm3870
        %v3872 = vsel %vm3871, %v3864, %v3868
        %v3873 = vand.u32 2147483647, %v3828
        %vm3874 = vcmp.eq.f32.partialorder %v3873, 8.507059e+37
        %v3875 = vand.u32 %v3828, 2147483648
        %v3876 = vor.u32 1.1754944e-38, %v3875
        %v3877 = vsel %vm3874, %v3876, %v3872
        %v3878 = vmul.f32 1.0, %v3877
        %v3879 = vrcp.pop %v3829
        %v3880 = vmul.f32 %v3829, %v3879
        %v3881 = vsub.f32 1.0, %v3880
        %v3882 = vmul.f32 %v3879, %v3881
        %v3883 = vadd.f32 %v3879, %v3882
        %vm3884 = vweird.f32 %v3829
        %vm3885 = vweird.f32 %v3879
        %vm3886 = vmor %vm3884, %vm3885
        %v3887 = vsel %vm3886, %v3879, %v3883
        %v3888 = vand.u32 2147483647, %v3829
        %vm3889 = vcmp.eq.f32.partialorder %v3888, 8.507059e+37
        %v3890 = vand.u32 %v3829, 2147483648
        %v3891 = vor.u32 1.1754944e-38, %v3890
        %v3892 = vsel %vm3889, %v3891, %v3887
        %v3893 = vmul.f32 1.0, %v3892
        %v3894 = vrcp.pop %v3830
        %v3895 = vmul.f32 %v3830, %v3894
        %v3896 = vsub.f32 1.0, %v3895
        %v3897 = vmul.f32 %v3894, %v3896
        %v3898 = vadd.f32 %v3894, %v3897
        %vm3899 = vweird.f32 %v3830
        %vm3900 = vweird.f32 %v3894
        %vm3901 = vmor %vm3899, %vm3900
        %v3902 = vsel %vm3901, %v3894, %v3898
        %v3903 = vand.u32 2147483647, %v3830
        %vm3904 = vcmp.eq.f32.partialorder %v3903, 8.507059e+37
        %v3905 = vand.u32 %v3830, 2147483648
        %v3906 = vor.u32 1.1754944e-38, %v3905
        %v3907 = vsel %vm3904, %v3906, %v3902
        %v3908 = vmul.f32 1.0, %v3907
        %v3909 = vrcp.pop %v3831
        %v3910 = vmul.f32 %v3831, %v3909
        %v3911 = vsub.f32 1.0, %v3910
        %v3912 = vmul.f32 %v3909, %v3911
        %v3913 = vadd.f32 %v3909, %v3912
        %vm3914 = vweird.f32 %v3831
        %vm3915 = vweird.f32 %v3909
        %vm3916 = vmor %vm3914, %vm3915
        %v3917 = vsel %vm3916, %v3909, %v3913
        %v3918 = vand.u32 2147483647, %v3831
        %vm3919 = vcmp.eq.f32.partialorder %v3918, 8.507059e+37
        %v3920 = vand.u32 %v3831, 2147483648
        %v3921 = vor.u32 1.1754944e-38, %v3920
        %v3922 = vsel %vm3919, %v3921, %v3917
        %v3923 = vmul.f32 1.0, %v3922
        %v3924 = vrcp.pop %v3832
        %v3925 = vmul.f32 %v3832, %v3924
        %v3926 = vsub.f32 1.0, %v3925
        %v3927 = vmul.f32 %v3924, %v3926
        %v3928 = vadd.f32 %v3924, %v3927
        %vm3929 = vweird.f32 %v3832
        %vm3930 = vweird.f32 %v3924
        %vm3931 = vmor %vm3929, %vm3930
        %v3932 = vsel %vm3931, %v3924, %v3928
        %v3933 = vand.u32 2147483647, %v3832
        %vm3934 = vcmp.eq.f32.partialorder %v3933, 8.507059e+37
        %v3935 = vand.u32 %v3832, 2147483648
        %v3936 = vor.u32 1.1754944e-38, %v3935
        %v3937 = vsel %vm3934, %v3936, %v3932
        %v3938 = vmul.f32 1.0, %v3937
        %v3939 = vrcp.pop %v3833
        %v3940 = vmul.f32 %v3833, %v3939
        %v3941 = vsub.f32 1.0, %v3940
        %v3942 = vmul.f32 %v3939, %v3941
        %v3943 = vadd.f32 %v3939, %v3942
        %vm3944 = vweird.f32 %v3833
        %vm3945 = vweird.f32 %v3939
        %vm3946 = vmor %vm3944, %vm3945
        %v3947 = vsel %vm3946, %v3939, %v3943
        %v3948 = vand.u32 2147483647, %v3833
        %vm3949 = vcmp.eq.f32.partialorder %v3948, 8.507059e+37
        %v3950 = vand.u32 %v3833, 2147483648
        %v3951 = vor.u32 1.1754944e-38, %v3950
        %v3952 = vsel %vm3949, %v3951, %v3947
        %v3953 = vmul.f32 1.0, %v3952
        %v3954 = vrot.slane %v3618, 2
        %v3955 = vrot.slane %v3619, 2
        %v3956 = vrot.slane %v3620, 2
        %v3957 = vrot.slane %v3621, 2
        %v3958 = vrot.slane %v3622, 2
        %v3959 = vrot.slane %v3623, 2
        %v3960 = vrot.slane %v3624, 2
        %v3961 = vrot.slane %v3625, 2
        %v3970 = vtanh.pop %v3954
        %v3971 = vtanh.pop %v3955
        %v3972 = vtanh.pop %v3956
        %v3973 = vtanh.pop %v3957
        %v3974 = vtanh.pop %v3958
        %v3975 = vtanh.pop %v3959
        %v3976 = vtanh.pop %v3960
        %v3977 = vtanh.pop %v3961
        %v3978 = vrot.slane %v3618, 3
        %v3979 = vrot.slane %v3619, 3
        %v3980 = vrot.slane %v3620, 3
        %v3981 = vrot.slane %v3621, 3
        %v3982 = vrot.slane %v3622, 3
        %v3983 = vrot.slane %v3623, 3
        %v3984 = vrot.slane %v3624, 3
        %v3985 = vrot.slane %v3625, 3
        %v3994 = vxor.u32 %v3978, 2147483648
        %v3995 = vxor.u32 %v3979, 2147483648
        %v3996 = vxor.u32 %v3980, 2147483648
        %v3997 = vxor.u32 %v3981, 2147483648
        %v3998 = vxor.u32 %v3982, 2147483648
        %v3999 = vxor.u32 %v3983, 2147483648
        %v4000 = vxor.u32 %v3984, 2147483648
        %v4001 = vxor.u32 %v3985, 2147483648
        %v4002 = vmul.f32 %v3994, 1.442695
        %v4003 = vpow.pop %v4002
        %v4004 = vmul.f32 %v3995, 1.442695
        %v4005 = vpow.pop %v4004
        %v4006 = vmul.f32 %v3996, 1.442695
        %v4007 = vpow.pop %v4006
        %v4008 = vmul.f32 %v3997, 1.442695
        %v4009 = vpow.pop %v4008
        %v4010 = vmul.f32 %v3998, 1.442695
        %v4011 = vpow.pop %v4010
        %v4012 = vmul.f32 %v3999, 1.442695
        %v4013 = vpow.pop %v4012
        %v4014 = vmul.f32 %v4000, 1.442695
        %v4015 = vpow.pop %v4014
        %v4016 = vmul.f32 %v4001, 1.442695
        %v4017 = vpow.pop %v4016
        %v4018 = vadd.f32 %v4003, 1.0
        %v4019 = vadd.f32 %v4005, 1.0
        %v4020 = vadd.f32 %v4007, 1.0
        %v4021 = vadd.f32 %v4009, 1.0
        %v4022 = vadd.f32 %v4011, 1.0
        %v4023 = vadd.f32 %v4013, 1.0
        %v4024 = vadd.f32 %v4015, 1.0
        %v4025 = vadd.f32 %v4017, 1.0
        %v4026 = vrcp.pop %v4018
        %v4027 = vmul.f32 %v4018, %v4026
        %v4028 = vsub.f32 1.0, %v4027
        %v4029 = vmul.f32 %v4026, %v4028
        %v4030 = vadd.f32 %v4026, %v4029
        %vm4031 = vweird.f32 %v4018
        %vm4032 = vweird.f32 %v4026
        %vm4033 = vmor %vm4031, %vm4032
        %v4034 = vsel %vm4033, %v4026, %v4030
        %v4035 = vand.u32 2147483647, %v4018
        %vm4036 = vcmp.eq.f32.partialorder %v4035, 8.507059e+37
        %v4037 = vand.u32 %v4018, 2147483648
        %v4038 = vor.u32 1.1754944e-38, %v4037
        %v4039 = vsel %vm4036, %v4038, %v4034
        %v4040 = vmul.f32 1.0, %v4039
        %v4041 = vrcp.pop %v4019
        %v4042 = vmul.f32 %v4019, %v4041
        %v4043 = vsub.f32 1.0, %v4042
        %v4044 = vmul.f32 %v4041, %v4043
        %v4045 = vadd.f32 %v4041, %v4044
        %vm4046 = vweird.f32 %v4019
        %vm4047 = vweird.f32 %v4041
        %vm4048 = vmor %vm4046, %vm4047
        %v4049 = vsel %vm4048, %v4041, %v4045
        %v4050 = vand.u32 2147483647, %v4019
        %vm4051 = vcmp.eq.f32.partialorder %v4050, 8.507059e+37
        %v4052 = vand.u32 %v4019, 2147483648
        %v4053 = vor.u32 1.1754944e-38, %v4052
        %v4054 = vsel %vm4051, %v4053, %v4049
        %v4055 = vmul.f32 1.0, %v4054
        %v4056 = vrcp.pop %v4020
        %v4057 = vmul.f32 %v4020, %v4056
        %v4058 = vsub.f32 1.0, %v4057
        %v4059 = vmul.f32 %v4056, %v4058
        %v4060 = vadd.f32 %v4056, %v4059
        %vm4061 = vweird.f32 %v4020
        %vm4062 = vweird.f32 %v4056
        %vm4063 = vmor %vm4061, %vm4062
        %v4064 = vsel %vm4063, %v4056, %v4060
        %v4065 = vand.u32 2147483647, %v4020
        %vm4066 = vcmp.eq.f32.partialorder %v4065, 8.507059e+37
        %v4067 = vand.u32 %v4020, 2147483648
        %v4068 = vor.u32 1.1754944e-38, %v4067
        %v4069 = vsel %vm4066, %v4068, %v4064
        %v4070 = vmul.f32 1.0, %v4069
        %v4071 = vrcp.pop %v4021
        %v4072 = vmul.f32 %v4021, %v4071
        %v4073 = vsub.f32 1.0, %v4072
        %v4074 = vmul.f32 %v4071, %v4073
        %v4075 = vadd.f32 %v4071, %v4074
        %vm4076 = vweird.f32 %v4021
        %vm4077 = vweird.f32 %v4071
        %vm4078 = vmor %vm4076, %vm4077
        %v4079 = vsel %vm4078, %v4071, %v4075
        %v4080 = vand.u32 2147483647, %v4021
        %vm4081 = vcmp.eq.f32.partialorder %v4080, 8.507059e+37
        %v4082 = vand.u32 %v4021, 2147483648
        %v4083 = vor.u32 1.1754944e-38, %v4082
        %v4084 = vsel %vm4081, %v4083, %v4079
        %v4085 = vmul.f32 1.0, %v4084
        %v4086 = vrcp.pop %v4022
        %v4087 = vmul.f32 %v4022, %v4086
        %v4088 = vsub.f32 1.0, %v4087
        %v4089 = vmul.f32 %v4086, %v4088
        %v4090 = vadd.f32 %v4086, %v4089
        %vm4091 = vweird.f32 %v4022
        %vm4092 = vweird.f32 %v4086
        %vm4093 = vmor %vm4091, %vm4092
        %v4094 = vsel %vm4093, %v4086, %v4090
        %v4095 = vand.u32 2147483647, %v4022
        %vm4096 = vcmp.eq.f32.partialorder %v4095, 8.507059e+37
        %v4097 = vand.u32 %v4022, 2147483648
        %v4098 = vor.u32 1.1754944e-38, %v4097
        %v4099 = vsel %vm4096, %v4098, %v4094
        %v4100 = vmul.f32 1.0, %v4099
        %v4101 = vrcp.pop %v4023
        %v4102 = vmul.f32 %v4023, %v4101
        %v4103 = vsub.f32 1.0, %v4102
        %v4104 = vmul.f32 %v4101, %v4103
        %v4105 = vadd.f32 %v4101, %v4104
        %vm4106 = vweird.f32 %v4023
        %vm4107 = vweird.f32 %v4101
        %vm4108 = vmor %vm4106, %vm4107
        %v4109 = vsel %vm4108, %v4101, %v4105
        %v4110 = vand.u32 2147483647, %v4023
        %vm4111 = vcmp.eq.f32.partialorder %v4110, 8.507059e+37
        %v4112 = vand.u32 %v4023, 2147483648
        %v4113 = vor.u32 1.1754944e-38, %v4112
        %v4114 = vsel %vm4111, %v4113, %v4109
        %v4115 = vmul.f32 1.0, %v4114
        %v4116 = vrcp.pop %v4024
        %v4117 = vmul.f32 %v4024, %v4116
        %v4118 = vsub.f32 1.0, %v4117
        %v4119 = vmul.f32 %v4116, %v4118
        %v4120 = vadd.f32 %v4116, %v4119
        %vm4121 = vweird.f32 %v4024
        %vm4122 = vweird.f32 %v4116
        %vm4123 = vmor %vm4121, %vm4122
        %v4124 = vsel %vm4123, %v4116, %v4120
        %v4125 = vand.u32 2147483647, %v4024
        %vm4126 = vcmp.eq.f32.partialorder %v4125, 8.507059e+37
        %v4127 = vand.u32 %v4024, 2147483648
        %v4128 = vor.u32 1.1754944e-38, %v4127
        %v4129 = vsel %vm4126, %v4128, %v4124
        %v4130 = vmul.f32 1.0, %v4129
        %v4131 = vrcp.pop %v4025
        %v4132 = vmul.f32 %v4025, %v4131
        %v4133 = vsub.f32 1.0, %v4132
        %v4134 = vmul.f32 %v4131, %v4133
        %v4135 = vadd.f32 %v4131, %v4134
        %vm4136 = vweird.f32 %v4025
        %vm4137 = vweird.f32 %v4131
        %vm4138 = vmor %vm4136, %vm4137
        %v4139 = vsel %vm4138, %v4131, %v4135
        %v4140 = vand.u32 2147483647, %v4025
        %vm4141 = vcmp.eq.f32.partialorder %v4140, 8.507059e+37
        %v4142 = vand.u32 %v4025, 2147483648
        %v4143 = vor.u32 1.1754944e-38, %v4142
        %v4144 = vsel %vm4141, %v4143, %v4139
        %v4145 = vmul.f32 1.0, %v4144
        %v4147 = vrot.slane %v3475, 1
        %v4148 = vrot.slane %v3475, 2
        %v4149 = vrot.slane %v3475, 3
        %v4150 = vrot.slane %v3475, 4
        %v4151 = vrot.slane %v3475, 5
        %v4152 = vrot.slane %v3475, 6
        %v4153 = vrot.slane %v3475, 7
        %v4161 = vmul.f32 %v3848, %v3475
        %v4162 = vmul.f32 %v3863, %v4147
        %v4163 = vmul.f32 %v3878, %v4148
        %v4164 = vmul.f32 %v3893, %v4149
        %v4165 = vmul.f32 %v3908, %v4150
        %v4166 = vmul.f32 %v3923, %v4151
        %v4167 = vmul.f32 %v3938, %v4152
        %v4168 = vmul.f32 %v3953, %v4153
        %v4169 = vmul.f32 %v3672, %v3970
        %v4170 = vmul.f32 %v3687, %v3971
        %v4171 = vmul.f32 %v3702, %v3972
        %v4172 = vmul.f32 %v3717, %v3973
        %v4173 = vmul.f32 %v3732, %v3974
        %v4174 = vmul.f32 %v3747, %v3975
        %v4175 = vmul.f32 %v3762, %v3976
        %v4176 = vmul.f32 %v3777, %v3977
        %v4177 = vadd.f32 %v4161, %v4169
        %v4178 = vadd.f32 %v4162, %v4170
        %v4179 = vadd.f32 %v4163, %v4171
        %v4180 = vadd.f32 %v4164, %v4172
        %v4181 = vadd.f32 %v4165, %v4173
        %v4182 = vadd.f32 %v4166, %v4174
        %v4183 = vadd.f32 %v4167, %v4175
        %v4184 = vadd.f32 %v4168, %v4176
        %v4185 = vtanh.pop %v4177
        %v4186 = vtanh.pop %v4178
        %v4187 = vtanh.pop %v4179
        %v4188 = vtanh.pop %v4180
        %v4189 = vtanh.pop %v4181
        %v4190 = vtanh.pop %v4182
        %v4191 = vtanh.pop %v4183
        %v4192 = vtanh.pop %v4184
        %v4193 = vmul.f32 %v4040, %v4185
        %v4194 = vmul.f32 %v4055, %v4186
        %v4195 = vmul.f32 %v4070, %v4187
        %v4196 = vmul.f32 %v4085, %v4188
        %v4197 = vmul.f32 %v4100, %v4189
        %v4198 = vmul.f32 %v4115, %v4190
        %v4199 = vmul.f32 %v4130, %v4191
        %v4200 = vmul.f32 %v4145, %v4192
        %4209 = vst [vmem:[#allocation1] ss:$9 sm:$0xff] %v4177
        %s4210 = scalar_lea.vmem [#allocation1], 1
        %4211 = vst [vmem:[%s4210] ss:$9 sm:$0xff] %v4178
        %s4212 = scalar_lea.vmem [#allocation1], 2
        %4213 = vst [vmem:[%s4212] ss:$9 sm:$0xff] %v4179
        %s4214 = scalar_lea.vmem [#allocation1], 3
        %4215 = vst [vmem:[%s4214] ss:$9 sm:$0xff] %v4180
        %s4216 = scalar_lea.vmem [#allocation1], 4
        %4217 = vst [vmem:[%s4216] ss:$9 sm:$0xff] %v4181
        %s4218 = scalar_lea.vmem [#allocation1], 5
        %4219 = vst [vmem:[%s4218] ss:$9 sm:$0xff] %v4182
        %s4220 = scalar_lea.vmem [#allocation1], 6
        %4221 = vst [vmem:[%s4220] ss:$9 sm:$0xff] %v4183
        %s4222 = scalar_lea.vmem [#allocation1], 7
        %4223 = vst [vmem:[%s4222] ss:$9 sm:$0xff] %v4184
        %v4224 = vld [vmem:[#allocation1] sm:$0xff]
        %4226 = vst [vmem:[#allocation3] sm:$0xff] %v4224
        %4235 = vst [vmem:[#allocation1] ss:$9 sm:$0xff] %v4193
        %s4236 = scalar_lea.vmem [#allocation1], 1
        %4237 = vst [vmem:[%s4236] ss:$9 sm:$0xff] %v4194
        %s4238 = scalar_lea.vmem [#allocation1], 2
        %4239 = vst [vmem:[%s4238] ss:$9 sm:$0xff] %v4195
        %s4240 = scalar_lea.vmem [#allocation1], 3
        %4241 = vst [vmem:[%s4240] ss:$9 sm:$0xff] %v4196
        %s4242 = scalar_lea.vmem [#allocation1], 4
        %4243 = vst [vmem:[%s4242] ss:$9 sm:$0xff] %v4197
        %s4244 = scalar_lea.vmem [#allocation1], 5
        %4245 = vst [vmem:[%s4244] ss:$9 sm:$0xff] %v4198
        %s4246 = scalar_lea.vmem [#allocation1], 6
        %4247 = vst [vmem:[%s4246] ss:$9 sm:$0xff] %v4199
        %s4248 = scalar_lea.vmem [#allocation1], 7
        %4249 = vst [vmem:[%s4248] ss:$9 sm:$0xff] %v4200
        %v4250 = vld [vmem:[#allocation1] sm:$0xff]
        %4252 = vst [vmem:[#allocation2] sm:$0xff] %v4250
        %4253 = vst [vmem:[%s238 + $0x4] sm:$0x1] %v4193
        %4254 = vst [vmem:[%s238 + $0xc] sm:$0x1] %v4194
        %4255 = vst [vmem:[%s238 + $0x14] sm:$0x1] %v4195
        %4256 = vst [vmem:[%s238 + $0x1c] sm:$0x1] %v4196
        %4257 = vst [vmem:[%s238 + $0x24] sm:$0x1] %v4197
        %4258 = vst [vmem:[%s238 + $0x2c] sm:$0x1] %v4198
        %4259 = vst [vmem:[%s238 + $0x34] sm:$0x1] %v4199
        %4260 = vst [vmem:[%s238 + $0x3c] sm:$0x1] %v4200
        %v4261 = vld [vmem:[#allocation2] sm:$0xff]
        %v4262 = vld [vmem:[#allocation3] sm:$0xff]
        %s4263 = scalar_lea.vmem %s221, 5 [#allocation4]
        %v4264 = vld [vmem:[%s4263] ss:$8 sm:$0xf]
        %s4265 = scalar_lea.vmem %s221, 37 [#allocation4]
        %v4266 = vld [vmem:[%s4265] ss:$8 sm:$0xf]
        %s4267 = scalar_lea.vmem %s221, 69 [#allocation4]
        %v4268 = vld [vmem:[%s4267] ss:$8 sm:$0xf]
        %s4269 = scalar_lea.vmem %s221, 101 [#allocation4]
        %v4270 = vld [vmem:[%s4269] ss:$8 sm:$0xf]
        %s4271 = scalar_lea.vmem %s221, 133 [#allocation4]
        %v4272 = vld [vmem:[%s4271] ss:$8 sm:$0xf]
        %s4273 = scalar_lea.vmem %s221, 165 [#allocation4]
        %v4274 = vld [vmem:[%s4273] ss:$8 sm:$0xf]
        %s4275 = scalar_lea.vmem %s221, 197 [#allocation4]
        %v4276 = vld [vmem:[%s4275] ss:$8 sm:$0xf]
        %s4277 = scalar_lea.vmem %s221, 229 [#allocation4]
        %v4278 = vld [vmem:[%s4277] ss:$8 sm:$0xf]
        %4279 = vmatpush.msra.mxu0 %v307
        %4280 = vmatpush.msra.mxu0 %v303
        %4281 = vmatpush.msra.mxu0 %v299
        %4282 = vmatpush.msra.mxu0 %v295
        %4283 = vmatpush.msra.mxu0 %v291
        %4284 = vmatpush.msra.mxu0 %v287
        %4285 = vmatpush.msra.mxu0 %v283
        %4286 = vmatpush.msra.mxu0 %v279
        %4287 = vmatpush.msra.mxu0 %v275
        %4288 = vmatpush.msra.mxu0 %v271
        %4289 = vmatpush.msra.mxu0 %v267
        %4290 = vmatpush.msra.mxu0 %v263
        %4291 = vmatpush.msra.mxu0 %v259
        %4292 = vmatpush.msra.mxu0 %v255
        %4293 = vmatpush.msra.mxu0 %v251
        %4294 = vmatpush.msra.mxu0 %v247
        %4295 = vmatmul.f32.gmra.mxu0 %v4261
        %v4296 = vpop.f32.mrf.mxu0
        %v4297 = vadd.f32 0.0, %v4296
        %4298 = vdwg.mxu0
        %4299 = vmatpush.msra.mxu0 %v308
        %4300 = vmatpush.msra.mxu0 %v304
        %4301 = vmatpush.msra.mxu0 %v300
        %4302 = vmatpush.msra.mxu0 %v296
        %4303 = vmatpush.msra.mxu0 %v292
        %4304 = vmatpush.msra.mxu0 %v288
        %4305 = vmatpush.msra.mxu0 %v284
        %4306 = vmatpush.msra.mxu0 %v280
        %4307 = vmatpush.msra.mxu0 %v276
        %4308 = vmatpush.msra.mxu0 %v272
        %4309 = vmatpush.msra.mxu0 %v268
        %4310 = vmatpush.msra.mxu0 %v264
        %4311 = vmatpush.msra.mxu0 %v260
        %4312 = vmatpush.msra.mxu0 %v256
        %4313 = vmatpush.msra.mxu0 %v252
        %4314 = vmatpush.msra.mxu0 %v248
        %4315 = vmatmul.f32.gmra.mxu0 %v4261
        %v4316 = vpop.f32.mrf.mxu0
        %v4317 = vadd.f32 0.0, %v4316
        %4318 = vdwg.mxu0
        %4319 = vmatpush.msra.mxu0 %v309
        %4320 = vmatpush.msra.mxu0 %v305
        %4321 = vmatpush.msra.mxu0 %v301
        %4322 = vmatpush.msra.mxu0 %v297
        %4323 = vmatpush.msra.mxu0 %v293
        %4324 = vmatpush.msra.mxu0 %v289
        %4325 = vmatpush.msra.mxu0 %v285
        %4326 = vmatpush.msra.mxu0 %v281
        %4327 = vmatpush.msra.mxu0 %v277
        %4328 = vmatpush.msra.mxu0 %v273
        %4329 = vmatpush.msra.mxu0 %v269
        %4330 = vmatpush.msra.mxu0 %v265
        %4331 = vmatpush.msra.mxu0 %v261
        %4332 = vmatpush.msra.mxu0 %v257
        %4333 = vmatpush.msra.mxu0 %v253
        %4334 = vmatpush.msra.mxu0 %v249
        %4335 = vmatmul.f32.gmra.mxu0 %v4261
        %v4336 = vpop.f32.mrf.mxu0
        %v4337 = vadd.f32 0.0, %v4336
        %4338 = vdwg.mxu0
        %4339 = vmatpush.msra.mxu0 %v310
        %4340 = vmatpush.msra.mxu0 %v306
        %4341 = vmatpush.msra.mxu0 %v302
        %4342 = vmatpush.msra.mxu0 %v298
        %4343 = vmatpush.msra.mxu0 %v294
        %4344 = vmatpush.msra.mxu0 %v290
        %4345 = vmatpush.msra.mxu0 %v286
        %4346 = vmatpush.msra.mxu0 %v282
        %4347 = vmatpush.msra.mxu0 %v278
        %4348 = vmatpush.msra.mxu0 %v274
        %4349 = vmatpush.msra.mxu0 %v270
        %4350 = vmatpush.msra.mxu0 %v266
        %4351 = vmatpush.msra.mxu0 %v262
        %4352 = vmatpush.msra.mxu0 %v258
        %4353 = vmatpush.msra.mxu0 %v254
        %4354 = vmatpush.msra.mxu0 %v250
        %4355 = vmatmul.f32.gmra.mxu0 %v4261
        %v4356 = vpop.f32.mrf.mxu0
        %v4357 = vadd.f32 0.0, %v4356
        %4358 = vdwg.mxu0
        %v4363 = vrot.slane %v4317, 7
        %v4364 = vrot.slane %v4337, 6
        %v4365 = vrot.slane %v4357, 5
        %v4366 = vsel %vm415, %v4297, %v4363
        %v4367 = vsel %vm417, %v4364, %v4365
        %v4368 = vsel %vm419, %v4366, %v4367
        %v4369 = vsel %vm421, %v4297, %v4363
        %v4370 = vsel %vm423, %v4364, %v4365
        %v4371 = vsel %vm425, %v4369, %v4370
        %v4372 = vrot.slane %v4371, 1
        %v4373 = vsel %vm417, %v4297, %v4363
        %v4374 = vsel %vm429, %v4364, %v4365
        %v4375 = vsel %vm431, %v4373, %v4374
        %v4376 = vrot.slane %v4375, 2
        %v4377 = vsel %vm423, %v4297, %v4363
        %v4378 = vsel %vm435, %v4364, %v4365
        %v4379 = vsel %vm437, %v4377, %v4378
        %v4380 = vrot.slane %v4379, 3
        %v4381 = vsel %vm429, %v4297, %v4363
        %v4382 = vsel %vm441, %v4364, %v4365
        %v4383 = vsel %vm443, %v4381, %v4382
        %v4384 = vrot.slane %v4383, 4
        %v4385 = vsel %vm435, %v4297, %v4363
        %v4386 = vsel %vm447, %v4365, %v4364
        %v4387 = vsel %vm449, %v4385, %v4386
        %v4388 = vrot.slane %v4387, 5
        %v4389 = vsel %vm441, %v4297, %v4363
        %v4390 = vsel %vm415, %v4364, %v4365
        %v4391 = vsel %vm454, %v4390, %v4389
        %v4392 = vrot.slane %v4391, 6
        %v4393 = vsel %vm447, %v4363, %v4297
        %v4394 = vsel %vm421, %v4364, %v4365
        %v4395 = vsel %vm459, %v4394, %v4393
        %v4396 = vrot.slane %v4395, 7
        %v4405 = vadd.f32 %v4264, %v4368
        %v4406 = vadd.f32 %v4266, %v4372
        %v4407 = vadd.f32 %v4268, %v4376
        %v4408 = vadd.f32 %v4270, %v4380
        %v4409 = vadd.f32 %v4272, %v4384
        %v4410 = vadd.f32 %v4274, %v4388
        %v4411 = vadd.f32 %v4276, %v4392
        %v4412 = vadd.f32 %v4278, %v4396
        %v4413 = vxor.u32 %v4405, 2147483648
        %v4414 = vxor.u32 %v4406, 2147483648
        %v4415 = vxor.u32 %v4407, 2147483648
        %v4416 = vxor.u32 %v4408, 2147483648
        %v4417 = vxor.u32 %v4409, 2147483648
        %v4418 = vxor.u32 %v4410, 2147483648
        %v4419 = vxor.u32 %v4411, 2147483648
        %v4420 = vxor.u32 %v4412, 2147483648
        %v4421 = vmul.f32 %v4413, 1.442695
        %v4422 = vpow.pop %v4421
        %v4423 = vmul.f32 %v4414, 1.442695
        %v4424 = vpow.pop %v4423
        %v4425 = vmul.f32 %v4415, 1.442695
        %v4426 = vpow.pop %v4425
        %v4427 = vmul.f32 %v4416, 1.442695
        %v4428 = vpow.pop %v4427
        %v4429 = vmul.f32 %v4417, 1.442695
        %v4430 = vpow.pop %v4429
        %v4431 = vmul.f32 %v4418, 1.442695
        %v4432 = vpow.pop %v4431
        %v4433 = vmul.f32 %v4419, 1.442695
        %v4434 = vpow.pop %v4433
        %v4435 = vmul.f32 %v4420, 1.442695
        %v4436 = vpow.pop %v4435
        %v4437 = vadd.f32 %v4422, 1.0
        %v4438 = vadd.f32 %v4424, 1.0
        %v4439 = vadd.f32 %v4426, 1.0
        %v4440 = vadd.f32 %v4428, 1.0
        %v4441 = vadd.f32 %v4430, 1.0
        %v4442 = vadd.f32 %v4432, 1.0
        %v4443 = vadd.f32 %v4434, 1.0
        %v4444 = vadd.f32 %v4436, 1.0
        %v4445 = vrcp.pop %v4437
        %v4446 = vmul.f32 %v4437, %v4445
        %v4447 = vsub.f32 1.0, %v4446
        %v4448 = vmul.f32 %v4445, %v4447
        %v4449 = vadd.f32 %v4445, %v4448
        %vm4450 = vweird.f32 %v4437
        %vm4451 = vweird.f32 %v4445
        %vm4452 = vmor %vm4450, %vm4451
        %v4453 = vsel %vm4452, %v4445, %v4449
        %v4454 = vand.u32 2147483647, %v4437
        %vm4455 = vcmp.eq.f32.partialorder %v4454, 8.507059e+37
        %v4456 = vand.u32 %v4437, 2147483648
        %v4457 = vor.u32 1.1754944e-38, %v4456
        %v4458 = vsel %vm4455, %v4457, %v4453
        %v4459 = vmul.f32 1.0, %v4458
        %v4460 = vrcp.pop %v4438
        %v4461 = vmul.f32 %v4438, %v4460
        %v4462 = vsub.f32 1.0, %v4461
        %v4463 = vmul.f32 %v4460, %v4462
        %v4464 = vadd.f32 %v4460, %v4463
        %vm4465 = vweird.f32 %v4438
        %vm4466 = vweird.f32 %v4460
        %vm4467 = vmor %vm4465, %vm4466
        %v4468 = vsel %vm4467, %v4460, %v4464
        %v4469 = vand.u32 2147483647, %v4438
        %vm4470 = vcmp.eq.f32.partialorder %v4469, 8.507059e+37
        %v4471 = vand.u32 %v4438, 2147483648
        %v4472 = vor.u32 1.1754944e-38, %v4471
        %v4473 = vsel %vm4470, %v4472, %v4468
        %v4474 = vmul.f32 1.0, %v4473
        %v4475 = vrcp.pop %v4439
        %v4476 = vmul.f32 %v4439, %v4475
        %v4477 = vsub.f32 1.0, %v4476
        %v4478 = vmul.f32 %v4475, %v4477
        %v4479 = vadd.f32 %v4475, %v4478
        %vm4480 = vweird.f32 %v4439
        %vm4481 = vweird.f32 %v4475
        %vm4482 = vmor %vm4480, %vm4481
        %v4483 = vsel %vm4482, %v4475, %v4479
        %v4484 = vand.u32 2147483647, %v4439
        %vm4485 = vcmp.eq.f32.partialorder %v4484, 8.507059e+37
        %v4486 = vand.u32 %v4439, 2147483648
        %v4487 = vor.u32 1.1754944e-38, %v4486
        %v4488 = vsel %vm4485, %v4487, %v4483
        %v4489 = vmul.f32 1.0, %v4488
        %v4490 = vrcp.pop %v4440
        %v4491 = vmul.f32 %v4440, %v4490
        %v4492 = vsub.f32 1.0, %v4491
        %v4493 = vmul.f32 %v4490, %v4492
        %v4494 = vadd.f32 %v4490, %v4493
        %vm4495 = vweird.f32 %v4440
        %vm4496 = vweird.f32 %v4490
        %vm4497 = vmor %vm4495, %vm4496
        %v4498 = vsel %vm4497, %v4490, %v4494
        %v4499 = vand.u32 2147483647, %v4440
        %vm4500 = vcmp.eq.f32.partialorder %v4499, 8.507059e+37
        %v4501 = vand.u32 %v4440, 2147483648
        %v4502 = vor.u32 1.1754944e-38, %v4501
        %v4503 = vsel %vm4500, %v4502, %v4498
        %v4504 = vmul.f32 1.0, %v4503
        %v4505 = vrcp.pop %v4441
        %v4506 = vmul.f32 %v4441, %v4505
        %v4507 = vsub.f32 1.0, %v4506
        %v4508 = vmul.f32 %v4505, %v4507
        %v4509 = vadd.f32 %v4505, %v4508
        %vm4510 = vweird.f32 %v4441
        %vm4511 = vweird.f32 %v4505
        %vm4512 = vmor %vm4510, %vm4511
        %v4513 = vsel %vm4512, %v4505, %v4509
        %v4514 = vand.u32 2147483647, %v4441
        %vm4515 = vcmp.eq.f32.partialorder %v4514, 8.507059e+37
        %v4516 = vand.u32 %v4441, 2147483648
        %v4517 = vor.u32 1.1754944e-38, %v4516
        %v4518 = vsel %vm4515, %v4517, %v4513
        %v4519 = vmul.f32 1.0, %v4518
        %v4520 = vrcp.pop %v4442
        %v4521 = vmul.f32 %v4442, %v4520
        %v4522 = vsub.f32 1.0, %v4521
        %v4523 = vmul.f32 %v4520, %v4522
        %v4524 = vadd.f32 %v4520, %v4523
        %vm4525 = vweird.f32 %v4442
        %vm4526 = vweird.f32 %v4520
        %vm4527 = vmor %vm4525, %vm4526
        %v4528 = vsel %vm4527, %v4520, %v4524
        %v4529 = vand.u32 2147483647, %v4442
        %vm4530 = vcmp.eq.f32.partialorder %v4529, 8.507059e+37
        %v4531 = vand.u32 %v4442, 2147483648
        %v4532 = vor.u32 1.1754944e-38, %v4531
        %v4533 = vsel %vm4530, %v4532, %v4528
        %v4534 = vmul.f32 1.0, %v4533
        %v4535 = vrcp.pop %v4443
        %v4536 = vmul.f32 %v4443, %v4535
        %v4537 = vsub.f32 1.0, %v4536
        %v4538 = vmul.f32 %v4535, %v4537
        %v4539 = vadd.f32 %v4535, %v4538
        %vm4540 = vweird.f32 %v4443
        %vm4541 = vweird.f32 %v4535
        %vm4542 = vmor %vm4540, %vm4541
        %v4543 = vsel %vm4542, %v4535, %v4539
        %v4544 = vand.u32 2147483647, %v4443
        %vm4545 = vcmp.eq.f32.partialorder %v4544, 8.507059e+37
        %v4546 = vand.u32 %v4443, 2147483648
        %v4547 = vor.u32 1.1754944e-38, %v4546
        %v4548 = vsel %vm4545, %v4547, %v4543
        %v4549 = vmul.f32 1.0, %v4548
        %v4550 = vrcp.pop %v4444
        %v4551 = vmul.f32 %v4444, %v4550
        %v4552 = vsub.f32 1.0, %v4551
        %v4553 = vmul.f32 %v4550, %v4552
        %v4554 = vadd.f32 %v4550, %v4553
        %vm4555 = vweird.f32 %v4444
        %vm4556 = vweird.f32 %v4550
        %vm4557 = vmor %vm4555, %vm4556
        %v4558 = vsel %vm4557, %v4550, %v4554
        %v4559 = vand.u32 2147483647, %v4444
        %vm4560 = vcmp.eq.f32.partialorder %v4559, 8.507059e+37
        %v4561 = vand.u32 %v4444, 2147483648
        %v4562 = vor.u32 1.1754944e-38, %v4561
        %v4563 = vsel %vm4560, %v4562, %v4558
        %v4564 = vmul.f32 1.0, %v4563
        %v4573 = vrot.slane %v4405, 1
        %v4574 = vrot.slane %v4406, 1
        %v4575 = vrot.slane %v4407, 1
        %v4576 = vrot.slane %v4408, 1
        %v4577 = vrot.slane %v4409, 1
        %v4578 = vrot.slane %v4410, 1
        %v4579 = vrot.slane %v4411, 1
        %v4580 = vrot.slane %v4412, 1
        %v4589 = vxor.u32 %v4573, 2147483648
        %v4590 = vxor.u32 %v4574, 2147483648
        %v4591 = vxor.u32 %v4575, 2147483648
        %v4592 = vxor.u32 %v4576, 2147483648
        %v4593 = vxor.u32 %v4577, 2147483648
        %v4594 = vxor.u32 %v4578, 2147483648
        %v4595 = vxor.u32 %v4579, 2147483648
        %v4596 = vxor.u32 %v4580, 2147483648
        %v4597 = vmul.f32 %v4589, 1.442695
        %v4598 = vpow.pop %v4597
        %v4599 = vmul.f32 %v4590, 1.442695
        %v4600 = vpow.pop %v4599
        %v4601 = vmul.f32 %v4591, 1.442695
        %v4602 = vpow.pop %v4601
        %v4603 = vmul.f32 %v4592, 1.442695
        %v4604 = vpow.pop %v4603
        %v4605 = vmul.f32 %v4593, 1.442695
        %v4606 = vpow.pop %v4605
        %v4607 = vmul.f32 %v4594, 1.442695
        %v4608 = vpow.pop %v4607
        %v4609 = vmul.f32 %v4595, 1.442695
        %v4610 = vpow.pop %v4609
        %v4611 = vmul.f32 %v4596, 1.442695
        %v4612 = vpow.pop %v4611
        %v4613 = vadd.f32 %v4598, 1.0
        %v4614 = vadd.f32 %v4600, 1.0
        %v4615 = vadd.f32 %v4602, 1.0
        %v4616 = vadd.f32 %v4604, 1.0
        %v4617 = vadd.f32 %v4606, 1.0
        %v4618 = vadd.f32 %v4608, 1.0
        %v4619 = vadd.f32 %v4610, 1.0
        %v4620 = vadd.f32 %v4612, 1.0
        %v4621 = vrcp.pop %v4613
        %v4622 = vmul.f32 %v4613, %v4621
        %v4623 = vsub.f32 1.0, %v4622
        %v4624 = vmul.f32 %v4621, %v4623
        %v4625 = vadd.f32 %v4621, %v4624
        %vm4626 = vweird.f32 %v4613
        %vm4627 = vweird.f32 %v4621
        %vm4628 = vmor %vm4626, %vm4627
        %v4629 = vsel %vm4628, %v4621, %v4625
        %v4630 = vand.u32 2147483647, %v4613
        %vm4631 = vcmp.eq.f32.partialorder %v4630, 8.507059e+37
        %v4632 = vand.u32 %v4613, 2147483648
        %v4633 = vor.u32 1.1754944e-38, %v4632
        %v4634 = vsel %vm4631, %v4633, %v4629
        %v4635 = vmul.f32 1.0, %v4634
        %v4636 = vrcp.pop %v4614
        %v4637 = vmul.f32 %v4614, %v4636
        %v4638 = vsub.f32 1.0, %v4637
        %v4639 = vmul.f32 %v4636, %v4638
        %v4640 = vadd.f32 %v4636, %v4639
        %vm4641 = vweird.f32 %v4614
        %vm4642 = vweird.f32 %v4636
        %vm4643 = vmor %vm4641, %vm4642
        %v4644 = vsel %vm4643, %v4636, %v4640
        %v4645 = vand.u32 2147483647, %v4614
        %vm4646 = vcmp.eq.f32.partialorder %v4645, 8.507059e+37
        %v4647 = vand.u32 %v4614, 2147483648
        %v4648 = vor.u32 1.1754944e-38, %v4647
        %v4649 = vsel %vm4646, %v4648, %v4644
        %v4650 = vmul.f32 1.0, %v4649
        %v4651 = vrcp.pop %v4615
        %v4652 = vmul.f32 %v4615, %v4651
        %v4653 = vsub.f32 1.0, %v4652
        %v4654 = vmul.f32 %v4651, %v4653
        %v4655 = vadd.f32 %v4651, %v4654
        %vm4656 = vweird.f32 %v4615
        %vm4657 = vweird.f32 %v4651
        %vm4658 = vmor %vm4656, %vm4657
        %v4659 = vsel %vm4658, %v4651, %v4655
        %v4660 = vand.u32 2147483647, %v4615
        %vm4661 = vcmp.eq.f32.partialorder %v4660, 8.507059e+37
        %v4662 = vand.u32 %v4615, 2147483648
        %v4663 = vor.u32 1.1754944e-38, %v4662
        %v4664 = vsel %vm4661, %v4663, %v4659
        %v4665 = vmul.f32 1.0, %v4664
        %v4666 = vrcp.pop %v4616
        %v4667 = vmul.f32 %v4616, %v4666
        %v4668 = vsub.f32 1.0, %v4667
        %v4669 = vmul.f32 %v4666, %v4668
        %v4670 = vadd.f32 %v4666, %v4669
        %vm4671 = vweird.f32 %v4616
        %vm4672 = vweird.f32 %v4666
        %vm4673 = vmor %vm4671, %vm4672
        %v4674 = vsel %vm4673, %v4666, %v4670
        %v4675 = vand.u32 2147483647, %v4616
        %vm4676 = vcmp.eq.f32.partialorder %v4675, 8.507059e+37
        %v4677 = vand.u32 %v4616, 2147483648
        %v4678 = vor.u32 1.1754944e-38, %v4677
        %v4679 = vsel %vm4676, %v4678, %v4674
        %v4680 = vmul.f32 1.0, %v4679
        %v4681 = vrcp.pop %v4617
        %v4682 = vmul.f32 %v4617, %v4681
        %v4683 = vsub.f32 1.0, %v4682
        %v4684 = vmul.f32 %v4681, %v4683
        %v4685 = vadd.f32 %v4681, %v4684
        %vm4686 = vweird.f32 %v4617
        %vm4687 = vweird.f32 %v4681
        %vm4688 = vmor %vm4686, %vm4687
        %v4689 = vsel %vm4688, %v4681, %v4685
        %v4690 = vand.u32 2147483647, %v4617
        %vm4691 = vcmp.eq.f32.partialorder %v4690, 8.507059e+37
        %v4692 = vand.u32 %v4617, 2147483648
        %v4693 = vor.u32 1.1754944e-38, %v4692
        %v4694 = vsel %vm4691, %v4693, %v4689
        %v4695 = vmul.f32 1.0, %v4694
        %v4696 = vrcp.pop %v4618
        %v4697 = vmul.f32 %v4618, %v4696
        %v4698 = vsub.f32 1.0, %v4697
        %v4699 = vmul.f32 %v4696, %v4698
        %v4700 = vadd.f32 %v4696, %v4699
        %vm4701 = vweird.f32 %v4618
        %vm4702 = vweird.f32 %v4696
        %vm4703 = vmor %vm4701, %vm4702
        %v4704 = vsel %vm4703, %v4696, %v4700
        %v4705 = vand.u32 2147483647, %v4618
        %vm4706 = vcmp.eq.f32.partialorder %v4705, 8.507059e+37
        %v4707 = vand.u32 %v4618, 2147483648
        %v4708 = vor.u32 1.1754944e-38, %v4707
        %v4709 = vsel %vm4706, %v4708, %v4704
        %v4710 = vmul.f32 1.0, %v4709
        %v4711 = vrcp.pop %v4619
        %v4712 = vmul.f32 %v4619, %v4711
        %v4713 = vsub.f32 1.0, %v4712
        %v4714 = vmul.f32 %v4711, %v4713
        %v4715 = vadd.f32 %v4711, %v4714
        %vm4716 = vweird.f32 %v4619
        %vm4717 = vweird.f32 %v4711
        %vm4718 = vmor %vm4716, %vm4717
        %v4719 = vsel %vm4718, %v4711, %v4715
        %v4720 = vand.u32 2147483647, %v4619
        %vm4721 = vcmp.eq.f32.partialorder %v4720, 8.507059e+37
        %v4722 = vand.u32 %v4619, 2147483648
        %v4723 = vor.u32 1.1754944e-38, %v4722
        %v4724 = vsel %vm4721, %v4723, %v4719
        %v4725 = vmul.f32 1.0, %v4724
        %v4726 = vrcp.pop %v4620
        %v4727 = vmul.f32 %v4620, %v4726
        %v4728 = vsub.f32 1.0, %v4727
        %v4729 = vmul.f32 %v4726, %v4728
        %v4730 = vadd.f32 %v4726, %v4729
        %vm4731 = vweird.f32 %v4620
        %vm4732 = vweird.f32 %v4726
        %vm4733 = vmor %vm4731, %vm4732
        %v4734 = vsel %vm4733, %v4726, %v4730
        %v4735 = vand.u32 2147483647, %v4620
        %vm4736 = vcmp.eq.f32.partialorder %v4735, 8.507059e+37
        %v4737 = vand.u32 %v4620, 2147483648
        %v4738 = vor.u32 1.1754944e-38, %v4737
        %v4739 = vsel %vm4736, %v4738, %v4734
        %v4740 = vmul.f32 1.0, %v4739
        %v4741 = vrot.slane %v4405, 2
        %v4742 = vrot.slane %v4406, 2
        %v4743 = vrot.slane %v4407, 2
        %v4744 = vrot.slane %v4408, 2
        %v4745 = vrot.slane %v4409, 2
        %v4746 = vrot.slane %v4410, 2
        %v4747 = vrot.slane %v4411, 2
        %v4748 = vrot.slane %v4412, 2
        %v4757 = vtanh.pop %v4741
        %v4758 = vtanh.pop %v4742
        %v4759 = vtanh.pop %v4743
        %v4760 = vtanh.pop %v4744
        %v4761 = vtanh.pop %v4745
        %v4762 = vtanh.pop %v4746
        %v4763 = vtanh.pop %v4747
        %v4764 = vtanh.pop %v4748
        %v4765 = vrot.slane %v4405, 3
        %v4766 = vrot.slane %v4406, 3
        %v4767 = vrot.slane %v4407, 3
        %v4768 = vrot.slane %v4408, 3
        %v4769 = vrot.slane %v4409, 3
        %v4770 = vrot.slane %v4410, 3
        %v4771 = vrot.slane %v4411, 3
        %v4772 = vrot.slane %v4412, 3
        %v4781 = vxor.u32 %v4765, 2147483648
        %v4782 = vxor.u32 %v4766, 2147483648
        %v4783 = vxor.u32 %v4767, 2147483648
        %v4784 = vxor.u32 %v4768, 2147483648
        %v4785 = vxor.u32 %v4769, 2147483648
        %v4786 = vxor.u32 %v4770, 2147483648
        %v4787 = vxor.u32 %v4771, 2147483648
        %v4788 = vxor.u32 %v4772, 2147483648
        %v4789 = vmul.f32 %v4781, 1.442695
        %v4790 = vpow.pop %v4789
        %v4791 = vmul.f32 %v4782, 1.442695
        %v4792 = vpow.pop %v4791
        %v4793 = vmul.f32 %v4783, 1.442695
        %v4794 = vpow.pop %v4793
        %v4795 = vmul.f32 %v4784, 1.442695
        %v4796 = vpow.pop %v4795
        %v4797 = vmul.f32 %v4785, 1.442695
        %v4798 = vpow.pop %v4797
        %v4799 = vmul.f32 %v4786, 1.442695
        %v4800 = vpow.pop %v4799
        %v4801 = vmul.f32 %v4787, 1.442695
        %v4802 = vpow.pop %v4801
        %v4803 = vmul.f32 %v4788, 1.442695
        %v4804 = vpow.pop %v4803
        %v4805 = vadd.f32 %v4790, 1.0
        %v4806 = vadd.f32 %v4792, 1.0
        %v4807 = vadd.f32 %v4794, 1.0
        %v4808 = vadd.f32 %v4796, 1.0
        %v4809 = vadd.f32 %v4798, 1.0
        %v4810 = vadd.f32 %v4800, 1.0
        %v4811 = vadd.f32 %v4802, 1.0
        %v4812 = vadd.f32 %v4804, 1.0
        %v4813 = vrcp.pop %v4805
        %v4814 = vmul.f32 %v4805, %v4813
        %v4815 = vsub.f32 1.0, %v4814
        %v4816 = vmul.f32 %v4813, %v4815
        %v4817 = vadd.f32 %v4813, %v4816
        %vm4818 = vweird.f32 %v4805
        %vm4819 = vweird.f32 %v4813
        %vm4820 = vmor %vm4818, %vm4819
        %v4821 = vsel %vm4820, %v4813, %v4817
        %v4822 = vand.u32 2147483647, %v4805
        %vm4823 = vcmp.eq.f32.partialorder %v4822, 8.507059e+37
        %v4824 = vand.u32 %v4805, 2147483648
        %v4825 = vor.u32 1.1754944e-38, %v4824
        %v4826 = vsel %vm4823, %v4825, %v4821
        %v4827 = vmul.f32 1.0, %v4826
        %v4828 = vrcp.pop %v4806
        %v4829 = vmul.f32 %v4806, %v4828
        %v4830 = vsub.f32 1.0, %v4829
        %v4831 = vmul.f32 %v4828, %v4830
        %v4832 = vadd.f32 %v4828, %v4831
        %vm4833 = vweird.f32 %v4806
        %vm4834 = vweird.f32 %v4828
        %vm4835 = vmor %vm4833, %vm4834
        %v4836 = vsel %vm4835, %v4828, %v4832
        %v4837 = vand.u32 2147483647, %v4806
        %vm4838 = vcmp.eq.f32.partialorder %v4837, 8.507059e+37
        %v4839 = vand.u32 %v4806, 2147483648
        %v4840 = vor.u32 1.1754944e-38, %v4839
        %v4841 = vsel %vm4838, %v4840, %v4836
        %v4842 = vmul.f32 1.0, %v4841
        %v4843 = vrcp.pop %v4807
        %v4844 = vmul.f32 %v4807, %v4843
        %v4845 = vsub.f32 1.0, %v4844
        %v4846 = vmul.f32 %v4843, %v4845
        %v4847 = vadd.f32 %v4843, %v4846
        %vm4848 = vweird.f32 %v4807
        %vm4849 = vweird.f32 %v4843
        %vm4850 = vmor %vm4848, %vm4849
        %v4851 = vsel %vm4850, %v4843, %v4847
        %v4852 = vand.u32 2147483647, %v4807
        %vm4853 = vcmp.eq.f32.partialorder %v4852, 8.507059e+37
        %v4854 = vand.u32 %v4807, 2147483648
        %v4855 = vor.u32 1.1754944e-38, %v4854
        %v4856 = vsel %vm4853, %v4855, %v4851
        %v4857 = vmul.f32 1.0, %v4856
        %v4858 = vrcp.pop %v4808
        %v4859 = vmul.f32 %v4808, %v4858
        %v4860 = vsub.f32 1.0, %v4859
        %v4861 = vmul.f32 %v4858, %v4860
        %v4862 = vadd.f32 %v4858, %v4861
        %vm4863 = vweird.f32 %v4808
        %vm4864 = vweird.f32 %v4858
        %vm4865 = vmor %vm4863, %vm4864
        %v4866 = vsel %vm4865, %v4858, %v4862
        %v4867 = vand.u32 2147483647, %v4808
        %vm4868 = vcmp.eq.f32.partialorder %v4867, 8.507059e+37
        %v4869 = vand.u32 %v4808, 2147483648
        %v4870 = vor.u32 1.1754944e-38, %v4869
        %v4871 = vsel %vm4868, %v4870, %v4866
        %v4872 = vmul.f32 1.0, %v4871
        %v4873 = vrcp.pop %v4809
        %v4874 = vmul.f32 %v4809, %v4873
        %v4875 = vsub.f32 1.0, %v4874
        %v4876 = vmul.f32 %v4873, %v4875
        %v4877 = vadd.f32 %v4873, %v4876
        %vm4878 = vweird.f32 %v4809
        %vm4879 = vweird.f32 %v4873
        %vm4880 = vmor %vm4878, %vm4879
        %v4881 = vsel %vm4880, %v4873, %v4877
        %v4882 = vand.u32 2147483647, %v4809
        %vm4883 = vcmp.eq.f32.partialorder %v4882, 8.507059e+37
        %v4884 = vand.u32 %v4809, 2147483648
        %v4885 = vor.u32 1.1754944e-38, %v4884
        %v4886 = vsel %vm4883, %v4885, %v4881
        %v4887 = vmul.f32 1.0, %v4886
        %v4888 = vrcp.pop %v4810
        %v4889 = vmul.f32 %v4810, %v4888
        %v4890 = vsub.f32 1.0, %v4889
        %v4891 = vmul.f32 %v4888, %v4890
        %v4892 = vadd.f32 %v4888, %v4891
        %vm4893 = vweird.f32 %v4810
        %vm4894 = vweird.f32 %v4888
        %vm4895 = vmor %vm4893, %vm4894
        %v4896 = vsel %vm4895, %v4888, %v4892
        %v4897 = vand.u32 2147483647, %v4810
        %vm4898 = vcmp.eq.f32.partialorder %v4897, 8.507059e+37
        %v4899 = vand.u32 %v4810, 2147483648
        %v4900 = vor.u32 1.1754944e-38, %v4899
        %v4901 = vsel %vm4898, %v4900, %v4896
        %v4902 = vmul.f32 1.0, %v4901
        %v4903 = vrcp.pop %v4811
        %v4904 = vmul.f32 %v4811, %v4903
        %v4905 = vsub.f32 1.0, %v4904
        %v4906 = vmul.f32 %v4903, %v4905
        %v4907 = vadd.f32 %v4903, %v4906
        %vm4908 = vweird.f32 %v4811
        %vm4909 = vweird.f32 %v4903
        %vm4910 = vmor %vm4908, %vm4909
        %v4911 = vsel %vm4910, %v4903, %v4907
        %v4912 = vand.u32 2147483647, %v4811
        %vm4913 = vcmp.eq.f32.partialorder %v4912, 8.507059e+37
        %v4914 = vand.u32 %v4811, 2147483648
        %v4915 = vor.u32 1.1754944e-38, %v4914
        %v4916 = vsel %vm4913, %v4915, %v4911
        %v4917 = vmul.f32 1.0, %v4916
        %v4918 = vrcp.pop %v4812
        %v4919 = vmul.f32 %v4812, %v4918
        %v4920 = vsub.f32 1.0, %v4919
        %v4921 = vmul.f32 %v4918, %v4920
        %v4922 = vadd.f32 %v4918, %v4921
        %vm4923 = vweird.f32 %v4812
        %vm4924 = vweird.f32 %v4918
        %vm4925 = vmor %vm4923, %vm4924
        %v4926 = vsel %vm4925, %v4918, %v4922
        %v4927 = vand.u32 2147483647, %v4812
        %vm4928 = vcmp.eq.f32.partialorder %v4927, 8.507059e+37
        %v4929 = vand.u32 %v4812, 2147483648
        %v4930 = vor.u32 1.1754944e-38, %v4929
        %v4931 = vsel %vm4928, %v4930, %v4926
        %v4932 = vmul.f32 1.0, %v4931
        %v4934 = vrot.slane %v4262, 1
        %v4935 = vrot.slane %v4262, 2
        %v4936 = vrot.slane %v4262, 3
        %v4937 = vrot.slane %v4262, 4
        %v4938 = vrot.slane %v4262, 5
        %v4939 = vrot.slane %v4262, 6
        %v4940 = vrot.slane %v4262, 7
        %v4948 = vmul.f32 %v4635, %v4262
        %v4949 = vmul.f32 %v4650, %v4934
        %v4950 = vmul.f32 %v4665, %v4935
        %v4951 = vmul.f32 %v4680, %v4936
        %v4952 = vmul.f32 %v4695, %v4937
        %v4953 = vmul.f32 %v4710, %v4938
        %v4954 = vmul.f32 %v4725, %v4939
        %v4955 = vmul.f32 %v4740, %v4940
        %v4956 = vmul.f32 %v4459, %v4757
        %v4957 = vmul.f32 %v4474, %v4758
        %v4958 = vmul.f32 %v4489, %v4759
        %v4959 = vmul.f32 %v4504, %v4760
        %v4960 = vmul.f32 %v4519, %v4761
        %v4961 = vmul.f32 %v4534, %v4762
        %v4962 = vmul.f32 %v4549, %v4763
        %v4963 = vmul.f32 %v4564, %v4764
        %v4964 = vadd.f32 %v4948, %v4956
        %v4965 = vadd.f32 %v4949, %v4957
        %v4966 = vadd.f32 %v4950, %v4958
        %v4967 = vadd.f32 %v4951, %v4959
        %v4968 = vadd.f32 %v4952, %v4960
        %v4969 = vadd.f32 %v4953, %v4961
        %v4970 = vadd.f32 %v4954, %v4962
        %v4971 = vadd.f32 %v4955, %v4963
        %v4972 = vtanh.pop %v4964
        %v4973 = vtanh.pop %v4965
        %v4974 = vtanh.pop %v4966
        %v4975 = vtanh.pop %v4967
        %v4976 = vtanh.pop %v4968
        %v4977 = vtanh.pop %v4969
        %v4978 = vtanh.pop %v4970
        %v4979 = vtanh.pop %v4971
        %v4980 = vmul.f32 %v4827, %v4972
        %v4981 = vmul.f32 %v4842, %v4973
        %v4982 = vmul.f32 %v4857, %v4974
        %v4983 = vmul.f32 %v4872, %v4975
        %v4984 = vmul.f32 %v4887, %v4976
        %v4985 = vmul.f32 %v4902, %v4977
        %v4986 = vmul.f32 %v4917, %v4978
        %v4987 = vmul.f32 %v4932, %v4979
        %4996 = vst [vmem:[#allocation1] ss:$9 sm:$0xff] %v4964
        %s4997 = scalar_lea.vmem [#allocation1], 1
        %4998 = vst [vmem:[%s4997] ss:$9 sm:$0xff] %v4965
        %s4999 = scalar_lea.vmem [#allocation1], 2
        %5000 = vst [vmem:[%s4999] ss:$9 sm:$0xff] %v4966
        %s5001 = scalar_lea.vmem [#allocation1], 3
        %5002 = vst [vmem:[%s5001] ss:$9 sm:$0xff] %v4967
        %s5003 = scalar_lea.vmem [#allocation1], 4
        %5004 = vst [vmem:[%s5003] ss:$9 sm:$0xff] %v4968
        %s5005 = scalar_lea.vmem [#allocation1], 5
        %5006 = vst [vmem:[%s5005] ss:$9 sm:$0xff] %v4969
        %s5007 = scalar_lea.vmem [#allocation1], 6
        %5008 = vst [vmem:[%s5007] ss:$9 sm:$0xff] %v4970
        %s5009 = scalar_lea.vmem [#allocation1], 7
        %5010 = vst [vmem:[%s5009] ss:$9 sm:$0xff] %v4971
        %v5011 = vld [vmem:[#allocation1] sm:$0xff]
        %5013 = vst [vmem:[#allocation3] sm:$0xff] %v5011
        %5022 = vst [vmem:[#allocation1] ss:$9 sm:$0xff] %v4980
        %s5023 = scalar_lea.vmem [#allocation1], 1
        %5024 = vst [vmem:[%s5023] ss:$9 sm:$0xff] %v4981
        %s5025 = scalar_lea.vmem [#allocation1], 2
        %5026 = vst [vmem:[%s5025] ss:$9 sm:$0xff] %v4982
        %s5027 = scalar_lea.vmem [#allocation1], 3
        %5028 = vst [vmem:[%s5027] ss:$9 sm:$0xff] %v4983
        %s5029 = scalar_lea.vmem [#allocation1], 4
        %5030 = vst [vmem:[%s5029] ss:$9 sm:$0xff] %v4984
        %s5031 = scalar_lea.vmem [#allocation1], 5
        %5032 = vst [vmem:[%s5031] ss:$9 sm:$0xff] %v4985
        %s5033 = scalar_lea.vmem [#allocation1], 6
        %5034 = vst [vmem:[%s5033] ss:$9 sm:$0xff] %v4986
        %s5035 = scalar_lea.vmem [#allocation1], 7
        %5036 = vst [vmem:[%s5035] ss:$9 sm:$0xff] %v4987
        %v5037 = vld [vmem:[#allocation1] sm:$0xff]
        %5039 = vst [vmem:[#allocation2] sm:$0xff] %v5037
        %5040 = vst [vmem:[%s238 + $0x5] sm:$0x1] %v4980
        %5041 = vst [vmem:[%s238 + $0xd] sm:$0x1] %v4981
        %5042 = vst [vmem:[%s238 + $0x15] sm:$0x1] %v4982
        %5043 = vst [vmem:[%s238 + $0x1d] sm:$0x1] %v4983
        %5044 = vst [vmem:[%s238 + $0x25] sm:$0x1] %v4984
        %5045 = vst [vmem:[%s238 + $0x2d] sm:$0x1] %v4985
        %5046 = vst [vmem:[%s238 + $0x35] sm:$0x1] %v4986
        %5047 = vst [vmem:[%s238 + $0x3d] sm:$0x1] %v4987
        %v5048 = vld [vmem:[#allocation2] sm:$0xff]
        %v5049 = vld [vmem:[#allocation3] sm:$0xff]
        %s5050 = scalar_lea.vmem %s221, 6 [#allocation4]
        %v5051 = vld [vmem:[%s5050] ss:$8 sm:$0xf]
        %s5052 = scalar_lea.vmem %s221, 38 [#allocation4]
        %v5053 = vld [vmem:[%s5052] ss:$8 sm:$0xf]
        %s5054 = scalar_lea.vmem %s221, 70 [#allocation4]
        %v5055 = vld [vmem:[%s5054] ss:$8 sm:$0xf]
        %s5056 = scalar_lea.vmem %s221, 102 [#allocation4]
        %v5057 = vld [vmem:[%s5056] ss:$8 sm:$0xf]
        %s5058 = scalar_lea.vmem %s221, 134 [#allocation4]
        %v5059 = vld [vmem:[%s5058] ss:$8 sm:$0xf]
        %s5060 = scalar_lea.vmem %s221, 166 [#allocation4]
        %v5061 = vld [vmem:[%s5060] ss:$8 sm:$0xf]
        %s5062 = scalar_lea.vmem %s221, 198 [#allocation4]
        %v5063 = vld [vmem:[%s5062] ss:$8 sm:$0xf]
        %s5064 = scalar_lea.vmem %s221, 230 [#allocation4]
        %v5065 = vld [vmem:[%s5064] ss:$8 sm:$0xf]
        %5066 = vmatpush.msra.mxu0 %v307
        %5067 = vmatpush.msra.mxu0 %v303
        %5068 = vmatpush.msra.mxu0 %v299
        %5069 = vmatpush.msra.mxu0 %v295
        %5070 = vmatpush.msra.mxu0 %v291
        %5071 = vmatpush.msra.mxu0 %v287
        %5072 = vmatpush.msra.mxu0 %v283
        %5073 = vmatpush.msra.mxu0 %v279
        %5074 = vmatpush.msra.mxu0 %v275
        %5075 = vmatpush.msra.mxu0 %v271
        %5076 = vmatpush.msra.mxu0 %v267
        %5077 = vmatpush.msra.mxu0 %v263
        %5078 = vmatpush.msra.mxu0 %v259
        %5079 = vmatpush.msra.mxu0 %v255
        %5080 = vmatpush.msra.mxu0 %v251
        %5081 = vmatpush.msra.mxu0 %v247
        %5082 = vmatmul.f32.gmra.mxu0 %v5048
        %v5083 = vpop.f32.mrf.mxu0
        %v5084 = vadd.f32 0.0, %v5083
        %5085 = vdwg.mxu0
        %5086 = vmatpush.msra.mxu0 %v308
        %5087 = vmatpush.msra.mxu0 %v304
        %5088 = vmatpush.msra.mxu0 %v300
        %5089 = vmatpush.msra.mxu0 %v296
        %5090 = vmatpush.msra.mxu0 %v292
        %5091 = vmatpush.msra.mxu0 %v288
        %5092 = vmatpush.msra.mxu0 %v284
        %5093 = vmatpush.msra.mxu0 %v280
        %5094 = vmatpush.msra.mxu0 %v276
        %5095 = vmatpush.msra.mxu0 %v272
        %5096 = vmatpush.msra.mxu0 %v268
        %5097 = vmatpush.msra.mxu0 %v264
        %5098 = vmatpush.msra.mxu0 %v260
        %5099 = vmatpush.msra.mxu0 %v256
        %5100 = vmatpush.msra.mxu0 %v252
        %5101 = vmatpush.msra.mxu0 %v248
        %5102 = vmatmul.f32.gmra.mxu0 %v5048
        %v5103 = vpop.f32.mrf.mxu0
        %v5104 = vadd.f32 0.0, %v5103
        %5105 = vdwg.mxu0
        %5106 = vmatpush.msra.mxu0 %v309
        %5107 = vmatpush.msra.mxu0 %v305
        %5108 = vmatpush.msra.mxu0 %v301
        %5109 = vmatpush.msra.mxu0 %v297
        %5110 = vmatpush.msra.mxu0 %v293
        %5111 = vmatpush.msra.mxu0 %v289
        %5112 = vmatpush.msra.mxu0 %v285
        %5113 = vmatpush.msra.mxu0 %v281
        %5114 = vmatpush.msra.mxu0 %v277
        %5115 = vmatpush.msra.mxu0 %v273
        %5116 = vmatpush.msra.mxu0 %v269
        %5117 = vmatpush.msra.mxu0 %v265
        %5118 = vmatpush.msra.mxu0 %v261
        %5119 = vmatpush.msra.mxu0 %v257
        %5120 = vmatpush.msra.mxu0 %v253
        %5121 = vmatpush.msra.mxu0 %v249
        %5122 = vmatmul.f32.gmra.mxu0 %v5048
        %v5123 = vpop.f32.mrf.mxu0
        %v5124 = vadd.f32 0.0, %v5123
        %5125 = vdwg.mxu0
        %5126 = vmatpush.msra.mxu0 %v310
        %5127 = vmatpush.msra.mxu0 %v306
        %5128 = vmatpush.msra.mxu0 %v302
        %5129 = vmatpush.msra.mxu0 %v298
        %5130 = vmatpush.msra.mxu0 %v294
        %5131 = vmatpush.msra.mxu0 %v290
        %5132 = vmatpush.msra.mxu0 %v286
        %5133 = vmatpush.msra.mxu0 %v282
        %5134 = vmatpush.msra.mxu0 %v278
        %5135 = vmatpush.msra.mxu0 %v274
        %5136 = vmatpush.msra.mxu0 %v270
        %5137 = vmatpush.msra.mxu0 %v266
        %5138 = vmatpush.msra.mxu0 %v262
        %5139 = vmatpush.msra.mxu0 %v258
        %5140 = vmatpush.msra.mxu0 %v254
        %5141 = vmatpush.msra.mxu0 %v250
        %5142 = vmatmul.f32.gmra.mxu0 %v5048
        %v5143 = vpop.f32.mrf.mxu0
        %v5144 = vadd.f32 0.0, %v5143
        %5145 = vdwg.mxu0
        %v5150 = vrot.slane %v5104, 7
        %v5151 = vrot.slane %v5124, 6
        %v5152 = vrot.slane %v5144, 5
        %v5153 = vsel %vm415, %v5084, %v5150
        %v5154 = vsel %vm417, %v5151, %v5152
        %v5155 = vsel %vm419, %v5153, %v5154
        %v5156 = vsel %vm421, %v5084, %v5150
        %v5157 = vsel %vm423, %v5151, %v5152
        %v5158 = vsel %vm425, %v5156, %v5157
        %v5159 = vrot.slane %v5158, 1
        %v5160 = vsel %vm417, %v5084, %v5150
        %v5161 = vsel %vm429, %v5151, %v5152
        %v5162 = vsel %vm431, %v5160, %v5161
        %v5163 = vrot.slane %v5162, 2
        %v5164 = vsel %vm423, %v5084, %v5150
        %v5165 = vsel %vm435, %v5151, %v5152
        %v5166 = vsel %vm437, %v5164, %v5165
        %v5167 = vrot.slane %v5166, 3
        %v5168 = vsel %vm429, %v5084, %v5150
        %v5169 = vsel %vm441, %v5151, %v5152
        %v5170 = vsel %vm443, %v5168, %v5169
        %v5171 = vrot.slane %v5170, 4
        %v5172 = vsel %vm435, %v5084, %v5150
        %v5173 = vsel %vm447, %v5152, %v5151
        %v5174 = vsel %vm449, %v5172, %v5173
        %v5175 = vrot.slane %v5174, 5
        %v5176 = vsel %vm441, %v5084, %v5150
        %v5177 = vsel %vm415, %v5151, %v5152
        %v5178 = vsel %vm454, %v5177, %v5176
        %v5179 = vrot.slane %v5178, 6
        %v5180 = vsel %vm447, %v5150, %v5084
        %v5181 = vsel %vm421, %v5151, %v5152
        %v5182 = vsel %vm459, %v5181, %v5180
        %v5183 = vrot.slane %v5182, 7
        %v5192 = vadd.f32 %v5051, %v5155
        %v5193 = vadd.f32 %v5053, %v5159
        %v5194 = vadd.f32 %v5055, %v5163
        %v5195 = vadd.f32 %v5057, %v5167
        %v5196 = vadd.f32 %v5059, %v5171
        %v5197 = vadd.f32 %v5061, %v5175
        %v5198 = vadd.f32 %v5063, %v5179
        %v5199 = vadd.f32 %v5065, %v5183
        %v5200 = vxor.u32 %v5192, 2147483648
        %v5201 = vxor.u32 %v5193, 2147483648
        %v5202 = vxor.u32 %v5194, 2147483648
        %v5203 = vxor.u32 %v5195, 2147483648
        %v5204 = vxor.u32 %v5196, 2147483648
        %v5205 = vxor.u32 %v5197, 2147483648
        %v5206 = vxor.u32 %v5198, 2147483648
        %v5207 = vxor.u32 %v5199, 2147483648
        %v5208 = vmul.f32 %v5200, 1.442695
        %v5209 = vpow.pop %v5208
        %v5210 = vmul.f32 %v5201, 1.442695
        %v5211 = vpow.pop %v5210
        %v5212 = vmul.f32 %v5202, 1.442695
        %v5213 = vpow.pop %v5212
        %v5214 = vmul.f32 %v5203, 1.442695
        %v5215 = vpow.pop %v5214
        %v5216 = vmul.f32 %v5204, 1.442695
        %v5217 = vpow.pop %v5216
        %v5218 = vmul.f32 %v5205, 1.442695
        %v5219 = vpow.pop %v5218
        %v5220 = vmul.f32 %v5206, 1.442695
        %v5221 = vpow.pop %v5220
        %v5222 = vmul.f32 %v5207, 1.442695
        %v5223 = vpow.pop %v5222
        %v5224 = vadd.f32 %v5209, 1.0
        %v5225 = vadd.f32 %v5211, 1.0
        %v5226 = vadd.f32 %v5213, 1.0
        %v5227 = vadd.f32 %v5215, 1.0
        %v5228 = vadd.f32 %v5217, 1.0
        %v5229 = vadd.f32 %v5219, 1.0
        %v5230 = vadd.f32 %v5221, 1.0
        %v5231 = vadd.f32 %v5223, 1.0
        %v5232 = vrcp.pop %v5224
        %v5233 = vmul.f32 %v5224, %v5232
        %v5234 = vsub.f32 1.0, %v5233
        %v5235 = vmul.f32 %v5232, %v5234
        %v5236 = vadd.f32 %v5232, %v5235
        %vm5237 = vweird.f32 %v5224
        %vm5238 = vweird.f32 %v5232
        %vm5239 = vmor %vm5237, %vm5238
        %v5240 = vsel %vm5239, %v5232, %v5236
        %v5241 = vand.u32 2147483647, %v5224
        %vm5242 = vcmp.eq.f32.partialorder %v5241, 8.507059e+37
        %v5243 = vand.u32 %v5224, 2147483648
        %v5244 = vor.u32 1.1754944e-38, %v5243
        %v5245 = vsel %vm5242, %v5244, %v5240
        %v5246 = vmul.f32 1.0, %v5245
        %v5247 = vrcp.pop %v5225
        %v5248 = vmul.f32 %v5225, %v5247
        %v5249 = vsub.f32 1.0, %v5248
        %v5250 = vmul.f32 %v5247, %v5249
        %v5251 = vadd.f32 %v5247, %v5250
        %vm5252 = vweird.f32 %v5225
        %vm5253 = vweird.f32 %v5247
        %vm5254 = vmor %vm5252, %vm5253
        %v5255 = vsel %vm5254, %v5247, %v5251
        %v5256 = vand.u32 2147483647, %v5225
        %vm5257 = vcmp.eq.f32.partialorder %v5256, 8.507059e+37
        %v5258 = vand.u32 %v5225, 2147483648
        %v5259 = vor.u32 1.1754944e-38, %v5258
        %v5260 = vsel %vm5257, %v5259, %v5255
        %v5261 = vmul.f32 1.0, %v5260
        %v5262 = vrcp.pop %v5226
        %v5263 = vmul.f32 %v5226, %v5262
        %v5264 = vsub.f32 1.0, %v5263
        %v5265 = vmul.f32 %v5262, %v5264
        %v5266 = vadd.f32 %v5262, %v5265
        %vm5267 = vweird.f32 %v5226
        %vm5268 = vweird.f32 %v5262
        %vm5269 = vmor %vm5267, %vm5268
        %v5270 = vsel %vm5269, %v5262, %v5266
        %v5271 = vand.u32 2147483647, %v5226
        %vm5272 = vcmp.eq.f32.partialorder %v5271, 8.507059e+37
        %v5273 = vand.u32 %v5226, 2147483648
        %v5274 = vor.u32 1.1754944e-38, %v5273
        %v5275 = vsel %vm5272, %v5274, %v5270
        %v5276 = vmul.f32 1.0, %v5275
        %v5277 = vrcp.pop %v5227
        %v5278 = vmul.f32 %v5227, %v5277
        %v5279 = vsub.f32 1.0, %v5278
        %v5280 = vmul.f32 %v5277, %v5279
        %v5281 = vadd.f32 %v5277, %v5280
        %vm5282 = vweird.f32 %v5227
        %vm5283 = vweird.f32 %v5277
        %vm5284 = vmor %vm5282, %vm5283
        %v5285 = vsel %vm5284, %v5277, %v5281
        %v5286 = vand.u32 2147483647, %v5227
        %vm5287 = vcmp.eq.f32.partialorder %v5286, 8.507059e+37
        %v5288 = vand.u32 %v5227, 2147483648
        %v5289 = vor.u32 1.1754944e-38, %v5288
        %v5290 = vsel %vm5287, %v5289, %v5285
        %v5291 = vmul.f32 1.0, %v5290
        %v5292 = vrcp.pop %v5228
        %v5293 = vmul.f32 %v5228, %v5292
        %v5294 = vsub.f32 1.0, %v5293
        %v5295 = vmul.f32 %v5292, %v5294
        %v5296 = vadd.f32 %v5292, %v5295
        %vm5297 = vweird.f32 %v5228
        %vm5298 = vweird.f32 %v5292
        %vm5299 = vmor %vm5297, %vm5298
        %v5300 = vsel %vm5299, %v5292, %v5296
        %v5301 = vand.u32 2147483647, %v5228
        %vm5302 = vcmp.eq.f32.partialorder %v5301, 8.507059e+37
        %v5303 = vand.u32 %v5228, 2147483648
        %v5304 = vor.u32 1.1754944e-38, %v5303
        %v5305 = vsel %vm5302, %v5304, %v5300
        %v5306 = vmul.f32 1.0, %v5305
        %v5307 = vrcp.pop %v5229
        %v5308 = vmul.f32 %v5229, %v5307
        %v5309 = vsub.f32 1.0, %v5308
        %v5310 = vmul.f32 %v5307, %v5309
        %v5311 = vadd.f32 %v5307, %v5310
        %vm5312 = vweird.f32 %v5229
        %vm5313 = vweird.f32 %v5307
        %vm5314 = vmor %vm5312, %vm5313
        %v5315 = vsel %vm5314, %v5307, %v5311
        %v5316 = vand.u32 2147483647, %v5229
        %vm5317 = vcmp.eq.f32.partialorder %v5316, 8.507059e+37
        %v5318 = vand.u32 %v5229, 2147483648
        %v5319 = vor.u32 1.1754944e-38, %v5318
        %v5320 = vsel %vm5317, %v5319, %v5315
        %v5321 = vmul.f32 1.0, %v5320
        %v5322 = vrcp.pop %v5230
        %v5323 = vmul.f32 %v5230, %v5322
        %v5324 = vsub.f32 1.0, %v5323
        %v5325 = vmul.f32 %v5322, %v5324
        %v5326 = vadd.f32 %v5322, %v5325
        %vm5327 = vweird.f32 %v5230
        %vm5328 = vweird.f32 %v5322
        %vm5329 = vmor %vm5327, %vm5328
        %v5330 = vsel %vm5329, %v5322, %v5326
        %v5331 = vand.u32 2147483647, %v5230
        %vm5332 = vcmp.eq.f32.partialorder %v5331, 8.507059e+37
        %v5333 = vand.u32 %v5230, 2147483648
        %v5334 = vor.u32 1.1754944e-38, %v5333
        %v5335 = vsel %vm5332, %v5334, %v5330
        %v5336 = vmul.f32 1.0, %v5335
        %v5337 = vrcp.pop %v5231
        %v5338 = vmul.f32 %v5231, %v5337
        %v5339 = vsub.f32 1.0, %v5338
        %v5340 = vmul.f32 %v5337, %v5339
        %v5341 = vadd.f32 %v5337, %v5340
        %vm5342 = vweird.f32 %v5231
        %vm5343 = vweird.f32 %v5337
        %vm5344 = vmor %vm5342, %vm5343
        %v5345 = vsel %vm5344, %v5337, %v5341
        %v5346 = vand.u32 2147483647, %v5231
        %vm5347 = vcmp.eq.f32.partialorder %v5346, 8.507059e+37
        %v5348 = vand.u32 %v5231, 2147483648
        %v5349 = vor.u32 1.1754944e-38, %v5348
        %v5350 = vsel %vm5347, %v5349, %v5345
        %v5351 = vmul.f32 1.0, %v5350
        %v5360 = vrot.slane %v5192, 1
        %v5361 = vrot.slane %v5193, 1
        %v5362 = vrot.slane %v5194, 1
        %v5363 = vrot.slane %v5195, 1
        %v5364 = vrot.slane %v5196, 1
        %v5365 = vrot.slane %v5197, 1
        %v5366 = vrot.slane %v5198, 1
        %v5367 = vrot.slane %v5199, 1
        %v5376 = vxor.u32 %v5360, 2147483648
        %v5377 = vxor.u32 %v5361, 2147483648
        %v5378 = vxor.u32 %v5362, 2147483648
        %v5379 = vxor.u32 %v5363, 2147483648
        %v5380 = vxor.u32 %v5364, 2147483648
        %v5381 = vxor.u32 %v5365, 2147483648
        %v5382 = vxor.u32 %v5366, 2147483648
        %v5383 = vxor.u32 %v5367, 2147483648
        %v5384 = vmul.f32 %v5376, 1.442695
        %v5385 = vpow.pop %v5384
        %v5386 = vmul.f32 %v5377, 1.442695
        %v5387 = vpow.pop %v5386
        %v5388 = vmul.f32 %v5378, 1.442695
        %v5389 = vpow.pop %v5388
        %v5390 = vmul.f32 %v5379, 1.442695
        %v5391 = vpow.pop %v5390
        %v5392 = vmul.f32 %v5380, 1.442695
        %v5393 = vpow.pop %v5392
        %v5394 = vmul.f32 %v5381, 1.442695
        %v5395 = vpow.pop %v5394
        %v5396 = vmul.f32 %v5382, 1.442695
        %v5397 = vpow.pop %v5396
        %v5398 = vmul.f32 %v5383, 1.442695
        %v5399 = vpow.pop %v5398
        %v5400 = vadd.f32 %v5385, 1.0
        %v5401 = vadd.f32 %v5387, 1.0
        %v5402 = vadd.f32 %v5389, 1.0
        %v5403 = vadd.f32 %v5391, 1.0
        %v5404 = vadd.f32 %v5393, 1.0
        %v5405 = vadd.f32 %v5395, 1.0
        %v5406 = vadd.f32 %v5397, 1.0
        %v5407 = vadd.f32 %v5399, 1.0
        %v5408 = vrcp.pop %v5400
        %v5409 = vmul.f32 %v5400, %v5408
        %v5410 = vsub.f32 1.0, %v5409
        %v5411 = vmul.f32 %v5408, %v5410
        %v5412 = vadd.f32 %v5408, %v5411
        %vm5413 = vweird.f32 %v5400
        %vm5414 = vweird.f32 %v5408
        %vm5415 = vmor %vm5413, %vm5414
        %v5416 = vsel %vm5415, %v5408, %v5412
        %v5417 = vand.u32 2147483647, %v5400
        %vm5418 = vcmp.eq.f32.partialorder %v5417, 8.507059e+37
        %v5419 = vand.u32 %v5400, 2147483648
        %v5420 = vor.u32 1.1754944e-38, %v5419
        %v5421 = vsel %vm5418, %v5420, %v5416
        %v5422 = vmul.f32 1.0, %v5421
        %v5423 = vrcp.pop %v5401
        %v5424 = vmul.f32 %v5401, %v5423
        %v5425 = vsub.f32 1.0, %v5424
        %v5426 = vmul.f32 %v5423, %v5425
        %v5427 = vadd.f32 %v5423, %v5426
        %vm5428 = vweird.f32 %v5401
        %vm5429 = vweird.f32 %v5423
        %vm5430 = vmor %vm5428, %vm5429
        %v5431 = vsel %vm5430, %v5423, %v5427
        %v5432 = vand.u32 2147483647, %v5401
        %vm5433 = vcmp.eq.f32.partialorder %v5432, 8.507059e+37
        %v5434 = vand.u32 %v5401, 2147483648
        %v5435 = vor.u32 1.1754944e-38, %v5434
        %v5436 = vsel %vm5433, %v5435, %v5431
        %v5437 = vmul.f32 1.0, %v5436
        %v5438 = vrcp.pop %v5402
        %v5439 = vmul.f32 %v5402, %v5438
        %v5440 = vsub.f32 1.0, %v5439
        %v5441 = vmul.f32 %v5438, %v5440
        %v5442 = vadd.f32 %v5438, %v5441
        %vm5443 = vweird.f32 %v5402
        %vm5444 = vweird.f32 %v5438
        %vm5445 = vmor %vm5443, %vm5444
        %v5446 = vsel %vm5445, %v5438, %v5442
        %v5447 = vand.u32 2147483647, %v5402
        %vm5448 = vcmp.eq.f32.partialorder %v5447, 8.507059e+37
        %v5449 = vand.u32 %v5402, 2147483648
        %v5450 = vor.u32 1.1754944e-38, %v5449
        %v5451 = vsel %vm5448, %v5450, %v5446
        %v5452 = vmul.f32 1.0, %v5451
        %v5453 = vrcp.pop %v5403
        %v5454 = vmul.f32 %v5403, %v5453
        %v5455 = vsub.f32 1.0, %v5454
        %v5456 = vmul.f32 %v5453, %v5455
        %v5457 = vadd.f32 %v5453, %v5456
        %vm5458 = vweird.f32 %v5403
        %vm5459 = vweird.f32 %v5453
        %vm5460 = vmor %vm5458, %vm5459
        %v5461 = vsel %vm5460, %v5453, %v5457
        %v5462 = vand.u32 2147483647, %v5403
        %vm5463 = vcmp.eq.f32.partialorder %v5462, 8.507059e+37
        %v5464 = vand.u32 %v5403, 2147483648
        %v5465 = vor.u32 1.1754944e-38, %v5464
        %v5466 = vsel %vm5463, %v5465, %v5461
        %v5467 = vmul.f32 1.0, %v5466
        %v5468 = vrcp.pop %v5404
        %v5469 = vmul.f32 %v5404, %v5468
        %v5470 = vsub.f32 1.0, %v5469
        %v5471 = vmul.f32 %v5468, %v5470
        %v5472 = vadd.f32 %v5468, %v5471
        %vm5473 = vweird.f32 %v5404
        %vm5474 = vweird.f32 %v5468
        %vm5475 = vmor %vm5473, %vm5474
        %v5476 = vsel %vm5475, %v5468, %v5472
        %v5477 = vand.u32 2147483647, %v5404
        %vm5478 = vcmp.eq.f32.partialorder %v5477, 8.507059e+37
        %v5479 = vand.u32 %v5404, 2147483648
        %v5480 = vor.u32 1.1754944e-38, %v5479
        %v5481 = vsel %vm5478, %v5480, %v5476
        %v5482 = vmul.f32 1.0, %v5481
        %v5483 = vrcp.pop %v5405
        %v5484 = vmul.f32 %v5405, %v5483
        %v5485 = vsub.f32 1.0, %v5484
        %v5486 = vmul.f32 %v5483, %v5485
        %v5487 = vadd.f32 %v5483, %v5486
        %vm5488 = vweird.f32 %v5405
        %vm5489 = vweird.f32 %v5483
        %vm5490 = vmor %vm5488, %vm5489
        %v5491 = vsel %vm5490, %v5483, %v5487
        %v5492 = vand.u32 2147483647, %v5405
        %vm5493 = vcmp.eq.f32.partialorder %v5492, 8.507059e+37
        %v5494 = vand.u32 %v5405, 2147483648
        %v5495 = vor.u32 1.1754944e-38, %v5494
        %v5496 = vsel %vm5493, %v5495, %v5491
        %v5497 = vmul.f32 1.0, %v5496
        %v5498 = vrcp.pop %v5406
        %v5499 = vmul.f32 %v5406, %v5498
        %v5500 = vsub.f32 1.0, %v5499
        %v5501 = vmul.f32 %v5498, %v5500
        %v5502 = vadd.f32 %v5498, %v5501
        %vm5503 = vweird.f32 %v5406
        %vm5504 = vweird.f32 %v5498
        %vm5505 = vmor %vm5503, %vm5504
        %v5506 = vsel %vm5505, %v5498, %v5502
        %v5507 = vand.u32 2147483647, %v5406
        %vm5508 = vcmp.eq.f32.partialorder %v5507, 8.507059e+37
        %v5509 = vand.u32 %v5406, 2147483648
        %v5510 = vor.u32 1.1754944e-38, %v5509
        %v5511 = vsel %vm5508, %v5510, %v5506
        %v5512 = vmul.f32 1.0, %v5511
        %v5513 = vrcp.pop %v5407
        %v5514 = vmul.f32 %v5407, %v5513
        %v5515 = vsub.f32 1.0, %v5514
        %v5516 = vmul.f32 %v5513, %v5515
        %v5517 = vadd.f32 %v5513, %v5516
        %vm5518 = vweird.f32 %v5407
        %vm5519 = vweird.f32 %v5513
        %vm5520 = vmor %vm5518, %vm5519
        %v5521 = vsel %vm5520, %v5513, %v5517
        %v5522 = vand.u32 2147483647, %v5407
        %vm5523 = vcmp.eq.f32.partialorder %v5522, 8.507059e+37
        %v5524 = vand.u32 %v5407, 2147483648
        %v5525 = vor.u32 1.1754944e-38, %v5524
        %v5526 = vsel %vm5523, %v5525, %v5521
        %v5527 = vmul.f32 1.0, %v5526
        %v5528 = vrot.slane %v5192, 2
        %v5529 = vrot.slane %v5193, 2
        %v5530 = vrot.slane %v5194, 2
        %v5531 = vrot.slane %v5195, 2
        %v5532 = vrot.slane %v5196, 2
        %v5533 = vrot.slane %v5197, 2
        %v5534 = vrot.slane %v5198, 2
        %v5535 = vrot.slane %v5199, 2
        %v5544 = vtanh.pop %v5528
        %v5545 = vtanh.pop %v5529
        %v5546 = vtanh.pop %v5530
        %v5547 = vtanh.pop %v5531
        %v5548 = vtanh.pop %v5532
        %v5549 = vtanh.pop %v5533
        %v5550 = vtanh.pop %v5534
        %v5551 = vtanh.pop %v5535
        %v5552 = vrot.slane %v5192, 3
        %v5553 = vrot.slane %v5193, 3
        %v5554 = vrot.slane %v5194, 3
        %v5555 = vrot.slane %v5195, 3
        %v5556 = vrot.slane %v5196, 3
        %v5557 = vrot.slane %v5197, 3
        %v5558 = vrot.slane %v5198, 3
        %v5559 = vrot.slane %v5199, 3
        %v5568 = vxor.u32 %v5552, 2147483648
        %v5569 = vxor.u32 %v5553, 2147483648
        %v5570 = vxor.u32 %v5554, 2147483648
        %v5571 = vxor.u32 %v5555, 2147483648
        %v5572 = vxor.u32 %v5556, 2147483648
        %v5573 = vxor.u32 %v5557, 2147483648
        %v5574 = vxor.u32 %v5558, 2147483648
        %v5575 = vxor.u32 %v5559, 2147483648
        %v5576 = vmul.f32 %v5568, 1.442695
        %v5577 = vpow.pop %v5576
        %v5578 = vmul.f32 %v5569, 1.442695
        %v5579 = vpow.pop %v5578
        %v5580 = vmul.f32 %v5570, 1.442695
        %v5581 = vpow.pop %v5580
        %v5582 = vmul.f32 %v5571, 1.442695
        %v5583 = vpow.pop %v5582
        %v5584 = vmul.f32 %v5572, 1.442695
        %v5585 = vpow.pop %v5584
        %v5586 = vmul.f32 %v5573, 1.442695
        %v5587 = vpow.pop %v5586
        %v5588 = vmul.f32 %v5574, 1.442695
        %v5589 = vpow.pop %v5588
        %v5590 = vmul.f32 %v5575, 1.442695
        %v5591 = vpow.pop %v5590
        %v5592 = vadd.f32 %v5577, 1.0
        %v5593 = vadd.f32 %v5579, 1.0
        %v5594 = vadd.f32 %v5581, 1.0
        %v5595 = vadd.f32 %v5583, 1.0
        %v5596 = vadd.f32 %v5585, 1.0
        %v5597 = vadd.f32 %v5587, 1.0
        %v5598 = vadd.f32 %v5589, 1.0
        %v5599 = vadd.f32 %v5591, 1.0
        %v5600 = vrcp.pop %v5592
        %v5601 = vmul.f32 %v5592, %v5600
        %v5602 = vsub.f32 1.0, %v5601
        %v5603 = vmul.f32 %v5600, %v5602
        %v5604 = vadd.f32 %v5600, %v5603
        %vm5605 = vweird.f32 %v5592
        %vm5606 = vweird.f32 %v5600
        %vm5607 = vmor %vm5605, %vm5606
        %v5608 = vsel %vm5607, %v5600, %v5604
        %v5609 = vand.u32 2147483647, %v5592
        %vm5610 = vcmp.eq.f32.partialorder %v5609, 8.507059e+37
        %v5611 = vand.u32 %v5592, 2147483648
        %v5612 = vor.u32 1.1754944e-38, %v5611
        %v5613 = vsel %vm5610, %v5612, %v5608
        %v5614 = vmul.f32 1.0, %v5613
        %v5615 = vrcp.pop %v5593
        %v5616 = vmul.f32 %v5593, %v5615
        %v5617 = vsub.f32 1.0, %v5616
        %v5618 = vmul.f32 %v5615, %v5617
        %v5619 = vadd.f32 %v5615, %v5618
        %vm5620 = vweird.f32 %v5593
        %vm5621 = vweird.f32 %v5615
        %vm5622 = vmor %vm5620, %vm5621
        %v5623 = vsel %vm5622, %v5615, %v5619
        %v5624 = vand.u32 2147483647, %v5593
        %vm5625 = vcmp.eq.f32.partialorder %v5624, 8.507059e+37
        %v5626 = vand.u32 %v5593, 2147483648
        %v5627 = vor.u32 1.1754944e-38, %v5626
        %v5628 = vsel %vm5625, %v5627, %v5623
        %v5629 = vmul.f32 1.0, %v5628
        %v5630 = vrcp.pop %v5594
        %v5631 = vmul.f32 %v5594, %v5630
        %v5632 = vsub.f32 1.0, %v5631
        %v5633 = vmul.f32 %v5630, %v5632
        %v5634 = vadd.f32 %v5630, %v5633
        %vm5635 = vweird.f32 %v5594
        %vm5636 = vweird.f32 %v5630
        %vm5637 = vmor %vm5635, %vm5636
        %v5638 = vsel %vm5637, %v5630, %v5634
        %v5639 = vand.u32 2147483647, %v5594
        %vm5640 = vcmp.eq.f32.partialorder %v5639, 8.507059e+37
        %v5641 = vand.u32 %v5594, 2147483648
        %v5642 = vor.u32 1.1754944e-38, %v5641
        %v5643 = vsel %vm5640, %v5642, %v5638
        %v5644 = vmul.f32 1.0, %v5643
        %v5645 = vrcp.pop %v5595
        %v5646 = vmul.f32 %v5595, %v5645
        %v5647 = vsub.f32 1.0, %v5646
        %v5648 = vmul.f32 %v5645, %v5647
        %v5649 = vadd.f32 %v5645, %v5648
        %vm5650 = vweird.f32 %v5595
        %vm5651 = vweird.f32 %v5645
        %vm5652 = vmor %vm5650, %vm5651
        %v5653 = vsel %vm5652, %v5645, %v5649
        %v5654 = vand.u32 2147483647, %v5595
        %vm5655 = vcmp.eq.f32.partialorder %v5654, 8.507059e+37
        %v5656 = vand.u32 %v5595, 2147483648
        %v5657 = vor.u32 1.1754944e-38, %v5656
        %v5658 = vsel %vm5655, %v5657, %v5653
        %v5659 = vmul.f32 1.0, %v5658
        %v5660 = vrcp.pop %v5596
        %v5661 = vmul.f32 %v5596, %v5660
        %v5662 = vsub.f32 1.0, %v5661
        %v5663 = vmul.f32 %v5660, %v5662
        %v5664 = vadd.f32 %v5660, %v5663
        %vm5665 = vweird.f32 %v5596
        %vm5666 = vweird.f32 %v5660
        %vm5667 = vmor %vm5665, %vm5666
        %v5668 = vsel %vm5667, %v5660, %v5664
        %v5669 = vand.u32 2147483647, %v5596
        %vm5670 = vcmp.eq.f32.partialorder %v5669, 8.507059e+37
        %v5671 = vand.u32 %v5596, 2147483648
        %v5672 = vor.u32 1.1754944e-38, %v5671
        %v5673 = vsel %vm5670, %v5672, %v5668
        %v5674 = vmul.f32 1.0, %v5673
        %v5675 = vrcp.pop %v5597
        %v5676 = vmul.f32 %v5597, %v5675
        %v5677 = vsub.f32 1.0, %v5676
        %v5678 = vmul.f32 %v5675, %v5677
        %v5679 = vadd.f32 %v5675, %v5678
        %vm5680 = vweird.f32 %v5597
        %vm5681 = vweird.f32 %v5675
        %vm5682 = vmor %vm5680, %vm5681
        %v5683 = vsel %vm5682, %v5675, %v5679
        %v5684 = vand.u32 2147483647, %v5597
        %vm5685 = vcmp.eq.f32.partialorder %v5684, 8.507059e+37
        %v5686 = vand.u32 %v5597, 2147483648
        %v5687 = vor.u32 1.1754944e-38, %v5686
        %v5688 = vsel %vm5685, %v5687, %v5683
        %v5689 = vmul.f32 1.0, %v5688
        %v5690 = vrcp.pop %v5598
        %v5691 = vmul.f32 %v5598, %v5690
        %v5692 = vsub.f32 1.0, %v5691
        %v5693 = vmul.f32 %v5690, %v5692
        %v5694 = vadd.f32 %v5690, %v5693
        %vm5695 = vweird.f32 %v5598
        %vm5696 = vweird.f32 %v5690
        %vm5697 = vmor %vm5695, %vm5696
        %v5698 = vsel %vm5697, %v5690, %v5694
        %v5699 = vand.u32 2147483647, %v5598
        %vm5700 = vcmp.eq.f32.partialorder %v5699, 8.507059e+37
        %v5701 = vand.u32 %v5598, 2147483648
        %v5702 = vor.u32 1.1754944e-38, %v5701
        %v5703 = vsel %vm5700, %v5702, %v5698
        %v5704 = vmul.f32 1.0, %v5703
        %v5705 = vrcp.pop %v5599
        %v5706 = vmul.f32 %v5599, %v5705
        %v5707 = vsub.f32 1.0, %v5706
        %v5708 = vmul.f32 %v5705, %v5707
        %v5709 = vadd.f32 %v5705, %v5708
        %vm5710 = vweird.f32 %v5599
        %vm5711 = vweird.f32 %v5705
        %vm5712 = vmor %vm5710, %vm5711
        %v5713 = vsel %vm5712, %v5705, %v5709
        %v5714 = vand.u32 2147483647, %v5599
        %vm5715 = vcmp.eq.f32.partialorder %v5714, 8.507059e+37
        %v5716 = vand.u32 %v5599, 2147483648
        %v5717 = vor.u32 1.1754944e-38, %v5716
        %v5718 = vsel %vm5715, %v5717, %v5713
        %v5719 = vmul.f32 1.0, %v5718
        %v5721 = vrot.slane %v5049, 1
        %v5722 = vrot.slane %v5049, 2
        %v5723 = vrot.slane %v5049, 3
        %v5724 = vrot.slane %v5049, 4
        %v5725 = vrot.slane %v5049, 5
        %v5726 = vrot.slane %v5049, 6
        %v5727 = vrot.slane %v5049, 7
        %v5735 = vmul.f32 %v5422, %v5049
        %v5736 = vmul.f32 %v5437, %v5721
        %v5737 = vmul.f32 %v5452, %v5722
        %v5738 = vmul.f32 %v5467, %v5723
        %v5739 = vmul.f32 %v5482, %v5724
        %v5740 = vmul.f32 %v5497, %v5725
        %v5741 = vmul.f32 %v5512, %v5726
        %v5742 = vmul.f32 %v5527, %v5727
        %v5743 = vmul.f32 %v5246, %v5544
        %v5744 = vmul.f32 %v5261, %v5545
        %v5745 = vmul.f32 %v5276, %v5546
        %v5746 = vmul.f32 %v5291, %v5547
        %v5747 = vmul.f32 %v5306, %v5548
        %v5748 = vmul.f32 %v5321, %v5549
        %v5749 = vmul.f32 %v5336, %v5550
        %v5750 = vmul.f32 %v5351, %v5551
        %v5751 = vadd.f32 %v5735, %v5743
        %v5752 = vadd.f32 %v5736, %v5744
        %v5753 = vadd.f32 %v5737, %v5745
        %v5754 = vadd.f32 %v5738, %v5746
        %v5755 = vadd.f32 %v5739, %v5747
        %v5756 = vadd.f32 %v5740, %v5748
        %v5757 = vadd.f32 %v5741, %v5749
        %v5758 = vadd.f32 %v5742, %v5750
        %v5759 = vtanh.pop %v5751
        %v5760 = vtanh.pop %v5752
        %v5761 = vtanh.pop %v5753
        %v5762 = vtanh.pop %v5754
        %v5763 = vtanh.pop %v5755
        %v5764 = vtanh.pop %v5756
        %v5765 = vtanh.pop %v5757
        %v5766 = vtanh.pop %v5758
        %v5767 = vmul.f32 %v5614, %v5759
        %v5768 = vmul.f32 %v5629, %v5760
        %v5769 = vmul.f32 %v5644, %v5761
        %v5770 = vmul.f32 %v5659, %v5762
        %v5771 = vmul.f32 %v5674, %v5763
        %v5772 = vmul.f32 %v5689, %v5764
        %v5773 = vmul.f32 %v5704, %v5765
        %v5774 = vmul.f32 %v5719, %v5766
        %5783 = vst [vmem:[#allocation1] ss:$9 sm:$0xff] %v5751
        %s5784 = scalar_lea.vmem [#allocation1], 1
        %5785 = vst [vmem:[%s5784] ss:$9 sm:$0xff] %v5752
        %s5786 = scalar_lea.vmem [#allocation1], 2
        %5787 = vst [vmem:[%s5786] ss:$9 sm:$0xff] %v5753
        %s5788 = scalar_lea.vmem [#allocation1], 3
        %5789 = vst [vmem:[%s5788] ss:$9 sm:$0xff] %v5754
        %s5790 = scalar_lea.vmem [#allocation1], 4
        %5791 = vst [vmem:[%s5790] ss:$9 sm:$0xff] %v5755
        %s5792 = scalar_lea.vmem [#allocation1], 5
        %5793 = vst [vmem:[%s5792] ss:$9 sm:$0xff] %v5756
        %s5794 = scalar_lea.vmem [#allocation1], 6
        %5795 = vst [vmem:[%s5794] ss:$9 sm:$0xff] %v5757
        %s5796 = scalar_lea.vmem [#allocation1], 7
        %5797 = vst [vmem:[%s5796] ss:$9 sm:$0xff] %v5758
        %v5798 = vld [vmem:[#allocation1] sm:$0xff]
        %5800 = vst [vmem:[#allocation3] sm:$0xff] %v5798
        %5809 = vst [vmem:[#allocation1] ss:$9 sm:$0xff] %v5767
        %s5810 = scalar_lea.vmem [#allocation1], 1
        %5811 = vst [vmem:[%s5810] ss:$9 sm:$0xff] %v5768
        %s5812 = scalar_lea.vmem [#allocation1], 2
        %5813 = vst [vmem:[%s5812] ss:$9 sm:$0xff] %v5769
        %s5814 = scalar_lea.vmem [#allocation1], 3
        %5815 = vst [vmem:[%s5814] ss:$9 sm:$0xff] %v5770
        %s5816 = scalar_lea.vmem [#allocation1], 4
        %5817 = vst [vmem:[%s5816] ss:$9 sm:$0xff] %v5771
        %s5818 = scalar_lea.vmem [#allocation1], 5
        %5819 = vst [vmem:[%s5818] ss:$9 sm:$0xff] %v5772
        %s5820 = scalar_lea.vmem [#allocation1], 6
        %5821 = vst [vmem:[%s5820] ss:$9 sm:$0xff] %v5773
        %s5822 = scalar_lea.vmem [#allocation1], 7
        %5823 = vst [vmem:[%s5822] ss:$9 sm:$0xff] %v5774
        %v5824 = vld [vmem:[#allocation1] sm:$0xff]
        %5826 = vst [vmem:[#allocation2] sm:$0xff] %v5824
        %5827 = vst [vmem:[%s238 + $0x6] sm:$0x1] %v5767
        %5828 = vst [vmem:[%s238 + $0xe] sm:$0x1] %v5768
        %5829 = vst [vmem:[%s238 + $0x16] sm:$0x1] %v5769
        %5830 = vst [vmem:[%s238 + $0x1e] sm:$0x1] %v5770
        %5831 = vst [vmem:[%s238 + $0x26] sm:$0x1] %v5771
        %5832 = vst [vmem:[%s238 + $0x2e] sm:$0x1] %v5772
        %5833 = vst [vmem:[%s238 + $0x36] sm:$0x1] %v5773
        %5834 = vst [vmem:[%s238 + $0x3e] sm:$0x1] %v5774
        %v5835 = vld [vmem:[#allocation2] sm:$0xff]
        %v5836 = vld [vmem:[#allocation3] sm:$0xff]
        %s5837 = scalar_lea.vmem %s221, 7 [#allocation4]
        %v5838 = vld [vmem:[%s5837] ss:$8 sm:$0xf]
        %s5839 = scalar_lea.vmem %s221, 39 [#allocation4]
        %v5840 = vld [vmem:[%s5839] ss:$8 sm:$0xf]
        %s5841 = scalar_lea.vmem %s221, 71 [#allocation4]
        %v5842 = vld [vmem:[%s5841] ss:$8 sm:$0xf]
        %s5843 = scalar_lea.vmem %s221, 103 [#allocation4]
        %v5844 = vld [vmem:[%s5843] ss:$8 sm:$0xf]
        %s5845 = scalar_lea.vmem %s221, 135 [#allocation4]
        %v5846 = vld [vmem:[%s5845] ss:$8 sm:$0xf]
        %s5847 = scalar_lea.vmem %s221, 167 [#allocation4]
        %v5848 = vld [vmem:[%s5847] ss:$8 sm:$0xf]
        %s5849 = scalar_lea.vmem %s221, 199 [#allocation4]
        %v5850 = vld [vmem:[%s5849] ss:$8 sm:$0xf]
        %s5851 = scalar_lea.vmem %s221, 231 [#allocation4]
        %v5852 = vld [vmem:[%s5851] ss:$8 sm:$0xf]
        %5853 = vmatpush.msra.mxu0 %v307
        %5854 = vmatpush.msra.mxu0 %v303
        %5855 = vmatpush.msra.mxu0 %v299
        %5856 = vmatpush.msra.mxu0 %v295
        %5857 = vmatpush.msra.mxu0 %v291
        %5858 = vmatpush.msra.mxu0 %v287
        %5859 = vmatpush.msra.mxu0 %v283
        %5860 = vmatpush.msra.mxu0 %v279
        %5861 = vmatpush.msra.mxu0 %v275
        %5862 = vmatpush.msra.mxu0 %v271
        %5863 = vmatpush.msra.mxu0 %v267
        %5864 = vmatpush.msra.mxu0 %v263
        %5865 = vmatpush.msra.mxu0 %v259
        %5866 = vmatpush.msra.mxu0 %v255
        %5867 = vmatpush.msra.mxu0 %v251
        %5868 = vmatpush.msra.mxu0 %v247
        %5869 = vmatmul.f32.gmra.mxu0 %v5835
        %v5870 = vpop.f32.mrf.mxu0
        %v5871 = vadd.f32 0.0, %v5870
        %5872 = vdwg.mxu0
        %5873 = vmatpush.msra.mxu0 %v308
        %5874 = vmatpush.msra.mxu0 %v304
        %5875 = vmatpush.msra.mxu0 %v300
        %5876 = vmatpush.msra.mxu0 %v296
        %5877 = vmatpush.msra.mxu0 %v292
        %5878 = vmatpush.msra.mxu0 %v288
        %5879 = vmatpush.msra.mxu0 %v284
        %5880 = vmatpush.msra.mxu0 %v280
        %5881 = vmatpush.msra.mxu0 %v276
        %5882 = vmatpush.msra.mxu0 %v272
        %5883 = vmatpush.msra.mxu0 %v268
        %5884 = vmatpush.msra.mxu0 %v264
        %5885 = vmatpush.msra.mxu0 %v260
        %5886 = vmatpush.msra.mxu0 %v256
        %5887 = vmatpush.msra.mxu0 %v252
        %5888 = vmatpush.msra.mxu0 %v248
        %5889 = vmatmul.f32.gmra.mxu0 %v5835
        %v5890 = vpop.f32.mrf.mxu0
        %v5891 = vadd.f32 0.0, %v5890
        %5892 = vdwg.mxu0
        %5893 = vmatpush.msra.mxu0 %v309
        %5894 = vmatpush.msra.mxu0 %v305
        %5895 = vmatpush.msra.mxu0 %v301
        %5896 = vmatpush.msra.mxu0 %v297
        %5897 = vmatpush.msra.mxu0 %v293
        %5898 = vmatpush.msra.mxu0 %v289
        %5899 = vmatpush.msra.mxu0 %v285
        %5900 = vmatpush.msra.mxu0 %v281
        %5901 = vmatpush.msra.mxu0 %v277
        %5902 = vmatpush.msra.mxu0 %v273
        %5903 = vmatpush.msra.mxu0 %v269
        %5904 = vmatpush.msra.mxu0 %v265
        %5905 = vmatpush.msra.mxu0 %v261
        %5906 = vmatpush.msra.mxu0 %v257
        %5907 = vmatpush.msra.mxu0 %v253
        %5908 = vmatpush.msra.mxu0 %v249
        %5909 = vmatmul.f32.gmra.mxu0 %v5835
        %v5910 = vpop.f32.mrf.mxu0
        %v5911 = vadd.f32 0.0, %v5910
        %5912 = vdwg.mxu0
        %5913 = vmatpush.msra.mxu0 %v310
        %5914 = vmatpush.msra.mxu0 %v306
        %5915 = vmatpush.msra.mxu0 %v302
        %5916 = vmatpush.msra.mxu0 %v298
        %5917 = vmatpush.msra.mxu0 %v294
        %5918 = vmatpush.msra.mxu0 %v290
        %5919 = vmatpush.msra.mxu0 %v286
        %5920 = vmatpush.msra.mxu0 %v282
        %5921 = vmatpush.msra.mxu0 %v278
        %5922 = vmatpush.msra.mxu0 %v274
        %5923 = vmatpush.msra.mxu0 %v270
        %5924 = vmatpush.msra.mxu0 %v266
        %5925 = vmatpush.msra.mxu0 %v262
        %5926 = vmatpush.msra.mxu0 %v258
        %5927 = vmatpush.msra.mxu0 %v254
        %5928 = vmatpush.msra.mxu0 %v250
        %5929 = vmatmul.f32.gmra.mxu0 %v5835
        %v5930 = vpop.f32.mrf.mxu0
        %v5931 = vadd.f32 0.0, %v5930
        %5932 = vdwg.mxu0
        %v5937 = vrot.slane %v5891, 7
        %v5938 = vrot.slane %v5911, 6
        %v5939 = vrot.slane %v5931, 5
        %v5940 = vsel %vm415, %v5871, %v5937
        %v5941 = vsel %vm417, %v5938, %v5939
        %v5942 = vsel %vm419, %v5940, %v5941
        %v5943 = vsel %vm421, %v5871, %v5937
        %v5944 = vsel %vm423, %v5938, %v5939
        %v5945 = vsel %vm425, %v5943, %v5944
        %v5946 = vrot.slane %v5945, 1
        %v5947 = vsel %vm417, %v5871, %v5937
        %v5948 = vsel %vm429, %v5938, %v5939
        %v5949 = vsel %vm431, %v5947, %v5948
        %v5950 = vrot.slane %v5949, 2
        %v5951 = vsel %vm423, %v5871, %v5937
        %v5952 = vsel %vm435, %v5938, %v5939
        %v5953 = vsel %vm437, %v5951, %v5952
        %v5954 = vrot.slane %v5953, 3
        %v5955 = vsel %vm429, %v5871, %v5937
        %v5956 = vsel %vm441, %v5938, %v5939
        %v5957 = vsel %vm443, %v5955, %v5956
        %v5958 = vrot.slane %v5957, 4
        %v5959 = vsel %vm435, %v5871, %v5937
        %v5960 = vsel %vm447, %v5939, %v5938
        %v5961 = vsel %vm449, %v5959, %v5960
        %v5962 = vrot.slane %v5961, 5
        %v5963 = vsel %vm441, %v5871, %v5937
        %v5964 = vsel %vm415, %v5938, %v5939
        %v5965 = vsel %vm454, %v5964, %v5963
        %v5966 = vrot.slane %v5965, 6
        %v5967 = vsel %vm447, %v5937, %v5871
        %v5968 = vsel %vm421, %v5938, %v5939
        %v5969 = vsel %vm459, %v5968, %v5967
        %v5970 = vrot.slane %v5969, 7
        %v5979 = vadd.f32 %v5838, %v5942
        %v5980 = vadd.f32 %v5840, %v5946
        %v5981 = vadd.f32 %v5842, %v5950
        %v5982 = vadd.f32 %v5844, %v5954
        %v5983 = vadd.f32 %v5846, %v5958
        %v5984 = vadd.f32 %v5848, %v5962
        %v5985 = vadd.f32 %v5850, %v5966
        %v5986 = vadd.f32 %v5852, %v5970
        %v5987 = vxor.u32 %v5979, 2147483648
        %v5988 = vxor.u32 %v5980, 2147483648
        %v5989 = vxor.u32 %v5981, 2147483648
        %v5990 = vxor.u32 %v5982, 2147483648
        %v5991 = vxor.u32 %v5983, 2147483648
        %v5992 = vxor.u32 %v5984, 2147483648
        %v5993 = vxor.u32 %v5985, 2147483648
        %v5994 = vxor.u32 %v5986, 2147483648
        %v5995 = vmul.f32 %v5987, 1.442695
        %v5996 = vpow.pop %v5995
        %v5997 = vmul.f32 %v5988, 1.442695
        %v5998 = vpow.pop %v5997
        %v5999 = vmul.f32 %v5989, 1.442695
        %v6000 = vpow.pop %v5999
        %v6001 = vmul.f32 %v5990, 1.442695
        %v6002 = vpow.pop %v6001
        %v6003 = vmul.f32 %v5991, 1.442695
        %v6004 = vpow.pop %v6003
        %v6005 = vmul.f32 %v5992, 1.442695
        %v6006 = vpow.pop %v6005
        %v6007 = vmul.f32 %v5993, 1.442695
        %v6008 = vpow.pop %v6007
        %v6009 = vmul.f32 %v5994, 1.442695
        %v6010 = vpow.pop %v6009
        %v6011 = vadd.f32 %v5996, 1.0
        %v6012 = vadd.f32 %v5998, 1.0
        %v6013 = vadd.f32 %v6000, 1.0
        %v6014 = vadd.f32 %v6002, 1.0
        %v6015 = vadd.f32 %v6004, 1.0
        %v6016 = vadd.f32 %v6006, 1.0
        %v6017 = vadd.f32 %v6008, 1.0
        %v6018 = vadd.f32 %v6010, 1.0
        %v6019 = vrcp.pop %v6011
        %v6020 = vmul.f32 %v6011, %v6019
        %v6021 = vsub.f32 1.0, %v6020
        %v6022 = vmul.f32 %v6019, %v6021
        %v6023 = vadd.f32 %v6019, %v6022
        %vm6024 = vweird.f32 %v6011
        %vm6025 = vweird.f32 %v6019
        %vm6026 = vmor %vm6024, %vm6025
        %v6027 = vsel %vm6026, %v6019, %v6023
        %v6028 = vand.u32 2147483647, %v6011
        %vm6029 = vcmp.eq.f32.partialorder %v6028, 8.507059e+37
        %v6030 = vand.u32 %v6011, 2147483648
        %v6031 = vor.u32 1.1754944e-38, %v6030
        %v6032 = vsel %vm6029, %v6031, %v6027
        %v6033 = vmul.f32 1.0, %v6032
        %v6034 = vrcp.pop %v6012
        %v6035 = vmul.f32 %v6012, %v6034
        %v6036 = vsub.f32 1.0, %v6035
        %v6037 = vmul.f32 %v6034, %v6036
        %v6038 = vadd.f32 %v6034, %v6037
        %vm6039 = vweird.f32 %v6012
        %vm6040 = vweird.f32 %v6034
        %vm6041 = vmor %vm6039, %vm6040
        %v6042 = vsel %vm6041, %v6034, %v6038
        %v6043 = vand.u32 2147483647, %v6012
        %vm6044 = vcmp.eq.f32.partialorder %v6043, 8.507059e+37
        %v6045 = vand.u32 %v6012, 2147483648
        %v6046 = vor.u32 1.1754944e-38, %v6045
        %v6047 = vsel %vm6044, %v6046, %v6042
        %v6048 = vmul.f32 1.0, %v6047
        %v6049 = vrcp.pop %v6013
        %v6050 = vmul.f32 %v6013, %v6049
        %v6051 = vsub.f32 1.0, %v6050
        %v6052 = vmul.f32 %v6049, %v6051
        %v6053 = vadd.f32 %v6049, %v6052
        %vm6054 = vweird.f32 %v6013
        %vm6055 = vweird.f32 %v6049
        %vm6056 = vmor %vm6054, %vm6055
        %v6057 = vsel %vm6056, %v6049, %v6053
        %v6058 = vand.u32 2147483647, %v6013
        %vm6059 = vcmp.eq.f32.partialorder %v6058, 8.507059e+37
        %v6060 = vand.u32 %v6013, 2147483648
        %v6061 = vor.u32 1.1754944e-38, %v6060
        %v6062 = vsel %vm6059, %v6061, %v6057
        %v6063 = vmul.f32 1.0, %v6062
        %v6064 = vrcp.pop %v6014
        %v6065 = vmul.f32 %v6014, %v6064
        %v6066 = vsub.f32 1.0, %v6065
        %v6067 = vmul.f32 %v6064, %v6066
        %v6068 = vadd.f32 %v6064, %v6067
        %vm6069 = vweird.f32 %v6014
        %vm6070 = vweird.f32 %v6064
        %vm6071 = vmor %vm6069, %vm6070
        %v6072 = vsel %vm6071, %v6064, %v6068
        %v6073 = vand.u32 2147483647, %v6014
        %vm6074 = vcmp.eq.f32.partialorder %v6073, 8.507059e+37
        %v6075 = vand.u32 %v6014, 2147483648
        %v6076 = vor.u32 1.1754944e-38, %v6075
        %v6077 = vsel %vm6074, %v6076, %v6072
        %v6078 = vmul.f32 1.0, %v6077
        %v6079 = vrcp.pop %v6015
        %v6080 = vmul.f32 %v6015, %v6079
        %v6081 = vsub.f32 1.0, %v6080
        %v6082 = vmul.f32 %v6079, %v6081
        %v6083 = vadd.f32 %v6079, %v6082
        %vm6084 = vweird.f32 %v6015
        %vm6085 = vweird.f32 %v6079
        %vm6086 = vmor %vm6084, %vm6085
        %v6087 = vsel %vm6086, %v6079, %v6083
        %v6088 = vand.u32 2147483647, %v6015
        %vm6089 = vcmp.eq.f32.partialorder %v6088, 8.507059e+37
        %v6090 = vand.u32 %v6015, 2147483648
        %v6091 = vor.u32 1.1754944e-38, %v6090
        %v6092 = vsel %vm6089, %v6091, %v6087
        %v6093 = vmul.f32 1.0, %v6092
        %v6094 = vrcp.pop %v6016
        %v6095 = vmul.f32 %v6016, %v6094
        %v6096 = vsub.f32 1.0, %v6095
        %v6097 = vmul.f32 %v6094, %v6096
        %v6098 = vadd.f32 %v6094, %v6097
        %vm6099 = vweird.f32 %v6016
        %vm6100 = vweird.f32 %v6094
        %vm6101 = vmor %vm6099, %vm6100
        %v6102 = vsel %vm6101, %v6094, %v6098
        %v6103 = vand.u32 2147483647, %v6016
        %vm6104 = vcmp.eq.f32.partialorder %v6103, 8.507059e+37
        %v6105 = vand.u32 %v6016, 2147483648
        %v6106 = vor.u32 1.1754944e-38, %v6105
        %v6107 = vsel %vm6104, %v6106, %v6102
        %v6108 = vmul.f32 1.0, %v6107
        %v6109 = vrcp.pop %v6017
        %v6110 = vmul.f32 %v6017, %v6109
        %v6111 = vsub.f32 1.0, %v6110
        %v6112 = vmul.f32 %v6109, %v6111
        %v6113 = vadd.f32 %v6109, %v6112
        %vm6114 = vweird.f32 %v6017
        %vm6115 = vweird.f32 %v6109
        %vm6116 = vmor %vm6114, %vm6115
        %v6117 = vsel %vm6116, %v6109, %v6113
        %v6118 = vand.u32 2147483647, %v6017
        %vm6119 = vcmp.eq.f32.partialorder %v6118, 8.507059e+37
        %v6120 = vand.u32 %v6017, 2147483648
        %v6121 = vor.u32 1.1754944e-38, %v6120
        %v6122 = vsel %vm6119, %v6121, %v6117
        %v6123 = vmul.f32 1.0, %v6122
        %v6124 = vrcp.pop %v6018
        %v6125 = vmul.f32 %v6018, %v6124
        %v6126 = vsub.f32 1.0, %v6125
        %v6127 = vmul.f32 %v6124, %v6126
        %v6128 = vadd.f32 %v6124, %v6127
        %vm6129 = vweird.f32 %v6018
        %vm6130 = vweird.f32 %v6124
        %vm6131 = vmor %vm6129, %vm6130
        %v6132 = vsel %vm6131, %v6124, %v6128
        %v6133 = vand.u32 2147483647, %v6018
        %vm6134 = vcmp.eq.f32.partialorder %v6133, 8.507059e+37
        %v6135 = vand.u32 %v6018, 2147483648
        %v6136 = vor.u32 1.1754944e-38, %v6135
        %v6137 = vsel %vm6134, %v6136, %v6132
        %v6138 = vmul.f32 1.0, %v6137
        %v6147 = vrot.slane %v5979, 1
        %v6148 = vrot.slane %v5980, 1
        %v6149 = vrot.slane %v5981, 1
        %v6150 = vrot.slane %v5982, 1
        %v6151 = vrot.slane %v5983, 1
        %v6152 = vrot.slane %v5984, 1
        %v6153 = vrot.slane %v5985, 1
        %v6154 = vrot.slane %v5986, 1
        %v6163 = vxor.u32 %v6147, 2147483648
        %v6164 = vxor.u32 %v6148, 2147483648
        %v6165 = vxor.u32 %v6149, 2147483648
        %v6166 = vxor.u32 %v6150, 2147483648
        %v6167 = vxor.u32 %v6151, 2147483648
        %v6168 = vxor.u32 %v6152, 2147483648
        %v6169 = vxor.u32 %v6153, 2147483648
        %v6170 = vxor.u32 %v6154, 2147483648
        %v6171 = vmul.f32 %v6163, 1.442695
        %v6172 = vpow.pop %v6171
        %v6173 = vmul.f32 %v6164, 1.442695
        %v6174 = vpow.pop %v6173
        %v6175 = vmul.f32 %v6165, 1.442695
        %v6176 = vpow.pop %v6175
        %v6177 = vmul.f32 %v6166, 1.442695
        %v6178 = vpow.pop %v6177
        %v6179 = vmul.f32 %v6167, 1.442695
        %v6180 = vpow.pop %v6179
        %v6181 = vmul.f32 %v6168, 1.442695
        %v6182 = vpow.pop %v6181
        %v6183 = vmul.f32 %v6169, 1.442695
        %v6184 = vpow.pop %v6183
        %v6185 = vmul.f32 %v6170, 1.442695
        %v6186 = vpow.pop %v6185
        %v6187 = vadd.f32 %v6172, 1.0
        %v6188 = vadd.f32 %v6174, 1.0
        %v6189 = vadd.f32 %v6176, 1.0
        %v6190 = vadd.f32 %v6178, 1.0
        %v6191 = vadd.f32 %v6180, 1.0
        %v6192 = vadd.f32 %v6182, 1.0
        %v6193 = vadd.f32 %v6184, 1.0
        %v6194 = vadd.f32 %v6186, 1.0
        %v6195 = vrcp.pop %v6187
        %v6196 = vmul.f32 %v6187, %v6195
        %v6197 = vsub.f32 1.0, %v6196
        %v6198 = vmul.f32 %v6195, %v6197
        %v6199 = vadd.f32 %v6195, %v6198
        %vm6200 = vweird.f32 %v6187
        %vm6201 = vweird.f32 %v6195
        %vm6202 = vmor %vm6200, %vm6201
        %v6203 = vsel %vm6202, %v6195, %v6199
        %v6204 = vand.u32 2147483647, %v6187
        %vm6205 = vcmp.eq.f32.partialorder %v6204, 8.507059e+37
        %v6206 = vand.u32 %v6187, 2147483648
        %v6207 = vor.u32 1.1754944e-38, %v6206
        %v6208 = vsel %vm6205, %v6207, %v6203
        %v6209 = vmul.f32 1.0, %v6208
        %v6210 = vrcp.pop %v6188
        %v6211 = vmul.f32 %v6188, %v6210
        %v6212 = vsub.f32 1.0, %v6211
        %v6213 = vmul.f32 %v6210, %v6212
        %v6214 = vadd.f32 %v6210, %v6213
        %vm6215 = vweird.f32 %v6188
        %vm6216 = vweird.f32 %v6210
        %vm6217 = vmor %vm6215, %vm6216
        %v6218 = vsel %vm6217, %v6210, %v6214
        %v6219 = vand.u32 2147483647, %v6188
        %vm6220 = vcmp.eq.f32.partialorder %v6219, 8.507059e+37
        %v6221 = vand.u32 %v6188, 2147483648
        %v6222 = vor.u32 1.1754944e-38, %v6221
        %v6223 = vsel %vm6220, %v6222, %v6218
        %v6224 = vmul.f32 1.0, %v6223
        %v6225 = vrcp.pop %v6189
        %v6226 = vmul.f32 %v6189, %v6225
        %v6227 = vsub.f32 1.0, %v6226
        %v6228 = vmul.f32 %v6225, %v6227
        %v6229 = vadd.f32 %v6225, %v6228
        %vm6230 = vweird.f32 %v6189
        %vm6231 = vweird.f32 %v6225
        %vm6232 = vmor %vm6230, %vm6231
        %v6233 = vsel %vm6232, %v6225, %v6229
        %v6234 = vand.u32 2147483647, %v6189
        %vm6235 = vcmp.eq.f32.partialorder %v6234, 8.507059e+37
        %v6236 = vand.u32 %v6189, 2147483648
        %v6237 = vor.u32 1.1754944e-38, %v6236
        %v6238 = vsel %vm6235, %v6237, %v6233
        %v6239 = vmul.f32 1.0, %v6238
        %v6240 = vrcp.pop %v6190
        %v6241 = vmul.f32 %v6190, %v6240
        %v6242 = vsub.f32 1.0, %v6241
        %v6243 = vmul.f32 %v6240, %v6242
        %v6244 = vadd.f32 %v6240, %v6243
        %vm6245 = vweird.f32 %v6190
        %vm6246 = vweird.f32 %v6240
        %vm6247 = vmor %vm6245, %vm6246
        %v6248 = vsel %vm6247, %v6240, %v6244
        %v6249 = vand.u32 2147483647, %v6190
        %vm6250 = vcmp.eq.f32.partialorder %v6249, 8.507059e+37
        %v6251 = vand.u32 %v6190, 2147483648
        %v6252 = vor.u32 1.1754944e-38, %v6251
        %v6253 = vsel %vm6250, %v6252, %v6248
        %v6254 = vmul.f32 1.0, %v6253
        %v6255 = vrcp.pop %v6191
        %v6256 = vmul.f32 %v6191, %v6255
        %v6257 = vsub.f32 1.0, %v6256
        %v6258 = vmul.f32 %v6255, %v6257
        %v6259 = vadd.f32 %v6255, %v6258
        %vm6260 = vweird.f32 %v6191
        %vm6261 = vweird.f32 %v6255
        %vm6262 = vmor %vm6260, %vm6261
        %v6263 = vsel %vm6262, %v6255, %v6259
        %v6264 = vand.u32 2147483647, %v6191
        %vm6265 = vcmp.eq.f32.partialorder %v6264, 8.507059e+37
        %v6266 = vand.u32 %v6191, 2147483648
        %v6267 = vor.u32 1.1754944e-38, %v6266
        %v6268 = vsel %vm6265, %v6267, %v6263
        %v6269 = vmul.f32 1.0, %v6268
        %v6270 = vrcp.pop %v6192
        %v6271 = vmul.f32 %v6192, %v6270
        %v6272 = vsub.f32 1.0, %v6271
        %v6273 = vmul.f32 %v6270, %v6272
        %v6274 = vadd.f32 %v6270, %v6273
        %vm6275 = vweird.f32 %v6192
        %vm6276 = vweird.f32 %v6270
        %vm6277 = vmor %vm6275, %vm6276
        %v6278 = vsel %vm6277, %v6270, %v6274
        %v6279 = vand.u32 2147483647, %v6192
        %vm6280 = vcmp.eq.f32.partialorder %v6279, 8.507059e+37
        %v6281 = vand.u32 %v6192, 2147483648
        %v6282 = vor.u32 1.1754944e-38, %v6281
        %v6283 = vsel %vm6280, %v6282, %v6278
        %v6284 = vmul.f32 1.0, %v6283
        %v6285 = vrcp.pop %v6193
        %v6286 = vmul.f32 %v6193, %v6285
        %v6287 = vsub.f32 1.0, %v6286
        %v6288 = vmul.f32 %v6285, %v6287
        %v6289 = vadd.f32 %v6285, %v6288
        %vm6290 = vweird.f32 %v6193
        %vm6291 = vweird.f32 %v6285
        %vm6292 = vmor %vm6290, %vm6291
        %v6293 = vsel %vm6292, %v6285, %v6289
        %v6294 = vand.u32 2147483647, %v6193
        %vm6295 = vcmp.eq.f32.partialorder %v6294, 8.507059e+37
        %v6296 = vand.u32 %v6193, 2147483648
        %v6297 = vor.u32 1.1754944e-38, %v6296
        %v6298 = vsel %vm6295, %v6297, %v6293
        %v6299 = vmul.f32 1.0, %v6298
        %v6300 = vrcp.pop %v6194
        %v6301 = vmul.f32 %v6194, %v6300
        %v6302 = vsub.f32 1.0, %v6301
        %v6303 = vmul.f32 %v6300, %v6302
        %v6304 = vadd.f32 %v6300, %v6303
        %vm6305 = vweird.f32 %v6194
        %vm6306 = vweird.f32 %v6300
        %vm6307 = vmor %vm6305, %vm6306
        %v6308 = vsel %vm6307, %v6300, %v6304
        %v6309 = vand.u32 2147483647, %v6194
        %vm6310 = vcmp.eq.f32.partialorder %v6309, 8.507059e+37
        %v6311 = vand.u32 %v6194, 2147483648
        %v6312 = vor.u32 1.1754944e-38, %v6311
        %v6313 = vsel %vm6310, %v6312, %v6308
        %v6314 = vmul.f32 1.0, %v6313
        %v6315 = vrot.slane %v5979, 2
        %v6316 = vrot.slane %v5980, 2
        %v6317 = vrot.slane %v5981, 2
        %v6318 = vrot.slane %v5982, 2
        %v6319 = vrot.slane %v5983, 2
        %v6320 = vrot.slane %v5984, 2
        %v6321 = vrot.slane %v5985, 2
        %v6322 = vrot.slane %v5986, 2
        %v6331 = vtanh.pop %v6315
        %v6332 = vtanh.pop %v6316
        %v6333 = vtanh.pop %v6317
        %v6334 = vtanh.pop %v6318
        %v6335 = vtanh.pop %v6319
        %v6336 = vtanh.pop %v6320
        %v6337 = vtanh.pop %v6321
        %v6338 = vtanh.pop %v6322
        %v6339 = vrot.slane %v5979, 3
        %v6340 = vrot.slane %v5980, 3
        %v6341 = vrot.slane %v5981, 3
        %v6342 = vrot.slane %v5982, 3
        %v6343 = vrot.slane %v5983, 3
        %v6344 = vrot.slane %v5984, 3
        %v6345 = vrot.slane %v5985, 3
        %v6346 = vrot.slane %v5986, 3
        %v6355 = vxor.u32 %v6339, 2147483648
        %v6356 = vxor.u32 %v6340, 2147483648
        %v6357 = vxor.u32 %v6341, 2147483648
        %v6358 = vxor.u32 %v6342, 2147483648
        %v6359 = vxor.u32 %v6343, 2147483648
        %v6360 = vxor.u32 %v6344, 2147483648
        %v6361 = vxor.u32 %v6345, 2147483648
        %v6362 = vxor.u32 %v6346, 2147483648
        %v6363 = vmul.f32 %v6355, 1.442695
        %v6364 = vpow.pop %v6363
        %v6365 = vmul.f32 %v6356, 1.442695
        %v6366 = vpow.pop %v6365
        %v6367 = vmul.f32 %v6357, 1.442695
        %v6368 = vpow.pop %v6367
        %v6369 = vmul.f32 %v6358, 1.442695
        %v6370 = vpow.pop %v6369
        %v6371 = vmul.f32 %v6359, 1.442695
        %v6372 = vpow.pop %v6371
        %v6373 = vmul.f32 %v6360, 1.442695
        %v6374 = vpow.pop %v6373
        %v6375 = vmul.f32 %v6361, 1.442695
        %v6376 = vpow.pop %v6375
        %v6377 = vmul.f32 %v6362, 1.442695
        %v6378 = vpow.pop %v6377
        %v6379 = vadd.f32 %v6364, 1.0
        %v6380 = vadd.f32 %v6366, 1.0
        %v6381 = vadd.f32 %v6368, 1.0
        %v6382 = vadd.f32 %v6370, 1.0
        %v6383 = vadd.f32 %v6372, 1.0
        %v6384 = vadd.f32 %v6374, 1.0
        %v6385 = vadd.f32 %v6376, 1.0
        %v6386 = vadd.f32 %v6378, 1.0
        %v6387 = vrcp.pop %v6379
        %v6388 = vmul.f32 %v6379, %v6387
        %v6389 = vsub.f32 1.0, %v6388
        %v6390 = vmul.f32 %v6387, %v6389
        %v6391 = vadd.f32 %v6387, %v6390
        %vm6392 = vweird.f32 %v6379
        %vm6393 = vweird.f32 %v6387
        %vm6394 = vmor %vm6392, %vm6393
        %v6395 = vsel %vm6394, %v6387, %v6391
        %v6396 = vand.u32 2147483647, %v6379
        %vm6397 = vcmp.eq.f32.partialorder %v6396, 8.507059e+37
        %v6398 = vand.u32 %v6379, 2147483648
        %v6399 = vor.u32 1.1754944e-38, %v6398
        %v6400 = vsel %vm6397, %v6399, %v6395
        %v6401 = vmul.f32 1.0, %v6400
        %v6402 = vrcp.pop %v6380
        %v6403 = vmul.f32 %v6380, %v6402
        %v6404 = vsub.f32 1.0, %v6403
        %v6405 = vmul.f32 %v6402, %v6404
        %v6406 = vadd.f32 %v6402, %v6405
        %vm6407 = vweird.f32 %v6380
        %vm6408 = vweird.f32 %v6402
        %vm6409 = vmor %vm6407, %vm6408
        %v6410 = vsel %vm6409, %v6402, %v6406
        %v6411 = vand.u32 2147483647, %v6380
        %vm6412 = vcmp.eq.f32.partialorder %v6411, 8.507059e+37
        %v6413 = vand.u32 %v6380, 2147483648
        %v6414 = vor.u32 1.1754944e-38, %v6413
        %v6415 = vsel %vm6412, %v6414, %v6410
        %v6416 = vmul.f32 1.0, %v6415
        %v6417 = vrcp.pop %v6381
        %v6418 = vmul.f32 %v6381, %v6417
        %v6419 = vsub.f32 1.0, %v6418
        %v6420 = vmul.f32 %v6417, %v6419
        %v6421 = vadd.f32 %v6417, %v6420
        %vm6422 = vweird.f32 %v6381
        %vm6423 = vweird.f32 %v6417
        %vm6424 = vmor %vm6422, %vm6423
        %v6425 = vsel %vm6424, %v6417, %v6421
        %v6426 = vand.u32 2147483647, %v6381
        %vm6427 = vcmp.eq.f32.partialorder %v6426, 8.507059e+37
        %v6428 = vand.u32 %v6381, 2147483648
        %v6429 = vor.u32 1.1754944e-38, %v6428
        %v6430 = vsel %vm6427, %v6429, %v6425
        %v6431 = vmul.f32 1.0, %v6430
        %v6432 = vrcp.pop %v6382
        %v6433 = vmul.f32 %v6382, %v6432
        %v6434 = vsub.f32 1.0, %v6433
        %v6435 = vmul.f32 %v6432, %v6434
        %v6436 = vadd.f32 %v6432, %v6435
        %vm6437 = vweird.f32 %v6382
        %vm6438 = vweird.f32 %v6432
        %vm6439 = vmor %vm6437, %vm6438
        %v6440 = vsel %vm6439, %v6432, %v6436
        %v6441 = vand.u32 2147483647, %v6382
        %vm6442 = vcmp.eq.f32.partialorder %v6441, 8.507059e+37
        %v6443 = vand.u32 %v6382, 2147483648
        %v6444 = vor.u32 1.1754944e-38, %v6443
        %v6445 = vsel %vm6442, %v6444, %v6440
        %v6446 = vmul.f32 1.0, %v6445
        %v6447 = vrcp.pop %v6383
        %v6448 = vmul.f32 %v6383, %v6447
        %v6449 = vsub.f32 1.0, %v6448
        %v6450 = vmul.f32 %v6447, %v6449
        %v6451 = vadd.f32 %v6447, %v6450
        %vm6452 = vweird.f32 %v6383
        %vm6453 = vweird.f32 %v6447
        %vm6454 = vmor %vm6452, %vm6453
        %v6455 = vsel %vm6454, %v6447, %v6451
        %v6456 = vand.u32 2147483647, %v6383
        %vm6457 = vcmp.eq.f32.partialorder %v6456, 8.507059e+37
        %v6458 = vand.u32 %v6383, 2147483648
        %v6459 = vor.u32 1.1754944e-38, %v6458
        %v6460 = vsel %vm6457, %v6459, %v6455
        %v6461 = vmul.f32 1.0, %v6460
        %v6462 = vrcp.pop %v6384
        %v6463 = vmul.f32 %v6384, %v6462
        %v6464 = vsub.f32 1.0, %v6463
        %v6465 = vmul.f32 %v6462, %v6464
        %v6466 = vadd.f32 %v6462, %v6465
        %vm6467 = vweird.f32 %v6384
        %vm6468 = vweird.f32 %v6462
        %vm6469 = vmor %vm6467, %vm6468
        %v6470 = vsel %vm6469, %v6462, %v6466
        %v6471 = vand.u32 2147483647, %v6384
        %vm6472 = vcmp.eq.f32.partialorder %v6471, 8.507059e+37
        %v6473 = vand.u32 %v6384, 2147483648
        %v6474 = vor.u32 1.1754944e-38, %v6473
        %v6475 = vsel %vm6472, %v6474, %v6470
        %v6476 = vmul.f32 1.0, %v6475
        %v6477 = vrcp.pop %v6385
        %v6478 = vmul.f32 %v6385, %v6477
        %v6479 = vsub.f32 1.0, %v6478
        %v6480 = vmul.f32 %v6477, %v6479
        %v6481 = vadd.f32 %v6477, %v6480
        %vm6482 = vweird.f32 %v6385
        %vm6483 = vweird.f32 %v6477
        %vm6484 = vmor %vm6482, %vm6483
        %v6485 = vsel %vm6484, %v6477, %v6481
        %v6486 = vand.u32 2147483647, %v6385
        %vm6487 = vcmp.eq.f32.partialorder %v6486, 8.507059e+37
        %v6488 = vand.u32 %v6385, 2147483648
        %v6489 = vor.u32 1.1754944e-38, %v6488
        %v6490 = vsel %vm6487, %v6489, %v6485
        %v6491 = vmul.f32 1.0, %v6490
        %v6492 = vrcp.pop %v6386
        %v6493 = vmul.f32 %v6386, %v6492
        %v6494 = vsub.f32 1.0, %v6493
        %v6495 = vmul.f32 %v6492, %v6494
        %v6496 = vadd.f32 %v6492, %v6495
        %vm6497 = vweird.f32 %v6386
        %vm6498 = vweird.f32 %v6492
        %vm6499 = vmor %vm6497, %vm6498
        %v6500 = vsel %vm6499, %v6492, %v6496
        %v6501 = vand.u32 2147483647, %v6386
        %vm6502 = vcmp.eq.f32.partialorder %v6501, 8.507059e+37
        %v6503 = vand.u32 %v6386, 2147483648
        %v6504 = vor.u32 1.1754944e-38, %v6503
        %v6505 = vsel %vm6502, %v6504, %v6500
        %v6506 = vmul.f32 1.0, %v6505
        %v6508 = vrot.slane %v5836, 1
        %v6509 = vrot.slane %v5836, 2
        %v6510 = vrot.slane %v5836, 3
        %v6511 = vrot.slane %v5836, 4
        %v6512 = vrot.slane %v5836, 5
        %v6513 = vrot.slane %v5836, 6
        %v6514 = vrot.slane %v5836, 7
        %v6522 = vmul.f32 %v6209, %v5836
        %v6523 = vmul.f32 %v6224, %v6508
        %v6524 = vmul.f32 %v6239, %v6509
        %v6525 = vmul.f32 %v6254, %v6510
        %v6526 = vmul.f32 %v6269, %v6511
        %v6527 = vmul.f32 %v6284, %v6512
        %v6528 = vmul.f32 %v6299, %v6513
        %v6529 = vmul.f32 %v6314, %v6514
        %v6530 = vmul.f32 %v6033, %v6331
        %v6531 = vmul.f32 %v6048, %v6332
        %v6532 = vmul.f32 %v6063, %v6333
        %v6533 = vmul.f32 %v6078, %v6334
        %v6534 = vmul.f32 %v6093, %v6335
        %v6535 = vmul.f32 %v6108, %v6336
        %v6536 = vmul.f32 %v6123, %v6337
        %v6537 = vmul.f32 %v6138, %v6338
        %v6538 = vadd.f32 %v6522, %v6530
        %v6539 = vadd.f32 %v6523, %v6531
        %v6540 = vadd.f32 %v6524, %v6532
        %v6541 = vadd.f32 %v6525, %v6533
        %v6542 = vadd.f32 %v6526, %v6534
        %v6543 = vadd.f32 %v6527, %v6535
        %v6544 = vadd.f32 %v6528, %v6536
        %v6545 = vadd.f32 %v6529, %v6537
        %v6546 = vtanh.pop %v6538
        %v6547 = vtanh.pop %v6539
        %v6548 = vtanh.pop %v6540
        %v6549 = vtanh.pop %v6541
        %v6550 = vtanh.pop %v6542
        %v6551 = vtanh.pop %v6543
        %v6552 = vtanh.pop %v6544
        %v6553 = vtanh.pop %v6545
        %v6554 = vmul.f32 %v6401, %v6546
        %v6555 = vmul.f32 %v6416, %v6547
        %v6556 = vmul.f32 %v6431, %v6548
        %v6557 = vmul.f32 %v6446, %v6549
        %v6558 = vmul.f32 %v6461, %v6550
        %v6559 = vmul.f32 %v6476, %v6551
        %v6560 = vmul.f32 %v6491, %v6552
        %v6561 = vmul.f32 %v6506, %v6553
        %6570 = vst [vmem:[#allocation1] ss:$9 sm:$0xff] %v6538
        %s6571 = scalar_lea.vmem [#allocation1], 1
        %6572 = vst [vmem:[%s6571] ss:$9 sm:$0xff] %v6539
        %s6573 = scalar_lea.vmem [#allocation1], 2
        %6574 = vst [vmem:[%s6573] ss:$9 sm:$0xff] %v6540
        %s6575 = scalar_lea.vmem [#allocation1], 3
        %6576 = vst [vmem:[%s6575] ss:$9 sm:$0xff] %v6541
        %s6577 = scalar_lea.vmem [#allocation1], 4
        %6578 = vst [vmem:[%s6577] ss:$9 sm:$0xff] %v6542
        %s6579 = scalar_lea.vmem [#allocation1], 5
        %6580 = vst [vmem:[%s6579] ss:$9 sm:$0xff] %v6543
        %s6581 = scalar_lea.vmem [#allocation1], 6
        %6582 = vst [vmem:[%s6581] ss:$9 sm:$0xff] %v6544
        %s6583 = scalar_lea.vmem [#allocation1], 7
        %6584 = vst [vmem:[%s6583] ss:$9 sm:$0xff] %v6545
        %v6585 = vld [vmem:[#allocation1] sm:$0xff]
        %6587 = vst [vmem:[#allocation3] sm:$0xff] %v6585
        %6596 = vst [vmem:[#allocation1] ss:$9 sm:$0xff] %v6554
        %s6597 = scalar_lea.vmem [#allocation1], 1
        %6598 = vst [vmem:[%s6597] ss:$9 sm:$0xff] %v6555
        %s6599 = scalar_lea.vmem [#allocation1], 2
        %6600 = vst [vmem:[%s6599] ss:$9 sm:$0xff] %v6556
        %s6601 = scalar_lea.vmem [#allocation1], 3
        %6602 = vst [vmem:[%s6601] ss:$9 sm:$0xff] %v6557
        %s6603 = scalar_lea.vmem [#allocation1], 4
        %6604 = vst [vmem:[%s6603] ss:$9 sm:$0xff] %v6558
        %s6605 = scalar_lea.vmem [#allocation1], 5
        %6606 = vst [vmem:[%s6605] ss:$9 sm:$0xff] %v6559
        %s6607 = scalar_lea.vmem [#allocation1], 6
        %6608 = vst [vmem:[%s6607] ss:$9 sm:$0xff] %v6560
        %s6609 = scalar_lea.vmem [#allocation1], 7
        %6610 = vst [vmem:[%s6609] ss:$9 sm:$0xff] %v6561
        %v6611 = vld [vmem:[#allocation1] sm:$0xff]
        %6613 = vst [vmem:[#allocation2] sm:$0xff] %v6611
        %6614 = vst [vmem:[%s238 + $0x7] sm:$0x1] %v6554
        %6615 = vst [vmem:[%s238 + $0xf] sm:$0x1] %v6555
        %6616 = vst [vmem:[%s238 + $0x17] sm:$0x1] %v6556
        %6617 = vst [vmem:[%s238 + $0x1f] sm:$0x1] %v6557
        %6618 = vst [vmem:[%s238 + $0x27] sm:$0x1] %v6558
        %6619 = vst [vmem:[%s238 + $0x2f] sm:$0x1] %v6559
        %6620 = vst [vmem:[%s238 + $0x37] sm:$0x1] %v6560
        %6621 = vst [vmem:[%s238 + $0x3f] sm:$0x1] %v6561
        %s6622 = sand.u32 %s84, 1
        %s6623 = sand.u32 %s84, 1
        %s6624 = smul.addr %s6623, 64
        %s6625 = scalar_lea.vmem [#allocation5], %s6624
        // Predicated region
        $region56: #{decoder_rnn_forward.4} parent=46 // pred_check
          %p6626 = pneg %p94
        $region57: #{decoder_rnn_forward.4} parent=46 // pred_check_branch
          %6628 = sbr.rel (%p6626) target = $region59
        $region58: #{decoder_rnn_forward.4} parent=46 // pred_region
          %s6629 = smul.u32 8, %s17
          %s6630 = smul.addr %s6629, 2
          %s6631 = sadd.s32 %s18, %s6630
          %s6632 = smul.addr %s6631, 8
          %s6633 = scalar_lea.vmem %s2, %s6632
          // Predicated region
          $region60: #{decoder_rnn_forward.4} parent=58 // pred_check
            _
          $region61: #{decoder_rnn_forward.4} parent=58 // pred_check_branch
            %6635 = sbr.rel (0) target = $region63
          $region62: #{decoder_rnn_forward.4} parent=58 // pred_region
            // Predicated region
            $region64: #{decoder_rnn_forward.4} parent=62 // pred_check
              _
            $region65: #{decoder_rnn_forward.4} parent=62 // pred_check_branch
              %6637 = sbr.rel (0) target = $region67
            $region66: #{decoder_rnn_forward.4} parent=62 // pred_region
              // Predicated region
              $region79: #{decoder_rnn_forward.4} parent=66 // pred_check
                _
              $region80: #{decoder_rnn_forward.4} parent=66 // pred_check_branch
                %6667 = sbr.rel (0) target = $region82
              $region81: #{decoder_rnn_forward.4} parent=66 // pred_region
                loop: start=0, step=1, limit=1
                $region83: #{decoder_rnn_forward.4} parent=81 // loop_pre_header
                  _
                $region84: #{decoder_rnn_forward.4} parent=81 // loop_header
                  %s6669 = sphi 0, %s6673
                  %p6670 = scmp.ge.s32.totalorder %s6669, 1
                  %s6674 = sphi %s6625, %s6625
                  %s6675 = sphi %s6633, %s6633
                $region85: #{decoder_rnn_forward.4} parent=81 // loop_header_branch
                  %6672 = sbr.rel (%p6670) target = $region89
                $region86: #{decoder_rnn_forward.4} parent=81 // loop_body
                  %v6676 = vld [vmem:[%s6674] sm:$0xff]
                  %6677 = vst [vmem:[%s6675] sm:$0xff] %v6676
                  %v6678 = vld [vmem:[%s6674 + $0x8] sm:$0xff]
                  %6679 = vst [vmem:[%s6675 + $0x10] sm:$0xff] %v6678
                  %v6680 = vld [vmem:[%s6674 + $0x10] sm:$0xff]
                  %6681 = vst [vmem:[%s6675 + $0x20] sm:$0xff] %v6680
                  %v6682 = vld [vmem:[%s6674 + $0x18] sm:$0xff]
                  %6683 = vst [vmem:[%s6675 + $0x30] sm:$0xff] %v6682
                  %v6684 = vld [vmem:[%s6674 + $0x20] sm:$0xff]
                  %6685 = vst [vmem:[%s6675 + $0x40] sm:$0xff] %v6684
                  %v6686 = vld [vmem:[%s6674 + $0x28] sm:$0xff]
                  %6687 = vst [vmem:[%s6675 + $0x50] sm:$0xff] %v6686
                  %v6688 = vld [vmem:[%s6674 + $0x30] sm:$0xff]
                  %6689 = vst [vmem:[%s6675 + $0x60] sm:$0xff] %v6688
                  %v6690 = vld [vmem:[%s6674 + $0x38] sm:$0xff]
                  %6691 = vst [vmem:[%s6675 + $0x70] sm:$0xff] %v6690
                $region87: #{decoder_rnn_forward.4} parent=81 // loop_footer
                  %s6673 = sadd.s32 1, %s6669
                $region88: #{decoder_rnn_forward.4} parent=81 // loop_footer_branch
                  %6668 = sbr.rel target = $region84
                $region89: #{decoder_rnn_forward.4} parent=81 // loop_exit
                  _
              $region82: #{decoder_rnn_forward.4} parent=66 // pred_fallthru
                _
              // Predicated region
              $region90: #{decoder_rnn_forward.4} parent=66 // pred_check
                _
              $region91: #{decoder_rnn_forward.4} parent=66 // pred_check_branch
                %6693 = sbr.rel target = $region93
              $region92: #{decoder_rnn_forward.4} parent=66 // pred_region
                _
              $region93: #{decoder_rnn_forward.4} parent=66 // pred_fallthru
                _
            $region67: #{decoder_rnn_forward.4} parent=62 // pred_fallthru
              _
            // Predicated region
            $region68: #{decoder_rnn_forward.4} parent=62 // pred_check
              _
            $region69: #{decoder_rnn_forward.4} parent=62 // pred_check_branch
              %6639 = sbr.rel target = $region71
            $region70: #{decoder_rnn_forward.4} parent=62 // pred_region
              %s6641 = ssub.s32 256, 1
              loop: start=0, step=1, limit=1
              $region72: #{decoder_rnn_forward.4} parent=70 // loop_pre_header
                _
              $region73: #{decoder_rnn_forward.4} parent=70 // loop_header
                %s6643 = sphi 0, %s6647
                %p6644 = scmp.ge.s32.totalorder %s6643, 1
                %s6648 = sphi %s6625, %s6625
                %s6649 = sphi %s6633, %s6633
              $region74: #{decoder_rnn_forward.4} parent=70 // loop_header_branch
                %6646 = sbr.rel (%p6644) target = $region78
              $region75: #{decoder_rnn_forward.4} parent=70 // loop_body
                %v6650 = vld [vmem:[%s6648] sm:%s6641]
                %6651 = vst [vmem:[%s6649] sm:%s6641] %v6650
                %v6652 = vld [vmem:[%s6648 + $0x8] sm:%s6641]
                %6653 = vst [vmem:[%s6649 + $0x10] sm:%s6641] %v6652
                %v6654 = vld [vmem:[%s6648 + $0x10] sm:%s6641]
                %6655 = vst [vmem:[%s6649 + $0x20] sm:%s6641] %v6654
                %v6656 = vld [vmem:[%s6648 + $0x18] sm:%s6641]
                %6657 = vst [vmem:[%s6649 + $0x30] sm:%s6641] %v6656
                %v6658 = vld [vmem:[%s6648 + $0x20] sm:%s6641]
                %6659 = vst [vmem:[%s6649 + $0x40] sm:%s6641] %v6658
                %v6660 = vld [vmem:[%s6648 + $0x28] sm:%s6641]
                %6661 = vst [vmem:[%s6649 + $0x50] sm:%s6641] %v6660
                %v6662 = vld [vmem:[%s6648 + $0x30] sm:%s6641]
                %6663 = vst [vmem:[%s6649 + $0x60] sm:%s6641] %v6662
                %v6664 = vld [vmem:[%s6648 + $0x38] sm:%s6641]
                %6665 = vst [vmem:[%s6649 + $0x70] sm:%s6641] %v6664
              $region76: #{decoder_rnn_forward.4} parent=70 // loop_footer
                %s6647 = sadd.s32 1, %s6643
              $region77: #{decoder_rnn_forward.4} parent=70 // loop_footer_branch
                %6642 = sbr.rel target = $region73
              $region78: #{decoder_rnn_forward.4} parent=70 // loop_exit
                _
            $region71: #{decoder_rnn_forward.4} parent=62 // pred_fallthru
              _
          $region63: #{decoder_rnn_forward.4} parent=58 // pred_fallthru
            _
          %6694 = vnop
        $region59: #{decoder_rnn_forward.4} parent=46 // pred_fallthru
          _
      $region47: #{decoder_rnn_forward.4} parent=5 // pred_fallthru
        _
      %p6695 = scmp.le.s32.totalorder 2, %s8
      // Predicated region
      $region94: #{decoder_rnn_forward.4} parent=5 // pred_check
        %p6696 = pneg %p6695
      $region95: #{decoder_rnn_forward.4} parent=5 // pred_check_branch
        %6698 = sbr.rel (%p6696) target = $region97
      $region96: #{decoder_rnn_forward.4} parent=5 // pred_region
        %s6699 = ssub.s32 %s8, 2
        // Predicated region
        $region98: #{decoder_rnn_forward.4} parent=96 // pred_check
          %p6700 = pneg %p100
        $region99: #{decoder_rnn_forward.4} parent=96 // pred_check_branch
          %6702 = sbr.rel (%p6700) target = $region101
        $region100: #{decoder_rnn_forward.4} parent=96 // pred_region
          %s6703 = sand.u32 %s85, 1
          %s6704 = sand.u32 %s85, 1
          %s6705 = smul.addr %s6704, 64
          %s6706 = scalar_lea.vmem [#allocation5], %s6705
        $region101: #{decoder_rnn_forward.4} parent=96 // pred_fallthru
          _
      $region97: #{decoder_rnn_forward.4} parent=5 // pred_fallthru
        _
    $region6: #{decoder_rnn_forward.4} parent=1 // loop_footer
      %s12 = sadd.s32 1, %s8
    $region7: #{decoder_rnn_forward.4} parent=1 // loop_footer_branch
      %7 = sbr.rel target = $region3
    $region8: #{decoder_rnn_forward.4} parent=1 // loop_exit
      _

</llo_original>
